<compile_context>
chip_gen: v7x
topology: tpu7x:2x2x1
jax: 0.10.0
libtpu: 0.0.40
codegen_flags: <defaults>
</compile_context>

<pallas_src>
import functools

import numpy as np
import jax
import jax.numpy as jnp
from jax.experimental import pallas as pl
from jax.experimental.pallas import tpu as pltpu

_EPS = 1e-5
_PAD_OFF = 8  # sublane-aligned interior row offset inside the padded scratch


def _bn_relu_dense(a, g_t, b_t, G, inv_count):
  """Training-mode BatchNorm2d + ReLU on a lane-dense (N*H, W*C) activation.

  G[l, m] = 1 iff l % C == m % C, so `a @ G` sums each row's W copies of every
  channel and broadcasts the result back to the tiled lane layout; summing over
  rows then gives the per-channel batch statistics (already lane-tiled).
  One-pass stats: var = E[x^2] - mean^2 (biased, like PyTorch training mode).
  """
  gsum = jnp.dot(a, G, preferred_element_type=jnp.float32)
  gsq = jnp.dot(a * a, G, preferred_element_type=jnp.float32)
  mean = jnp.sum(gsum, axis=0, keepdims=True) * inv_count      # (1, W*C) tiled
  ex2 = jnp.sum(gsq, axis=0, keepdims=True) * inv_count
  var = jnp.maximum(ex2 - mean * mean, 0.0)
  y = (a - mean) * jax.lax.rsqrt(var + _EPS) * g_t + b_t
  return jnp.maximum(y, 0.0)


def _fill_pad(pad_ref, val, n, h):
  """Write activation rows at a sublane-aligned offset; zero only the H halo."""
  wc = pad_ref.shape[2]
  zrow = jnp.zeros((n, 1, wc), jnp.float32)
  pad_ref[:, _PAD_OFF - 1:_PAD_OFF, :] = zrow
  pad_ref[:, _PAD_OFF + h:_PAD_OFF + h + 1, :] = zrow
  pad_ref[:, _PAD_OFF:_PAD_OFF + h, :] = val.reshape(n, h, wc)


def _conv3x3_dense(pad_ref, w_ref, bias, n, h):
  """3x3 'same' conv as 3 dense Toeplitz MXU matmuls (one per row offset dy)."""
  wc = pad_ref.shape[2]
  acc = bias
  for dy in range(3):
    lo = _PAD_OFF - 1 + dy
    lhs = pad_ref[:, lo:lo + h, :].reshape(n * h, wc)
    acc = acc + jnp.dot(lhs, w_ref[dy], preferred_element_type=jnp.float32)
  return acc


def _coupling_kernel(
    xc_ref, xid_ref, ldj_ref,
    g1_ref, b1_ref, Gin_ref, w1_ref,
    g2_ref, b2_ref, Gmid_ref, w2_ref,
    g3_ref, b3_ref, w3s_ref, w3t_ref, bs_ref, bt_ref, scale_ref,
    y_ref, ldj_out_ref,
    pad1_ref, pad2_ref,
    *, cin, reverse):
  nh, wcin = xc_ref.shape
  n = ldj_ref.shape[0]
  h = nh // n
  w = wcin // cin
  inv_count = 1.0 / float(n * h * w)

  # in_norm -> relu -> in_conv (3x3, padding=1, no bias)
  a1 = _bn_relu_dense(xid_ref[...], g1_ref[...], b1_ref[...], Gin_ref[...],
                      inv_count)
  _fill_pad(pad1_ref, a1, n, h)
  h1 = _conv3x3_dense(pad1_ref, w1_ref, 0.0, n, h)             # (NH, W*Cmid)

  # mid_norm -> relu -> mid_conv (1x1, no bias): block-diagonal matmul
  a2 = _bn_relu_dense(h1, g2_ref[...], b2_ref[...], Gmid_ref[...], inv_count)
  h2 = jnp.dot(a2, w2_ref[...], preferred_element_type=jnp.float32)

  # out_norm -> relu -> out_conv (3x3, padding=1, bias), split s / t groups
  a3 = _bn_relu_dense(h2, g3_ref[...], b3_ref[...], Gmid_ref[...], inv_count)
  _fill_pad(pad2_ref, a3, n, h)
  s_raw = _conv3x3_dense(pad2_ref, w3s_ref, bs_ref[...], n, h)  # (NH, W*Cin)
  t = _conv3x3_dense(pad2_ref, w3t_ref, bt_ref[...], n, h)

  # Affine coupling epilogue (fully lane-dense).
  s = scale_ref[...] * jnp.tanh(s_raw)
  xc = xc_ref[...]
  if reverse:
    yc = xc * jnp.exp(-s) - t
    sgn = -1.0
  else:
    yc = (xc + t) * jnp.exp(s)
    sgn = 1.0
  y_ref[...] = yc

  # ldj +/- per-example sum of s.
  s3 = s.reshape(n, h, wcin)
  per_ex = jnp.sum(jnp.sum(s3, axis=2), axis=1, keepdims=True)  # (N, 1)
  ldj_out_ref[...] = ldj_ref[...] + sgn * per_ex


def fold_params(params, W):
  """One-time folding of the module parameters into lane-dense kernel operands.

  * 3x3 convs -> per-dy Toeplitz matrices over the W*C lane axis (W "same"
    zero-padding folded into the weights).
  * 1x1 conv -> (W*Cmid, W*Cmid) block-diagonal matrix.
  * out_conv split into "s" (even) / "t" (odd) channel groups.
  * BN gamma/beta, out bias and scale pre-tiled to the (1, W*C) lane layout.
  * G matrices implement the per-channel grouped reduction for BN statistics.
  """
  w_in = np.asarray(params["w_in_oihw"], np.float32)      # (Cmid, Cin, 3, 3)
  w_mid = np.asarray(params["w_mid_oihw"], np.float32)    # (Cmid, Cmid, 1, 1)
  w_out = np.asarray(params["w_out_oihw"], np.float32)    # (2Cin, Cmid, 3, 3)
  b_out = np.asarray(params["b_out"], np.float32)
  scale = np.asarray(params["scale"], np.float32).reshape(-1)
  cmid, cin = w_in.shape[0], w_in.shape[1]

  def toeplitz(w_oihw, ci, co):
    tw = np.zeros((3, W * ci, W * co), np.float32)
    for dy in range(3):
      for dx in range(3):
        blk = w_oihw[:, :, dy, dx].T                       # (ci, co)
        for wo in range(W):
          wi = wo + dx - 1
          if 0 <= wi < W:
            tw[dy, wi * ci:(wi + 1) * ci, wo * co:(wo + 1) * co] = blk
    return tw

  def tile_row(v, c):
    return np.tile(np.asarray(v, np.float32).reshape(-1), W).reshape(1, W * c)

  folded = {
      "w1": toeplitz(w_in, cin, cmid),                     # (3, W*Cin, W*Cmid)
      "w2": np.kron(np.eye(W, dtype=np.float32), w_mid[:, :, 0, 0].T),
      "w3s": toeplitz(w_out[0::2], cmid, cin),             # (3, W*Cmid, W*Cin)
      "w3t": toeplitz(w_out[1::2], cmid, cin),
      "bs": tile_row(b_out[0::2], cin),
      "bt": tile_row(b_out[1::2], cin),
      "scale_t": tile_row(scale, cin),
      "Gin": np.tile(np.eye(cin, dtype=np.float32), (W, W)),
      "Gmid": np.tile(np.eye(cmid, dtype=np.float32), (W, W)),
      "g1": tile_row(params["bn1_gamma"], cin),
      "b1": tile_row(params["bn1_beta"], cin),
      "g2": tile_row(params["bn2_gamma"], cmid),
      "b2": tile_row(params["bn2_beta"], cmid),
      "g3": tile_row(params["bn3_gamma"], cmid),
      "b3": tile_row(params["bn3_beta"], cmid),
  }
  return {k: jnp.asarray(v, jnp.float32) for k, v in folded.items()}


def coupling_forward(x_nchw, ldj, folded, reverse=False):
  N, C2, H, W = x_nchw.shape
  Cin = C2 // 2
  WCin = W * Cin
  WCmid = folded["g2"].shape[1]

  x_nhwc = jnp.transpose(x_nchw, (0, 2, 3, 1)).astype(jnp.float32)
  xc = x_nhwc[..., :Cin].reshape(N * H, WCin)
  xid = x_nhwc[..., Cin:].reshape(N * H, WCin)
  ldj2 = ldj.reshape(N, 1).astype(jnp.float32)

  inputs = (
      xc, xid, ldj2,
      folded["g1"], folded["b1"], folded["Gin"], folded["w1"],
      folded["g2"], folded["b2"], folded["Gmid"], folded["w2"],
      folded["g3"], folded["b3"], folded["w3s"], folded["w3t"],
      folded["bs"], folded["bt"], folded["scale_t"],
  )

  def full_spec(a):
    nd = a.ndim
    return pl.BlockSpec(a.shape, lambda i, _nd=nd: (0,) * _nd)

  # NOTE: grid=(1,) because training-mode BN statistics couple the whole batch;
  # scaling to large N/H would need a two-pass stats scheme + batch tiling.
  grid_spec = pltpu.PrefetchScalarGridSpec(
      num_scalar_prefetch=0,
      grid=(1,),
      in_specs=[full_spec(a) for a in inputs],
      out_specs=[
          pl.BlockSpec((N * H, WCin), lambda i: (0, 0)),
          pl.BlockSpec((N, 1), lambda i: (0, 0)),
      ],
      scratch_shapes=[
          pltpu.VMEM((N, H + _PAD_OFF + 1, WCin), jnp.float32),   # in_conv halo
          pltpu.VMEM((N, H + _PAD_OFF + 1, WCmid), jnp.float32),  # out_conv halo
      ],
  )

  yc_dense, ldj_out = pl.pallas_call(
      functools.partial(_coupling_kernel, cin=Cin, reverse=reverse),
      out_shape=(
          jax.ShapeDtypeStruct((N * H, WCin), jnp.float32),
          jax.ShapeDtypeStruct((N, 1), jnp.float32),
      ),
      grid_spec=grid_spec,
      compiler_params=pltpu.CompilerParams(
          dimension_semantics=("arbitrary",),
          vmem_limit_bytes=48 * 1024 * 1024,
      ),
  )(*inputs)

  yc_nchw = jnp.transpose(yc_dense.reshape(N, H, W, Cin), (0, 3, 1, 2))
  y = jnp.concatenate([yc_nchw, x_nchw[:, Cin:].astype(jnp.float32)], axis=1)
  return y, ldj_out.reshape(N)


def coupling_reference(x, ldj, params, reverse=False):
  """Pure-JAX NCHW reference matching the PyTorch module (training-mode BN)."""
  Cin = x.shape[1] // 2
  x_change, x_id = x[:, :Cin], x[:, Cin:]

  def bn_relu(a, g, b):
    mean = jnp.mean(a, axis=(0, 2, 3), keepdims=True)
    var = jnp.mean((a - mean) ** 2, axis=(0, 2, 3), keepdims=True)
    y = (a - mean) / jnp.sqrt(var + _EPS)
    y = y * g.reshape(1, -1, 1, 1) + b.reshape(1, -1, 1, 1)
    return jnp.maximum(y, 0.0)

  def conv(a, w, pad):
    return jax.lax.conv_general_dilated(
        a, w, (1, 1), [(pad, pad), (pad, pad)],
        dimension_numbers=("NCHW", "OIHW", "NCHW"))

  h = bn_relu(x_id, params["bn1_gamma"], params["bn1_beta"])
  h = conv(h, params["w_in_oihw"], 1)
  h = bn_relu(h, params["bn2_gamma"], params["bn2_beta"])
  h = conv(h, params["w_mid_oihw"], 0)
  h = bn_relu(h, params["bn3_gamma"], params["bn3_beta"])
  st = conv(h, params["w_out_oihw"], 1) + params["b_out"].reshape(1, -1, 1, 1)

  s, t = st[:, 0::2], st[:, 1::2]
  s = params["scale"].reshape(1, Cin, 1, 1) * jnp.tanh(s)
  if reverse:
    x_change = x_change * jnp.exp(-s) - t
    ldj = ldj - s.reshape(s.shape[0], -1).sum(-1)
  else:
    x_change = (x_change + t) * jnp.exp(s)
    ldj = ldj + s.reshape(s.shape[0], -1).sum(-1)
  return jnp.concatenate([x_change, x_id], axis=1), ldj


if __name__ == "__main__":
  # Coupling(in_channels=Cin, mid_channels=Cmid) => forward input has 2*Cin channels.
  N, Cin, Cmid, H, W = 2, 4, 32, 16, 16
  key = jax.random.PRNGKey(0)
  k = jax.random.split(key, 7)

  params = {
      "w_in_oihw": 0.05 * jax.random.normal(k[0], (Cmid, Cin, 3, 3), jnp.float32),
      "w_mid_oihw": 0.05 * jax.random.normal(k[1], (Cmid, Cmid, 1, 1), jnp.float32),
      # PyTorch zero-inits out_conv (identity coupling); use small non-zero
      # values so the full path is exercised.
      "w_out_oihw": 0.05 * jax.random.normal(k[2], (2 * Cin, Cmid, 3, 3), jnp.float32),
      "b_out": 0.05 * jax.random.normal(k[3], (2 * Cin,), jnp.float32),
      "scale": 1.0 + 0.1 * jax.random.normal(k[4], (Cin,), jnp.float32),
      "bn1_gamma": jnp.ones((Cin,), jnp.float32),
      "bn1_beta": jnp.zeros((Cin,), jnp.float32),
      "bn2_gamma": jnp.ones((Cmid,), jnp.float32),
      "bn2_beta": jnp.zeros((Cmid,), jnp.float32),
      "bn3_gamma": jnp.ones((Cmid,), jnp.float32),
      "bn3_beta": jnp.zeros((Cmid,), jnp.float32),
  }

  # One-time weight folding (kept outside the jitted per-call wrapper).
  folded = fold_params(params, W)

  x = jax.random.normal(k[5], (N, 2 * Cin, H, W), jnp.float32)
  ldj = jax.random.normal(k[6], (N,), jnp.float32)

  fwd = jax.jit(coupling_forward, static_argnames=("reverse",))
  y, ldj_out = fwd(x, ldj, folded, reverse=False)
  y, ldj_out = jax.block_until_ready((y, ldj_out))

  y_ref, ldj_ref = coupling_reference(x, ldj, params, reverse=False)
  assert y.shape == (N, 2 * Cin, H, W) and ldj_out.shape == (N,)
  assert jnp.allclose(y, y_ref, rtol=1e-4, atol=1e-4), "x mismatch vs reference"
  assert jnp.allclose(ldj_out, ldj_ref, rtol=1e-4, atol=1e-4), "ldj mismatch vs reference"
  print("KERNEL_OK")
</pallas_src>

<mosaic_0001>
module attributes {stable_mosaic.version = 11 : i64} {
  func.func @_coupling_kernel(%arg0: i32, %arg1: memref<32x64xf32, #tpu.memory_space<vmem>>, %arg2: memref<32x64xf32, #tpu.memory_space<vmem>>, %arg3: memref<2x1xf32, #tpu.memory_space<vmem>>, %arg4: memref<1x64xf32, #tpu.memory_space<vmem>>, %arg5: memref<1x64xf32, #tpu.memory_space<vmem>>, %arg6: memref<64x64xf32, #tpu.memory_space<vmem>>, %arg7: memref<3x64x512xf32, #tpu.memory_space<vmem>>, %arg8: memref<1x512xf32, #tpu.memory_space<vmem>>, %arg9: memref<1x512xf32, #tpu.memory_space<vmem>>, %arg10: memref<512x512xf32, #tpu.memory_space<vmem>>, %arg11: memref<512x512xf32, #tpu.memory_space<vmem>>, %arg12: memref<1x512xf32, #tpu.memory_space<vmem>>, %arg13: memref<1x512xf32, #tpu.memory_space<vmem>>, %arg14: memref<3x512x64xf32, #tpu.memory_space<vmem>>, %arg15: memref<3x512x64xf32, #tpu.memory_space<vmem>>, %arg16: memref<1x64xf32, #tpu.memory_space<vmem>>, %arg17: memref<1x64xf32, #tpu.memory_space<vmem>>, %arg18: memref<1x64xf32, #tpu.memory_space<vmem>>, %arg19: memref<32x64xf32, #tpu.memory_space<vmem>>, %arg20: memref<2x1xf32, #tpu.memory_space<vmem>>, %arg21: memref<2x25x64xf32, #tpu.memory_space<vmem>>, %arg22: memref<2x25x512xf32, #tpu.memory_space<vmem>>) attributes {dimension_semantics = [#tpu.dimension_semantics<arbitrary>], iteration_bounds = array<i64: 1>, scalar_prefetch = 0 : i64, scratch_operands = 2 : i64, tpu.core_type = #tpu.core_type<tc>, window_params = [{pipeline_mode = #tpu.pipeline_mode<synchronous>, transform_indices = @transform_0, window_bounds = array<i64: 32, 64>}, {pipeline_mode = #tpu.pipeline_mode<synchronous>, transform_indices = @transform_1, window_bounds = array<i64: 32, 64>}, {pipeline_mode = #tpu.pipeline_mode<synchronous>, transform_indices = @transform_2, window_bounds = array<i64: 2, 1>}, {pipeline_mode = #tpu.pipeline_mode<synchronous>, transform_indices = @transform_3, window_bounds = array<i64: 1, 64>}, {pipeline_mode = #tpu.pipeline_mode<synchronous>, transform_indices = @transform_4, window_bounds = array<i64: 1, 64>}, {pipeline_mode = #tpu.pipeline_mode<synchronous>, transform_indices = @transform_5, window_bounds = array<i64: 64, 64>}, {pipeline_mode = #tpu.pipeline_mode<synchronous>, transform_indices = @transform_6, window_bounds = array<i64: 3, 64, 512>}, {pipeline_mode = #tpu.pipeline_mode<synchronous>, transform_indices = @transform_7, window_bounds = array<i64: 1, 512>}, {pipeline_mode = #tpu.pipeline_mode<synchronous>, transform_indices = @transform_8, window_bounds = array<i64: 1, 512>}, {pipeline_mode = #tpu.pipeline_mode<synchronous>, transform_indices = @transform_9, window_bounds = array<i64: 512, 512>}, {pipeline_mode = #tpu.pipeline_mode<synchronous>, transform_indices = @transform_10, window_bounds = array<i64: 512, 512>}, {pipeline_mode = #tpu.pipeline_mode<synchronous>, transform_indices = @transform_11, window_bounds = array<i64: 1, 512>}, {pipeline_mode = #tpu.pipeline_mode<synchronous>, transform_indices = @transform_12, window_bounds = array<i64: 1, 512>}, {pipeline_mode = #tpu.pipeline_mode<synchronous>, transform_indices = @transform_13, window_bounds = array<i64: 3, 512, 64>}, {pipeline_mode = #tpu.pipeline_mode<synchronous>, transform_indices = @transform_14, window_bounds = array<i64: 3, 512, 64>}, {pipeline_mode = #tpu.pipeline_mode<synchronous>, transform_indices = @transform_15, window_bounds = array<i64: 1, 64>}, {pipeline_mode = #tpu.pipeline_mode<synchronous>, transform_indices = @transform_16, window_bounds = array<i64: 1, 64>}, {pipeline_mode = #tpu.pipeline_mode<synchronous>, transform_indices = @transform_17, window_bounds = array<i64: 1, 64>}, {pipeline_mode = #tpu.pipeline_mode<synchronous>, transform_indices = @transform_18, window_bounds = array<i64: 32, 64>}, {pipeline_mode = #tpu.pipeline_mode<synchronous>, transform_indices = @transform_19, window_bounds = array<i64: 2, 1>}]} {
    %c0 = arith.constant 0 : index
    %c0_0 = arith.constant 0 : index
    %0 = vector.load %arg2[%c0, %c0_0] : memref<32x64xf32, #tpu.memory_space<vmem>>, vector<32x64xf32>
    %c0_1 = arith.constant 0 : index
    %c0_2 = arith.constant 0 : index
    %1 = vector.load %arg4[%c0_1, %c0_2] : memref<1x64xf32, #tpu.memory_space<vmem>>, vector<1x64xf32>
    %c0_3 = arith.constant 0 : index
    %c0_4 = arith.constant 0 : index
    %2 = vector.load %arg5[%c0_3, %c0_4] : memref<1x64xf32, #tpu.memory_space<vmem>>, vector<1x64xf32>
    %c0_5 = arith.constant 0 : index
    %c0_6 = arith.constant 0 : index
    %3 = vector.load %arg6[%c0_5, %c0_6] : memref<64x64xf32, #tpu.memory_space<vmem>>, vector<64x64xf32>
    %cst = arith.constant dense<0.000000e+00> : vector<32x64xf32>
    %4 = tpu.matmul %0, %3, %cst {dimension_numbers = #tpu.dot_dimension_numbers<[1], [0], [0], [1], [0, 0, 1, 1], [], []>} : vector<32x64xf32>, vector<64x64xf32>, vector<32x64xf32> -> vector<32x64xf32>
    %5 = arith.mulf %0, %0 : vector<32x64xf32>
    %cst_7 = arith.constant dense<0.000000e+00> : vector<32x64xf32>
    %6 = tpu.matmul %5, %3, %cst_7 {dimension_numbers = #tpu.dot_dimension_numbers<[1], [0], [0], [1], [0, 0, 1, 1], [], []>} : vector<32x64xf32>, vector<64x64xf32>, vector<32x64xf32> -> vector<32x64xf32>
    %cst_8 = arith.constant dense<0.000000e+00> : vector<64xf32>
    %7 = vector.multi_reduction <add>, %4, %cst_8 [0] : vector<32x64xf32> to vector<64xf32>
    %8 = vector.shape_cast %7 : vector<64xf32> to vector<1x64xf32>
    %cst_9 = arith.constant 0.001953125 : f32
    %9 = vector.broadcast %cst_9 : f32 to vector<1x64xf32>
    %10 = arith.mulf %8, %9 : vector<1x64xf32>
    %cst_10 = arith.constant dense<0.000000e+00> : vector<64xf32>
    %11 = vector.multi_reduction <add>, %6, %cst_10 [0] : vector<32x64xf32> to vector<64xf32>
    %12 = vector.shape_cast %11 : vector<64xf32> to vector<1x64xf32>
    %cst_11 = arith.constant 0.001953125 : f32
    %13 = vector.broadcast %cst_11 : f32 to vector<1x64xf32>
    %14 = arith.mulf %12, %13 : vector<1x64xf32>
    %15 = arith.mulf %10, %10 : vector<1x64xf32>
    %16 = arith.subf %14, %15 : vector<1x64xf32>
    %cst_12 = arith.constant 0.000000e+00 : f32
    %17 = vector.broadcast %cst_12 : f32 to vector<1x64xf32>
    %18 = arith.maximumf %16, %17 : vector<1x64xf32>
    %19 = vector.broadcast %10 : vector<1x64xf32> to vector<32x64xf32>
    %20 = arith.subf %0, %19 : vector<32x64xf32>
    %cst_13 = arith.constant 9.99999974E-6 : f32
    %21 = vector.broadcast %cst_13 : f32 to vector<1x64xf32>
    %22 = arith.addf %18, %21 : vector<1x64xf32>
    %23 = math.rsqrt %22 : vector<1x64xf32>
    %24 = vector.broadcast %23 : vector<1x64xf32> to vector<32x64xf32>
    %25 = arith.mulf %20, %24 : vector<32x64xf32>
    %26 = vector.broadcast %1 : vector<1x64xf32> to vector<32x64xf32>
    %27 = arith.mulf %25, %26 : vector<32x64xf32>
    %28 = vector.broadcast %2 : vector<1x64xf32> to vector<32x64xf32>
    %29 = arith.addf %27, %28 : vector<32x64xf32>
    %cst_14 = arith.constant 0.000000e+00 : f32
    %30 = vector.broadcast %cst_14 : f32 to vector<32x64xf32>
    %31 = arith.maximumf %29, %30 : vector<32x64xf32>
    %cst_15 = arith.constant 0.000000e+00 : f32
    %32 = vector.broadcast %cst_15 : f32 to vector<2x1x64xf32>
    %c0_16 = arith.constant 0 : index
    %c7 = arith.constant 7 : index
    %c0_17 = arith.constant 0 : index
    %33 = vector.load %arg21[%c0_16, %c7, %c0_17] : memref<2x25x64xf32, #tpu.memory_space<vmem>>, vector<2x1x64xf32>
    tpu.vector_store %arg21[%c0_16, %c7, %c0_17], %32 {strides = array<i32>} : memref<2x25x64xf32, #tpu.memory_space<vmem>>, vector<2x1x64xf32>,
    %c0_18 = arith.constant 0 : index
    %c24 = arith.constant 24 : index
    %c0_19 = arith.constant 0 : index
    %34 = vector.load %arg21[%c0_18, %c24, %c0_19] : memref<2x25x64xf32, #tpu.memory_space<vmem>>, vector<2x1x64xf32>
    tpu.vector_store %arg21[%c0_18, %c24, %c0_19], %32 {strides = array<i32>} : memref<2x25x64xf32, #tpu.memory_space<vmem>>, vector<2x1x64xf32>,
    %35 = vector.shape_cast %31 : vector<32x64xf32> to vector<2x16x64xf32>
    %c0_20 = arith.constant 0 : index
    %c8 = arith.constant 8 : index
    %c0_21 = arith.constant 0 : index
    %36 = vector.load %arg21[%c0_20, %c8, %c0_21] : memref<2x25x64xf32, #tpu.memory_space<vmem>>, vector<2x16x64xf32>
    tpu.vector_store %arg21[%c0_20, %c8, %c0_21], %35 {strides = array<i32>} : memref<2x25x64xf32, #tpu.memory_space<vmem>>, vector<2x16x64xf32>,
    %c0_22 = arith.constant 0 : index
    %c7_23 = arith.constant 7 : index
    %c0_24 = arith.constant 0 : index
    %37 = vector.load %arg21[%c0_22, %c7_23, %c0_24] : memref<2x25x64xf32, #tpu.memory_space<vmem>>, vector<2x16x64xf32>
    %38 = vector.shape_cast %37 : vector<2x16x64xf32> to vector<32x64xf32>
    %c0_25 = arith.constant 0 : index
    %c0_26 = arith.constant 0 : index
    %c0_27 = arith.constant 0 : index
    %39 = vector.load %arg7[%c0_25, %c0_26, %c0_27] : memref<3x64x512xf32, #tpu.memory_space<vmem>>, vector<1x64x512xf32>
    %40 = vector.shape_cast %39 : vector<1x64x512xf32> to vector<64x512xf32>
    %cst_28 = arith.constant dense<0.000000e+00> : vector<32x512xf32>
    %41 = tpu.matmul %38, %40, %cst_28 {dimension_numbers = #tpu.dot_dimension_numbers<[1], [0], [0], [1], [0, 0, 1, 1], [], []>} : vector<32x64xf32>, vector<64x512xf32>, vector<32x512xf32> -> vector<32x512xf32>
    %cst_29 = arith.constant 0.000000e+00 : f32
    %42 = vector.broadcast %cst_29 : f32 to vector<32x512xf32>
    %43 = arith.addf %42, %41 : vector<32x512xf32>
    %c0_30 = arith.constant 0 : index
    %c8_31 = arith.constant 8 : index
    %c0_32 = arith.constant 0 : index
    %44 = vector.load %arg21[%c0_30, %c8_31, %c0_32] : memref<2x25x64xf32, #tpu.memory_space<vmem>>, vector<2x16x64xf32>
    %45 = vector.shape_cast %44 : vector<2x16x64xf32> to vector<32x64xf32>
    %c1 = arith.constant 1 : index
    %c0_33 = arith.constant 0 : index
    %c0_34 = arith.constant 0 : index
    %46 = vector.load %arg7[%c1, %c0_33, %c0_34] : memref<3x64x512xf32, #tpu.memory_space<vmem>>, vector<1x64x512xf32>
    %47 = vector.shape_cast %46 : vector<1x64x512xf32> to vector<64x512xf32>
    %cst_35 = arith.constant dense<0.000000e+00> : vector<32x512xf32>
    %48 = tpu.matmul %45, %47, %cst_35 {dimension_numbers = #tpu.dot_dimension_numbers<[1], [0], [0], [1], [0, 0, 1, 1], [], []>} : vector<32x64xf32>, vector<64x512xf32>, vector<32x512xf32> -> vector<32x512xf32>
    %49 = arith.addf %43, %48 : vector<32x512xf32>
    %c0_36 = arith.constant 0 : index
    %c9 = arith.constant 9 : index
    %c0_37 = arith.constant 0 : index
    %50 = vector.load %arg21[%c0_36, %c9, %c0_37] : memref<2x25x64xf32, #tpu.memory_space<vmem>>, vector<2x16x64xf32>
    %51 = vector.shape_cast %50 : vector<2x16x64xf32> to vector<32x64xf32>
    %c2 = arith.constant 2 : index
    %c0_38 = arith.constant 0 : index
    %c0_39 = arith.constant 0 : index
    %52 = vector.load %arg7[%c2, %c0_38, %c0_39] : memref<3x64x512xf32, #tpu.memory_space<vmem>>, vector<1x64x512xf32>
    %53 = vector.shape_cast %52 : vector<1x64x512xf32> to vector<64x512xf32>
    %cst_40 = arith.constant dense<0.000000e+00> : vector<32x512xf32>
    %54 = tpu.matmul %51, %53, %cst_40 {dimension_numbers = #tpu.dot_dimension_numbers<[1], [0], [0], [1], [0, 0, 1, 1], [], []>} : vector<32x64xf32>, vector<64x512xf32>, vector<32x512xf32> -> vector<32x512xf32>
    %55 = arith.addf %49, %54 : vector<32x512xf32>
    %c0_41 = arith.constant 0 : index
    %c0_42 = arith.constant 0 : index
    %56 = vector.load %arg8[%c0_41, %c0_42] : memref<1x512xf32, #tpu.memory_space<vmem>>, vector<1x512xf32>
    %c0_43 = arith.constant 0 : index
    %c0_44 = arith.constant 0 : index
    %57 = vector.load %arg9[%c0_43, %c0_44] : memref<1x512xf32, #tpu.memory_space<vmem>>, vector<1x512xf32>
    %c0_45 = arith.constant 0 : index
    %c0_46 = arith.constant 0 : index
    %58 = vector.load %arg10[%c0_45, %c0_46] : memref<512x512xf32, #tpu.memory_space<vmem>>, vector<512x512xf32>
    %cst_47 = arith.constant dense<0.000000e+00> : vector<32x512xf32>
    %59 = tpu.matmul %55, %58, %cst_47 {dimension_numbers = #tpu.dot_dimension_numbers<[1], [0], [0], [1], [0, 0, 1, 1], [], []>} : vector<32x512xf32>, vector<512x512xf32>, vector<32x512xf32> -> vector<32x512xf32>
    %60 = arith.mulf %55, %55 : vector<32x512xf32>
    %cst_48 = arith.constant dense<0.000000e+00> : vector<32x512xf32>
    %61 = tpu.matmul %60, %58, %cst_48 {dimension_numbers = #tpu.dot_dimension_numbers<[1], [0], [0], [1], [0, 0, 1, 1], [], []>} : vector<32x512xf32>, vector<512x512xf32>, vector<32x512xf32> -> vector<32x512xf32>
    %cst_49 = arith.constant dense<0.000000e+00> : vector<512xf32>
    %62 = vector.multi_reduction <add>, %59, %cst_49 [0] : vector<32x512xf32> to vector<512xf32>
    %63 = vector.shape_cast %62 : vector<512xf32> to vector<1x512xf32>
    %cst_50 = arith.constant 0.001953125 : f32
    %64 = vector.broadcast %cst_50 : f32 to vector<1x512xf32>
    %65 = arith.mulf %63, %64 : vector<1x512xf32>
    %cst_51 = arith.constant dense<0.000000e+00> : vector<512xf32>
    %66 = vector.multi_reduction <add>, %61, %cst_51 [0] : vector<32x512xf32> to vector<512xf32>
    %67 = vector.shape_cast %66 : vector<512xf32> to vector<1x512xf32>
    %cst_52 = arith.constant 0.001953125 : f32
    %68 = vector.broadcast %cst_52 : f32 to vector<1x512xf32>
    %69 = arith.mulf %67, %68 : vector<1x512xf32>
    %70 = arith.mulf %65, %65 : vector<1x512xf32>
    %71 = arith.subf %69, %70 : vector<1x512xf32>
    %cst_53 = arith.constant 0.000000e+00 : f32
    %72 = vector.broadcast %cst_53 : f32 to vector<1x512xf32>
    %73 = arith.maximumf %71, %72 : vector<1x512xf32>
    %74 = vector.broadcast %65 : vector<1x512xf32> to vector<32x512xf32>
    %75 = arith.subf %55, %74 : vector<32x512xf32>
    %cst_54 = arith.constant 9.99999974E-6 : f32
    %76 = vector.broadcast %cst_54 : f32 to vector<1x512xf32>
    %77 = arith.addf %73, %76 : vector<1x512xf32>
    %78 = math.rsqrt %77 : vector<1x512xf32>
    %79 = vector.broadcast %78 : vector<1x512xf32> to vector<32x512xf32>
    %80 = arith.mulf %75, %79 : vector<32x512xf32>
    %81 = vector.broadcast %56 : vector<1x512xf32> to vector<32x512xf32>
    %82 = arith.mulf %80, %81 : vector<32x512xf32>
    %83 = vector.broadcast %57 : vector<1x512xf32> to vector<32x512xf32>
    %84 = arith.addf %82, %83 : vector<32x512xf32>
    %cst_55 = arith.constant 0.000000e+00 : f32
    %85 = vector.broadcast %cst_55 : f32 to vector<32x512xf32>
    %86 = arith.maximumf %84, %85 : vector<32x512xf32>
    %c0_56 = arith.constant 0 : index
    %c0_57 = arith.constant 0 : index
    %87 = vector.load %arg11[%c0_56, %c0_57] : memref<512x512xf32, #tpu.memory_space<vmem>>, vector<512x512xf32>
    %cst_58 = arith.constant dense<0.000000e+00> : vector<32x512xf32>
    %88 = tpu.matmul %86, %87, %cst_58 {dimension_numbers = #tpu.dot_dimension_numbers<[1], [0], [0], [1], [0, 0, 1, 1], [], []>} : vector<32x512xf32>, vector<512x512xf32>, vector<32x512xf32> -> vector<32x512xf32>
    %c0_59 = arith.constant 0 : index
    %c0_60 = arith.constant 0 : index
    %89 = vector.load %arg12[%c0_59, %c0_60] : memref<1x512xf32, #tpu.memory_space<vmem>>, vector<1x512xf32>
    %c0_61 = arith.constant 0 : index
    %c0_62 = arith.constant 0 : index
    %90 = vector.load %arg13[%c0_61, %c0_62] : memref<1x512xf32, #tpu.memory_space<vmem>>, vector<1x512xf32>
    %c0_63 = arith.constant 0 : index
    %c0_64 = arith.constant 0 : index
    %91 = vector.load %arg10[%c0_63, %c0_64] : memref<512x512xf32, #tpu.memory_space<vmem>>, vector<512x512xf32>
    %cst_65 = arith.constant dense<0.000000e+00> : vector<32x512xf32>
    %92 = tpu.matmul %88, %91, %cst_65 {dimension_numbers = #tpu.dot_dimension_numbers<[1], [0], [0], [1], [0, 0, 1, 1], [], []>} : vector<32x512xf32>, vector<512x512xf32>, vector<32x512xf32> -> vector<32x512xf32>
    %93 = arith.mulf %88, %88 : vector<32x512xf32>
    %cst_66 = arith.constant dense<0.000000e+00> : vector<32x512xf32>
    %94 = tpu.matmul %93, %91, %cst_66 {dimension_numbers = #tpu.dot_dimension_numbers<[1], [0], [0], [1], [0, 0, 1, 1], [], []>} : vector<32x512xf32>, vector<512x512xf32>, vector<32x512xf32> -> vector<32x512xf32>
    %cst_67 = arith.constant dense<0.000000e+00> : vector<512xf32>
    %95 = vector.multi_reduction <add>, %92, %cst_67 [0] : vector<32x512xf32> to vector<512xf32>
    %96 = vector.shape_cast %95 : vector<512xf32> to vector<1x512xf32>
    %cst_68 = arith.constant 0.001953125 : f32
    %97 = vector.broadcast %cst_68 : f32 to vector<1x512xf32>
    %98 = arith.mulf %96, %97 : vector<1x512xf32>
    %cst_69 = arith.constant dense<0.000000e+00> : vector<512xf32>
    %99 = vector.multi_reduction <add>, %94, %cst_69 [0] : vector<32x512xf32> to vector<512xf32>
    %100 = vector.shape_cast %99 : vector<512xf32> to vector<1x512xf32>
    %cst_70 = arith.constant 0.001953125 : f32
    %101 = vector.broadcast %cst_70 : f32 to vector<1x512xf32>
    %102 = arith.mulf %100, %101 : vector<1x512xf32>
    %103 = arith.mulf %98, %98 : vector<1x512xf32>
    %104 = arith.subf %102, %103 : vector<1x512xf32>
    %cst_71 = arith.constant 0.000000e+00 : f32
    %105 = vector.broadcast %cst_71 : f32 to vector<1x512xf32>
    %106 = arith.maximumf %104, %105 : vector<1x512xf32>
    %107 = vector.broadcast %98 : vector<1x512xf32> to vector<32x512xf32>
    %108 = arith.subf %88, %107 : vector<32x512xf32>
    %cst_72 = arith.constant 9.99999974E-6 : f32
    %109 = vector.broadcast %cst_72 : f32 to vector<1x512xf32>
    %110 = arith.addf %106, %109 : vector<1x512xf32>
    %111 = math.rsqrt %110 : vector<1x512xf32>
    %112 = vector.broadcast %111 : vector<1x512xf32> to vector<32x512xf32>
    %113 = arith.mulf %108, %112 : vector<32x512xf32>
    %114 = vector.broadcast %89 : vector<1x512xf32> to vector<32x512xf32>
    %115 = arith.mulf %113, %114 : vector<32x512xf32>
    %116 = vector.broadcast %90 : vector<1x512xf32> to vector<32x512xf32>
    %117 = arith.addf %115, %116 : vector<32x512xf32>
    %cst_73 = arith.constant 0.000000e+00 : f32
    %118 = vector.broadcast %cst_73 : f32 to vector<32x512xf32>
    %119 = arith.maximumf %117, %118 : vector<32x512xf32>
    %cst_74 = arith.constant 0.000000e+00 : f32
    %120 = vector.broadcast %cst_74 : f32 to vector<2x1x512xf32>
    %c0_75 = arith.constant 0 : index
    %c7_76 = arith.constant 7 : index
    %c0_77 = arith.constant 0 : index
    %121 = vector.load %arg22[%c0_75, %c7_76, %c0_77] : memref<2x25x512xf32, #tpu.memory_space<vmem>>, vector<2x1x512xf32>
    tpu.vector_store %arg22[%c0_75, %c7_76, %c0_77], %120 {strides = array<i32>} : memref<2x25x512xf32, #tpu.memory_space<vmem>>, vector<2x1x512xf32>,
    %c0_78 = arith.constant 0 : index
    %c24_79 = arith.constant 24 : index
    %c0_80 = arith.constant 0 : index
    %122 = vector.load %arg22[%c0_78, %c24_79, %c0_80] : memref<2x25x512xf32, #tpu.memory_space<vmem>>, vector<2x1x512xf32>
    tpu.vector_store %arg22[%c0_78, %c24_79, %c0_80], %120 {strides = array<i32>} : memref<2x25x512xf32, #tpu.memory_space<vmem>>, vector<2x1x512xf32>,
    %123 = vector.shape_cast %119 : vector<32x512xf32> to vector<2x16x512xf32>
    %c0_81 = arith.constant 0 : index
    %c8_82 = arith.constant 8 : index
    %c0_83 = arith.constant 0 : index
    %124 = vector.load %arg22[%c0_81, %c8_82, %c0_83] : memref<2x25x512xf32, #tpu.memory_space<vmem>>, vector<2x16x512xf32>
    tpu.vector_store %arg22[%c0_81, %c8_82, %c0_83], %123 {strides = array<i32>} : memref<2x25x512xf32, #tpu.memory_space<vmem>>, vector<2x16x512xf32>,
    %c0_84 = arith.constant 0 : index
    %c0_85 = arith.constant 0 : index
    %125 = vector.load %arg16[%c0_84, %c0_85] : memref<1x64xf32, #tpu.memory_space<vmem>>, vector<1x64xf32>
    %c0_86 = arith.constant 0 : index
    %c7_87 = arith.constant 7 : index
    %c0_88 = arith.constant 0 : index
    %126 = vector.load %arg22[%c0_86, %c7_87, %c0_88] : memref<2x25x512xf32, #tpu.memory_space<vmem>>, vector<2x16x512xf32>
    %127 = vector.shape_cast %126 : vector<2x16x512xf32> to vector<32x512xf32>
    %c0_89 = arith.constant 0 : index
    %c0_90 = arith.constant 0 : index
    %c0_91 = arith.constant 0 : index
    %128 = vector.load %arg14[%c0_89, %c0_90, %c0_91] : memref<3x512x64xf32, #tpu.memory_space<vmem>>, vector<1x512x64xf32>
    %129 = vector.shape_cast %128 : vector<1x512x64xf32> to vector<512x64xf32>
    %cst_92 = arith.constant dense<0.000000e+00> : vector<32x64xf32>
    %130 = tpu.matmul %127, %129, %cst_92 {dimension_numbers = #tpu.dot_dimension_numbers<[1], [0], [0], [1], [0, 0, 1, 1], [], []>} : vector<32x512xf32>, vector<512x64xf32>, vector<32x64xf32> -> vector<32x64xf32>
    %131 = vector.broadcast %125 : vector<1x64xf32> to vector<32x64xf32>
    %132 = arith.addf %131, %130 : vector<32x64xf32>
    %c0_93 = arith.constant 0 : index
    %c8_94 = arith.constant 8 : index
    %c0_95 = arith.constant 0 : index
    %133 = vector.load %arg22[%c0_93, %c8_94, %c0_95] : memref<2x25x512xf32, #tpu.memory_space<vmem>>, vector<2x16x512xf32>
    %134 = vector.shape_cast %133 : vector<2x16x512xf32> to vector<32x512xf32>
    %c1_96 = arith.constant 1 : index
    %c0_97 = arith.constant 0 : index
    %c0_98 = arith.constant 0 : index
    %135 = vector.load %arg14[%c1_96, %c0_97, %c0_98] : memref<3x512x64xf32, #tpu.memory_space<vmem>>, vector<1x512x64xf32>
    %136 = vector.shape_cast %135 : vector<1x512x64xf32> to vector<512x64xf32>
    %cst_99 = arith.constant dense<0.000000e+00> : vector<32x64xf32>
    %137 = tpu.matmul %134, %136, %cst_99 {dimension_numbers = #tpu.dot_dimension_numbers<[1], [0], [0], [1], [0, 0, 1, 1], [], []>} : vector<32x512xf32>, vector<512x64xf32>, vector<32x64xf32> -> vector<32x64xf32>
    %138 = arith.addf %132, %137 : vector<32x64xf32>
    %c0_100 = arith.constant 0 : index
    %c9_101 = arith.constant 9 : index
    %c0_102 = arith.constant 0 : index
    %139 = vector.load %arg22[%c0_100, %c9_101, %c0_102] : memref<2x25x512xf32, #tpu.memory_space<vmem>>, vector<2x16x512xf32>
    %140 = vector.shape_cast %139 : vector<2x16x512xf32> to vector<32x512xf32>
    %c2_103 = arith.constant 2 : index
    %c0_104 = arith.constant 0 : index
    %c0_105 = arith.constant 0 : index
    %141 = vector.load %arg14[%c2_103, %c0_104, %c0_105] : memref<3x512x64xf32, #tpu.memory_space<vmem>>, vector<1x512x64xf32>
    %142 = vector.shape_cast %141 : vector<1x512x64xf32> to vector<512x64xf32>
    %cst_106 = arith.constant dense<0.000000e+00> : vector<32x64xf32>
    %143 = tpu.matmul %140, %142, %cst_106 {dimension_numbers = #tpu.dot_dimension_numbers<[1], [0], [0], [1], [0, 0, 1, 1], [], []>} : vector<32x512xf32>, vector<512x64xf32>, vector<32x64xf32> -> vector<32x64xf32>
    %144 = arith.addf %138, %143 : vector<32x64xf32>
    %c0_107 = arith.constant 0 : index
    %c0_108 = arith.constant 0 : index
    %145 = vector.load %arg17[%c0_107, %c0_108] : memref<1x64xf32, #tpu.memory_space<vmem>>, vector<1x64xf32>
    %c0_109 = arith.constant 0 : index
    %c7_110 = arith.constant 7 : index
    %c0_111 = arith.constant 0 : index
    %146 = vector.load %arg22[%c0_109, %c7_110, %c0_111] : memref<2x25x512xf32, #tpu.memory_space<vmem>>, vector<2x16x512xf32>
    %147 = vector.shape_cast %146 : vector<2x16x512xf32> to vector<32x512xf32>
    %c0_112 = arith.constant 0 : index
    %c0_113 = arith.constant 0 : index
    %c0_114 = arith.constant 0 : index
    %148 = vector.load %arg15[%c0_112, %c0_113, %c0_114] : memref<3x512x64xf32, #tpu.memory_space<vmem>>, vector<1x512x64xf32>
    %149 = vector.shape_cast %148 : vector<1x512x64xf32> to vector<512x64xf32>
    %cst_115 = arith.constant dense<0.000000e+00> : vector<32x64xf32>
    %150 = tpu.matmul %147, %149, %cst_115 {dimension_numbers = #tpu.dot_dimension_numbers<[1], [0], [0], [1], [0, 0, 1, 1], [], []>} : vector<32x512xf32>, vector<512x64xf32>, vector<32x64xf32> -> vector<32x64xf32>
    %151 = vector.broadcast %145 : vector<1x64xf32> to vector<32x64xf32>
    %152 = arith.addf %151, %150 : vector<32x64xf32>
    %c0_116 = arith.constant 0 : index
    %c8_117 = arith.constant 8 : index
    %c0_118 = arith.constant 0 : index
    %153 = vector.load %arg22[%c0_116, %c8_117, %c0_118] : memref<2x25x512xf32, #tpu.memory_space<vmem>>, vector<2x16x512xf32>
    %154 = vector.shape_cast %153 : vector<2x16x512xf32> to vector<32x512xf32>
    %c1_119 = arith.constant 1 : index
    %c0_120 = arith.constant 0 : index
    %c0_121 = arith.constant 0 : index
    %155 = vector.load %arg15[%c1_119, %c0_120, %c0_121] : memref<3x512x64xf32, #tpu.memory_space<vmem>>, vector<1x512x64xf32>
    %156 = vector.shape_cast %155 : vector<1x512x64xf32> to vector<512x64xf32>
    %cst_122 = arith.constant dense<0.000000e+00> : vector<32x64xf32>
    %157 = tpu.matmul %154, %156, %cst_122 {dimension_numbers = #tpu.dot_dimension_numbers<[1], [0], [0], [1], [0, 0, 1, 1], [], []>} : vector<32x512xf32>, vector<512x64xf32>, vector<32x64xf32> -> vector<32x64xf32>
    %158 = arith.addf %152, %157 : vector<32x64xf32>
    %c0_123 = arith.constant 0 : index
    %c9_124 = arith.constant 9 : index
    %c0_125 = arith.constant 0 : index
    %159 = vector.load %arg22[%c0_123, %c9_124, %c0_125] : memref<2x25x512xf32, #tpu.memory_space<vmem>>, vector<2x16x512xf32>
    %160 = vector.shape_cast %159 : vector<2x16x512xf32> to vector<32x512xf32>
    %c2_126 = arith.constant 2 : index
    %c0_127 = arith.constant 0 : index
    %c0_128 = arith.constant 0 : index
    %161 = vector.load %arg15[%c2_126, %c0_127, %c0_128] : memref<3x512x64xf32, #tpu.memory_space<vmem>>, vector<1x512x64xf32>
    %162 = vector.shape_cast %161 : vector<1x512x64xf32> to vector<512x64xf32>
    %cst_129 = arith.constant dense<0.000000e+00> : vector<32x64xf32>
    %163 = tpu.matmul %160, %162, %cst_129 {dimension_numbers = #tpu.dot_dimension_numbers<[1], [0], [0], [1], [0, 0, 1, 1], [], []>} : vector<32x512xf32>, vector<512x64xf32>, vector<32x64xf32> -> vector<32x64xf32>
    %164 = arith.addf %158, %163 : vector<32x64xf32>
    %c0_130 = arith.constant 0 : index
    %c0_131 = arith.constant 0 : index
    %165 = vector.load %arg18[%c0_130, %c0_131] : memref<1x64xf32, #tpu.memory_space<vmem>>, vector<1x64xf32>
    %166 = math.tanh %144 : vector<32x64xf32>
    %167 = vector.broadcast %165 : vector<1x64xf32> to vector<32x64xf32>
    %168 = arith.mulf %167, %166 : vector<32x64xf32>
    %c0_132 = arith.constant 0 : index
    %c0_133 = arith.constant 0 : index
    %169 = vector.load %arg1[%c0_132, %c0_133] : memref<32x64xf32, #tpu.memory_space<vmem>>, vector<32x64xf32>
    %170 = arith.addf %169, %164 : vector<32x64xf32>
    %171 = math.exp %168 : vector<32x64xf32>
    %172 = arith.mulf %170, %171 : vector<32x64xf32>
    %c0_134 = arith.constant 0 : index
    %c0_135 = arith.constant 0 : index
    %173 = vector.load %arg19[%c0_134, %c0_135] : memref<32x64xf32, #tpu.memory_space<vmem>>, vector<32x64xf32>
    tpu.vector_store %arg19[%c0_134, %c0_135], %172 {strides = array<i32>} : memref<32x64xf32, #tpu.memory_space<vmem>>, vector<32x64xf32>,
    %174 = vector.shape_cast %168 : vector<32x64xf32> to vector<2x16x64xf32>
    %cst_136 = arith.constant dense<0.000000e+00> : vector<2x16xf32>
    %175 = vector.multi_reduction <add>, %174, %cst_136 [2] : vector<2x16x64xf32> to vector<2x16xf32>
    %cst_137 = arith.constant dense<0.000000e+00> : vector<2xf32>
    %176 = vector.multi_reduction <add>, %175, %cst_137 [1] : vector<2x16xf32> to vector<2xf32>
    %177 = vector.shape_cast %176 : vector<2xf32> to vector<2x1xf32>
    %c0_138 = arith.constant 0 : index
    %c0_139 = arith.constant 0 : index
    %178 = vector.load %arg3[%c0_138, %c0_139] : memref<2x1xf32, #tpu.memory_space<vmem>>, vector<2x1xf32>
    %cst_140 = arith.constant 1.000000e+00 : f32
    %179 = vector.broadcast %cst_140 : f32 to vector<2x1xf32>
    %180 = arith.mulf %179, %177 : vector<2x1xf32>
    %181 = arith.addf %178, %180 : vector<2x1xf32>
    %c0_141 = arith.constant 0 : index
    %c0_142 = arith.constant 0 : index
    %182 = vector.load %arg20[%c0_141, %c0_142] : memref<2x1xf32, #tpu.memory_space<vmem>>, vector<2x1xf32>
    tpu.vector_store %arg20[%c0_141, %c0_142], %181 {strides = array<i32>} : memref<2x1xf32, #tpu.memory_space<vmem>>, vector<2x1xf32>,
    return
  }
  func.func @transform_0(%arg0: i32) -> (i32, i32) {
    %c0_i32 = arith.constant 0 : i32
    %c0_i32_0 = arith.constant 0 : i32
    %c0_i32_1 = arith.constant 0 : i32
    return %c0_i32, %c0_i32_0 : i32, i32
  }
  func.func @transform_1(%arg0: i32) -> (i32, i32) {
    %c0_i32 = arith.constant 0 : i32
    %c0_i32_0 = arith.constant 0 : i32
    %c0_i32_1 = arith.constant 0 : i32
    return %c0_i32, %c0_i32_0 : i32, i32
  }
  func.func @transform_2(%arg0: i32) -> (i32, i32) {
    %c0_i32 = arith.constant 0 : i32
    %c0_i32_0 = arith.constant 0 : i32
    %c0_i32_1 = arith.constant 0 : i32
    return %c0_i32, %c0_i32_0 : i32, i32
  }
  func.func @transform_3(%arg0: i32) -> (i32, i32) {
    %c0_i32 = arith.constant 0 : i32
    %c0_i32_0 = arith.constant 0 : i32
    %c0_i32_1 = arith.constant 0 : i32
    return %c0_i32, %c0_i32_0 : i32, i32
  }
  func.func @transform_4(%arg0: i32) -> (i32, i32) {
    %c0_i32 = arith.constant 0 : i32
    %c0_i32_0 = arith.constant 0 : i32
    %c0_i32_1 = arith.constant 0 : i32
    return %c0_i32, %c0_i32_0 : i32, i32
  }
  func.func @transform_5(%arg0: i32) -> (i32, i32) {
    %c0_i32 = arith.constant 0 : i32
    %c0_i32_0 = arith.constant 0 : i32
    %c0_i32_1 = arith.constant 0 : i32
    return %c0_i32, %c0_i32_0 : i32, i32
  }
  func.func @transform_6(%arg0: i32) -> (i32, i32, i32) {
    %c0_i32 = arith.constant 0 : i32
    %c0_i32_0 = arith.constant 0 : i32
    %c0_i32_1 = arith.constant 0 : i32
    %c0_i32_2 = arith.constant 0 : i32
    return %c0_i32, %c0_i32_0, %c0_i32_1 : i32, i32, i32
  }
  func.func @transform_7(%arg0: i32) -> (i32, i32) {
    %c0_i32 = arith.constant 0 : i32
    %c0_i32_0 = arith.constant 0 : i32
    %c0_i32_1 = arith.constant 0 : i32
    return %c0_i32, %c0_i32_0 : i32, i32
  }
  func.func @transform_8(%arg0: i32) -> (i32, i32) {
    %c0_i32 = arith.constant 0 : i32
    %c0_i32_0 = arith.constant 0 : i32
    %c0_i32_1 = arith.constant 0 : i32
    return %c0_i32, %c0_i32_0 : i32, i32
  }
  func.func @transform_9(%arg0: i32) -> (i32, i32) {
    %c0_i32 = arith.constant 0 : i32
    %c0_i32_0 = arith.constant 0 : i32
    %c0_i32_1 = arith.constant 0 : i32
    return %c0_i32, %c0_i32_0 : i32, i32
  }
  func.func @transform_10(%arg0: i32) -> (i32, i32) {
    %c0_i32 = arith.constant 0 : i32
    %c0_i32_0 = arith.constant 0 : i32
    %c0_i32_1 = arith.constant 0 : i32
    return %c0_i32, %c0_i32_0 : i32, i32
  }
  func.func @transform_11(%arg0: i32) -> (i32, i32) {
    %c0_i32 = arith.constant 0 : i32
    %c0_i32_0 = arith.constant 0 : i32
    %c0_i32_1 = arith.constant 0 : i32
    return %c0_i32, %c0_i32_0 : i32, i32
  }
  func.func @transform_12(%arg0: i32) -> (i32, i32) {
    %c0_i32 = arith.constant 0 : i32
    %c0_i32_0 = arith.constant 0 : i32
    %c0_i32_1 = arith.constant 0 : i32
    return %c0_i32, %c0_i32_0 : i32, i32
  }
  func.func @transform_13(%arg0: i32) -> (i32, i32, i32) {
    %c0_i32 = arith.constant 0 : i32
    %c0_i32_0 = arith.constant 0 : i32
    %c0_i32_1 = arith.constant 0 : i32
    %c0_i32_2 = arith.constant 0 : i32
    return %c0_i32, %c0_i32_0, %c0_i32_1 : i32, i32, i32
  }
  func.func @transform_14(%arg0: i32) -> (i32, i32, i32) {
    %c0_i32 = arith.constant 0 : i32
    %c0_i32_0 = arith.constant 0 : i32
    %c0_i32_1 = arith.constant 0 : i32
    %c0_i32_2 = arith.constant 0 : i32
    return %c0_i32, %c0_i32_0, %c0_i32_1 : i32, i32, i32
  }
  func.func @transform_15(%arg0: i32) -> (i32, i32) {
    %c0_i32 = arith.constant 0 : i32
    %c0_i32_0 = arith.constant 0 : i32
    %c0_i32_1 = arith.constant 0 : i32
    return %c0_i32, %c0_i32_0 : i32, i32
  }
  func.func @transform_16(%arg0: i32) -> (i32, i32) {
    %c0_i32 = arith.constant 0 : i32
    %c0_i32_0 = arith.constant 0 : i32
    %c0_i32_1 = arith.constant 0 : i32
    return %c0_i32, %c0_i32_0 : i32, i32
  }
  func.func @transform_17(%arg0: i32) -> (i32, i32) {
    %c0_i32 = arith.constant 0 : i32
    %c0_i32_0 = arith.constant 0 : i32
    %c0_i32_1 = arith.constant 0 : i32
    return %c0_i32, %c0_i32_0 : i32, i32
  }
  func.func @transform_18(%arg0: i32) -> (i32, i32) {
    %c0_i32 = arith.constant 0 : i32
    %c0_i32_0 = arith.constant 0 : i32
    %c0_i32_1 = arith.constant 0 : i32
    return %c0_i32, %c0_i32_0 : i32, i32
  }
  func.func @transform_19(%arg0: i32) -> (i32, i32) {
    %c0_i32 = arith.constant 0 : i32
    %c0_i32_0 = arith.constant 0 : i32
    %c0_i32_1 = arith.constant 0 : i32
    return %c0_i32, %c0_i32_0 : i32, i32
  }
}

</mosaic_0001>

<llo_original>
// kernel: coupling_forward.1
$region0: #{coupling_forward.1}
  #allocation0 [shape = 'u32[]', space=smem, size = 0x4, offset = 0x4, fixed_abs, tag = 'smem constant byte address 0x4 - core index']
  #allocation1 [shape = 'u32[144,128]{1,0:T(1,128)}', space=vmem, size = 0x12000, scoped, tag = 'internal scratch']
  #allocation2 [shape = 'f32[2,25,64]{2,1,0:T(8,128)}', space=vmem, size = 0x8000, scoped, tag = 'scratch operand']
  #allocation3 [shape = 'f32[2,25,512]{2,1,0:T(8,128)}', space=vmem, size = 0x20000, scoped, tag = 'scratch operand']
  %s0 = inlined_call_operand.vmem [shape: f32[32,64], index: 0, kind: input, shape index: {}]
  %s1 = inlined_call_operand.vmem [shape: f32[32,64], index: 1, kind: input, shape index: {}]
  %s2 = inlined_call_operand.vmem [shape: f32[2,1], index: 2, kind: input, shape index: {}]
  %s3 = inlined_call_operand.vmem [shape: f32[1,64], index: 3, kind: input, shape index: {}]
  %s4 = inlined_call_operand.vmem [shape: f32[1,64], index: 4, kind: input, shape index: {}]
  %s5 = inlined_call_operand.vmem [shape: f32[64,64], index: 5, kind: input, shape index: {}]
  %s6 = inlined_call_operand.vmem [shape: f32[3,64,512], index: 6, kind: input, shape index: {}]
  %s7 = inlined_call_operand.vmem [shape: f32[1,512], index: 7, kind: input, shape index: {}]
  %s8 = inlined_call_operand.vmem [shape: f32[1,512], index: 8, kind: input, shape index: {}]
  %s9 = inlined_call_operand.vmem [shape: f32[512,512], index: 9, kind: input, shape index: {}]
  %s10 = inlined_call_operand.vmem [shape: f32[512,512], index: 10, kind: input, shape index: {}]
  %s11 = inlined_call_operand.vmem [shape: f32[1,512], index: 11, kind: input, shape index: {}]
  %s12 = inlined_call_operand.vmem [shape: f32[1,512], index: 12, kind: input, shape index: {}]
  %s13 = inlined_call_operand.vmem [shape: f32[3,512,64], index: 13, kind: input, shape index: {}]
  %s14 = inlined_call_operand.vmem [shape: f32[3,512,64], index: 14, kind: input, shape index: {}]
  %s15 = inlined_call_operand.vmem [shape: f32[1,64], index: 15, kind: input, shape index: {}]
  %s16 = inlined_call_operand.vmem [shape: f32[1,64], index: 16, kind: input, shape index: {}]
  %s17 = inlined_call_operand.vmem [shape: f32[1,64], index: 17, kind: input, shape index: {}]
  %s18 = inlined_call_operand.vmem [shape: f32[32,64], index: 18, kind: output, shape index: {0}]
  %s19 = inlined_call_operand.vmem [shape: f32[2,1], index: 19, kind: output, shape index: {1}]
  %20 = xla_tuple %s18, %s19
  %s21 = sld [smem:[#allocation0]]
  $region90: #{coupling_forward.1} parent=0
    _
  %s23 = ssub.s32 1, %s21
  %s24 = scalar_select 0, %s23, %s21
  // Predicated region
  $region2: #{coupling_forward.1} parent=0 // pred_check
    _
  $region3: #{coupling_forward.1} parent=0 // pred_check_branch
    %26 = sbr.rel (0) target = $region5
  $region4: #{coupling_forward.1} parent=0 // pred_region
    _
  $region5: #{coupling_forward.1} parent=0 // pred_fallthru
    _
  // Predicated region
  $region6: #{coupling_forward.1} parent=0 // pred_check
    _
  $region7: #{coupling_forward.1} parent=0 // pred_check_branch
    %28 = sbr.rel (0) target = $region9
  $region8: #{coupling_forward.1} parent=0 // pred_region
    _
  $region9: #{coupling_forward.1} parent=0 // pred_fallthru
    _
  // Predicated region
  $region10: #{coupling_forward.1} parent=0 // pred_check
    _
  $region11: #{coupling_forward.1} parent=0 // pred_check_branch
    %30 = sbr.rel (0) target = $region13
  $region12: #{coupling_forward.1} parent=0 // pred_region
    _
  $region13: #{coupling_forward.1} parent=0 // pred_fallthru
    _
  // Predicated region
  $region14: #{coupling_forward.1} parent=0 // pred_check
    _
  $region15: #{coupling_forward.1} parent=0 // pred_check_branch
    %32 = sbr.rel (0) target = $region17
  $region16: #{coupling_forward.1} parent=0 // pred_region
    _
  $region17: #{coupling_forward.1} parent=0 // pred_fallthru
    _
  // Predicated region
  $region18: #{coupling_forward.1} parent=0 // pred_check
    _
  $region19: #{coupling_forward.1} parent=0 // pred_check_branch
    %34 = sbr.rel (0) target = $region21
  $region20: #{coupling_forward.1} parent=0 // pred_region
    _
  $region21: #{coupling_forward.1} parent=0 // pred_fallthru
    _
  // Predicated region
  $region22: #{coupling_forward.1} parent=0 // pred_check
    _
  $region23: #{coupling_forward.1} parent=0 // pred_check_branch
    %36 = sbr.rel (0) target = $region25
  $region24: #{coupling_forward.1} parent=0 // pred_region
    _
  $region25: #{coupling_forward.1} parent=0 // pred_fallthru
    _
  // Predicated region
  $region26: #{coupling_forward.1} parent=0 // pred_check
    _
  $region27: #{coupling_forward.1} parent=0 // pred_check_branch
    %38 = sbr.rel (0) target = $region29
  $region28: #{coupling_forward.1} parent=0 // pred_region
    _
  $region29: #{coupling_forward.1} parent=0 // pred_fallthru
    _
  // Predicated region
  $region30: #{coupling_forward.1} parent=0 // pred_check
    _
  $region31: #{coupling_forward.1} parent=0 // pred_check_branch
    %40 = sbr.rel (0) target = $region33
  $region32: #{coupling_forward.1} parent=0 // pred_region
    _
  $region33: #{coupling_forward.1} parent=0 // pred_fallthru
    _
  // Predicated region
  $region34: #{coupling_forward.1} parent=0 // pred_check
    _
  $region35: #{coupling_forward.1} parent=0 // pred_check_branch
    %42 = sbr.rel (0) target = $region37
  $region36: #{coupling_forward.1} parent=0 // pred_region
    _
  $region37: #{coupling_forward.1} parent=0 // pred_fallthru
    _
  // Predicated region
  $region38: #{coupling_forward.1} parent=0 // pred_check
    _
  $region39: #{coupling_forward.1} parent=0 // pred_check_branch
    %44 = sbr.rel (0) target = $region41
  $region40: #{coupling_forward.1} parent=0 // pred_region
    _
  $region41: #{coupling_forward.1} parent=0 // pred_fallthru
    _
  // Predicated region
  $region42: #{coupling_forward.1} parent=0 // pred_check
    _
  $region43: #{coupling_forward.1} parent=0 // pred_check_branch
    %46 = sbr.rel (0) target = $region45
  $region44: #{coupling_forward.1} parent=0 // pred_region
    _
  $region45: #{coupling_forward.1} parent=0 // pred_fallthru
    _
  // Predicated region
  $region46: #{coupling_forward.1} parent=0 // pred_check
    _
  $region47: #{coupling_forward.1} parent=0 // pred_check_branch
    %48 = sbr.rel (0) target = $region49
  $region48: #{coupling_forward.1} parent=0 // pred_region
    _
  $region49: #{coupling_forward.1} parent=0 // pred_fallthru
    _
  // Predicated region
  $region50: #{coupling_forward.1} parent=0 // pred_check
    _
  $region51: #{coupling_forward.1} parent=0 // pred_check_branch
    %50 = sbr.rel (0) target = $region53
  $region52: #{coupling_forward.1} parent=0 // pred_region
    _
  $region53: #{coupling_forward.1} parent=0 // pred_fallthru
    _
  // Predicated region
  $region54: #{coupling_forward.1} parent=0 // pred_check
    _
  $region55: #{coupling_forward.1} parent=0 // pred_check_branch
    %52 = sbr.rel (0) target = $region57
  $region56: #{coupling_forward.1} parent=0 // pred_region
    _
  $region57: #{coupling_forward.1} parent=0 // pred_fallthru
    _
  // Predicated region
  $region58: #{coupling_forward.1} parent=0 // pred_check
    _
  $region59: #{coupling_forward.1} parent=0 // pred_check_branch
    %54 = sbr.rel (0) target = $region61
  $region60: #{coupling_forward.1} parent=0 // pred_region
    _
  $region61: #{coupling_forward.1} parent=0 // pred_fallthru
    _
  // Predicated region
  $region62: #{coupling_forward.1} parent=0 // pred_check
    _
  $region63: #{coupling_forward.1} parent=0 // pred_check_branch
    %56 = sbr.rel (0) target = $region65
  $region64: #{coupling_forward.1} parent=0 // pred_region
    _
  $region65: #{coupling_forward.1} parent=0 // pred_fallthru
    _
  // Predicated region
  $region66: #{coupling_forward.1} parent=0 // pred_check
    _
  $region67: #{coupling_forward.1} parent=0 // pred_check_branch
    %58 = sbr.rel (0) target = $region69
  $region68: #{coupling_forward.1} parent=0 // pred_region
    _
  $region69: #{coupling_forward.1} parent=0 // pred_fallthru
    _
  // Predicated region
  $region70: #{coupling_forward.1} parent=0 // pred_check
    _
  $region71: #{coupling_forward.1} parent=0 // pred_check_branch
    %60 = sbr.rel (0) target = $region73
  $region72: #{coupling_forward.1} parent=0 // pred_region
    _
  $region73: #{coupling_forward.1} parent=0 // pred_fallthru
    _
  %v61 = vld [vmem:[%s1] sm:$0xff]
  %v62 = vld [vmem:[%s1 + $0x8] sm:$0xff]
  %v63 = vld [vmem:[%s1 + $0x10] sm:$0xff]
  %v64 = vld [vmem:[%s1 + $0x18] sm:$0xff]
  %v65 = vld [vmem:[%s3] sm:$0x1]
  %v66 = vld [vmem:[%s4] sm:$0x1]
  %v67 = vld [vmem:[%s5] sm:$0xff]
  %v68 = vld [vmem:[%s5 + $0x8] sm:$0xff]
  %v69 = vld [vmem:[%s5 + $0x10] sm:$0xff]
  %v70 = vld [vmem:[%s5 + $0x18] sm:$0xff]
  %v71 = vld [vmem:[%s5 + $0x20] sm:$0xff]
  %v72 = vld [vmem:[%s5 + $0x28] sm:$0xff]
  %v73 = vld [vmem:[%s5 + $0x30] sm:$0xff]
  %v74 = vld [vmem:[%s5 + $0x38] sm:$0xff]
  %vm75 = vcmask 523264
  %v77 = vsel %vm75, %v61, 0
  %v80 = vsel %vm75, %v62, 0
  %v83 = vsel %vm75, %v63, 0
  %v86 = vsel %vm75, %v64, 0
  %88 = vmatprep.subr.mxu0 0.0
  %89 = vmatpush1.msra.mxu0 %v67
  %90 = vmatprep.subr.mxu0 0.0
  %91 = vmatpush1.msra.mxu0 %v68
  %92 = vmatprep.subr.mxu0 0.0
  %93 = vmatpush1.msra.mxu0 %v69
  %94 = vmatprep.subr.mxu0 0.0
  %95 = vmatpush1.msra.mxu0 %v70
  %96 = vmatprep.subr.mxu0 0.0
  %97 = vmatpush1.msra.mxu0 %v71
  %98 = vmatprep.subr.mxu0 0.0
  %99 = vmatpush1.msra.mxu0 %v72
  %100 = vmatprep.subr.mxu0 0.0
  %101 = vmatpush1.msra.mxu0 %v73
  %102 = vmatprep.subr.mxu0 0.0
  %103 = vmatpush1.msra.mxu0 %v74
  %104 = vmatprep.subr.mxu0 0.0
  %105 = vmatpush1.msra.mxu0 0.0
  %106 = vmatprep.subr.mxu0 0.0
  %107 = vmatpush1.msra.mxu0 0.0
  %108 = vmatprep.subr.mxu0 0.0
  %109 = vmatpush1.msra.mxu0 0.0
  %110 = vmatprep.subr.mxu0 0.0
  %111 = vmatpush1.msra.mxu0 0.0
  %112 = vmatprep.subr.mxu0 0.0
  %113 = vmatpush1.msra.mxu0 0.0
  %114 = vmatprep.subr.mxu0 0.0
  %115 = vmatpush1.msra.mxu0 0.0
  %116 = vmatprep.subr.mxu0 0.0
  %117 = vmatpush1.msra.mxu0 0.0
  %118 = vmatprep.subr.mxu0 0.0
  %119 = vmatpush1.msra.mxu0 0.0
  %120 = vmatprep.subr.mxu0 0.0
  %121 = vmatpush1.msra.mxu0 0.0
  %122 = vmatprep.subr.mxu0 0.0
  %123 = vmatpush1.msra.mxu0 0.0
  %124 = vmatprep.subr.mxu0 0.0
  %125 = vmatpush1.msra.mxu0 0.0
  %126 = vmatprep.subr.mxu0 0.0
  %127 = vmatpush1.msra.mxu0 0.0
  %128 = vmatprep.subr.mxu0 0.0
  %129 = vmatpush1.msra.mxu0 0.0
  %130 = vmatprep.subr.mxu0 0.0
  %131 = vmatpush1.msra.mxu0 0.0
  %132 = vmatprep.subr.mxu0 0.0
  %133 = vmatpush1.msra.mxu0 0.0
  %134 = vmatprep.subr.mxu0 0.0
  %135 = vmatpush1.msra.mxu0 0.0
  %136 = vmatprep.subr.mxu0 0.0
  %137 = vmatpush1.msra.mxu0 0.0
  %138 = vmatprep.subr.mxu0 0.0
  %139 = vmatpush1.msra.mxu0 0.0
  %140 = vmatprep.subr.mxu0 0.0
  %141 = vmatpush1.msra.mxu0 0.0
  %142 = vmatprep.subr.mxu0 0.0
  %143 = vmatpush1.msra.mxu0 0.0
  %144 = vmatprep.subr.mxu0 0.0
  %145 = vmatpush1.msra.mxu0 0.0
  %146 = vmatprep.subr.mxu0 0.0
  %147 = vmatpush1.msra.mxu0 0.0
  %148 = vmatprep.subr.mxu0 0.0
  %149 = vmatpush1.msra.mxu0 0.0
  %150 = vmatprep.subr.mxu0 0.0
  %151 = vmatpush1.msra.mxu0 0.0
  %152 = vmatprep.mubr.f32.mxu0 0.0
  %153 = vmatmul.mubr.f32.gmra.mrb[0].mxu0 %v77
  %v154 = vpop.f32.mrb[0].mxu0
  %v155 = vadd.f32 0.0, %v154
  %v156 = vpop.f32.mrb[0].mxu0
  %157 = vmatprep.mubr.f32.mxu0 0.0
  %158 = vmatmul.mubr.f32.gmra.mrb[0].mxu0 %v80
  %v159 = vpop.f32.mrb[0].mxu0
  %v160 = vadd.f32 0.0, %v159
  %v161 = vpop.f32.mrb[0].mxu0
  %162 = vmatprep.mubr.f32.mxu0 0.0
  %163 = vmatmul.mubr.f32.gmra.mrb[0].mxu0 %v83
  %v164 = vpop.f32.mrb[0].mxu0
  %v165 = vadd.f32 0.0, %v164
  %v166 = vpop.f32.mrb[0].mxu0
  %167 = vmatprep.mubr.f32.mxu0 0.0
  %168 = vmatmul.mubr.f32.gmra.mrb[0].mxu0 %v86
  %v169 = vpop.f32.mrb[0].mxu0
  %v170 = vadd.f32 0.0, %v169
  %v171 = vpop.f32.mrb[0].mxu0
  %172 = vdwg.mxu0
  %v173 = vmul.f32 %v61, %v61
  %v174 = vmul.f32 %v62, %v62
  %v175 = vmul.f32 %v63, %v63
  %v176 = vmul.f32 %v64, %v64
  %v178 = vsel %vm75, %v173, 0
  %v181 = vsel %vm75, %v174, 0
  %v184 = vsel %vm75, %v175, 0
  %v187 = vsel %vm75, %v176, 0
  %189 = vmatprep.subr.mxu0 0.0
  %190 = vmatpush1.msra.mxu0 %v67
  %191 = vmatprep.subr.mxu0 0.0
  %192 = vmatpush1.msra.mxu0 %v68
  %193 = vmatprep.subr.mxu0 0.0
  %194 = vmatpush1.msra.mxu0 %v69
  %195 = vmatprep.subr.mxu0 0.0
  %196 = vmatpush1.msra.mxu0 %v70
  %197 = vmatprep.subr.mxu0 0.0
  %198 = vmatpush1.msra.mxu0 %v71
  %199 = vmatprep.subr.mxu0 0.0
  %200 = vmatpush1.msra.mxu0 %v72
  %201 = vmatprep.subr.mxu0 0.0
  %202 = vmatpush1.msra.mxu0 %v73
  %203 = vmatprep.subr.mxu0 0.0
  %204 = vmatpush1.msra.mxu0 %v74
  %205 = vmatprep.subr.mxu0 0.0
  %206 = vmatpush1.msra.mxu0 0.0
  %207 = vmatprep.subr.mxu0 0.0
  %208 = vmatpush1.msra.mxu0 0.0
  %209 = vmatprep.subr.mxu0 0.0
  %210 = vmatpush1.msra.mxu0 0.0
  %211 = vmatprep.subr.mxu0 0.0
  %212 = vmatpush1.msra.mxu0 0.0
  %213 = vmatprep.subr.mxu0 0.0
  %214 = vmatpush1.msra.mxu0 0.0
  %215 = vmatprep.subr.mxu0 0.0
  %216 = vmatpush1.msra.mxu0 0.0
  %217 = vmatprep.subr.mxu0 0.0
  %218 = vmatpush1.msra.mxu0 0.0
  %219 = vmatprep.subr.mxu0 0.0
  %220 = vmatpush1.msra.mxu0 0.0
  %221 = vmatprep.subr.mxu0 0.0
  %222 = vmatpush1.msra.mxu0 0.0
  %223 = vmatprep.subr.mxu0 0.0
  %224 = vmatpush1.msra.mxu0 0.0
  %225 = vmatprep.subr.mxu0 0.0
  %226 = vmatpush1.msra.mxu0 0.0
  %227 = vmatprep.subr.mxu0 0.0
  %228 = vmatpush1.msra.mxu0 0.0
  %229 = vmatprep.subr.mxu0 0.0
  %230 = vmatpush1.msra.mxu0 0.0
  %231 = vmatprep.subr.mxu0 0.0
  %232 = vmatpush1.msra.mxu0 0.0
  %233 = vmatprep.subr.mxu0 0.0
  %234 = vmatpush1.msra.mxu0 0.0
  %235 = vmatprep.subr.mxu0 0.0
  %236 = vmatpush1.msra.mxu0 0.0
  %237 = vmatprep.subr.mxu0 0.0
  %238 = vmatpush1.msra.mxu0 0.0
  %239 = vmatprep.subr.mxu0 0.0
  %240 = vmatpush1.msra.mxu0 0.0
  %241 = vmatprep.subr.mxu0 0.0
  %242 = vmatpush1.msra.mxu0 0.0
  %243 = vmatprep.subr.mxu0 0.0
  %244 = vmatpush1.msra.mxu0 0.0
  %245 = vmatprep.subr.mxu0 0.0
  %246 = vmatpush1.msra.mxu0 0.0
  %247 = vmatprep.subr.mxu0 0.0
  %248 = vmatpush1.msra.mxu0 0.0
  %249 = vmatprep.subr.mxu0 0.0
  %250 = vmatpush1.msra.mxu0 0.0
  %251 = vmatprep.subr.mxu0 0.0
  %252 = vmatpush1.msra.mxu0 0.0
  %253 = vmatprep.mubr.f32.mxu0 0.0
  %254 = vmatmul.mubr.f32.gmra.mrb[0].mxu0 %v178
  %v255 = vpop.f32.mrb[0].mxu0
  %v256 = vadd.f32 0.0, %v255
  %v257 = vpop.f32.mrb[0].mxu0
  %258 = vmatprep.mubr.f32.mxu0 0.0
  %259 = vmatmul.mubr.f32.gmra.mrb[0].mxu0 %v181
  %v260 = vpop.f32.mrb[0].mxu0
  %v261 = vadd.f32 0.0, %v260
  %v262 = vpop.f32.mrb[0].mxu0
  %263 = vmatprep.mubr.f32.mxu0 0.0
  %264 = vmatmul.mubr.f32.gmra.mrb[0].mxu0 %v184
  %v265 = vpop.f32.mrb[0].mxu0
  %v266 = vadd.f32 0.0, %v265
  %v267 = vpop.f32.mrb[0].mxu0
  %268 = vmatprep.mubr.f32.mxu0 0.0
  %269 = vmatmul.mubr.f32.gmra.mrb[0].mxu0 %v187
  %v270 = vpop.f32.mrb[0].mxu0
  %v271 = vadd.f32 0.0, %v270
  %v272 = vpop.f32.mrb[0].mxu0
  %273 = vdwg.mxu0
  %v274 = vsel %vm75, %v155, 0.0
  %v275 = vsel %vm75, %v160, 0.0
  %v276 = vadd.f32 %v274, %v275
  %v277 = vsel %vm75, %v165, 0.0
  %v278 = vadd.f32 %v276, %v277
  %v279 = vsel %vm75, %v170, 0.0
  %v280 = vadd.f32 %v278, %v279
  %v281 = vrot.slane %v280, 4
  %v282 = vadd.f32 %v280, %v281
  %v283 = vrot.slane %v282, 2
  %v284 = vadd.f32 %v282, %v283
  %v285 = vrot.slane %v284, 1
  %v286 = vadd.f32 %v284, %v285
  %v287 = vmul.f32 %v286, 0.001953125
  %v288 = vsel %vm75, %v256, 0.0
  %v289 = vsel %vm75, %v261, 0.0
  %v290 = vadd.f32 %v288, %v289
  %v291 = vsel %vm75, %v266, 0.0
  %v292 = vadd.f32 %v290, %v291
  %v293 = vsel %vm75, %v271, 0.0
  %v294 = vadd.f32 %v292, %v293
  %v295 = vrot.slane %v294, 4
  %v296 = vadd.f32 %v294, %v295
  %v297 = vrot.slane %v296, 2
  %v298 = vadd.f32 %v296, %v297
  %v299 = vrot.slane %v298, 1
  %v300 = vadd.f32 %v298, %v299
  %v301 = vmul.f32 %v300, 0.001953125
  %v302 = vmul.f32 %v287, %v287
  %v303 = vsub.f32 %v301, %v302
  %v304 = vmax.f32 %v303, 0.0
  %v305 = vsub.f32 %v61, %v287
  %v306 = vsub.f32 %v62, %v287
  %v307 = vsub.f32 %v63, %v287
  %v308 = vsub.f32 %v64, %v287
  %v309 = vadd.f32 %v304, 1e-05
  %v310 = vrsqrt.pop %v309
  %v311 = vmul.f32 %v305, %v310
  %v312 = vmul.f32 %v306, %v310
  %v313 = vmul.f32 %v307, %v310
  %v314 = vmul.f32 %v308, %v310
  %v316 = vlaneseq
  %v317 = vshrl.u32 %v316, 7
  %v318 = vsub.s32 0, %v317
  %v319 = vrot.slane %v65, %v318
  %v321 = vmul.f32 %v311, %v319
  %v322 = vmul.f32 %v312, %v319
  %v323 = vmul.f32 %v313, %v319
  %v324 = vmul.f32 %v314, %v319
  %v326 = vlaneseq
  %v327 = vshrl.u32 %v326, 7
  %v328 = vsub.s32 0, %v327
  %v329 = vrot.slane %v66, %v328
  %v331 = vadd.f32 %v321, %v329
  %v332 = vadd.f32 %v322, %v329
  %v333 = vadd.f32 %v323, %v329
  %v334 = vadd.f32 %v324, %v329
  %v335 = vmax.f32 %v331, 0.0
  %v336 = vmax.f32 %v332, 0.0
  %v337 = vmax.f32 %v333, 0.0
  %v338 = vmax.f32 %v334, 0.0
  %vm339 = vcmask 516096
  %340 = vst.msk [vmem:[#allocation2 + $0x7] sm:$0x1] %vm339, 0.0
  %341 = vst.msk [vmem:[#allocation2 + $0x27] sm:$0x1] %vm339, 0.0
  %342 = vst.msk [vmem:[#allocation2 + $0x18] sm:$0x1] %vm339, 0.0
  %343 = vst.msk [vmem:[#allocation2 + $0x38] sm:$0x1] %vm339, 0.0
  %344 = vst.msk [vmem:[#allocation2 + $0x8] sm:$0xff] %vm75, %v335
  %345 = vst.msk [vmem:[#allocation2 + $0x10] sm:$0xff] %vm75, %v336
  %346 = vst.msk [vmem:[#allocation2 + $0x28] sm:$0xff] %vm75, %v337
  %347 = vst.msk [vmem:[#allocation2 + $0x30] sm:$0xff] %vm75, %v338
  %v348 = vld [vmem:[#allocation2 + $0x7] sm:$0xff]
  %v349 = vld [vmem:[#allocation2 + $0xf] sm:$0xff]
  %v350 = vld [vmem:[#allocation2 + $0x27] sm:$0xff]
  %v351 = vld [vmem:[#allocation2 + $0x2f] sm:$0xff]
  %v352 = vld [vmem:[%s6] sm:$0xff]
  %v353 = vld [vmem:[%s6 + $0x8] sm:$0xff]
  %v354 = vld [vmem:[%s6 + $0x10] sm:$0xff]
  %v355 = vld [vmem:[%s6 + $0x18] sm:$0xff]
  %v356 = vld [vmem:[%s6 + $0x20] sm:$0xff]
  %v357 = vld [vmem:[%s6 + $0x28] sm:$0xff]
  %v358 = vld [vmem:[%s6 + $0x30] sm:$0xff]
  %v359 = vld [vmem:[%s6 + $0x38] sm:$0xff]
  %v360 = vld [vmem:[%s6 + $0x40] sm:$0xff]
  %v361 = vld [vmem:[%s6 + $0x48] sm:$0xff]
  %v362 = vld [vmem:[%s6 + $0x50] sm:$0xff]
  %v363 = vld [vmem:[%s6 + $0x58] sm:$0xff]
  %v364 = vld [vmem:[%s6 + $0x60] sm:$0xff]
  %v365 = vld [vmem:[%s6 + $0x68] sm:$0xff]
  %v366 = vld [vmem:[%s6 + $0x70] sm:$0xff]
  %v367 = vld [vmem:[%s6 + $0x78] sm:$0xff]
  %v368 = vld [vmem:[%s6 + $0x80] sm:$0xff]
  %v369 = vld [vmem:[%s6 + $0x88] sm:$0xff]
  %v370 = vld [vmem:[%s6 + $0x90] sm:$0xff]
  %v371 = vld [vmem:[%s6 + $0x98] sm:$0xff]
  %v372 = vld [vmem:[%s6 + $0xa0] sm:$0xff]
  %v373 = vld [vmem:[%s6 + $0xa8] sm:$0xff]
  %v374 = vld [vmem:[%s6 + $0xb0] sm:$0xff]
  %v375 = vld [vmem:[%s6 + $0xb8] sm:$0xff]
  %v376 = vld [vmem:[%s6 + $0xc0] sm:$0xff]
  %v377 = vld [vmem:[%s6 + $0xc8] sm:$0xff]
  %v378 = vld [vmem:[%s6 + $0xd0] sm:$0xff]
  %v379 = vld [vmem:[%s6 + $0xd8] sm:$0xff]
  %v380 = vld [vmem:[%s6 + $0xe0] sm:$0xff]
  %v381 = vld [vmem:[%s6 + $0xe8] sm:$0xff]
  %v382 = vld [vmem:[%s6 + $0xf0] sm:$0xff]
  %v383 = vld [vmem:[%s6 + $0xf8] sm:$0xff]
  %v384 = vld [vmem:[#allocation2 + $0x8] sm:$0xff]
  %v385 = vld [vmem:[#allocation2 + $0x10] sm:$0xff]
  %v386 = vld [vmem:[#allocation2 + $0x28] sm:$0xff]
  %v387 = vld [vmem:[#allocation2 + $0x30] sm:$0xff]
  %s388 = scalar_lea.vmem %s6, 256
  %v389 = vld [vmem:[%s388] sm:$0xff]
  %v390 = vld [vmem:[%s388 + $0x8] sm:$0xff]
  %v391 = vld [vmem:[%s388 + $0x10] sm:$0xff]
  %v392 = vld [vmem:[%s388 + $0x18] sm:$0xff]
  %v393 = vld [vmem:[%s388 + $0x20] sm:$0xff]
  %v394 = vld [vmem:[%s388 + $0x28] sm:$0xff]
  %v395 = vld [vmem:[%s388 + $0x30] sm:$0xff]
  %v396 = vld [vmem:[%s388 + $0x38] sm:$0xff]
  %v397 = vld [vmem:[%s388 + $0x40] sm:$0xff]
  %v398 = vld [vmem:[%s388 + $0x48] sm:$0xff]
  %v399 = vld [vmem:[%s388 + $0x50] sm:$0xff]
  %v400 = vld [vmem:[%s388 + $0x58] sm:$0xff]
  %v401 = vld [vmem:[%s388 + $0x60] sm:$0xff]
  %v402 = vld [vmem:[%s388 + $0x68] sm:$0xff]
  %v403 = vld [vmem:[%s388 + $0x70] sm:$0xff]
  %v404 = vld [vmem:[%s388 + $0x78] sm:$0xff]
  %v405 = vld [vmem:[%s388 + $0x80] sm:$0xff]
  %v406 = vld [vmem:[%s388 + $0x88] sm:$0xff]
  %v407 = vld [vmem:[%s388 + $0x90] sm:$0xff]
  %v408 = vld [vmem:[%s388 + $0x98] sm:$0xff]
  %v409 = vld [vmem:[%s388 + $0xa0] sm:$0xff]
  %v410 = vld [vmem:[%s388 + $0xa8] sm:$0xff]
  %v411 = vld [vmem:[%s388 + $0xb0] sm:$0xff]
  %v412 = vld [vmem:[%s388 + $0xb8] sm:$0xff]
  %v413 = vld [vmem:[%s388 + $0xc0] sm:$0xff]
  %v414 = vld [vmem:[%s388 + $0xc8] sm:$0xff]
  %v415 = vld [vmem:[%s388 + $0xd0] sm:$0xff]
  %v416 = vld [vmem:[%s388 + $0xd8] sm:$0xff]
  %v417 = vld [vmem:[%s388 + $0xe0] sm:$0xff]
  %v418 = vld [vmem:[%s388 + $0xe8] sm:$0xff]
  %v419 = vld [vmem:[%s388 + $0xf0] sm:$0xff]
  %v420 = vld [vmem:[%s388 + $0xf8] sm:$0xff]
  %v422 = vsel %vm75, %v384, 0
  %v425 = vsel %vm75, %v385, 0
  %v428 = vsel %vm75, %v386, 0
  %v431 = vsel %vm75, %v387, 0
  %433 = vmatprep.subr.mxu0 %v390
  %434 = vmatpush1.msra.mxu0 %v389
  %435 = vmatprep.subr.mxu0 %v394
  %436 = vmatpush1.msra.mxu0 %v393
  %437 = vmatprep.subr.mxu0 %v398
  %438 = vmatpush1.msra.mxu0 %v397
  %439 = vmatprep.subr.mxu0 %v402
  %440 = vmatpush1.msra.mxu0 %v401
  %441 = vmatprep.subr.mxu0 %v406
  %442 = vmatpush1.msra.mxu0 %v405
  %443 = vmatprep.subr.mxu0 %v410
  %444 = vmatpush1.msra.mxu0 %v409
  %445 = vmatprep.subr.mxu0 %v414
  %446 = vmatpush1.msra.mxu0 %v413
  %447 = vmatprep.subr.mxu0 %v418
  %448 = vmatpush1.msra.mxu0 %v417
  %449 = vmatprep.subr.mxu0 0.0
  %450 = vmatpush1.msra.mxu0 0.0
  %451 = vmatprep.subr.mxu0 0.0
  %452 = vmatpush1.msra.mxu0 0.0
  %453 = vmatprep.subr.mxu0 0.0
  %454 = vmatpush1.msra.mxu0 0.0
  %455 = vmatprep.subr.mxu0 0.0
  %456 = vmatpush1.msra.mxu0 0.0
  %457 = vmatprep.subr.mxu0 0.0
  %458 = vmatpush1.msra.mxu0 0.0
  %459 = vmatprep.subr.mxu0 0.0
  %460 = vmatpush1.msra.mxu0 0.0
  %461 = vmatprep.subr.mxu0 0.0
  %462 = vmatpush1.msra.mxu0 0.0
  %463 = vmatprep.subr.mxu0 0.0
  %464 = vmatpush1.msra.mxu0 0.0
  %465 = vmatprep.subr.mxu0 0.0
  %466 = vmatpush1.msra.mxu0 0.0
  %467 = vmatprep.subr.mxu0 0.0
  %468 = vmatpush1.msra.mxu0 0.0
  %469 = vmatprep.subr.mxu0 0.0
  %470 = vmatpush1.msra.mxu0 0.0
  %471 = vmatprep.subr.mxu0 0.0
  %472 = vmatpush1.msra.mxu0 0.0
  %473 = vmatprep.subr.mxu0 0.0
  %474 = vmatpush1.msra.mxu0 0.0
  %475 = vmatprep.subr.mxu0 0.0
  %476 = vmatpush1.msra.mxu0 0.0
  %477 = vmatprep.subr.mxu0 0.0
  %478 = vmatpush1.msra.mxu0 0.0
  %479 = vmatprep.subr.mxu0 0.0
  %480 = vmatpush1.msra.mxu0 0.0
  %481 = vmatprep.subr.mxu0 0.0
  %482 = vmatpush1.msra.mxu0 0.0
  %483 = vmatprep.subr.mxu0 0.0
  %484 = vmatpush1.msra.mxu0 0.0
  %485 = vmatprep.subr.mxu0 0.0
  %486 = vmatpush1.msra.mxu0 0.0
  %487 = vmatprep.subr.mxu0 0.0
  %488 = vmatpush1.msra.mxu0 0.0
  %489 = vmatprep.subr.mxu0 0.0
  %490 = vmatpush1.msra.mxu0 0.0
  %491 = vmatprep.subr.mxu0 0.0
  %492 = vmatpush1.msra.mxu0 0.0
  %493 = vmatprep.subr.mxu0 0.0
  %494 = vmatpush1.msra.mxu0 0.0
  %495 = vmatprep.subr.mxu0 0.0
  %496 = vmatpush1.msra.mxu0 0.0
  %497 = vmatprep.mubr.f32.mxu0 0.0
  %498 = vmatmul.mubr.f32.gmra.mrb[0].mxu0 %v422
  %v499 = vpop.f32.mrb[0].mxu0
  %v500 = vadd.f32 0.0, %v499
  %v501 = vpop.f32.mrb[0].mxu0
  %v502 = vadd.f32 0.0, %v501
  %503 = vmatprep.mubr.f32.mxu0 0.0
  %504 = vmatmul.mubr.f32.gmra.mrb[0].mxu0 %v425
  %v505 = vpop.f32.mrb[0].mxu0
  %v506 = vadd.f32 0.0, %v505
  %v507 = vpop.f32.mrb[0].mxu0
  %v508 = vadd.f32 0.0, %v507
  %509 = vmatprep.mubr.f32.mxu0 0.0
  %510 = vmatmul.mubr.f32.gmra.mrb[0].mxu0 %v428
  %v511 = vpop.f32.mrb[0].mxu0
  %v512 = vadd.f32 0.0, %v511
  %v513 = vpop.f32.mrb[0].mxu0
  %v514 = vadd.f32 0.0, %v513
  %515 = vmatprep.mubr.f32.mxu0 0.0
  %516 = vmatmul.mubr.f32.gmra.mrb[0].mxu0 %v431
  %v517 = vpop.f32.mrb[0].mxu0
  %v518 = vadd.f32 0.0, %v517
  %v519 = vpop.f32.mrb[0].mxu0
  %v520 = vadd.f32 0.0, %v519
  %521 = vdwg.mxu0
  %522 = vmatprep.subr.mxu0 %v392
  %523 = vmatpush1.msra.mxu0 %v391
  %524 = vmatprep.subr.mxu0 %v396
  %525 = vmatpush1.msra.mxu0 %v395
  %526 = vmatprep.subr.mxu0 %v400
  %527 = vmatpush1.msra.mxu0 %v399
  %528 = vmatprep.subr.mxu0 %v404
  %529 = vmatpush1.msra.mxu0 %v403
  %530 = vmatprep.subr.mxu0 %v408
  %531 = vmatpush1.msra.mxu0 %v407
  %532 = vmatprep.subr.mxu0 %v412
  %533 = vmatpush1.msra.mxu0 %v411
  %534 = vmatprep.subr.mxu0 %v416
  %535 = vmatpush1.msra.mxu0 %v415
  %536 = vmatprep.subr.mxu0 %v420
  %537 = vmatpush1.msra.mxu0 %v419
  %538 = vmatprep.subr.mxu0 0.0
  %539 = vmatpush1.msra.mxu0 0.0
  %540 = vmatprep.subr.mxu0 0.0
  %541 = vmatpush1.msra.mxu0 0.0
  %542 = vmatprep.subr.mxu0 0.0
  %543 = vmatpush1.msra.mxu0 0.0
  %544 = vmatprep.subr.mxu0 0.0
  %545 = vmatpush1.msra.mxu0 0.0
  %546 = vmatprep.subr.mxu0 0.0
  %547 = vmatpush1.msra.mxu0 0.0
  %548 = vmatprep.subr.mxu0 0.0
  %549 = vmatpush1.msra.mxu0 0.0
  %550 = vmatprep.subr.mxu0 0.0
  %551 = vmatpush1.msra.mxu0 0.0
  %552 = vmatprep.subr.mxu0 0.0
  %553 = vmatpush1.msra.mxu0 0.0
  %554 = vmatprep.subr.mxu0 0.0
  %555 = vmatpush1.msra.mxu0 0.0
  %556 = vmatprep.subr.mxu0 0.0
  %557 = vmatpush1.msra.mxu0 0.0
  %558 = vmatprep.subr.mxu0 0.0
  %559 = vmatpush1.msra.mxu0 0.0
  %560 = vmatprep.subr.mxu0 0.0
  %561 = vmatpush1.msra.mxu0 0.0
  %562 = vmatprep.subr.mxu0 0.0
  %563 = vmatpush1.msra.mxu0 0.0
  %564 = vmatprep.subr.mxu0 0.0
  %565 = vmatpush1.msra.mxu0 0.0
  %566 = vmatprep.subr.mxu0 0.0
  %567 = vmatpush1.msra.mxu0 0.0
  %568 = vmatprep.subr.mxu0 0.0
  %569 = vmatpush1.msra.mxu0 0.0
  %570 = vmatprep.subr.mxu0 0.0
  %571 = vmatpush1.msra.mxu0 0.0
  %572 = vmatprep.subr.mxu0 0.0
  %573 = vmatpush1.msra.mxu0 0.0
  %574 = vmatprep.subr.mxu0 0.0
  %575 = vmatpush1.msra.mxu0 0.0
  %576 = vmatprep.subr.mxu0 0.0
  %577 = vmatpush1.msra.mxu0 0.0
  %578 = vmatprep.subr.mxu0 0.0
  %579 = vmatpush1.msra.mxu0 0.0
  %580 = vmatprep.subr.mxu0 0.0
  %581 = vmatpush1.msra.mxu0 0.0
  %582 = vmatprep.subr.mxu0 0.0
  %583 = vmatpush1.msra.mxu0 0.0
  %584 = vmatprep.subr.mxu0 0.0
  %585 = vmatpush1.msra.mxu0 0.0
  %586 = vmatprep.mubr.f32.mxu0 0.0
  %587 = vmatmul.mubr.f32.gmra.mrb[0].mxu0 %v422
  %v588 = vpop.f32.mrb[0].mxu0
  %v589 = vadd.f32 0.0, %v588
  %v590 = vpop.f32.mrb[0].mxu0
  %v591 = vadd.f32 0.0, %v590
  %592 = vmatprep.mubr.f32.mxu0 0.0
  %593 = vmatmul.mubr.f32.gmra.mrb[0].mxu0 %v425
  %v594 = vpop.f32.mrb[0].mxu0
  %v595 = vadd.f32 0.0, %v594
  %v596 = vpop.f32.mrb[0].mxu0
  %v597 = vadd.f32 0.0, %v596
  %598 = vmatprep.mubr.f32.mxu0 0.0
  %599 = vmatmul.mubr.f32.gmra.mrb[0].mxu0 %v428
  %v600 = vpop.f32.mrb[0].mxu0
  %v601 = vadd.f32 0.0, %v600
  %v602 = vpop.f32.mrb[0].mxu0
  %v603 = vadd.f32 0.0, %v602
  %604 = vmatprep.mubr.f32.mxu0 0.0
  %605 = vmatmul.mubr.f32.gmra.mrb[0].mxu0 %v431
  %v606 = vpop.f32.mrb[0].mxu0
  %v607 = vadd.f32 0.0, %v606
  %v608 = vpop.f32.mrb[0].mxu0
  %v609 = vadd.f32 0.0, %v608
  %610 = vdwg.mxu0
  %v612 = vsel %vm75, %v348, 0
  %v615 = vsel %vm75, %v349, 0
  %v618 = vsel %vm75, %v350, 0
  %v621 = vsel %vm75, %v351, 0
  %623 = vmatprep.subr.mxu0 %v353
  %624 = vmatpush1.msra.mxu0 %v352
  %625 = vmatprep.subr.mxu0 %v357
  %626 = vmatpush1.msra.mxu0 %v356
  %627 = vmatprep.subr.mxu0 %v361
  %628 = vmatpush1.msra.mxu0 %v360
  %629 = vmatprep.subr.mxu0 %v365
  %630 = vmatpush1.msra.mxu0 %v364
  %631 = vmatprep.subr.mxu0 %v369
  %632 = vmatpush1.msra.mxu0 %v368
  %633 = vmatprep.subr.mxu0 %v373
  %634 = vmatpush1.msra.mxu0 %v372
  %635 = vmatprep.subr.mxu0 %v377
  %636 = vmatpush1.msra.mxu0 %v376
  %637 = vmatprep.subr.mxu0 %v381
  %638 = vmatpush1.msra.mxu0 %v380
  %639 = vmatprep.subr.mxu0 0.0
  %640 = vmatpush1.msra.mxu0 0.0
  %641 = vmatprep.subr.mxu0 0.0
  %642 = vmatpush1.msra.mxu0 0.0
  %643 = vmatprep.subr.mxu0 0.0
  %644 = vmatpush1.msra.mxu0 0.0
  %645 = vmatprep.subr.mxu0 0.0
  %646 = vmatpush1.msra.mxu0 0.0
  %647 = vmatprep.subr.mxu0 0.0
  %648 = vmatpush1.msra.mxu0 0.0
  %649 = vmatprep.subr.mxu0 0.0
  %650 = vmatpush1.msra.mxu0 0.0
  %651 = vmatprep.subr.mxu0 0.0
  %652 = vmatpush1.msra.mxu0 0.0
  %653 = vmatprep.subr.mxu0 0.0
  %654 = vmatpush1.msra.mxu0 0.0
  %655 = vmatprep.subr.mxu0 0.0
  %656 = vmatpush1.msra.mxu0 0.0
  %657 = vmatprep.subr.mxu0 0.0
  %658 = vmatpush1.msra.mxu0 0.0
  %659 = vmatprep.subr.mxu0 0.0
  %660 = vmatpush1.msra.mxu0 0.0
  %661 = vmatprep.subr.mxu0 0.0
  %662 = vmatpush1.msra.mxu0 0.0
  %663 = vmatprep.subr.mxu0 0.0
  %664 = vmatpush1.msra.mxu0 0.0
  %665 = vmatprep.subr.mxu0 0.0
  %666 = vmatpush1.msra.mxu0 0.0
  %667 = vmatprep.subr.mxu0 0.0
  %668 = vmatpush1.msra.mxu0 0.0
  %669 = vmatprep.subr.mxu0 0.0
  %670 = vmatpush1.msra.mxu0 0.0
  %671 = vmatprep.subr.mxu0 0.0
  %672 = vmatpush1.msra.mxu0 0.0
  %673 = vmatprep.subr.mxu0 0.0
  %674 = vmatpush1.msra.mxu0 0.0
  %675 = vmatprep.subr.mxu0 0.0
  %676 = vmatpush1.msra.mxu0 0.0
  %677 = vmatprep.subr.mxu0 0.0
  %678 = vmatpush1.msra.mxu0 0.0
  %679 = vmatprep.subr.mxu0 0.0
  %680 = vmatpush1.msra.mxu0 0.0
  %681 = vmatprep.subr.mxu0 0.0
  %682 = vmatpush1.msra.mxu0 0.0
  %683 = vmatprep.subr.mxu0 0.0
  %684 = vmatpush1.msra.mxu0 0.0
  %685 = vmatprep.subr.mxu0 0.0
  %686 = vmatpush1.msra.mxu0 0.0
  %687 = vmatprep.mubr.f32.mxu0 0.0
  %688 = vmatmul.mubr.f32.gmra.mrb[0].mxu0 %v612
  %v689 = vpop.f32.mrb[0].mxu0
  %v690 = vadd.f32 %v500, %v689
  %v691 = vpop.f32.mrb[0].mxu0
  %v692 = vadd.f32 %v502, %v691
  %693 = vmatprep.mubr.f32.mxu0 0.0
  %694 = vmatmul.mubr.f32.gmra.mrb[0].mxu0 %v615
  %v695 = vpop.f32.mrb[0].mxu0
  %v696 = vadd.f32 %v506, %v695
  %v697 = vpop.f32.mrb[0].mxu0
  %v698 = vadd.f32 %v508, %v697
  %699 = vmatprep.mubr.f32.mxu0 0.0
  %700 = vmatmul.mubr.f32.gmra.mrb[0].mxu0 %v618
  %v701 = vpop.f32.mrb[0].mxu0
  %v702 = vadd.f32 %v512, %v701
  %v703 = vpop.f32.mrb[0].mxu0
  %v704 = vadd.f32 %v514, %v703
  %705 = vmatprep.mubr.f32.mxu0 0.0
  %706 = vmatmul.mubr.f32.gmra.mrb[0].mxu0 %v621
  %v707 = vpop.f32.mrb[0].mxu0
  %v708 = vadd.f32 %v518, %v707
  %v709 = vpop.f32.mrb[0].mxu0
  %v710 = vadd.f32 %v520, %v709
  %711 = vdwg.mxu0
  %712 = vmatprep.subr.mxu0 %v355
  %713 = vmatpush1.msra.mxu0 %v354
  %714 = vmatprep.subr.mxu0 %v359
  %715 = vmatpush1.msra.mxu0 %v358
  %716 = vmatprep.subr.mxu0 %v363
  %717 = vmatpush1.msra.mxu0 %v362
  %718 = vmatprep.subr.mxu0 %v367
  %719 = vmatpush1.msra.mxu0 %v366
  %720 = vmatprep.subr.mxu0 %v371
  %721 = vmatpush1.msra.mxu0 %v370
  %722 = vmatprep.subr.mxu0 %v375
  %723 = vmatpush1.msra.mxu0 %v374
  %724 = vmatprep.subr.mxu0 %v379
  %725 = vmatpush1.msra.mxu0 %v378
  %726 = vmatprep.subr.mxu0 %v383
  %727 = vmatpush1.msra.mxu0 %v382
  %728 = vmatprep.subr.mxu0 0.0
  %729 = vmatpush1.msra.mxu0 0.0
  %730 = vmatprep.subr.mxu0 0.0
  %731 = vmatpush1.msra.mxu0 0.0
  %732 = vmatprep.subr.mxu0 0.0
  %733 = vmatpush1.msra.mxu0 0.0
  %734 = vmatprep.subr.mxu0 0.0
  %735 = vmatpush1.msra.mxu0 0.0
  %736 = vmatprep.subr.mxu0 0.0
  %737 = vmatpush1.msra.mxu0 0.0
  %738 = vmatprep.subr.mxu0 0.0
  %739 = vmatpush1.msra.mxu0 0.0
  %740 = vmatprep.subr.mxu0 0.0
  %741 = vmatpush1.msra.mxu0 0.0
  %742 = vmatprep.subr.mxu0 0.0
  %743 = vmatpush1.msra.mxu0 0.0
  %744 = vmatprep.subr.mxu0 0.0
  %745 = vmatpush1.msra.mxu0 0.0
  %746 = vmatprep.subr.mxu0 0.0
  %747 = vmatpush1.msra.mxu0 0.0
  %748 = vmatprep.subr.mxu0 0.0
  %749 = vmatpush1.msra.mxu0 0.0
  %750 = vmatprep.subr.mxu0 0.0
  %751 = vmatpush1.msra.mxu0 0.0
  %752 = vmatprep.subr.mxu0 0.0
  %753 = vmatpush1.msra.mxu0 0.0
  %754 = vmatprep.subr.mxu0 0.0
  %755 = vmatpush1.msra.mxu0 0.0
  %756 = vmatprep.subr.mxu0 0.0
  %757 = vmatpush1.msra.mxu0 0.0
  %758 = vmatprep.subr.mxu0 0.0
  %759 = vmatpush1.msra.mxu0 0.0
  %760 = vmatprep.subr.mxu0 0.0
  %761 = vmatpush1.msra.mxu0 0.0
  %762 = vmatprep.subr.mxu0 0.0
  %763 = vmatpush1.msra.mxu0 0.0
  %764 = vmatprep.subr.mxu0 0.0
  %765 = vmatpush1.msra.mxu0 0.0
  %766 = vmatprep.subr.mxu0 0.0
  %767 = vmatpush1.msra.mxu0 0.0
  %768 = vmatprep.subr.mxu0 0.0
  %769 = vmatpush1.msra.mxu0 0.0
  %770 = vmatprep.subr.mxu0 0.0
  %771 = vmatpush1.msra.mxu0 0.0
  %772 = vmatprep.subr.mxu0 0.0
  %773 = vmatpush1.msra.mxu0 0.0
  %774 = vmatprep.subr.mxu0 0.0
  %775 = vmatpush1.msra.mxu0 0.0
  %776 = vmatprep.mubr.f32.mxu0 0.0
  %777 = vmatmul.mubr.f32.gmra.mrb[0].mxu0 %v612
  %v778 = vpop.f32.mrb[0].mxu0
  %v779 = vadd.f32 %v589, %v778
  %v780 = vpop.f32.mrb[0].mxu0
  %v781 = vadd.f32 %v591, %v780
  %782 = vmatprep.mubr.f32.mxu0 0.0
  %783 = vmatmul.mubr.f32.gmra.mrb[0].mxu0 %v615
  %v784 = vpop.f32.mrb[0].mxu0
  %v785 = vadd.f32 %v595, %v784
  %v786 = vpop.f32.mrb[0].mxu0
  %v787 = vadd.f32 %v597, %v786
  %788 = vmatprep.mubr.f32.mxu0 0.0
  %789 = vmatmul.mubr.f32.gmra.mrb[0].mxu0 %v618
  %v790 = vpop.f32.mrb[0].mxu0
  %v791 = vadd.f32 %v601, %v790
  %v792 = vpop.f32.mrb[0].mxu0
  %v793 = vadd.f32 %v603, %v792
  %794 = vmatprep.mubr.f32.mxu0 0.0
  %795 = vmatmul.mubr.f32.gmra.mrb[0].mxu0 %v621
  %v796 = vpop.f32.mrb[0].mxu0
  %v797 = vadd.f32 %v607, %v796
  %v798 = vpop.f32.mrb[0].mxu0
  %v799 = vadd.f32 %v609, %v798
  %800 = vdwg.mxu0
  %v801 = vld [vmem:[#allocation2 + $0x9] sm:$0xff]
  %v802 = vld [vmem:[#allocation2 + $0x11] sm:$0xff]
  %v803 = vld [vmem:[#allocation2 + $0x29] sm:$0xff]
  %v804 = vld [vmem:[#allocation2 + $0x31] sm:$0xff]
  %s805 = scalar_lea.vmem %s6, 512
  %v806 = vld [vmem:[%s805] sm:$0xff]
  %v807 = vld [vmem:[%s805 + $0x8] sm:$0xff]
  %v808 = vld [vmem:[%s805 + $0x10] sm:$0xff]
  %v809 = vld [vmem:[%s805 + $0x18] sm:$0xff]
  %v810 = vld [vmem:[%s805 + $0x20] sm:$0xff]
  %v811 = vld [vmem:[%s805 + $0x28] sm:$0xff]
  %v812 = vld [vmem:[%s805 + $0x30] sm:$0xff]
  %v813 = vld [vmem:[%s805 + $0x38] sm:$0xff]
  %v814 = vld [vmem:[%s805 + $0x40] sm:$0xff]
  %v815 = vld [vmem:[%s805 + $0x48] sm:$0xff]
  %v816 = vld [vmem:[%s805 + $0x50] sm:$0xff]
  %v817 = vld [vmem:[%s805 + $0x58] sm:$0xff]
  %v818 = vld [vmem:[%s805 + $0x60] sm:$0xff]
  %v819 = vld [vmem:[%s805 + $0x68] sm:$0xff]
  %v820 = vld [vmem:[%s805 + $0x70] sm:$0xff]
  %v821 = vld [vmem:[%s805 + $0x78] sm:$0xff]
  %v822 = vld [vmem:[%s805 + $0x80] sm:$0xff]
  %v823 = vld [vmem:[%s805 + $0x88] sm:$0xff]
  %v824 = vld [vmem:[%s805 + $0x90] sm:$0xff]
  %v825 = vld [vmem:[%s805 + $0x98] sm:$0xff]
  %v826 = vld [vmem:[%s805 + $0xa0] sm:$0xff]
  %v827 = vld [vmem:[%s805 + $0xa8] sm:$0xff]
  %v828 = vld [vmem:[%s805 + $0xb0] sm:$0xff]
  %v829 = vld [vmem:[%s805 + $0xb8] sm:$0xff]
  %v830 = vld [vmem:[%s805 + $0xc0] sm:$0xff]
  %v831 = vld [vmem:[%s805 + $0xc8] sm:$0xff]
  %v832 = vld [vmem:[%s805 + $0xd0] sm:$0xff]
  %v833 = vld [vmem:[%s805 + $0xd8] sm:$0xff]
  %v834 = vld [vmem:[%s805 + $0xe0] sm:$0xff]
  %v835 = vld [vmem:[%s805 + $0xe8] sm:$0xff]
  %v836 = vld [vmem:[%s805 + $0xf0] sm:$0xff]
  %v837 = vld [vmem:[%s805 + $0xf8] sm:$0xff]
  %v839 = vsel %vm75, %v801, 0
  %v842 = vsel %vm75, %v802, 0
  %v845 = vsel %vm75, %v803, 0
  %v848 = vsel %vm75, %v804, 0
  %850 = vmatprep.subr.mxu0 %v807
  %851 = vmatpush1.msra.mxu0 %v806
  %852 = vmatprep.subr.mxu0 %v811
  %853 = vmatpush1.msra.mxu0 %v810
  %854 = vmatprep.subr.mxu0 %v815
  %855 = vmatpush1.msra.mxu0 %v814
  %856 = vmatprep.subr.mxu0 %v819
  %857 = vmatpush1.msra.mxu0 %v818
  %858 = vmatprep.subr.mxu0 %v823
  %859 = vmatpush1.msra.mxu0 %v822
  %860 = vmatprep.subr.mxu0 %v827
  %861 = vmatpush1.msra.mxu0 %v826
  %862 = vmatprep.subr.mxu0 %v831
  %863 = vmatpush1.msra.mxu0 %v830
  %864 = vmatprep.subr.mxu0 %v835
  %865 = vmatpush1.msra.mxu0 %v834
  %866 = vmatprep.subr.mxu0 0.0
  %867 = vmatpush1.msra.mxu0 0.0
  %868 = vmatprep.subr.mxu0 0.0
  %869 = vmatpush1.msra.mxu0 0.0
  %870 = vmatprep.subr.mxu0 0.0
  %871 = vmatpush1.msra.mxu0 0.0
  %872 = vmatprep.subr.mxu0 0.0
  %873 = vmatpush1.msra.mxu0 0.0
  %874 = vmatprep.subr.mxu0 0.0
  %875 = vmatpush1.msra.mxu0 0.0
  %876 = vmatprep.subr.mxu0 0.0
  %877 = vmatpush1.msra.mxu0 0.0
  %878 = vmatprep.subr.mxu0 0.0
  %879 = vmatpush1.msra.mxu0 0.0
  %880 = vmatprep.subr.mxu0 0.0
  %881 = vmatpush1.msra.mxu0 0.0
  %882 = vmatprep.subr.mxu0 0.0
  %883 = vmatpush1.msra.mxu0 0.0
  %884 = vmatprep.subr.mxu0 0.0
  %885 = vmatpush1.msra.mxu0 0.0
  %886 = vmatprep.subr.mxu0 0.0
  %887 = vmatpush1.msra.mxu0 0.0
  %888 = vmatprep.subr.mxu0 0.0
  %889 = vmatpush1.msra.mxu0 0.0
  %890 = vmatprep.subr.mxu0 0.0
  %891 = vmatpush1.msra.mxu0 0.0
  %892 = vmatprep.subr.mxu0 0.0
  %893 = vmatpush1.msra.mxu0 0.0
  %894 = vmatprep.subr.mxu0 0.0
  %895 = vmatpush1.msra.mxu0 0.0
  %896 = vmatprep.subr.mxu0 0.0
  %897 = vmatpush1.msra.mxu0 0.0
  %898 = vmatprep.subr.mxu0 0.0
  %899 = vmatpush1.msra.mxu0 0.0
  %900 = vmatprep.subr.mxu0 0.0
  %901 = vmatpush1.msra.mxu0 0.0
  %902 = vmatprep.subr.mxu0 0.0
  %903 = vmatpush1.msra.mxu0 0.0
  %904 = vmatprep.subr.mxu0 0.0
  %905 = vmatpush1.msra.mxu0 0.0
  %906 = vmatprep.subr.mxu0 0.0
  %907 = vmatpush1.msra.mxu0 0.0
  %908 = vmatprep.subr.mxu0 0.0
  %909 = vmatpush1.msra.mxu0 0.0
  %910 = vmatprep.subr.mxu0 0.0
  %911 = vmatpush1.msra.mxu0 0.0
  %912 = vmatprep.subr.mxu0 0.0
  %913 = vmatpush1.msra.mxu0 0.0
  %914 = vmatprep.mubr.f32.mxu0 0.0
  %915 = vmatmul.mubr.f32.gmra.mrb[0].mxu0 %v839
  %v916 = vpop.f32.mrb[0].mxu0
  %v917 = vadd.f32 0.0, %v916
  %v918 = vpop.f32.mrb[0].mxu0
  %v919 = vadd.f32 0.0, %v918
  %920 = vmatprep.mubr.f32.mxu0 0.0
  %921 = vmatmul.mubr.f32.gmra.mrb[0].mxu0 %v842
  %v922 = vpop.f32.mrb[0].mxu0
  %v923 = vadd.f32 0.0, %v922
  %v924 = vpop.f32.mrb[0].mxu0
  %v925 = vadd.f32 0.0, %v924
  %926 = vmatprep.mubr.f32.mxu0 0.0
  %927 = vmatmul.mubr.f32.gmra.mrb[0].mxu0 %v845
  %v928 = vpop.f32.mrb[0].mxu0
  %v929 = vadd.f32 0.0, %v928
  %v930 = vpop.f32.mrb[0].mxu0
  %v931 = vadd.f32 0.0, %v930
  %932 = vmatprep.mubr.f32.mxu0 0.0
  %933 = vmatmul.mubr.f32.gmra.mrb[0].mxu0 %v848
  %v934 = vpop.f32.mrb[0].mxu0
  %v935 = vadd.f32 0.0, %v934
  %v936 = vpop.f32.mrb[0].mxu0
  %v937 = vadd.f32 0.0, %v936
  %938 = vdwg.mxu0
  %939 = vmatprep.subr.mxu0 %v809
  %940 = vmatpush1.msra.mxu0 %v808
  %941 = vmatprep.subr.mxu0 %v813
  %942 = vmatpush1.msra.mxu0 %v812
  %943 = vmatprep.subr.mxu0 %v817
  %944 = vmatpush1.msra.mxu0 %v816
  %945 = vmatprep.subr.mxu0 %v821
  %946 = vmatpush1.msra.mxu0 %v820
  %947 = vmatprep.subr.mxu0 %v825
  %948 = vmatpush1.msra.mxu0 %v824
  %949 = vmatprep.subr.mxu0 %v829
  %950 = vmatpush1.msra.mxu0 %v828
  %951 = vmatprep.subr.mxu0 %v833
  %952 = vmatpush1.msra.mxu0 %v832
  %953 = vmatprep.subr.mxu0 %v837
  %954 = vmatpush1.msra.mxu0 %v836
  %955 = vmatprep.subr.mxu0 0.0
  %956 = vmatpush1.msra.mxu0 0.0
  %957 = vmatprep.subr.mxu0 0.0
  %958 = vmatpush1.msra.mxu0 0.0
  %959 = vmatprep.subr.mxu0 0.0
  %960 = vmatpush1.msra.mxu0 0.0
  %961 = vmatprep.subr.mxu0 0.0
  %962 = vmatpush1.msra.mxu0 0.0
  %963 = vmatprep.subr.mxu0 0.0
  %964 = vmatpush1.msra.mxu0 0.0
  %965 = vmatprep.subr.mxu0 0.0
  %966 = vmatpush1.msra.mxu0 0.0
  %967 = vmatprep.subr.mxu0 0.0
  %968 = vmatpush1.msra.mxu0 0.0
  %969 = vmatprep.subr.mxu0 0.0
  %970 = vmatpush1.msra.mxu0 0.0
  %971 = vmatprep.subr.mxu0 0.0
  %972 = vmatpush1.msra.mxu0 0.0
  %973 = vmatprep.subr.mxu0 0.0
  %974 = vmatpush1.msra.mxu0 0.0
  %975 = vmatprep.subr.mxu0 0.0
  %976 = vmatpush1.msra.mxu0 0.0
  %977 = vmatprep.subr.mxu0 0.0
  %978 = vmatpush1.msra.mxu0 0.0
  %979 = vmatprep.subr.mxu0 0.0
  %980 = vmatpush1.msra.mxu0 0.0
  %981 = vmatprep.subr.mxu0 0.0
  %982 = vmatpush1.msra.mxu0 0.0
  %983 = vmatprep.subr.mxu0 0.0
  %984 = vmatpush1.msra.mxu0 0.0
  %985 = vmatprep.subr.mxu0 0.0
  %986 = vmatpush1.msra.mxu0 0.0
  %987 = vmatprep.subr.mxu0 0.0
  %988 = vmatpush1.msra.mxu0 0.0
  %989 = vmatprep.subr.mxu0 0.0
  %990 = vmatpush1.msra.mxu0 0.0
  %991 = vmatprep.subr.mxu0 0.0
  %992 = vmatpush1.msra.mxu0 0.0
  %993 = vmatprep.subr.mxu0 0.0
  %994 = vmatpush1.msra.mxu0 0.0
  %995 = vmatprep.subr.mxu0 0.0
  %996 = vmatpush1.msra.mxu0 0.0
  %997 = vmatprep.subr.mxu0 0.0
  %998 = vmatpush1.msra.mxu0 0.0
  %999 = vmatprep.subr.mxu0 0.0
  %1000 = vmatpush1.msra.mxu0 0.0
  %1001 = vmatprep.subr.mxu0 0.0
  %1002 = vmatpush1.msra.mxu0 0.0
  %1003 = vmatprep.mubr.f32.mxu0 0.0
  %1004 = vmatmul.mubr.f32.gmra.mrb[0].mxu0 %v839
  %v1005 = vpop.f32.mrb[0].mxu0
  %v1006 = vadd.f32 0.0, %v1005
  %v1007 = vpop.f32.mrb[0].mxu0
  %v1008 = vadd.f32 0.0, %v1007
  %1009 = vmatprep.mubr.f32.mxu0 0.0
  %1010 = vmatmul.mubr.f32.gmra.mrb[0].mxu0 %v842
  %v1011 = vpop.f32.mrb[0].mxu0
  %v1012 = vadd.f32 0.0, %v1011
  %v1013 = vpop.f32.mrb[0].mxu0
  %v1014 = vadd.f32 0.0, %v1013
  %1015 = vmatprep.mubr.f32.mxu0 0.0
  %1016 = vmatmul.mubr.f32.gmra.mrb[0].mxu0 %v845
  %v1017 = vpop.f32.mrb[0].mxu0
  %v1018 = vadd.f32 0.0, %v1017
  %v1019 = vpop.f32.mrb[0].mxu0
  %v1020 = vadd.f32 0.0, %v1019
  %1021 = vmatprep.mubr.f32.mxu0 0.0
  %1022 = vmatmul.mubr.f32.gmra.mrb[0].mxu0 %v848
  %v1023 = vpop.f32.mrb[0].mxu0
  %v1024 = vadd.f32 0.0, %v1023
  %v1025 = vpop.f32.mrb[0].mxu0
  %v1026 = vadd.f32 0.0, %v1025
  %1027 = vdwg.mxu0
  %v1028 = vadd.f32 %v690, %v917
  %v1029 = vadd.f32 %v692, %v919
  %v1030 = vadd.f32 %v779, %v1006
  %v1031 = vadd.f32 %v781, %v1008
  %v1032 = vadd.f32 %v696, %v923
  %v1033 = vadd.f32 %v698, %v925
  %v1034 = vadd.f32 %v785, %v1012
  %v1035 = vadd.f32 %v787, %v1014
  %v1036 = vadd.f32 %v702, %v929
  %v1037 = vadd.f32 %v704, %v931
  %v1038 = vadd.f32 %v791, %v1018
  %v1039 = vadd.f32 %v793, %v1020
  %v1040 = vadd.f32 %v708, %v935
  %v1041 = vadd.f32 %v710, %v937
  %v1042 = vadd.f32 %v797, %v1024
  %v1043 = vadd.f32 %v799, %v1026
  %v1044 = vld [vmem:[%s7] sm:$0xf]
  %v1045 = vld [vmem:[%s8] sm:$0xf]
  %v1046 = vld [vmem:[%s9] sm:$0xff]
  %v1047 = vld [vmem:[%s9 + $0x8] sm:$0xff]
  %v1048 = vld [vmem:[%s9 + $0x10] sm:$0xff]
  %v1049 = vld [vmem:[%s9 + $0x18] sm:$0xff]
  %v1050 = vld [vmem:[%s9 + $0x20] sm:$0xff]
  %v1051 = vld [vmem:[%s9 + $0x28] sm:$0xff]
  %v1052 = vld [vmem:[%s9 + $0x30] sm:$0xff]
  %v1053 = vld [vmem:[%s9 + $0x38] sm:$0xff]
  %v1054 = vld [vmem:[%s9 + $0x40] sm:$0xff]
  %v1055 = vld [vmem:[%s9 + $0x48] sm:$0xff]
  %v1056 = vld [vmem:[%s9 + $0x50] sm:$0xff]
  %v1057 = vld [vmem:[%s9 + $0x58] sm:$0xff]
  %v1058 = vld [vmem:[%s9 + $0x60] sm:$0xff]
  %v1059 = vld [vmem:[%s9 + $0x68] sm:$0xff]
  %v1060 = vld [vmem:[%s9 + $0x70] sm:$0xff]
  %v1061 = vld [vmem:[%s9 + $0x78] sm:$0xff]
  %v1062 = vld [vmem:[%s9 + $0x80] sm:$0xff]
  %v1063 = vld [vmem:[%s9 + $0x88] sm:$0xff]
  %v1064 = vld [vmem:[%s9 + $0x90] sm:$0xff]
  %v1065 = vld [vmem:[%s9 + $0x98] sm:$0xff]
  %v1066 = vld [vmem:[%s9 + $0xa0] sm:$0xff]
  %v1067 = vld [vmem:[%s9 + $0xa8] sm:$0xff]
  %v1068 = vld [vmem:[%s9 + $0xb0] sm:$0xff]
  %v1069 = vld [vmem:[%s9 + $0xb8] sm:$0xff]
  %v1070 = vld [vmem:[%s9 + $0xc0] sm:$0xff]
  %v1071 = vld [vmem:[%s9 + $0xc8] sm:$0xff]
  %v1072 = vld [vmem:[%s9 + $0xd0] sm:$0xff]
  %v1073 = vld [vmem:[%s9 + $0xd8] sm:$0xff]
  %v1074 = vld [vmem:[%s9 + $0xe0] sm:$0xff]
  %v1075 = vld [vmem:[%s9 + $0xe8] sm:$0xff]
  %v1076 = vld [vmem:[%s9 + $0xf0] sm:$0xff]
  %v1077 = vld [vmem:[%s9 + $0xf8] sm:$0xff]
  %v1078 = vld [vmem:[%s9 + $0x100] sm:$0xff]
  %v1079 = vld [vmem:[%s9 + $0x108] sm:$0xff]
  %v1080 = vld [vmem:[%s9 + $0x110] sm:$0xff]
  %v1081 = vld [vmem:[%s9 + $0x118] sm:$0xff]
  %v1082 = vld [vmem:[%s9 + $0x120] sm:$0xff]
  %v1083 = vld [vmem:[%s9 + $0x128] sm:$0xff]
  %v1084 = vld [vmem:[%s9 + $0x130] sm:$0xff]
  %v1085 = vld [vmem:[%s9 + $0x138] sm:$0xff]
  %v1086 = vld [vmem:[%s9 + $0x140] sm:$0xff]
  %v1087 = vld [vmem:[%s9 + $0x148] sm:$0xff]
  %v1088 = vld [vmem:[%s9 + $0x150] sm:$0xff]
  %v1089 = vld [vmem:[%s9 + $0x158] sm:$0xff]
  %v1090 = vld [vmem:[%s9 + $0x160] sm:$0xff]
  %v1091 = vld [vmem:[%s9 + $0x168] sm:$0xff]
  %v1092 = vld [vmem:[%s9 + $0x170] sm:$0xff]
  %v1093 = vld [vmem:[%s9 + $0x178] sm:$0xff]
  %v1094 = vld [vmem:[%s9 + $0x180] sm:$0xff]
  %v1095 = vld [vmem:[%s9 + $0x188] sm:$0xff]
  %v1096 = vld [vmem:[%s9 + $0x190] sm:$0xff]
  %v1097 = vld [vmem:[%s9 + $0x198] sm:$0xff]
  %v1098 = vld [vmem:[%s9 + $0x1a0] sm:$0xff]
  %v1099 = vld [vmem:[%s9 + $0x1a8] sm:$0xff]
  %v1100 = vld [vmem:[%s9 + $0x1b0] sm:$0xff]
  %v1101 = vld [vmem:[%s9 + $0x1b8] sm:$0xff]
  %v1102 = vld [vmem:[%s9 + $0x1c0] sm:$0xff]
  %v1103 = vld [vmem:[%s9 + $0x1c8] sm:$0xff]
  %v1104 = vld [vmem:[%s9 + $0x1d0] sm:$0xff]
  %v1105 = vld [vmem:[%s9 + $0x1d8] sm:$0xff]
  %v1106 = vld [vmem:[%s9 + $0x1e0] sm:$0xff]
  %v1107 = vld [vmem:[%s9 + $0x1e8] sm:$0xff]
  %v1108 = vld [vmem:[%s9 + $0x1f0] sm:$0xff]
  %v1109 = vld [vmem:[%s9 + $0x1f8] sm:$0xff]
  %v1110 = vld [vmem:[%s9 + $0x200] sm:$0xff]
  %v1111 = vld [vmem:[%s9 + $0x208] sm:$0xff]
  %v1112 = vld [vmem:[%s9 + $0x210] sm:$0xff]
  %v1113 = vld [vmem:[%s9 + $0x218] sm:$0xff]
  %v1114 = vld [vmem:[%s9 + $0x220] sm:$0xff]
  %v1115 = vld [vmem:[%s9 + $0x228] sm:$0xff]
  %v1116 = vld [vmem:[%s9 + $0x230] sm:$0xff]
  %v1117 = vld [vmem:[%s9 + $0x238] sm:$0xff]
  %v1118 = vld [vmem:[%s9 + $0x240] sm:$0xff]
  %v1119 = vld [vmem:[%s9 + $0x248] sm:$0xff]
  %v1120 = vld [vmem:[%s9 + $0x250] sm:$0xff]
  %v1121 = vld [vmem:[%s9 + $0x258] sm:$0xff]
  %v1122 = vld [vmem:[%s9 + $0x260] sm:$0xff]
  %v1123 = vld [vmem:[%s9 + $0x268] sm:$0xff]
  %v1124 = vld [vmem:[%s9 + $0x270] sm:$0xff]
  %v1125 = vld [vmem:[%s9 + $0x278] sm:$0xff]
  %v1126 = vld [vmem:[%s9 + $0x280] sm:$0xff]
  %v1127 = vld [vmem:[%s9 + $0x288] sm:$0xff]
  %v1128 = vld [vmem:[%s9 + $0x290] sm:$0xff]
  %v1129 = vld [vmem:[%s9 + $0x298] sm:$0xff]
  %v1130 = vld [vmem:[%s9 + $0x2a0] sm:$0xff]
  %v1131 = vld [vmem:[%s9 + $0x2a8] sm:$0xff]
  %v1132 = vld [vmem:[%s9 + $0x2b0] sm:$0xff]
  %v1133 = vld [vmem:[%s9 + $0x2b8] sm:$0xff]
  %v1134 = vld [vmem:[%s9 + $0x2c0] sm:$0xff]
  %v1135 = vld [vmem:[%s9 + $0x2c8] sm:$0xff]
  %v1136 = vld [vmem:[%s9 + $0x2d0] sm:$0xff]
  %v1137 = vld [vmem:[%s9 + $0x2d8] sm:$0xff]
  %v1138 = vld [vmem:[%s9 + $0x2e0] sm:$0xff]
  %v1139 = vld [vmem:[%s9 + $0x2e8] sm:$0xff]
  %v1140 = vld [vmem:[%s9 + $0x2f0] sm:$0xff]
  %v1141 = vld [vmem:[%s9 + $0x2f8] sm:$0xff]
  %v1142 = vld [vmem:[%s9 + $0x300] sm:$0xff]
  %v1143 = vld [vmem:[%s9 + $0x308] sm:$0xff]
  %v1144 = vld [vmem:[%s9 + $0x310] sm:$0xff]
  %v1145 = vld [vmem:[%s9 + $0x318] sm:$0xff]
  %v1146 = vld [vmem:[%s9 + $0x320] sm:$0xff]
  %v1147 = vld [vmem:[%s9 + $0x328] sm:$0xff]
  %v1148 = vld [vmem:[%s9 + $0x330] sm:$0xff]
  %v1149 = vld [vmem:[%s9 + $0x338] sm:$0xff]
  %v1150 = vld [vmem:[%s9 + $0x340] sm:$0xff]
  %v1151 = vld [vmem:[%s9 + $0x348] sm:$0xff]
  %v1152 = vld [vmem:[%s9 + $0x350] sm:$0xff]
  %v1153 = vld [vmem:[%s9 + $0x358] sm:$0xff]
  %v1154 = vld [vmem:[%s9 + $0x360] sm:$0xff]
  %v1155 = vld [vmem:[%s9 + $0x368] sm:$0xff]
  %v1156 = vld [vmem:[%s9 + $0x370] sm:$0xff]
  %v1157 = vld [vmem:[%s9 + $0x378] sm:$0xff]
  %v1158 = vld [vmem:[%s9 + $0x380] sm:$0xff]
  %v1159 = vld [vmem:[%s9 + $0x388] sm:$0xff]
  %v1160 = vld [vmem:[%s9 + $0x390] sm:$0xff]
  %v1161 = vld [vmem:[%s9 + $0x398] sm:$0xff]
  %v1162 = vld [vmem:[%s9 + $0x3a0] sm:$0xff]
  %v1163 = vld [vmem:[%s9 + $0x3a8] sm:$0xff]
  %v1164 = vld [vmem:[%s9 + $0x3b0] sm:$0xff]
  %v1165 = vld [vmem:[%s9 + $0x3b8] sm:$0xff]
  %v1166 = vld [vmem:[%s9 + $0x3c0] sm:$0xff]
  %v1167 = vld [vmem:[%s9 + $0x3c8] sm:$0xff]
  %v1168 = vld [vmem:[%s9 + $0x3d0] sm:$0xff]
  %v1169 = vld [vmem:[%s9 + $0x3d8] sm:$0xff]
  %v1170 = vld [vmem:[%s9 + $0x3e0] sm:$0xff]
  %v1171 = vld [vmem:[%s9 + $0x3e8] sm:$0xff]
  %v1172 = vld [vmem:[%s9 + $0x3f0] sm:$0xff]
  %v1173 = vld [vmem:[%s9 + $0x3f8] sm:$0xff]
  %v1174 = vld [vmem:[%s9 + $0x400] sm:$0xff]
  %v1175 = vld [vmem:[%s9 + $0x408] sm:$0xff]
  %v1176 = vld [vmem:[%s9 + $0x410] sm:$0xff]
  %v1177 = vld [vmem:[%s9 + $0x418] sm:$0xff]
  %v1178 = vld [vmem:[%s9 + $0x420] sm:$0xff]
  %v1179 = vld [vmem:[%s9 + $0x428] sm:$0xff]
  %v1180 = vld [vmem:[%s9 + $0x430] sm:$0xff]
  %v1181 = vld [vmem:[%s9 + $0x438] sm:$0xff]
  %v1182 = vld [vmem:[%s9 + $0x440] sm:$0xff]
  %v1183 = vld [vmem:[%s9 + $0x448] sm:$0xff]
  %v1184 = vld [vmem:[%s9 + $0x450] sm:$0xff]
  %v1185 = vld [vmem:[%s9 + $0x458] sm:$0xff]
  %v1186 = vld [vmem:[%s9 + $0x460] sm:$0xff]
  %v1187 = vld [vmem:[%s9 + $0x468] sm:$0xff]
  %v1188 = vld [vmem:[%s9 + $0x470] sm:$0xff]
  %v1189 = vld [vmem:[%s9 + $0x478] sm:$0xff]
  %v1190 = vld [vmem:[%s9 + $0x480] sm:$0xff]
  %v1191 = vld [vmem:[%s9 + $0x488] sm:$0xff]
  %v1192 = vld [vmem:[%s9 + $0x490] sm:$0xff]
  %v1193 = vld [vmem:[%s9 + $0x498] sm:$0xff]
  %v1194 = vld [vmem:[%s9 + $0x4a0] sm:$0xff]
  %v1195 = vld [vmem:[%s9 + $0x4a8] sm:$0xff]
  %v1196 = vld [vmem:[%s9 + $0x4b0] sm:$0xff]
  %v1197 = vld [vmem:[%s9 + $0x4b8] sm:$0xff]
  %v1198 = vld [vmem:[%s9 + $0x4c0] sm:$0xff]
  %v1199 = vld [vmem:[%s9 + $0x4c8] sm:$0xff]
  %v1200 = vld [vmem:[%s9 + $0x4d0] sm:$0xff]
  %v1201 = vld [vmem:[%s9 + $0x4d8] sm:$0xff]
  %v1202 = vld [vmem:[%s9 + $0x4e0] sm:$0xff]
  %v1203 = vld [vmem:[%s9 + $0x4e8] sm:$0xff]
  %v1204 = vld [vmem:[%s9 + $0x4f0] sm:$0xff]
  %v1205 = vld [vmem:[%s9 + $0x4f8] sm:$0xff]
  %v1206 = vld [vmem:[%s9 + $0x500] sm:$0xff]
  %v1207 = vld [vmem:[%s9 + $0x508] sm:$0xff]
  %v1208 = vld [vmem:[%s9 + $0x510] sm:$0xff]
  %v1209 = vld [vmem:[%s9 + $0x518] sm:$0xff]
  %v1210 = vld [vmem:[%s9 + $0x520] sm:$0xff]
  %v1211 = vld [vmem:[%s9 + $0x528] sm:$0xff]
  %v1212 = vld [vmem:[%s9 + $0x530] sm:$0xff]
  %v1213 = vld [vmem:[%s9 + $0x538] sm:$0xff]
  %v1214 = vld [vmem:[%s9 + $0x540] sm:$0xff]
  %v1215 = vld [vmem:[%s9 + $0x548] sm:$0xff]
  %v1216 = vld [vmem:[%s9 + $0x550] sm:$0xff]
  %v1217 = vld [vmem:[%s9 + $0x558] sm:$0xff]
  %v1218 = vld [vmem:[%s9 + $0x560] sm:$0xff]
  %v1219 = vld [vmem:[%s9 + $0x568] sm:$0xff]
  %v1220 = vld [vmem:[%s9 + $0x570] sm:$0xff]
  %v1221 = vld [vmem:[%s9 + $0x578] sm:$0xff]
  %v1222 = vld [vmem:[%s9 + $0x580] sm:$0xff]
  %v1223 = vld [vmem:[%s9 + $0x588] sm:$0xff]
  %v1224 = vld [vmem:[%s9 + $0x590] sm:$0xff]
  %v1225 = vld [vmem:[%s9 + $0x598] sm:$0xff]
  %v1226 = vld [vmem:[%s9 + $0x5a0] sm:$0xff]
  %v1227 = vld [vmem:[%s9 + $0x5a8] sm:$0xff]
  %v1228 = vld [vmem:[%s9 + $0x5b0] sm:$0xff]
  %v1229 = vld [vmem:[%s9 + $0x5b8] sm:$0xff]
  %v1230 = vld [vmem:[%s9 + $0x5c0] sm:$0xff]
  %v1231 = vld [vmem:[%s9 + $0x5c8] sm:$0xff]
  %v1232 = vld [vmem:[%s9 + $0x5d0] sm:$0xff]
  %v1233 = vld [vmem:[%s9 + $0x5d8] sm:$0xff]
  %v1234 = vld [vmem:[%s9 + $0x5e0] sm:$0xff]
  %v1235 = vld [vmem:[%s9 + $0x5e8] sm:$0xff]
  %v1236 = vld [vmem:[%s9 + $0x5f0] sm:$0xff]
  %v1237 = vld [vmem:[%s9 + $0x5f8] sm:$0xff]
  %v1238 = vld [vmem:[%s9 + $0x600] sm:$0xff]
  %v1239 = vld [vmem:[%s9 + $0x608] sm:$0xff]
  %v1240 = vld [vmem:[%s9 + $0x610] sm:$0xff]
  %v1241 = vld [vmem:[%s9 + $0x618] sm:$0xff]
  %v1242 = vld [vmem:[%s9 + $0x620] sm:$0xff]
  %v1243 = vld [vmem:[%s9 + $0x628] sm:$0xff]
  %v1244 = vld [vmem:[%s9 + $0x630] sm:$0xff]
  %v1245 = vld [vmem:[%s9 + $0x638] sm:$0xff]
  %v1246 = vld [vmem:[%s9 + $0x640] sm:$0xff]
  %v1247 = vld [vmem:[%s9 + $0x648] sm:$0xff]
  %v1248 = vld [vmem:[%s9 + $0x650] sm:$0xff]
  %v1249 = vld [vmem:[%s9 + $0x658] sm:$0xff]
  %v1250 = vld [vmem:[%s9 + $0x660] sm:$0xff]
  %v1251 = vld [vmem:[%s9 + $0x668] sm:$0xff]
  %v1252 = vld [vmem:[%s9 + $0x670] sm:$0xff]
  %v1253 = vld [vmem:[%s9 + $0x678] sm:$0xff]
  %v1254 = vld [vmem:[%s9 + $0x680] sm:$0xff]
  %v1255 = vld [vmem:[%s9 + $0x688] sm:$0xff]
  %v1256 = vld [vmem:[%s9 + $0x690] sm:$0xff]
  %v1257 = vld [vmem:[%s9 + $0x698] sm:$0xff]
  %v1258 = vld [vmem:[%s9 + $0x6a0] sm:$0xff]
  %v1259 = vld [vmem:[%s9 + $0x6a8] sm:$0xff]
  %v1260 = vld [vmem:[%s9 + $0x6b0] sm:$0xff]
  %v1261 = vld [vmem:[%s9 + $0x6b8] sm:$0xff]
  %v1262 = vld [vmem:[%s9 + $0x6c0] sm:$0xff]
  %v1263 = vld [vmem:[%s9 + $0x6c8] sm:$0xff]
  %v1264 = vld [vmem:[%s9 + $0x6d0] sm:$0xff]
  %v1265 = vld [vmem:[%s9 + $0x6d8] sm:$0xff]
  %v1266 = vld [vmem:[%s9 + $0x6e0] sm:$0xff]
  %v1267 = vld [vmem:[%s9 + $0x6e8] sm:$0xff]
  %v1268 = vld [vmem:[%s9 + $0x6f0] sm:$0xff]
  %v1269 = vld [vmem:[%s9 + $0x6f8] sm:$0xff]
  %v1270 = vld [vmem:[%s9 + $0x700] sm:$0xff]
  %v1271 = vld [vmem:[%s9 + $0x708] sm:$0xff]
  %v1272 = vld [vmem:[%s9 + $0x710] sm:$0xff]
  %v1273 = vld [vmem:[%s9 + $0x718] sm:$0xff]
  %v1274 = vld [vmem:[%s9 + $0x720] sm:$0xff]
  %v1275 = vld [vmem:[%s9 + $0x728] sm:$0xff]
  %v1276 = vld [vmem:[%s9 + $0x730] sm:$0xff]
  %v1277 = vld [vmem:[%s9 + $0x738] sm:$0xff]
  %v1278 = vld [vmem:[%s9 + $0x740] sm:$0xff]
  %v1279 = vld [vmem:[%s9 + $0x748] sm:$0xff]
  %v1280 = vld [vmem:[%s9 + $0x750] sm:$0xff]
  %v1281 = vld [vmem:[%s9 + $0x758] sm:$0xff]
  %v1282 = vld [vmem:[%s9 + $0x760] sm:$0xff]
  %v1283 = vld [vmem:[%s9 + $0x768] sm:$0xff]
  %v1284 = vld [vmem:[%s9 + $0x770] sm:$0xff]
  %v1285 = vld [vmem:[%s9 + $0x778] sm:$0xff]
  %v1286 = vld [vmem:[%s9 + $0x780] sm:$0xff]
  %v1287 = vld [vmem:[%s9 + $0x788] sm:$0xff]
  %v1288 = vld [vmem:[%s9 + $0x790] sm:$0xff]
  %v1289 = vld [vmem:[%s9 + $0x798] sm:$0xff]
  %v1290 = vld [vmem:[%s9 + $0x7a0] sm:$0xff]
  %v1291 = vld [vmem:[%s9 + $0x7a8] sm:$0xff]
  %v1292 = vld [vmem:[%s9 + $0x7b0] sm:$0xff]
  %v1293 = vld [vmem:[%s9 + $0x7b8] sm:$0xff]
  %v1294 = vld [vmem:[%s9 + $0x7c0] sm:$0xff]
  %v1295 = vld [vmem:[%s9 + $0x7c8] sm:$0xff]
  %v1296 = vld [vmem:[%s9 + $0x7d0] sm:$0xff]
  %v1297 = vld [vmem:[%s9 + $0x7d8] sm:$0xff]
  %v1298 = vld [vmem:[%s9 + $0x7e0] sm:$0xff]
  %v1299 = vld [vmem:[%s9 + $0x7e8] sm:$0xff]
  %v1300 = vld [vmem:[%s9 + $0x7f0] sm:$0xff]
  %v1301 = vld [vmem:[%s9 + $0x7f8] sm:$0xff]
  %1302 = vmatprep.subr.mxu0 %v1047
  %1303 = vmatpush1.msra.mxu0 %v1046
  %1304 = vmatprep.subr.mxu0 %v1051
  %1305 = vmatpush1.msra.mxu0 %v1050
  %1306 = vmatprep.subr.mxu0 %v1055
  %1307 = vmatpush1.msra.mxu0 %v1054
  %1308 = vmatprep.subr.mxu0 %v1059
  %1309 = vmatpush1.msra.mxu0 %v1058
  %1310 = vmatprep.subr.mxu0 %v1063
  %1311 = vmatpush1.msra.mxu0 %v1062
  %1312 = vmatprep.subr.mxu0 %v1067
  %1313 = vmatpush1.msra.mxu0 %v1066
  %1314 = vmatprep.subr.mxu0 %v1071
  %1315 = vmatpush1.msra.mxu0 %v1070
  %1316 = vmatprep.subr.mxu0 %v1075
  %1317 = vmatpush1.msra.mxu0 %v1074
  %1318 = vmatprep.subr.mxu0 %v1079
  %1319 = vmatpush1.msra.mxu0 %v1078
  %1320 = vmatprep.subr.mxu0 %v1083
  %1321 = vmatpush1.msra.mxu0 %v1082
  %1322 = vmatprep.subr.mxu0 %v1087
  %1323 = vmatpush1.msra.mxu0 %v1086
  %1324 = vmatprep.subr.mxu0 %v1091
  %1325 = vmatpush1.msra.mxu0 %v1090
  %1326 = vmatprep.subr.mxu0 %v1095
  %1327 = vmatpush1.msra.mxu0 %v1094
  %1328 = vmatprep.subr.mxu0 %v1099
  %1329 = vmatpush1.msra.mxu0 %v1098
  %1330 = vmatprep.subr.mxu0 %v1103
  %1331 = vmatpush1.msra.mxu0 %v1102
  %1332 = vmatprep.subr.mxu0 %v1107
  %1333 = vmatpush1.msra.mxu0 %v1106
  %1334 = vmatprep.subr.mxu0 %v1111
  %1335 = vmatpush1.msra.mxu0 %v1110
  %1336 = vmatprep.subr.mxu0 %v1115
  %1337 = vmatpush1.msra.mxu0 %v1114
  %1338 = vmatprep.subr.mxu0 %v1119
  %1339 = vmatpush1.msra.mxu0 %v1118
  %1340 = vmatprep.subr.mxu0 %v1123
  %1341 = vmatpush1.msra.mxu0 %v1122
  %1342 = vmatprep.subr.mxu0 %v1127
  %1343 = vmatpush1.msra.mxu0 %v1126
  %1344 = vmatprep.subr.mxu0 %v1131
  %1345 = vmatpush1.msra.mxu0 %v1130
  %1346 = vmatprep.subr.mxu0 %v1135
  %1347 = vmatpush1.msra.mxu0 %v1134
  %1348 = vmatprep.subr.mxu0 %v1139
  %1349 = vmatpush1.msra.mxu0 %v1138
  %1350 = vmatprep.subr.mxu0 %v1143
  %1351 = vmatpush1.msra.mxu0 %v1142
  %1352 = vmatprep.subr.mxu0 %v1147
  %1353 = vmatpush1.msra.mxu0 %v1146
  %1354 = vmatprep.subr.mxu0 %v1151
  %1355 = vmatpush1.msra.mxu0 %v1150
  %1356 = vmatprep.subr.mxu0 %v1155
  %1357 = vmatpush1.msra.mxu0 %v1154
  %1358 = vmatprep.subr.mxu0 %v1159
  %1359 = vmatpush1.msra.mxu0 %v1158
  %1360 = vmatprep.subr.mxu0 %v1163
  %1361 = vmatpush1.msra.mxu0 %v1162
  %1362 = vmatprep.subr.mxu0 %v1167
  %1363 = vmatpush1.msra.mxu0 %v1166
  %1364 = vmatprep.subr.mxu0 %v1171
  %1365 = vmatpush1.msra.mxu0 %v1170
  %1366 = vmatprep.mubr.f32.mxu0 %v1029
  %1367 = vmatmul.mubr.f32.gmra.mrb[0].mxu0 %v1028
  %v1368 = vpop.f32.mrb[0].mxu0
  %v1369 = vadd.f32 0.0, %v1368
  %v1370 = vpop.f32.mrb[0].mxu0
  %v1371 = vadd.f32 0.0, %v1370
  %1372 = vmatprep.mubr.f32.mxu0 %v1033
  %1373 = vmatmul.mubr.f32.gmra.mrb[0].mxu0 %v1032
  %v1374 = vpop.f32.mrb[0].mxu0
  %v1375 = vadd.f32 0.0, %v1374
  %v1376 = vpop.f32.mrb[0].mxu0
  %v1377 = vadd.f32 0.0, %v1376
  %1378 = vmatprep.mubr.f32.mxu0 %v1037
  %1379 = vmatmul.mubr.f32.gmra.mrb[0].mxu0 %v1036
  %v1380 = vpop.f32.mrb[0].mxu0
  %v1381 = vadd.f32 0.0, %v1380
  %v1382 = vpop.f32.mrb[0].mxu0
  %v1383 = vadd.f32 0.0, %v1382
  %1384 = vmatprep.mubr.f32.mxu0 %v1041
  %1385 = vmatmul.mubr.f32.gmra.mrb[0].mxu0 %v1040
  %v1386 = vpop.f32.mrb[0].mxu0
  %v1387 = vadd.f32 0.0, %v1386
  %v1388 = vpop.f32.mrb[0].mxu0
  %v1389 = vadd.f32 0.0, %v1388
  %1390 = vdwg.mxu0
  %1391 = vmatprep.subr.mxu0 %v1175
  %1392 = vmatpush1.msra.mxu0 %v1174
  %1393 = vmatprep.subr.mxu0 %v1179
  %1394 = vmatpush1.msra.mxu0 %v1178
  %1395 = vmatprep.subr.mxu0 %v1183
  %1396 = vmatpush1.msra.mxu0 %v1182
  %1397 = vmatprep.subr.mxu0 %v1187
  %1398 = vmatpush1.msra.mxu0 %v1186
  %1399 = vmatprep.subr.mxu0 %v1191
  %1400 = vmatpush1.msra.mxu0 %v1190
  %1401 = vmatprep.subr.mxu0 %v1195
  %1402 = vmatpush1.msra.mxu0 %v1194
  %1403 = vmatprep.subr.mxu0 %v1199
  %1404 = vmatpush1.msra.mxu0 %v1198
  %1405 = vmatprep.subr.mxu0 %v1203
  %1406 = vmatpush1.msra.mxu0 %v1202
  %1407 = vmatprep.subr.mxu0 %v1207
  %1408 = vmatpush1.msra.mxu0 %v1206
  %1409 = vmatprep.subr.mxu0 %v1211
  %1410 = vmatpush1.msra.mxu0 %v1210
  %1411 = vmatprep.subr.mxu0 %v1215
  %1412 = vmatpush1.msra.mxu0 %v1214
  %1413 = vmatprep.subr.mxu0 %v1219
  %1414 = vmatpush1.msra.mxu0 %v1218
  %1415 = vmatprep.subr.mxu0 %v1223
  %1416 = vmatpush1.msra.mxu0 %v1222
  %1417 = vmatprep.subr.mxu0 %v1227
  %1418 = vmatpush1.msra.mxu0 %v1226
  %1419 = vmatprep.subr.mxu0 %v1231
  %1420 = vmatpush1.msra.mxu0 %v1230
  %1421 = vmatprep.subr.mxu0 %v1235
  %1422 = vmatpush1.msra.mxu0 %v1234
  %1423 = vmatprep.subr.mxu0 %v1239
  %1424 = vmatpush1.msra.mxu0 %v1238
  %1425 = vmatprep.subr.mxu0 %v1243
  %1426 = vmatpush1.msra.mxu0 %v1242
  %1427 = vmatprep.subr.mxu0 %v1247
  %1428 = vmatpush1.msra.mxu0 %v1246
  %1429 = vmatprep.subr.mxu0 %v1251
  %1430 = vmatpush1.msra.mxu0 %v1250
  %1431 = vmatprep.subr.mxu0 %v1255
  %1432 = vmatpush1.msra.mxu0 %v1254
  %1433 = vmatprep.subr.mxu0 %v1259
  %1434 = vmatpush1.msra.mxu0 %v1258
  %1435 = vmatprep.subr.mxu0 %v1263
  %1436 = vmatpush1.msra.mxu0 %v1262
  %1437 = vmatprep.subr.mxu0 %v1267
  %1438 = vmatpush1.msra.mxu0 %v1266
  %1439 = vmatprep.subr.mxu0 %v1271
  %1440 = vmatpush1.msra.mxu0 %v1270
  %1441 = vmatprep.subr.mxu0 %v1275
  %1442 = vmatpush1.msra.mxu0 %v1274
  %1443 = vmatprep.subr.mxu0 %v1279
  %1444 = vmatpush1.msra.mxu0 %v1278
  %1445 = vmatprep.subr.mxu0 %v1283
  %1446 = vmatpush1.msra.mxu0 %v1282
  %1447 = vmatprep.subr.mxu0 %v1287
  %1448 = vmatpush1.msra.mxu0 %v1286
  %1449 = vmatprep.subr.mxu0 %v1291
  %1450 = vmatpush1.msra.mxu0 %v1290
  %1451 = vmatprep.subr.mxu0 %v1295
  %1452 = vmatpush1.msra.mxu0 %v1294
  %1453 = vmatprep.subr.mxu0 %v1299
  %1454 = vmatpush1.msra.mxu0 %v1298
  %1455 = vmatprep.mubr.f32.mxu0 %v1031
  %1456 = vmatmul.mubr.f32.gmra.mrb[0].mxu0 %v1030
  %v1457 = vpop.f32.mrb[0].mxu0
  %v1458 = vadd.f32 %v1369, %v1457
  %v1459 = vpop.f32.mrb[0].mxu0
  %v1460 = vadd.f32 %v1371, %v1459
  %1461 = vmatprep.mubr.f32.mxu0 %v1035
  %1462 = vmatmul.mubr.f32.gmra.mrb[0].mxu0 %v1034
  %v1463 = vpop.f32.mrb[0].mxu0
  %v1464 = vadd.f32 %v1375, %v1463
  %v1465 = vpop.f32.mrb[0].mxu0
  %v1466 = vadd.f32 %v1377, %v1465
  %1467 = vmatprep.mubr.f32.mxu0 %v1039
  %1468 = vmatmul.mubr.f32.gmra.mrb[0].mxu0 %v1038
  %v1469 = vpop.f32.mrb[0].mxu0
  %v1470 = vadd.f32 %v1381, %v1469
  %v1471 = vpop.f32.mrb[0].mxu0
  %v1472 = vadd.f32 %v1383, %v1471
  %1473 = vmatprep.mubr.f32.mxu0 %v1043
  %1474 = vmatmul.mubr.f32.gmra.mrb[0].mxu0 %v1042
  %v1475 = vpop.f32.mrb[0].mxu0
  %v1476 = vadd.f32 %v1387, %v1475
  %v1477 = vpop.f32.mrb[0].mxu0
  %v1478 = vadd.f32 %v1389, %v1477
  %1479 = vdwg.mxu0
  %1480 = vmatprep.subr.mxu0 %v1049
  %1481 = vmatpush1.msra.mxu0 %v1048
  %1482 = vmatprep.subr.mxu0 %v1053
  %1483 = vmatpush1.msra.mxu0 %v1052
  %1484 = vmatprep.subr.mxu0 %v1057
  %1485 = vmatpush1.msra.mxu0 %v1056
  %1486 = vmatprep.subr.mxu0 %v1061
  %1487 = vmatpush1.msra.mxu0 %v1060
  %1488 = vmatprep.subr.mxu0 %v1065
  %1489 = vmatpush1.msra.mxu0 %v1064
  %1490 = vmatprep.subr.mxu0 %v1069
  %1491 = vmatpush1.msra.mxu0 %v1068
  %1492 = vmatprep.subr.mxu0 %v1073
  %1493 = vmatpush1.msra.mxu0 %v1072
  %1494 = vmatprep.subr.mxu0 %v1077
  %1495 = vmatpush1.msra.mxu0 %v1076
  %1496 = vmatprep.subr.mxu0 %v1081
  %1497 = vmatpush1.msra.mxu0 %v1080
  %1498 = vmatprep.subr.mxu0 %v1085
  %1499 = vmatpush1.msra.mxu0 %v1084
  %1500 = vmatprep.subr.mxu0 %v1089
  %1501 = vmatpush1.msra.mxu0 %v1088
  %1502 = vmatprep.subr.mxu0 %v1093
  %1503 = vmatpush1.msra.mxu0 %v1092
  %1504 = vmatprep.subr.mxu0 %v1097
  %1505 = vmatpush1.msra.mxu0 %v1096
  %1506 = vmatprep.subr.mxu0 %v1101
  %1507 = vmatpush1.msra.mxu0 %v1100
  %1508 = vmatprep.subr.mxu0 %v1105
  %1509 = vmatpush1.msra.mxu0 %v1104
  %1510 = vmatprep.subr.mxu0 %v1109
  %1511 = vmatpush1.msra.mxu0 %v1108
  %1512 = vmatprep.subr.mxu0 %v1113
  %1513 = vmatpush1.msra.mxu0 %v1112
  %1514 = vmatprep.subr.mxu0 %v1117
  %1515 = vmatpush1.msra.mxu0 %v1116
  %1516 = vmatprep.subr.mxu0 %v1121
  %1517 = vmatpush1.msra.mxu0 %v1120
  %1518 = vmatprep.subr.mxu0 %v1125
  %1519 = vmatpush1.msra.mxu0 %v1124
  %1520 = vmatprep.subr.mxu0 %v1129
  %1521 = vmatpush1.msra.mxu0 %v1128
  %1522 = vmatprep.subr.mxu0 %v1133
  %1523 = vmatpush1.msra.mxu0 %v1132
  %1524 = vmatprep.subr.mxu0 %v1137
  %1525 = vmatpush1.msra.mxu0 %v1136
  %1526 = vmatprep.subr.mxu0 %v1141
  %1527 = vmatpush1.msra.mxu0 %v1140
  %1528 = vmatprep.subr.mxu0 %v1145
  %1529 = vmatpush1.msra.mxu0 %v1144
  %1530 = vmatprep.subr.mxu0 %v1149
  %1531 = vmatpush1.msra.mxu0 %v1148
  %1532 = vmatprep.subr.mxu0 %v1153
  %1533 = vmatpush1.msra.mxu0 %v1152
  %1534 = vmatprep.subr.mxu0 %v1157
  %1535 = vmatpush1.msra.mxu0 %v1156
  %1536 = vmatprep.subr.mxu0 %v1161
  %1537 = vmatpush1.msra.mxu0 %v1160
  %1538 = vmatprep.subr.mxu0 %v1165
  %1539 = vmatpush1.msra.mxu0 %v1164
  %1540 = vmatprep.subr.mxu0 %v1169
  %1541 = vmatpush1.msra.mxu0 %v1168
  %1542 = vmatprep.subr.mxu0 %v1173
  %1543 = vmatpush1.msra.mxu0 %v1172
  %1544 = vmatprep.mubr.f32.mxu0 %v1029
  %1545 = vmatmul.mubr.f32.gmra.mrb[0].mxu0 %v1028
  %v1546 = vpop.f32.mrb[0].mxu0
  %v1547 = vadd.f32 0.0, %v1546
  %v1548 = vpop.f32.mrb[0].mxu0
  %v1549 = vadd.f32 0.0, %v1548
  %1550 = vmatprep.mubr.f32.mxu0 %v1033
  %1551 = vmatmul.mubr.f32.gmra.mrb[0].mxu0 %v1032
  %v1552 = vpop.f32.mrb[0].mxu0
  %v1553 = vadd.f32 0.0, %v1552
  %v1554 = vpop.f32.mrb[0].mxu0
  %v1555 = vadd.f32 0.0, %v1554
  %1556 = vmatprep.mubr.f32.mxu0 %v1037
  %1557 = vmatmul.mubr.f32.gmra.mrb[0].mxu0 %v1036
  %v1558 = vpop.f32.mrb[0].mxu0
  %v1559 = vadd.f32 0.0, %v1558
  %v1560 = vpop.f32.mrb[0].mxu0
  %v1561 = vadd.f32 0.0, %v1560
  %1562 = vmatprep.mubr.f32.mxu0 %v1041
  %1563 = vmatmul.mubr.f32.gmra.mrb[0].mxu0 %v1040
  %v1564 = vpop.f32.mrb[0].mxu0
  %v1565 = vadd.f32 0.0, %v1564
  %v1566 = vpop.f32.mrb[0].mxu0
  %v1567 = vadd.f32 0.0, %v1566
  %1568 = vdwg.mxu0
  %1569 = vmatprep.subr.mxu0 %v1177
  %1570 = vmatpush1.msra.mxu0 %v1176
  %1571 = vmatprep.subr.mxu0 %v1181
  %1572 = vmatpush1.msra.mxu0 %v1180
  %1573 = vmatprep.subr.mxu0 %v1185
  %1574 = vmatpush1.msra.mxu0 %v1184
  %1575 = vmatprep.subr.mxu0 %v1189
  %1576 = vmatpush1.msra.mxu0 %v1188
  %1577 = vmatprep.subr.mxu0 %v1193
  %1578 = vmatpush1.msra.mxu0 %v1192
  %1579 = vmatprep.subr.mxu0 %v1197
  %1580 = vmatpush1.msra.mxu0 %v1196
  %1581 = vmatprep.subr.mxu0 %v1201
  %1582 = vmatpush1.msra.mxu0 %v1200
  %1583 = vmatprep.subr.mxu0 %v1205
  %1584 = vmatpush1.msra.mxu0 %v1204
  %1585 = vmatprep.subr.mxu0 %v1209
  %1586 = vmatpush1.msra.mxu0 %v1208
  %1587 = vmatprep.subr.mxu0 %v1213
  %1588 = vmatpush1.msra.mxu0 %v1212
  %1589 = vmatprep.subr.mxu0 %v1217
  %1590 = vmatpush1.msra.mxu0 %v1216
  %1591 = vmatprep.subr.mxu0 %v1221
  %1592 = vmatpush1.msra.mxu0 %v1220
  %1593 = vmatprep.subr.mxu0 %v1225
  %1594 = vmatpush1.msra.mxu0 %v1224
  %1595 = vmatprep.subr.mxu0 %v1229
  %1596 = vmatpush1.msra.mxu0 %v1228
  %1597 = vmatprep.subr.mxu0 %v1233
  %1598 = vmatpush1.msra.mxu0 %v1232
  %1599 = vmatprep.subr.mxu0 %v1237
  %1600 = vmatpush1.msra.mxu0 %v1236
  %1601 = vmatprep.subr.mxu0 %v1241
  %1602 = vmatpush1.msra.mxu0 %v1240
  %1603 = vmatprep.subr.mxu0 %v1245
  %1604 = vmatpush1.msra.mxu0 %v1244
  %1605 = vmatprep.subr.mxu0 %v1249
  %1606 = vmatpush1.msra.mxu0 %v1248
  %1607 = vmatprep.subr.mxu0 %v1253
  %1608 = vmatpush1.msra.mxu0 %v1252
  %1609 = vmatprep.subr.mxu0 %v1257
  %1610 = vmatpush1.msra.mxu0 %v1256
  %1611 = vmatprep.subr.mxu0 %v1261
  %1612 = vmatpush1.msra.mxu0 %v1260
  %1613 = vmatprep.subr.mxu0 %v1265
  %1614 = vmatpush1.msra.mxu0 %v1264
  %1615 = vmatprep.subr.mxu0 %v1269
  %1616 = vmatpush1.msra.mxu0 %v1268
  %1617 = vmatprep.subr.mxu0 %v1273
  %1618 = vmatpush1.msra.mxu0 %v1272
  %1619 = vmatprep.subr.mxu0 %v1277
  %1620 = vmatpush1.msra.mxu0 %v1276
  %1621 = vmatprep.subr.mxu0 %v1281
  %1622 = vmatpush1.msra.mxu0 %v1280
  %1623 = vmatprep.subr.mxu0 %v1285
  %1624 = vmatpush1.msra.mxu0 %v1284
  %1625 = vmatprep.subr.mxu0 %v1289
  %1626 = vmatpush1.msra.mxu0 %v1288
  %1627 = vmatprep.subr.mxu0 %v1293
  %1628 = vmatpush1.msra.mxu0 %v1292
  %1629 = vmatprep.subr.mxu0 %v1297
  %1630 = vmatpush1.msra.mxu0 %v1296
  %1631 = vmatprep.subr.mxu0 %v1301
  %1632 = vmatpush1.msra.mxu0 %v1300
  %1633 = vmatprep.mubr.f32.mxu0 %v1031
  %1634 = vmatmul.mubr.f32.gmra.mrb[0].mxu0 %v1030
  %v1635 = vpop.f32.mrb[0].mxu0
  %v1636 = vadd.f32 %v1547, %v1635
  %v1637 = vpop.f32.mrb[0].mxu0
  %v1638 = vadd.f32 %v1549, %v1637
  %1639 = vmatprep.mubr.f32.mxu0 %v1035
  %1640 = vmatmul.mubr.f32.gmra.mrb[0].mxu0 %v1034
  %v1641 = vpop.f32.mrb[0].mxu0
  %v1642 = vadd.f32 %v1553, %v1641
  %v1643 = vpop.f32.mrb[0].mxu0
  %v1644 = vadd.f32 %v1555, %v1643
  %1645 = vmatprep.mubr.f32.mxu0 %v1039
  %1646 = vmatmul.mubr.f32.gmra.mrb[0].mxu0 %v1038
  %v1647 = vpop.f32.mrb[0].mxu0
  %v1648 = vadd.f32 %v1559, %v1647
  %v1649 = vpop.f32.mrb[0].mxu0
  %v1650 = vadd.f32 %v1561, %v1649
  %1651 = vmatprep.mubr.f32.mxu0 %v1043
  %1652 = vmatmul.mubr.f32.gmra.mrb[0].mxu0 %v1042
  %v1653 = vpop.f32.mrb[0].mxu0
  %v1654 = vadd.f32 %v1565, %v1653
  %v1655 = vpop.f32.mrb[0].mxu0
  %v1656 = vadd.f32 %v1567, %v1655
  %1657 = vdwg.mxu0
  %v1658 = vmul.f32 %v1028, %v1028
  %v1659 = vmul.f32 %v1029, %v1029
  %v1660 = vmul.f32 %v1030, %v1030
  %v1661 = vmul.f32 %v1031, %v1031
  %v1662 = vmul.f32 %v1032, %v1032
  %v1663 = vmul.f32 %v1033, %v1033
  %v1664 = vmul.f32 %v1034, %v1034
  %v1665 = vmul.f32 %v1035, %v1035
  %v1666 = vmul.f32 %v1036, %v1036
  %v1667 = vmul.f32 %v1037, %v1037
  %v1668 = vmul.f32 %v1038, %v1038
  %v1669 = vmul.f32 %v1039, %v1039
  %v1670 = vmul.f32 %v1040, %v1040
  %v1671 = vmul.f32 %v1041, %v1041
  %v1672 = vmul.f32 %v1042, %v1042
  %v1673 = vmul.f32 %v1043, %v1043
  %1674 = vmatprep.subr.mxu0 %v1047
  %1675 = vmatpush1.msra.mxu0 %v1046
  %1676 = vmatprep.subr.mxu0 %v1051
  %1677 = vmatpush1.msra.mxu0 %v1050
  %1678 = vmatprep.subr.mxu0 %v1055
  %1679 = vmatpush1.msra.mxu0 %v1054
  %1680 = vmatprep.subr.mxu0 %v1059
  %1681 = vmatpush1.msra.mxu0 %v1058
  %1682 = vmatprep.subr.mxu0 %v1063
  %1683 = vmatpush1.msra.mxu0 %v1062
  %1684 = vmatprep.subr.mxu0 %v1067
  %1685 = vmatpush1.msra.mxu0 %v1066
  %1686 = vmatprep.subr.mxu0 %v1071
  %1687 = vmatpush1.msra.mxu0 %v1070
  %1688 = vmatprep.subr.mxu0 %v1075
  %1689 = vmatpush1.msra.mxu0 %v1074
  %1690 = vmatprep.subr.mxu0 %v1079
  %1691 = vmatpush1.msra.mxu0 %v1078
  %1692 = vmatprep.subr.mxu0 %v1083
  %1693 = vmatpush1.msra.mxu0 %v1082
  %1694 = vmatprep.subr.mxu0 %v1087
  %1695 = vmatpush1.msra.mxu0 %v1086
  %1696 = vmatprep.subr.mxu0 %v1091
  %1697 = vmatpush1.msra.mxu0 %v1090
  %1698 = vmatprep.subr.mxu0 %v1095
  %1699 = vmatpush1.msra.mxu0 %v1094
  %1700 = vmatprep.subr.mxu0 %v1099
  %1701 = vmatpush1.msra.mxu0 %v1098
  %1702 = vmatprep.subr.mxu0 %v1103
  %1703 = vmatpush1.msra.mxu0 %v1102
  %1704 = vmatprep.subr.mxu0 %v1107
  %1705 = vmatpush1.msra.mxu0 %v1106
  %1706 = vmatprep.subr.mxu0 %v1111
  %1707 = vmatpush1.msra.mxu0 %v1110
  %1708 = vmatprep.subr.mxu0 %v1115
  %1709 = vmatpush1.msra.mxu0 %v1114
  %1710 = vmatprep.subr.mxu0 %v1119
  %1711 = vmatpush1.msra.mxu0 %v1118
  %1712 = vmatprep.subr.mxu0 %v1123
  %1713 = vmatpush1.msra.mxu0 %v1122
  %1714 = vmatprep.subr.mxu0 %v1127
  %1715 = vmatpush1.msra.mxu0 %v1126
  %1716 = vmatprep.subr.mxu0 %v1131
  %1717 = vmatpush1.msra.mxu0 %v1130
  %1718 = vmatprep.subr.mxu0 %v1135
  %1719 = vmatpush1.msra.mxu0 %v1134
  %1720 = vmatprep.subr.mxu0 %v1139
  %1721 = vmatpush1.msra.mxu0 %v1138
  %1722 = vmatprep.subr.mxu0 %v1143
  %1723 = vmatpush1.msra.mxu0 %v1142
  %1724 = vmatprep.subr.mxu0 %v1147
  %1725 = vmatpush1.msra.mxu0 %v1146
  %1726 = vmatprep.subr.mxu0 %v1151
  %1727 = vmatpush1.msra.mxu0 %v1150
  %1728 = vmatprep.subr.mxu0 %v1155
  %1729 = vmatpush1.msra.mxu0 %v1154
  %1730 = vmatprep.subr.mxu0 %v1159
  %1731 = vmatpush1.msra.mxu0 %v1158
  %1732 = vmatprep.subr.mxu0 %v1163
  %1733 = vmatpush1.msra.mxu0 %v1162
  %1734 = vmatprep.subr.mxu0 %v1167
  %1735 = vmatpush1.msra.mxu0 %v1166
  %1736 = vmatprep.subr.mxu0 %v1171
  %1737 = vmatpush1.msra.mxu0 %v1170
  %1738 = vmatprep.mubr.f32.mxu0 %v1659
  %1739 = vmatmul.mubr.f32.gmra.mrb[0].mxu0 %v1658
  %v1740 = vpop.f32.mrb[0].mxu0
  %v1741 = vadd.f32 0.0, %v1740
  %v1742 = vpop.f32.mrb[0].mxu0
  %v1743 = vadd.f32 0.0, %v1742
  %1744 = vmatprep.mubr.f32.mxu0 %v1663
  %1745 = vmatmul.mubr.f32.gmra.mrb[0].mxu0 %v1662
  %v1746 = vpop.f32.mrb[0].mxu0
  %v1747 = vadd.f32 0.0, %v1746
  %v1748 = vpop.f32.mrb[0].mxu0
  %v1749 = vadd.f32 0.0, %v1748
  %1750 = vmatprep.mubr.f32.mxu0 %v1667
  %1751 = vmatmul.mubr.f32.gmra.mrb[0].mxu0 %v1666
  %v1752 = vpop.f32.mrb[0].mxu0
  %v1753 = vadd.f32 0.0, %v1752
  %v1754 = vpop.f32.mrb[0].mxu0
  %v1755 = vadd.f32 0.0, %v1754
  %1756 = vmatprep.mubr.f32.mxu0 %v1671
  %1757 = vmatmul.mubr.f32.gmra.mrb[0].mxu0 %v1670
  %v1758 = vpop.f32.mrb[0].mxu0
  %v1759 = vadd.f32 0.0, %v1758
  %v1760 = vpop.f32.mrb[0].mxu0
  %v1761 = vadd.f32 0.0, %v1760
  %1762 = vdwg.mxu0
  %1763 = vmatprep.subr.mxu0 %v1175
  %1764 = vmatpush1.msra.mxu0 %v1174
  %1765 = vmatprep.subr.mxu0 %v1179
  %1766 = vmatpush1.msra.mxu0 %v1178
  %1767 = vmatprep.subr.mxu0 %v1183
  %1768 = vmatpush1.msra.mxu0 %v1182
  %1769 = vmatprep.subr.mxu0 %v1187
  %1770 = vmatpush1.msra.mxu0 %v1186
  %1771 = vmatprep.subr.mxu0 %v1191
  %1772 = vmatpush1.msra.mxu0 %v1190
  %1773 = vmatprep.subr.mxu0 %v1195
  %1774 = vmatpush1.msra.mxu0 %v1194
  %1775 = vmatprep.subr.mxu0 %v1199
  %1776 = vmatpush1.msra.mxu0 %v1198
  %1777 = vmatprep.subr.mxu0 %v1203
  %1778 = vmatpush1.msra.mxu0 %v1202
  %1779 = vmatprep.subr.mxu0 %v1207
  %1780 = vmatpush1.msra.mxu0 %v1206
  %1781 = vmatprep.subr.mxu0 %v1211
  %1782 = vmatpush1.msra.mxu0 %v1210
  %1783 = vmatprep.subr.mxu0 %v1215
  %1784 = vmatpush1.msra.mxu0 %v1214
  %1785 = vmatprep.subr.mxu0 %v1219
  %1786 = vmatpush1.msra.mxu0 %v1218
  %1787 = vmatprep.subr.mxu0 %v1223
  %1788 = vmatpush1.msra.mxu0 %v1222
  %1789 = vmatprep.subr.mxu0 %v1227
  %1790 = vmatpush1.msra.mxu0 %v1226
  %1791 = vmatprep.subr.mxu0 %v1231
  %1792 = vmatpush1.msra.mxu0 %v1230
  %1793 = vmatprep.subr.mxu0 %v1235
  %1794 = vmatpush1.msra.mxu0 %v1234
  %1795 = vmatprep.subr.mxu0 %v1239
  %1796 = vmatpush1.msra.mxu0 %v1238
  %1797 = vmatprep.subr.mxu0 %v1243
  %1798 = vmatpush1.msra.mxu0 %v1242
  %1799 = vmatprep.subr.mxu0 %v1247
  %1800 = vmatpush1.msra.mxu0 %v1246
  %1801 = vmatprep.subr.mxu0 %v1251
  %1802 = vmatpush1.msra.mxu0 %v1250
  %1803 = vmatprep.subr.mxu0 %v1255
  %1804 = vmatpush1.msra.mxu0 %v1254
  %1805 = vmatprep.subr.mxu0 %v1259
  %1806 = vmatpush1.msra.mxu0 %v1258
  %1807 = vmatprep.subr.mxu0 %v1263
  %1808 = vmatpush1.msra.mxu0 %v1262
  %1809 = vmatprep.subr.mxu0 %v1267
  %1810 = vmatpush1.msra.mxu0 %v1266
  %1811 = vmatprep.subr.mxu0 %v1271
  %1812 = vmatpush1.msra.mxu0 %v1270
  %1813 = vmatprep.subr.mxu0 %v1275
  %1814 = vmatpush1.msra.mxu0 %v1274
  %1815 = vmatprep.subr.mxu0 %v1279
  %1816 = vmatpush1.msra.mxu0 %v1278
  %1817 = vmatprep.subr.mxu0 %v1283
  %1818 = vmatpush1.msra.mxu0 %v1282
  %1819 = vmatprep.subr.mxu0 %v1287
  %1820 = vmatpush1.msra.mxu0 %v1286
  %1821 = vmatprep.subr.mxu0 %v1291
  %1822 = vmatpush1.msra.mxu0 %v1290
  %1823 = vmatprep.subr.mxu0 %v1295
  %1824 = vmatpush1.msra.mxu0 %v1294
  %1825 = vmatprep.subr.mxu0 %v1299
  %1826 = vmatpush1.msra.mxu0 %v1298
  %1827 = vmatprep.mubr.f32.mxu0 %v1661
  %1828 = vmatmul.mubr.f32.gmra.mrb[0].mxu0 %v1660
  %v1829 = vpop.f32.mrb[0].mxu0
  %v1830 = vadd.f32 %v1741, %v1829
  %v1831 = vpop.f32.mrb[0].mxu0
  %v1832 = vadd.f32 %v1743, %v1831
  %1833 = vmatprep.mubr.f32.mxu0 %v1665
  %1834 = vmatmul.mubr.f32.gmra.mrb[0].mxu0 %v1664
  %v1835 = vpop.f32.mrb[0].mxu0
  %v1836 = vadd.f32 %v1747, %v1835
  %v1837 = vpop.f32.mrb[0].mxu0
  %v1838 = vadd.f32 %v1749, %v1837
  %1839 = vmatprep.mubr.f32.mxu0 %v1669
  %1840 = vmatmul.mubr.f32.gmra.mrb[0].mxu0 %v1668
  %v1841 = vpop.f32.mrb[0].mxu0
  %v1842 = vadd.f32 %v1753, %v1841
  %v1843 = vpop.f32.mrb[0].mxu0
  %v1844 = vadd.f32 %v1755, %v1843
  %1845 = vmatprep.mubr.f32.mxu0 %v1673
  %1846 = vmatmul.mubr.f32.gmra.mrb[0].mxu0 %v1672
  %v1847 = vpop.f32.mrb[0].mxu0
  %v1848 = vadd.f32 %v1759, %v1847
  %v1849 = vpop.f32.mrb[0].mxu0
  %v1850 = vadd.f32 %v1761, %v1849
  %1851 = vdwg.mxu0
  %1852 = vmatprep.subr.mxu0 %v1049
  %1853 = vmatpush1.msra.mxu0 %v1048
  %1854 = vmatprep.subr.mxu0 %v1053
  %1855 = vmatpush1.msra.mxu0 %v1052
  %1856 = vmatprep.subr.mxu0 %v1057
  %1857 = vmatpush1.msra.mxu0 %v1056
  %1858 = vmatprep.subr.mxu0 %v1061
  %1859 = vmatpush1.msra.mxu0 %v1060
  %1860 = vmatprep.subr.mxu0 %v1065
  %1861 = vmatpush1.msra.mxu0 %v1064
  %1862 = vmatprep.subr.mxu0 %v1069
  %1863 = vmatpush1.msra.mxu0 %v1068
  %1864 = vmatprep.subr.mxu0 %v1073
  %1865 = vmatpush1.msra.mxu0 %v1072
  %1866 = vmatprep.subr.mxu0 %v1077
  %1867 = vmatpush1.msra.mxu0 %v1076
  %1868 = vmatprep.subr.mxu0 %v1081
  %1869 = vmatpush1.msra.mxu0 %v1080
  %1870 = vmatprep.subr.mxu0 %v1085
  %1871 = vmatpush1.msra.mxu0 %v1084
  %1872 = vmatprep.subr.mxu0 %v1089
  %1873 = vmatpush1.msra.mxu0 %v1088
  %1874 = vmatprep.subr.mxu0 %v1093
  %1875 = vmatpush1.msra.mxu0 %v1092
  %1876 = vmatprep.subr.mxu0 %v1097
  %1877 = vmatpush1.msra.mxu0 %v1096
  %1878 = vmatprep.subr.mxu0 %v1101
  %1879 = vmatpush1.msra.mxu0 %v1100
  %1880 = vmatprep.subr.mxu0 %v1105
  %1881 = vmatpush1.msra.mxu0 %v1104
  %1882 = vmatprep.subr.mxu0 %v1109
  %1883 = vmatpush1.msra.mxu0 %v1108
  %1884 = vmatprep.subr.mxu0 %v1113
  %1885 = vmatpush1.msra.mxu0 %v1112
  %1886 = vmatprep.subr.mxu0 %v1117
  %1887 = vmatpush1.msra.mxu0 %v1116
  %1888 = vmatprep.subr.mxu0 %v1121
  %1889 = vmatpush1.msra.mxu0 %v1120
  %1890 = vmatprep.subr.mxu0 %v1125
  %1891 = vmatpush1.msra.mxu0 %v1124
  %1892 = vmatprep.subr.mxu0 %v1129
  %1893 = vmatpush1.msra.mxu0 %v1128
  %1894 = vmatprep.subr.mxu0 %v1133
  %1895 = vmatpush1.msra.mxu0 %v1132
  %1896 = vmatprep.subr.mxu0 %v1137
  %1897 = vmatpush1.msra.mxu0 %v1136
  %1898 = vmatprep.subr.mxu0 %v1141
  %1899 = vmatpush1.msra.mxu0 %v1140
  %1900 = vmatprep.subr.mxu0 %v1145
  %1901 = vmatpush1.msra.mxu0 %v1144
  %1902 = vmatprep.subr.mxu0 %v1149
  %1903 = vmatpush1.msra.mxu0 %v1148
  %1904 = vmatprep.subr.mxu0 %v1153
  %1905 = vmatpush1.msra.mxu0 %v1152
  %1906 = vmatprep.subr.mxu0 %v1157
  %1907 = vmatpush1.msra.mxu0 %v1156
  %1908 = vmatprep.subr.mxu0 %v1161
  %1909 = vmatpush1.msra.mxu0 %v1160
  %1910 = vmatprep.subr.mxu0 %v1165
  %1911 = vmatpush1.msra.mxu0 %v1164
  %1912 = vmatprep.subr.mxu0 %v1169
  %1913 = vmatpush1.msra.mxu0 %v1168
  %1914 = vmatprep.subr.mxu0 %v1173
  %1915 = vmatpush1.msra.mxu0 %v1172
  %1916 = vmatprep.mubr.f32.mxu0 %v1659
  %1917 = vmatmul.mubr.f32.gmra.mrb[0].mxu0 %v1658
  %v1918 = vpop.f32.mrb[0].mxu0
  %v1919 = vadd.f32 0.0, %v1918
  %v1920 = vpop.f32.mrb[0].mxu0
  %v1921 = vadd.f32 0.0, %v1920
  %1922 = vmatprep.mubr.f32.mxu0 %v1663
  %1923 = vmatmul.mubr.f32.gmra.mrb[0].mxu0 %v1662
  %v1924 = vpop.f32.mrb[0].mxu0
  %v1925 = vadd.f32 0.0, %v1924
  %v1926 = vpop.f32.mrb[0].mxu0
  %v1927 = vadd.f32 0.0, %v1926
  %1928 = vmatprep.mubr.f32.mxu0 %v1667
  %1929 = vmatmul.mubr.f32.gmra.mrb[0].mxu0 %v1666
  %v1930 = vpop.f32.mrb[0].mxu0
  %v1931 = vadd.f32 0.0, %v1930
  %v1932 = vpop.f32.mrb[0].mxu0
  %v1933 = vadd.f32 0.0, %v1932
  %1934 = vmatprep.mubr.f32.mxu0 %v1671
  %1935 = vmatmul.mubr.f32.gmra.mrb[0].mxu0 %v1670
  %v1936 = vpop.f32.mrb[0].mxu0
  %v1937 = vadd.f32 0.0, %v1936
  %v1938 = vpop.f32.mrb[0].mxu0
  %v1939 = vadd.f32 0.0, %v1938
  %1940 = vdwg.mxu0
  %1941 = vmatprep.subr.mxu0 %v1177
  %1942 = vmatpush1.msra.mxu0 %v1176
  %1943 = vmatprep.subr.mxu0 %v1181
  %1944 = vmatpush1.msra.mxu0 %v1180
  %1945 = vmatprep.subr.mxu0 %v1185
  %1946 = vmatpush1.msra.mxu0 %v1184
  %1947 = vmatprep.subr.mxu0 %v1189
  %1948 = vmatpush1.msra.mxu0 %v1188
  %1949 = vmatprep.subr.mxu0 %v1193
  %1950 = vmatpush1.msra.mxu0 %v1192
  %1951 = vmatprep.subr.mxu0 %v1197
  %1952 = vmatpush1.msra.mxu0 %v1196
  %1953 = vmatprep.subr.mxu0 %v1201
  %1954 = vmatpush1.msra.mxu0 %v1200
  %1955 = vmatprep.subr.mxu0 %v1205
  %1956 = vmatpush1.msra.mxu0 %v1204
  %1957 = vmatprep.subr.mxu0 %v1209
  %1958 = vmatpush1.msra.mxu0 %v1208
  %1959 = vmatprep.subr.mxu0 %v1213
  %1960 = vmatpush1.msra.mxu0 %v1212
  %1961 = vmatprep.subr.mxu0 %v1217
  %1962 = vmatpush1.msra.mxu0 %v1216
  %1963 = vmatprep.subr.mxu0 %v1221
  %1964 = vmatpush1.msra.mxu0 %v1220
  %1965 = vmatprep.subr.mxu0 %v1225
  %1966 = vmatpush1.msra.mxu0 %v1224
  %1967 = vmatprep.subr.mxu0 %v1229
  %1968 = vmatpush1.msra.mxu0 %v1228
  %1969 = vmatprep.subr.mxu0 %v1233
  %1970 = vmatpush1.msra.mxu0 %v1232
  %1971 = vmatprep.subr.mxu0 %v1237
  %1972 = vmatpush1.msra.mxu0 %v1236
  %1973 = vmatprep.subr.mxu0 %v1241
  %1974 = vmatpush1.msra.mxu0 %v1240
  %1975 = vmatprep.subr.mxu0 %v1245
  %1976 = vmatpush1.msra.mxu0 %v1244
  %1977 = vmatprep.subr.mxu0 %v1249
  %1978 = vmatpush1.msra.mxu0 %v1248
  %1979 = vmatprep.subr.mxu0 %v1253
  %1980 = vmatpush1.msra.mxu0 %v1252
  %1981 = vmatprep.subr.mxu0 %v1257
  %1982 = vmatpush1.msra.mxu0 %v1256
  %1983 = vmatprep.subr.mxu0 %v1261
  %1984 = vmatpush1.msra.mxu0 %v1260
  %1985 = vmatprep.subr.mxu0 %v1265
  %1986 = vmatpush1.msra.mxu0 %v1264
  %1987 = vmatprep.subr.mxu0 %v1269
  %1988 = vmatpush1.msra.mxu0 %v1268
  %1989 = vmatprep.subr.mxu0 %v1273
  %1990 = vmatpush1.msra.mxu0 %v1272
  %1991 = vmatprep.subr.mxu0 %v1277
  %1992 = vmatpush1.msra.mxu0 %v1276
  %1993 = vmatprep.subr.mxu0 %v1281
  %1994 = vmatpush1.msra.mxu0 %v1280
  %1995 = vmatprep.subr.mxu0 %v1285
  %1996 = vmatpush1.msra.mxu0 %v1284
  %1997 = vmatprep.subr.mxu0 %v1289
  %1998 = vmatpush1.msra.mxu0 %v1288
  %1999 = vmatprep.subr.mxu0 %v1293
  %2000 = vmatpush1.msra.mxu0 %v1292
  %2001 = vmatprep.subr.mxu0 %v1297
  %2002 = vmatpush1.msra.mxu0 %v1296
  %2003 = vmatprep.subr.mxu0 %v1301
  %2004 = vmatpush1.msra.mxu0 %v1300
  %2005 = vmatprep.mubr.f32.mxu0 %v1661
  %2006 = vmatmul.mubr.f32.gmra.mrb[0].mxu0 %v1660
  %v2007 = vpop.f32.mrb[0].mxu0
  %v2008 = vadd.f32 %v1919, %v2007
  %v2009 = vpop.f32.mrb[0].mxu0
  %v2010 = vadd.f32 %v1921, %v2009
  %2011 = vmatprep.mubr.f32.mxu0 %v1665
  %2012 = vmatmul.mubr.f32.gmra.mrb[0].mxu0 %v1664
  %v2013 = vpop.f32.mrb[0].mxu0
  %v2014 = vadd.f32 %v1925, %v2013
  %v2015 = vpop.f32.mrb[0].mxu0
  %v2016 = vadd.f32 %v1927, %v2015
  %2017 = vmatprep.mubr.f32.mxu0 %v1669
  %2018 = vmatmul.mubr.f32.gmra.mrb[0].mxu0 %v1668
  %v2019 = vpop.f32.mrb[0].mxu0
  %v2020 = vadd.f32 %v1931, %v2019
  %v2021 = vpop.f32.mrb[0].mxu0
  %v2022 = vadd.f32 %v1933, %v2021
  %2023 = vmatprep.mubr.f32.mxu0 %v1673
  %2024 = vmatmul.mubr.f32.gmra.mrb[0].mxu0 %v1672
  %v2025 = vpop.f32.mrb[0].mxu0
  %v2026 = vadd.f32 %v1937, %v2025
  %v2027 = vpop.f32.mrb[0].mxu0
  %v2028 = vadd.f32 %v1939, %v2027
  %2029 = vdwg.mxu0
  %v2030 = vadd.f32 %v1458, %v1464
  %v2031 = vadd.f32 %v2030, %v1470
  %v2032 = vadd.f32 %v2031, %v1476
  %v2033 = vrot.slane %v2032, 4
  %v2034 = vadd.f32 %v2032, %v2033
  %v2035 = vrot.slane %v2034, 2
  %v2036 = vadd.f32 %v2034, %v2035
  %v2037 = vrot.slane %v2036, 1
  %v2038 = vadd.f32 %v2036, %v2037
  %v2039 = vadd.f32 %v1460, %v1466
  %v2040 = vadd.f32 %v2039, %v1472
  %v2041 = vadd.f32 %v2040, %v1478
  %v2042 = vrot.slane %v2041, 4
  %v2043 = vadd.f32 %v2041, %v2042
  %v2044 = vrot.slane %v2043, 2
  %v2045 = vadd.f32 %v2043, %v2044
  %v2046 = vrot.slane %v2045, 1
  %v2047 = vadd.f32 %v2045, %v2046
  %v2048 = vadd.f32 %v1636, %v1642
  %v2049 = vadd.f32 %v2048, %v1648
  %v2050 = vadd.f32 %v2049, %v1654
  %v2051 = vrot.slane %v2050, 4
  %v2052 = vadd.f32 %v2050, %v2051
  %v2053 = vrot.slane %v2052, 2
  %v2054 = vadd.f32 %v2052, %v2053
  %v2055 = vrot.slane %v2054, 1
  %v2056 = vadd.f32 %v2054, %v2055
  %v2057 = vadd.f32 %v1638, %v1644
  %v2058 = vadd.f32 %v2057, %v1650
  %v2059 = vadd.f32 %v2058, %v1656
  %v2060 = vrot.slane %v2059, 4
  %v2061 = vadd.f32 %v2059, %v2060
  %v2062 = vrot.slane %v2061, 2
  %v2063 = vadd.f32 %v2061, %v2062
  %v2064 = vrot.slane %v2063, 1
  %v2065 = vadd.f32 %v2063, %v2064
  %v2066 = vmul.f32 %v2038, 0.001953125
  %v2067 = vmul.f32 %v2047, 0.001953125
  %v2068 = vmul.f32 %v2056, 0.001953125
  %v2069 = vmul.f32 %v2065, 0.001953125
  %v2070 = vadd.f32 %v1830, %v1836
  %v2071 = vadd.f32 %v2070, %v1842
  %v2072 = vadd.f32 %v2071, %v1848
  %v2073 = vrot.slane %v2072, 4
  %v2074 = vadd.f32 %v2072, %v2073
  %v2075 = vrot.slane %v2074, 2
  %v2076 = vadd.f32 %v2074, %v2075
  %v2077 = vrot.slane %v2076, 1
  %v2078 = vadd.f32 %v2076, %v2077
  %v2079 = vadd.f32 %v1832, %v1838
  %v2080 = vadd.f32 %v2079, %v1844
  %v2081 = vadd.f32 %v2080, %v1850
  %v2082 = vrot.slane %v2081, 4
  %v2083 = vadd.f32 %v2081, %v2082
  %v2084 = vrot.slane %v2083, 2
  %v2085 = vadd.f32 %v2083, %v2084
  %v2086 = vrot.slane %v2085, 1
  %v2087 = vadd.f32 %v2085, %v2086
  %v2088 = vadd.f32 %v2008, %v2014
  %v2089 = vadd.f32 %v2088, %v2020
  %v2090 = vadd.f32 %v2089, %v2026
  %v2091 = vrot.slane %v2090, 4
  %v2092 = vadd.f32 %v2090, %v2091
  %v2093 = vrot.slane %v2092, 2
  %v2094 = vadd.f32 %v2092, %v2093
  %v2095 = vrot.slane %v2094, 1
  %v2096 = vadd.f32 %v2094, %v2095
  %v2097 = vadd.f32 %v2010, %v2016
  %v2098 = vadd.f32 %v2097, %v2022
  %v2099 = vadd.f32 %v2098, %v2028
  %v2100 = vrot.slane %v2099, 4
  %v2101 = vadd.f32 %v2099, %v2100
  %v2102 = vrot.slane %v2101, 2
  %v2103 = vadd.f32 %v2101, %v2102
  %v2104 = vrot.slane %v2103, 1
  %v2105 = vadd.f32 %v2103, %v2104
  %v2106 = vmul.f32 %v2078, 0.001953125
  %v2107 = vmul.f32 %v2087, 0.001953125
  %v2108 = vmul.f32 %v2096, 0.001953125
  %v2109 = vmul.f32 %v2105, 0.001953125
  %v2110 = vmul.f32 %v2066, %v2066
  %v2111 = vmul.f32 %v2067, %v2067
  %v2112 = vmul.f32 %v2068, %v2068
  %v2113 = vmul.f32 %v2069, %v2069
  %v2114 = vsub.f32 %v2106, %v2110
  %v2115 = vsub.f32 %v2107, %v2111
  %v2116 = vsub.f32 %v2108, %v2112
  %v2117 = vsub.f32 %v2109, %v2113
  %v2118 = vmax.f32 %v2114, 0.0
  %v2119 = vmax.f32 %v2115, 0.0
  %v2120 = vmax.f32 %v2116, 0.0
  %v2121 = vmax.f32 %v2117, 0.0
  %v2122 = vsub.f32 %v1028, %v2066
  %v2123 = vsub.f32 %v1029, %v2067
  %v2124 = vsub.f32 %v1030, %v2068
  %v2125 = vsub.f32 %v1031, %v2069
  %v2126 = vsub.f32 %v1032, %v2066
  %v2127 = vsub.f32 %v1033, %v2067
  %v2128 = vsub.f32 %v1034, %v2068
  %v2129 = vsub.f32 %v1035, %v2069
  %v2130 = vsub.f32 %v1036, %v2066
  %v2131 = vsub.f32 %v1037, %v2067
  %v2132 = vsub.f32 %v1038, %v2068
  %v2133 = vsub.f32 %v1039, %v2069
  %v2134 = vsub.f32 %v1040, %v2066
  %v2135 = vsub.f32 %v1041, %v2067
  %v2136 = vsub.f32 %v1042, %v2068
  %v2137 = vsub.f32 %v1043, %v2069
  %v2138 = vadd.f32 %v2118, 1e-05
  %v2139 = vadd.f32 %v2119, 1e-05
  %v2140 = vadd.f32 %v2120, 1e-05
  %v2141 = vadd.f32 %v2121, 1e-05
  %v2142 = vrsqrt.pop %v2138
  %v2143 = vrsqrt.pop %v2139
  %v2144 = vrsqrt.pop %v2140
  %v2145 = vrsqrt.pop %v2141
  %v2146 = vmul.f32 %v2122, %v2142
  %v2147 = vmul.f32 %v2123, %v2143
  %v2148 = vmul.f32 %v2124, %v2144
  %v2149 = vmul.f32 %v2125, %v2145
  %v2150 = vmul.f32 %v2126, %v2142
  %v2151 = vmul.f32 %v2127, %v2143
  %v2152 = vmul.f32 %v2128, %v2144
  %v2153 = vmul.f32 %v2129, %v2145
  %v2154 = vmul.f32 %v2130, %v2142
  %v2155 = vmul.f32 %v2131, %v2143
  %v2156 = vmul.f32 %v2132, %v2144
  %v2157 = vmul.f32 %v2133, %v2145
  %v2158 = vmul.f32 %v2134, %v2142
  %v2159 = vmul.f32 %v2135, %v2143
  %v2160 = vmul.f32 %v2136, %v2144
  %v2161 = vmul.f32 %v2137, %v2145
  %v2163 = vlaneseq
  %v2164 = vshrl.u32 %v2163, 7
  %v2165 = vsub.s32 0, %v2164
  %v2166 = vrot.slane %v1044, %v2165
  %v2167 = vlaneseq
  %v2168 = vshrl.u32 %v2167, 7
  %v2169 = vsub.s32 1, %v2168
  %v2170 = vrot.slane %v1044, %v2169
  %v2171 = vlaneseq
  %v2172 = vshrl.u32 %v2171, 7
  %v2173 = vsub.s32 2, %v2172
  %v2174 = vrot.slane %v1044, %v2173
  %v2175 = vlaneseq
  %v2176 = vshrl.u32 %v2175, 7
  %v2177 = vsub.s32 3, %v2176
  %v2178 = vrot.slane %v1044, %v2177
  %v2183 = vmul.f32 %v2146, %v2166
  %v2184 = vmul.f32 %v2147, %v2170
  %v2185 = vmul.f32 %v2148, %v2174
  %v2186 = vmul.f32 %v2149, %v2178
  %v2187 = vmul.f32 %v2150, %v2166
  %v2188 = vmul.f32 %v2151, %v2170
  %v2189 = vmul.f32 %v2152, %v2174
  %v2190 = vmul.f32 %v2153, %v2178
  %v2191 = vmul.f32 %v2154, %v2166
  %v2192 = vmul.f32 %v2155, %v2170
  %v2193 = vmul.f32 %v2156, %v2174
  %v2194 = vmul.f32 %v2157, %v2178
  %v2195 = vmul.f32 %v2158, %v2166
  %v2196 = vmul.f32 %v2159, %v2170
  %v2197 = vmul.f32 %v2160, %v2174
  %v2198 = vmul.f32 %v2161, %v2178
  %v2200 = vlaneseq
  %v2201 = vshrl.u32 %v2200, 7
  %v2202 = vsub.s32 0, %v2201
  %v2203 = vrot.slane %v1045, %v2202
  %v2204 = vlaneseq
  %v2205 = vshrl.u32 %v2204, 7
  %v2206 = vsub.s32 1, %v2205
  %v2207 = vrot.slane %v1045, %v2206
  %v2208 = vlaneseq
  %v2209 = vshrl.u32 %v2208, 7
  %v2210 = vsub.s32 2, %v2209
  %v2211 = vrot.slane %v1045, %v2210
  %v2212 = vlaneseq
  %v2213 = vshrl.u32 %v2212, 7
  %v2214 = vsub.s32 3, %v2213
  %v2215 = vrot.slane %v1045, %v2214
  %v2220 = vadd.f32 %v2183, %v2203
  %v2221 = vadd.f32 %v2184, %v2207
  %v2222 = vadd.f32 %v2185, %v2211
  %v2223 = vadd.f32 %v2186, %v2215
  %v2224 = vadd.f32 %v2187, %v2203
  %v2225 = vadd.f32 %v2188, %v2207
  %v2226 = vadd.f32 %v2189, %v2211
  %v2227 = vadd.f32 %v2190, %v2215
  %v2228 = vadd.f32 %v2191, %v2203
  %v2229 = vadd.f32 %v2192, %v2207
  %v2230 = vadd.f32 %v2193, %v2211
  %v2231 = vadd.f32 %v2194, %v2215
  %v2232 = vadd.f32 %v2195, %v2203
  %v2233 = vadd.f32 %v2196, %v2207
  %v2234 = vadd.f32 %v2197, %v2211
  %v2235 = vadd.f32 %v2198, %v2215
  %v2236 = vmax.f32 %v2220, 0.0
  %v2237 = vmax.f32 %v2221, 0.0
  %v2238 = vmax.f32 %v2222, 0.0
  %v2239 = vmax.f32 %v2223, 0.0
  %v2240 = vmax.f32 %v2224, 0.0
  %v2241 = vmax.f32 %v2225, 0.0
  %v2242 = vmax.f32 %v2226, 0.0
  %v2243 = vmax.f32 %v2227, 0.0
  %v2244 = vmax.f32 %v2228, 0.0
  %v2245 = vmax.f32 %v2229, 0.0
  %v2246 = vmax.f32 %v2230, 0.0
  %v2247 = vmax.f32 %v2231, 0.0
  %v2248 = vmax.f32 %v2232, 0.0
  %v2249 = vmax.f32 %v2233, 0.0
  %v2250 = vmax.f32 %v2234, 0.0
  %v2251 = vmax.f32 %v2235, 0.0
  %v2252 = vld [vmem:[%s10] sm:$0xff]
  %v2253 = vld [vmem:[%s10 + $0x8] sm:$0xff]
  %v2254 = vld [vmem:[%s10 + $0x10] sm:$0xff]
  %v2255 = vld [vmem:[%s10 + $0x18] sm:$0xff]
  %v2256 = vld [vmem:[%s10 + $0x20] sm:$0xff]
  %v2257 = vld [vmem:[%s10 + $0x28] sm:$0xff]
  %v2258 = vld [vmem:[%s10 + $0x30] sm:$0xff]
  %v2259 = vld [vmem:[%s10 + $0x38] sm:$0xff]
  %v2260 = vld [vmem:[%s10 + $0x40] sm:$0xff]
  %v2261 = vld [vmem:[%s10 + $0x48] sm:$0xff]
  %v2262 = vld [vmem:[%s10 + $0x50] sm:$0xff]
  %v2263 = vld [vmem:[%s10 + $0x58] sm:$0xff]
  %v2264 = vld [vmem:[%s10 + $0x60] sm:$0xff]
  %v2265 = vld [vmem:[%s10 + $0x68] sm:$0xff]
  %v2266 = vld [vmem:[%s10 + $0x70] sm:$0xff]
  %v2267 = vld [vmem:[%s10 + $0x78] sm:$0xff]
  %v2268 = vld [vmem:[%s10 + $0x80] sm:$0xff]
  %v2269 = vld [vmem:[%s10 + $0x88] sm:$0xff]
  %v2270 = vld [vmem:[%s10 + $0x90] sm:$0xff]
  %v2271 = vld [vmem:[%s10 + $0x98] sm:$0xff]
  %v2272 = vld [vmem:[%s10 + $0xa0] sm:$0xff]
  %v2273 = vld [vmem:[%s10 + $0xa8] sm:$0xff]
  %v2274 = vld [vmem:[%s10 + $0xb0] sm:$0xff]
  %v2275 = vld [vmem:[%s10 + $0xb8] sm:$0xff]
  %v2276 = vld [vmem:[%s10 + $0xc0] sm:$0xff]
  %v2277 = vld [vmem:[%s10 + $0xc8] sm:$0xff]
  %v2278 = vld [vmem:[%s10 + $0xd0] sm:$0xff]
  %v2279 = vld [vmem:[%s10 + $0xd8] sm:$0xff]
  %v2280 = vld [vmem:[%s10 + $0xe0] sm:$0xff]
  %v2281 = vld [vmem:[%s10 + $0xe8] sm:$0xff]
  %v2282 = vld [vmem:[%s10 + $0xf0] sm:$0xff]
  %v2283 = vld [vmem:[%s10 + $0xf8] sm:$0xff]
  %v2284 = vld [vmem:[%s10 + $0x100] sm:$0xff]
  %v2285 = vld [vmem:[%s10 + $0x108] sm:$0xff]
  %v2286 = vld [vmem:[%s10 + $0x110] sm:$0xff]
  %v2287 = vld [vmem:[%s10 + $0x118] sm:$0xff]
  %v2288 = vld [vmem:[%s10 + $0x120] sm:$0xff]
  %v2289 = vld [vmem:[%s10 + $0x128] sm:$0xff]
  %v2290 = vld [vmem:[%s10 + $0x130] sm:$0xff]
  %v2291 = vld [vmem:[%s10 + $0x138] sm:$0xff]
  %v2292 = vld [vmem:[%s10 + $0x140] sm:$0xff]
  %v2293 = vld [vmem:[%s10 + $0x148] sm:$0xff]
  %v2294 = vld [vmem:[%s10 + $0x150] sm:$0xff]
  %v2295 = vld [vmem:[%s10 + $0x158] sm:$0xff]
  %v2296 = vld [vmem:[%s10 + $0x160] sm:$0xff]
  %v2297 = vld [vmem:[%s10 + $0x168] sm:$0xff]
  %v2298 = vld [vmem:[%s10 + $0x170] sm:$0xff]
  %v2299 = vld [vmem:[%s10 + $0x178] sm:$0xff]
  %v2300 = vld [vmem:[%s10 + $0x180] sm:$0xff]
  %v2301 = vld [vmem:[%s10 + $0x188] sm:$0xff]
  %v2302 = vld [vmem:[%s10 + $0x190] sm:$0xff]
  %v2303 = vld [vmem:[%s10 + $0x198] sm:$0xff]
  %v2304 = vld [vmem:[%s10 + $0x1a0] sm:$0xff]
  %v2305 = vld [vmem:[%s10 + $0x1a8] sm:$0xff]
  %v2306 = vld [vmem:[%s10 + $0x1b0] sm:$0xff]
  %v2307 = vld [vmem:[%s10 + $0x1b8] sm:$0xff]
  %v2308 = vld [vmem:[%s10 + $0x1c0] sm:$0xff]
  %v2309 = vld [vmem:[%s10 + $0x1c8] sm:$0xff]
  %v2310 = vld [vmem:[%s10 + $0x1d0] sm:$0xff]
  %v2311 = vld [vmem:[%s10 + $0x1d8] sm:$0xff]
  %v2312 = vld [vmem:[%s10 + $0x1e0] sm:$0xff]
  %v2313 = vld [vmem:[%s10 + $0x1e8] sm:$0xff]
  %v2314 = vld [vmem:[%s10 + $0x1f0] sm:$0xff]
  %v2315 = vld [vmem:[%s10 + $0x1f8] sm:$0xff]
  %v2316 = vld [vmem:[%s10 + $0x200] sm:$0xff]
  %v2317 = vld [vmem:[%s10 + $0x208] sm:$0xff]
  %v2318 = vld [vmem:[%s10 + $0x210] sm:$0xff]
  %v2319 = vld [vmem:[%s10 + $0x218] sm:$0xff]
  %v2320 = vld [vmem:[%s10 + $0x220] sm:$0xff]
  %v2321 = vld [vmem:[%s10 + $0x228] sm:$0xff]
  %v2322 = vld [vmem:[%s10 + $0x230] sm:$0xff]
  %v2323 = vld [vmem:[%s10 + $0x238] sm:$0xff]
  %v2324 = vld [vmem:[%s10 + $0x240] sm:$0xff]
  %v2325 = vld [vmem:[%s10 + $0x248] sm:$0xff]
  %v2326 = vld [vmem:[%s10 + $0x250] sm:$0xff]
  %v2327 = vld [vmem:[%s10 + $0x258] sm:$0xff]
  %v2328 = vld [vmem:[%s10 + $0x260] sm:$0xff]
  %v2329 = vld [vmem:[%s10 + $0x268] sm:$0xff]
  %v2330 = vld [vmem:[%s10 + $0x270] sm:$0xff]
  %v2331 = vld [vmem:[%s10 + $0x278] sm:$0xff]
  %v2332 = vld [vmem:[%s10 + $0x280] sm:$0xff]
  %v2333 = vld [vmem:[%s10 + $0x288] sm:$0xff]
  %v2334 = vld [vmem:[%s10 + $0x290] sm:$0xff]
  %v2335 = vld [vmem:[%s10 + $0x298] sm:$0xff]
  %v2336 = vld [vmem:[%s10 + $0x2a0] sm:$0xff]
  %v2337 = vld [vmem:[%s10 + $0x2a8] sm:$0xff]
  %v2338 = vld [vmem:[%s10 + $0x2b0] sm:$0xff]
  %v2339 = vld [vmem:[%s10 + $0x2b8] sm:$0xff]
  %v2340 = vld [vmem:[%s10 + $0x2c0] sm:$0xff]
  %v2341 = vld [vmem:[%s10 + $0x2c8] sm:$0xff]
  %v2342 = vld [vmem:[%s10 + $0x2d0] sm:$0xff]
  %v2343 = vld [vmem:[%s10 + $0x2d8] sm:$0xff]
  %v2344 = vld [vmem:[%s10 + $0x2e0] sm:$0xff]
  %v2345 = vld [vmem:[%s10 + $0x2e8] sm:$0xff]
  %v2346 = vld [vmem:[%s10 + $0x2f0] sm:$0xff]
  %v2347 = vld [vmem:[%s10 + $0x2f8] sm:$0xff]
  %v2348 = vld [vmem:[%s10 + $0x300] sm:$0xff]
  %v2349 = vld [vmem:[%s10 + $0x308] sm:$0xff]
  %v2350 = vld [vmem:[%s10 + $0x310] sm:$0xff]
  %v2351 = vld [vmem:[%s10 + $0x318] sm:$0xff]
  %v2352 = vld [vmem:[%s10 + $0x320] sm:$0xff]
  %v2353 = vld [vmem:[%s10 + $0x328] sm:$0xff]
  %v2354 = vld [vmem:[%s10 + $0x330] sm:$0xff]
  %v2355 = vld [vmem:[%s10 + $0x338] sm:$0xff]
  %v2356 = vld [vmem:[%s10 + $0x340] sm:$0xff]
  %v2357 = vld [vmem:[%s10 + $0x348] sm:$0xff]
  %v2358 = vld [vmem:[%s10 + $0x350] sm:$0xff]
  %v2359 = vld [vmem:[%s10 + $0x358] sm:$0xff]
  %v2360 = vld [vmem:[%s10 + $0x360] sm:$0xff]
  %v2361 = vld [vmem:[%s10 + $0x368] sm:$0xff]
  %v2362 = vld [vmem:[%s10 + $0x370] sm:$0xff]
  %v2363 = vld [vmem:[%s10 + $0x378] sm:$0xff]
  %v2364 = vld [vmem:[%s10 + $0x380] sm:$0xff]
  %v2365 = vld [vmem:[%s10 + $0x388] sm:$0xff]
  %v2366 = vld [vmem:[%s10 + $0x390] sm:$0xff]
  %v2367 = vld [vmem:[%s10 + $0x398] sm:$0xff]
  %v2368 = vld [vmem:[%s10 + $0x3a0] sm:$0xff]
  %v2369 = vld [vmem:[%s10 + $0x3a8] sm:$0xff]
  %v2370 = vld [vmem:[%s10 + $0x3b0] sm:$0xff]
  %v2371 = vld [vmem:[%s10 + $0x3b8] sm:$0xff]
  %v2372 = vld [vmem:[%s10 + $0x3c0] sm:$0xff]
  %v2373 = vld [vmem:[%s10 + $0x3c8] sm:$0xff]
  %v2374 = vld [vmem:[%s10 + $0x3d0] sm:$0xff]
  %v2375 = vld [vmem:[%s10 + $0x3d8] sm:$0xff]
  %v2376 = vld [vmem:[%s10 + $0x3e0] sm:$0xff]
  %v2377 = vld [vmem:[%s10 + $0x3e8] sm:$0xff]
  %v2378 = vld [vmem:[%s10 + $0x3f0] sm:$0xff]
  %v2379 = vld [vmem:[%s10 + $0x3f8] sm:$0xff]
  %v2380 = vld [vmem:[%s10 + $0x400] sm:$0xff]
  %v2381 = vld [vmem:[%s10 + $0x408] sm:$0xff]
  %v2382 = vld [vmem:[%s10 + $0x410] sm:$0xff]
  %v2383 = vld [vmem:[%s10 + $0x418] sm:$0xff]
  %v2384 = vld [vmem:[%s10 + $0x420] sm:$0xff]
  %v2385 = vld [vmem:[%s10 + $0x428] sm:$0xff]
  %v2386 = vld [vmem:[%s10 + $0x430] sm:$0xff]
  %v2387 = vld [vmem:[%s10 + $0x438] sm:$0xff]
  %v2388 = vld [vmem:[%s10 + $0x440] sm:$0xff]
  %v2389 = vld [vmem:[%s10 + $0x448] sm:$0xff]
  %v2390 = vld [vmem:[%s10 + $0x450] sm:$0xff]
  %v2391 = vld [vmem:[%s10 + $0x458] sm:$0xff]
  %v2392 = vld [vmem:[%s10 + $0x460] sm:$0xff]
  %v2393 = vld [vmem:[%s10 + $0x468] sm:$0xff]
  %v2394 = vld [vmem:[%s10 + $0x470] sm:$0xff]
  %v2395 = vld [vmem:[%s10 + $0x478] sm:$0xff]
  %v2396 = vld [vmem:[%s10 + $0x480] sm:$0xff]
  %v2397 = vld [vmem:[%s10 + $0x488] sm:$0xff]
  %v2398 = vld [vmem:[%s10 + $0x490] sm:$0xff]
  %v2399 = vld [vmem:[%s10 + $0x498] sm:$0xff]
  %v2400 = vld [vmem:[%s10 + $0x4a0] sm:$0xff]
  %v2401 = vld [vmem:[%s10 + $0x4a8] sm:$0xff]
  %v2402 = vld [vmem:[%s10 + $0x4b0] sm:$0xff]
  %v2403 = vld [vmem:[%s10 + $0x4b8] sm:$0xff]
  %v2404 = vld [vmem:[%s10 + $0x4c0] sm:$0xff]
  %v2405 = vld [vmem:[%s10 + $0x4c8] sm:$0xff]
  %v2406 = vld [vmem:[%s10 + $0x4d0] sm:$0xff]
  %v2407 = vld [vmem:[%s10 + $0x4d8] sm:$0xff]
  %v2408 = vld [vmem:[%s10 + $0x4e0] sm:$0xff]
  %v2409 = vld [vmem:[%s10 + $0x4e8] sm:$0xff]
  %v2410 = vld [vmem:[%s10 + $0x4f0] sm:$0xff]
  %v2411 = vld [vmem:[%s10 + $0x4f8] sm:$0xff]
  %v2412 = vld [vmem:[%s10 + $0x500] sm:$0xff]
  %v2413 = vld [vmem:[%s10 + $0x508] sm:$0xff]
  %v2414 = vld [vmem:[%s10 + $0x510] sm:$0xff]
  %v2415 = vld [vmem:[%s10 + $0x518] sm:$0xff]
  %v2416 = vld [vmem:[%s10 + $0x520] sm:$0xff]
  %v2417 = vld [vmem:[%s10 + $0x528] sm:$0xff]
  %v2418 = vld [vmem:[%s10 + $0x530] sm:$0xff]
  %v2419 = vld [vmem:[%s10 + $0x538] sm:$0xff]
  %v2420 = vld [vmem:[%s10 + $0x540] sm:$0xff]
  %v2421 = vld [vmem:[%s10 + $0x548] sm:$0xff]
  %v2422 = vld [vmem:[%s10 + $0x550] sm:$0xff]
  %v2423 = vld [vmem:[%s10 + $0x558] sm:$0xff]
  %v2424 = vld [vmem:[%s10 + $0x560] sm:$0xff]
  %v2425 = vld [vmem:[%s10 + $0x568] sm:$0xff]
  %v2426 = vld [vmem:[%s10 + $0x570] sm:$0xff]
  %v2427 = vld [vmem:[%s10 + $0x578] sm:$0xff]
  %v2428 = vld [vmem:[%s10 + $0x580] sm:$0xff]
  %v2429 = vld [vmem:[%s10 + $0x588] sm:$0xff]
  %v2430 = vld [vmem:[%s10 + $0x590] sm:$0xff]
  %v2431 = vld [vmem:[%s10 + $0x598] sm:$0xff]
  %v2432 = vld [vmem:[%s10 + $0x5a0] sm:$0xff]
  %v2433 = vld [vmem:[%s10 + $0x5a8] sm:$0xff]
  %v2434 = vld [vmem:[%s10 + $0x5b0] sm:$0xff]
  %v2435 = vld [vmem:[%s10 + $0x5b8] sm:$0xff]
  %v2436 = vld [vmem:[%s10 + $0x5c0] sm:$0xff]
  %v2437 = vld [vmem:[%s10 + $0x5c8] sm:$0xff]
  %v2438 = vld [vmem:[%s10 + $0x5d0] sm:$0xff]
  %v2439 = vld [vmem:[%s10 + $0x5d8] sm:$0xff]
  %v2440 = vld [vmem:[%s10 + $0x5e0] sm:$0xff]
  %v2441 = vld [vmem:[%s10 + $0x5e8] sm:$0xff]
  %v2442 = vld [vmem:[%s10 + $0x5f0] sm:$0xff]
  %v2443 = vld [vmem:[%s10 + $0x5f8] sm:$0xff]
  %v2444 = vld [vmem:[%s10 + $0x600] sm:$0xff]
  %v2445 = vld [vmem:[%s10 + $0x608] sm:$0xff]
  %v2446 = vld [vmem:[%s10 + $0x610] sm:$0xff]
  %v2447 = vld [vmem:[%s10 + $0x618] sm:$0xff]
  %v2448 = vld [vmem:[%s10 + $0x620] sm:$0xff]
  %v2449 = vld [vmem:[%s10 + $0x628] sm:$0xff]
  %v2450 = vld [vmem:[%s10 + $0x630] sm:$0xff]
  %v2451 = vld [vmem:[%s10 + $0x638] sm:$0xff]
  %v2452 = vld [vmem:[%s10 + $0x640] sm:$0xff]
  %v2453 = vld [vmem:[%s10 + $0x648] sm:$0xff]
  %v2454 = vld [vmem:[%s10 + $0x650] sm:$0xff]
  %v2455 = vld [vmem:[%s10 + $0x658] sm:$0xff]
  %v2456 = vld [vmem:[%s10 + $0x660] sm:$0xff]
  %v2457 = vld [vmem:[%s10 + $0x668] sm:$0xff]
  %v2458 = vld [vmem:[%s10 + $0x670] sm:$0xff]
  %v2459 = vld [vmem:[%s10 + $0x678] sm:$0xff]
  %v2460 = vld [vmem:[%s10 + $0x680] sm:$0xff]
  %v2461 = vld [vmem:[%s10 + $0x688] sm:$0xff]
  %v2462 = vld [vmem:[%s10 + $0x690] sm:$0xff]
  %v2463 = vld [vmem:[%s10 + $0x698] sm:$0xff]
  %v2464 = vld [vmem:[%s10 + $0x6a0] sm:$0xff]
  %v2465 = vld [vmem:[%s10 + $0x6a8] sm:$0xff]
  %v2466 = vld [vmem:[%s10 + $0x6b0] sm:$0xff]
  %v2467 = vld [vmem:[%s10 + $0x6b8] sm:$0xff]
  %v2468 = vld [vmem:[%s10 + $0x6c0] sm:$0xff]
  %v2469 = vld [vmem:[%s10 + $0x6c8] sm:$0xff]
  %v2470 = vld [vmem:[%s10 + $0x6d0] sm:$0xff]
  %v2471 = vld [vmem:[%s10 + $0x6d8] sm:$0xff]
  %v2472 = vld [vmem:[%s10 + $0x6e0] sm:$0xff]
  %v2473 = vld [vmem:[%s10 + $0x6e8] sm:$0xff]
  %v2474 = vld [vmem:[%s10 + $0x6f0] sm:$0xff]
  %v2475 = vld [vmem:[%s10 + $0x6f8] sm:$0xff]
  %v2476 = vld [vmem:[%s10 + $0x700] sm:$0xff]
  %v2477 = vld [vmem:[%s10 + $0x708] sm:$0xff]
  %v2478 = vld [vmem:[%s10 + $0x710] sm:$0xff]
  %v2479 = vld [vmem:[%s10 + $0x718] sm:$0xff]
  %v2480 = vld [vmem:[%s10 + $0x720] sm:$0xff]
  %v2481 = vld [vmem:[%s10 + $0x728] sm:$0xff]
  %v2482 = vld [vmem:[%s10 + $0x730] sm:$0xff]
  %v2483 = vld [vmem:[%s10 + $0x738] sm:$0xff]
  %v2484 = vld [vmem:[%s10 + $0x740] sm:$0xff]
  %v2485 = vld [vmem:[%s10 + $0x748] sm:$0xff]
  %v2486 = vld [vmem:[%s10 + $0x750] sm:$0xff]
  %v2487 = vld [vmem:[%s10 + $0x758] sm:$0xff]
  %v2488 = vld [vmem:[%s10 + $0x760] sm:$0xff]
  %v2489 = vld [vmem:[%s10 + $0x768] sm:$0xff]
  %v2490 = vld [vmem:[%s10 + $0x770] sm:$0xff]
  %v2491 = vld [vmem:[%s10 + $0x778] sm:$0xff]
  %v2492 = vld [vmem:[%s10 + $0x780] sm:$0xff]
  %v2493 = vld [vmem:[%s10 + $0x788] sm:$0xff]
  %v2494 = vld [vmem:[%s10 + $0x790] sm:$0xff]
  %v2495 = vld [vmem:[%s10 + $0x798] sm:$0xff]
  %v2496 = vld [vmem:[%s10 + $0x7a0] sm:$0xff]
  %v2497 = vld [vmem:[%s10 + $0x7a8] sm:$0xff]
  %v2498 = vld [vmem:[%s10 + $0x7b0] sm:$0xff]
  %v2499 = vld [vmem:[%s10 + $0x7b8] sm:$0xff]
  %v2500 = vld [vmem:[%s10 + $0x7c0] sm:$0xff]
  %v2501 = vld [vmem:[%s10 + $0x7c8] sm:$0xff]
  %v2502 = vld [vmem:[%s10 + $0x7d0] sm:$0xff]
  %v2503 = vld [vmem:[%s10 + $0x7d8] sm:$0xff]
  %v2504 = vld [vmem:[%s10 + $0x7e0] sm:$0xff]
  %v2505 = vld [vmem:[%s10 + $0x7e8] sm:$0xff]
  %v2506 = vld [vmem:[%s10 + $0x7f0] sm:$0xff]
  %v2507 = vld [vmem:[%s10 + $0x7f8] sm:$0xff]
  %2508 = vmatprep.subr.mxu0 %v2253
  %2509 = vmatpush1.msra.mxu0 %v2252
  %2510 = vmatprep.subr.mxu0 %v2257
  %2511 = vmatpush1.msra.mxu0 %v2256
  %2512 = vmatprep.subr.mxu0 %v2261
  %2513 = vmatpush1.msra.mxu0 %v2260
  %2514 = vmatprep.subr.mxu0 %v2265
  %2515 = vmatpush1.msra.mxu0 %v2264
  %2516 = vmatprep.subr.mxu0 %v2269
  %2517 = vmatpush1.msra.mxu0 %v2268
  %2518 = vmatprep.subr.mxu0 %v2273
  %2519 = vmatpush1.msra.mxu0 %v2272
  %2520 = vmatprep.subr.mxu0 %v2277
  %2521 = vmatpush1.msra.mxu0 %v2276
  %2522 = vmatprep.subr.mxu0 %v2281
  %2523 = vmatpush1.msra.mxu0 %v2280
  %2524 = vmatprep.subr.mxu0 %v2285
  %2525 = vmatpush1.msra.mxu0 %v2284
  %2526 = vmatprep.subr.mxu0 %v2289
  %2527 = vmatpush1.msra.mxu0 %v2288
  %2528 = vmatprep.subr.mxu0 %v2293
  %2529 = vmatpush1.msra.mxu0 %v2292
  %2530 = vmatprep.subr.mxu0 %v2297
  %2531 = vmatpush1.msra.mxu0 %v2296
  %2532 = vmatprep.subr.mxu0 %v2301
  %2533 = vmatpush1.msra.mxu0 %v2300
  %2534 = vmatprep.subr.mxu0 %v2305
  %2535 = vmatpush1.msra.mxu0 %v2304
  %2536 = vmatprep.subr.mxu0 %v2309
  %2537 = vmatpush1.msra.mxu0 %v2308
  %2538 = vmatprep.subr.mxu0 %v2313
  %2539 = vmatpush1.msra.mxu0 %v2312
  %2540 = vmatprep.subr.mxu0 %v2317
  %2541 = vmatpush1.msra.mxu0 %v2316
  %2542 = vmatprep.subr.mxu0 %v2321
  %2543 = vmatpush1.msra.mxu0 %v2320
  %2544 = vmatprep.subr.mxu0 %v2325
  %2545 = vmatpush1.msra.mxu0 %v2324
  %2546 = vmatprep.subr.mxu0 %v2329
  %2547 = vmatpush1.msra.mxu0 %v2328
  %2548 = vmatprep.subr.mxu0 %v2333
  %2549 = vmatpush1.msra.mxu0 %v2332
  %2550 = vmatprep.subr.mxu0 %v2337
  %2551 = vmatpush1.msra.mxu0 %v2336
  %2552 = vmatprep.subr.mxu0 %v2341
  %2553 = vmatpush1.msra.mxu0 %v2340
  %2554 = vmatprep.subr.mxu0 %v2345
  %2555 = vmatpush1.msra.mxu0 %v2344
  %2556 = vmatprep.subr.mxu0 %v2349
  %2557 = vmatpush1.msra.mxu0 %v2348
  %2558 = vmatprep.subr.mxu0 %v2353
  %2559 = vmatpush1.msra.mxu0 %v2352
  %2560 = vmatprep.subr.mxu0 %v2357
  %2561 = vmatpush1.msra.mxu0 %v2356
  %2562 = vmatprep.subr.mxu0 %v2361
  %2563 = vmatpush1.msra.mxu0 %v2360
  %2564 = vmatprep.subr.mxu0 %v2365
  %2565 = vmatpush1.msra.mxu0 %v2364
  %2566 = vmatprep.subr.mxu0 %v2369
  %2567 = vmatpush1.msra.mxu0 %v2368
  %2568 = vmatprep.subr.mxu0 %v2373
  %2569 = vmatpush1.msra.mxu0 %v2372
  %2570 = vmatprep.subr.mxu0 %v2377
  %2571 = vmatpush1.msra.mxu0 %v2376
  %2572 = vmatprep.mubr.f32.mxu0 %v2237
  %2573 = vmatmul.mubr.f32.gmra.mrb[0].mxu0 %v2236
  %v2574 = vpop.f32.mrb[0].mxu0
  %v2575 = vadd.f32 0.0, %v2574
  %v2576 = vpop.f32.mrb[0].mxu0
  %v2577 = vadd.f32 0.0, %v2576
  %2578 = vmatprep.mubr.f32.mxu0 %v2241
  %2579 = vmatmul.mubr.f32.gmra.mrb[0].mxu0 %v2240
  %v2580 = vpop.f32.mrb[0].mxu0
  %v2581 = vadd.f32 0.0, %v2580
  %v2582 = vpop.f32.mrb[0].mxu0
  %v2583 = vadd.f32 0.0, %v2582
  %2584 = vmatprep.mubr.f32.mxu0 %v2245
  %2585 = vmatmul.mubr.f32.gmra.mrb[0].mxu0 %v2244
  %v2586 = vpop.f32.mrb[0].mxu0
  %v2587 = vadd.f32 0.0, %v2586
  %v2588 = vpop.f32.mrb[0].mxu0
  %v2589 = vadd.f32 0.0, %v2588
  %2590 = vmatprep.mubr.f32.mxu0 %v2249
  %2591 = vmatmul.mubr.f32.gmra.mrb[0].mxu0 %v2248
  %v2592 = vpop.f32.mrb[0].mxu0
  %v2593 = vadd.f32 0.0, %v2592
  %v2594 = vpop.f32.mrb[0].mxu0
  %v2595 = vadd.f32 0.0, %v2594
  %2596 = vdwg.mxu0
  %2597 = vmatprep.subr.mxu0 %v2381
  %2598 = vmatpush1.msra.mxu0 %v2380
  %2599 = vmatprep.subr.mxu0 %v2385
  %2600 = vmatpush1.msra.mxu0 %v2384
  %2601 = vmatprep.subr.mxu0 %v2389
  %2602 = vmatpush1.msra.mxu0 %v2388
  %2603 = vmatprep.subr.mxu0 %v2393
  %2604 = vmatpush1.msra.mxu0 %v2392
  %2605 = vmatprep.subr.mxu0 %v2397
  %2606 = vmatpush1.msra.mxu0 %v2396
  %2607 = vmatprep.subr.mxu0 %v2401
  %2608 = vmatpush1.msra.mxu0 %v2400
  %2609 = vmatprep.subr.mxu0 %v2405
  %2610 = vmatpush1.msra.mxu0 %v2404
  %2611 = vmatprep.subr.mxu0 %v2409
  %2612 = vmatpush1.msra.mxu0 %v2408
  %2613 = vmatprep.subr.mxu0 %v2413
  %2614 = vmatpush1.msra.mxu0 %v2412
  %2615 = vmatprep.subr.mxu0 %v2417
  %2616 = vmatpush1.msra.mxu0 %v2416
  %2617 = vmatprep.subr.mxu0 %v2421
  %2618 = vmatpush1.msra.mxu0 %v2420
  %2619 = vmatprep.subr.mxu0 %v2425
  %2620 = vmatpush1.msra.mxu0 %v2424
  %2621 = vmatprep.subr.mxu0 %v2429
  %2622 = vmatpush1.msra.mxu0 %v2428
  %2623 = vmatprep.subr.mxu0 %v2433
  %2624 = vmatpush1.msra.mxu0 %v2432
  %2625 = vmatprep.subr.mxu0 %v2437
  %2626 = vmatpush1.msra.mxu0 %v2436
  %2627 = vmatprep.subr.mxu0 %v2441
  %2628 = vmatpush1.msra.mxu0 %v2440
  %2629 = vmatprep.subr.mxu0 %v2445
  %2630 = vmatpush1.msra.mxu0 %v2444
  %2631 = vmatprep.subr.mxu0 %v2449
  %2632 = vmatpush1.msra.mxu0 %v2448
  %2633 = vmatprep.subr.mxu0 %v2453
  %2634 = vmatpush1.msra.mxu0 %v2452
  %2635 = vmatprep.subr.mxu0 %v2457
  %2636 = vmatpush1.msra.mxu0 %v2456
  %2637 = vmatprep.subr.mxu0 %v2461
  %2638 = vmatpush1.msra.mxu0 %v2460
  %2639 = vmatprep.subr.mxu0 %v2465
  %2640 = vmatpush1.msra.mxu0 %v2464
  %2641 = vmatprep.subr.mxu0 %v2469
  %2642 = vmatpush1.msra.mxu0 %v2468
  %2643 = vmatprep.subr.mxu0 %v2473
  %2644 = vmatpush1.msra.mxu0 %v2472
  %2645 = vmatprep.subr.mxu0 %v2477
  %2646 = vmatpush1.msra.mxu0 %v2476
  %2647 = vmatprep.subr.mxu0 %v2481
  %2648 = vmatpush1.msra.mxu0 %v2480
  %2649 = vmatprep.subr.mxu0 %v2485
  %2650 = vmatpush1.msra.mxu0 %v2484
  %2651 = vmatprep.subr.mxu0 %v2489
  %2652 = vmatpush1.msra.mxu0 %v2488
  %2653 = vmatprep.subr.mxu0 %v2493
  %2654 = vmatpush1.msra.mxu0 %v2492
  %2655 = vmatprep.subr.mxu0 %v2497
  %2656 = vmatpush1.msra.mxu0 %v2496
  %2657 = vmatprep.subr.mxu0 %v2501
  %2658 = vmatpush1.msra.mxu0 %v2500
  %2659 = vmatprep.subr.mxu0 %v2505
  %2660 = vmatpush1.msra.mxu0 %v2504
  %2661 = vmatprep.mubr.f32.mxu0 %v2239
  %2662 = vmatmul.mubr.f32.gmra.mrb[0].mxu0 %v2238
  %v2663 = vpop.f32.mrb[0].mxu0
  %v2664 = vadd.f32 %v2575, %v2663
  %v2665 = vpop.f32.mrb[0].mxu0
  %v2666 = vadd.f32 %v2577, %v2665
  %2667 = vmatprep.mubr.f32.mxu0 %v2243
  %2668 = vmatmul.mubr.f32.gmra.mrb[0].mxu0 %v2242
  %v2669 = vpop.f32.mrb[0].mxu0
  %v2670 = vadd.f32 %v2581, %v2669
  %v2671 = vpop.f32.mrb[0].mxu0
  %v2672 = vadd.f32 %v2583, %v2671
  %2673 = vmatprep.mubr.f32.mxu0 %v2247
  %2674 = vmatmul.mubr.f32.gmra.mrb[0].mxu0 %v2246
  %v2675 = vpop.f32.mrb[0].mxu0
  %v2676 = vadd.f32 %v2587, %v2675
  %v2677 = vpop.f32.mrb[0].mxu0
  %v2678 = vadd.f32 %v2589, %v2677
  %2679 = vmatprep.mubr.f32.mxu0 %v2251
  %2680 = vmatmul.mubr.f32.gmra.mrb[0].mxu0 %v2250
  %v2681 = vpop.f32.mrb[0].mxu0
  %v2682 = vadd.f32 %v2593, %v2681
  %v2683 = vpop.f32.mrb[0].mxu0
  %v2684 = vadd.f32 %v2595, %v2683
  %2685 = vdwg.mxu0
  %2686 = vmatprep.subr.mxu0 %v2255
  %2687 = vmatpush1.msra.mxu0 %v2254
  %2688 = vmatprep.subr.mxu0 %v2259
  %2689 = vmatpush1.msra.mxu0 %v2258
  %2690 = vmatprep.subr.mxu0 %v2263
  %2691 = vmatpush1.msra.mxu0 %v2262
  %2692 = vmatprep.subr.mxu0 %v2267
  %2693 = vmatpush1.msra.mxu0 %v2266
  %2694 = vmatprep.subr.mxu0 %v2271
  %2695 = vmatpush1.msra.mxu0 %v2270
  %2696 = vmatprep.subr.mxu0 %v2275
  %2697 = vmatpush1.msra.mxu0 %v2274
  %2698 = vmatprep.subr.mxu0 %v2279
  %2699 = vmatpush1.msra.mxu0 %v2278
  %2700 = vmatprep.subr.mxu0 %v2283
  %2701 = vmatpush1.msra.mxu0 %v2282
  %2702 = vmatprep.subr.mxu0 %v2287
  %2703 = vmatpush1.msra.mxu0 %v2286
  %2704 = vmatprep.subr.mxu0 %v2291
  %2705 = vmatpush1.msra.mxu0 %v2290
  %2706 = vmatprep.subr.mxu0 %v2295
  %2707 = vmatpush1.msra.mxu0 %v2294
  %2708 = vmatprep.subr.mxu0 %v2299
  %2709 = vmatpush1.msra.mxu0 %v2298
  %2710 = vmatprep.subr.mxu0 %v2303
  %2711 = vmatpush1.msra.mxu0 %v2302
  %2712 = vmatprep.subr.mxu0 %v2307
  %2713 = vmatpush1.msra.mxu0 %v2306
  %2714 = vmatprep.subr.mxu0 %v2311
  %2715 = vmatpush1.msra.mxu0 %v2310
  %2716 = vmatprep.subr.mxu0 %v2315
  %2717 = vmatpush1.msra.mxu0 %v2314
  %2718 = vmatprep.subr.mxu0 %v2319
  %2719 = vmatpush1.msra.mxu0 %v2318
  %2720 = vmatprep.subr.mxu0 %v2323
  %2721 = vmatpush1.msra.mxu0 %v2322
  %2722 = vmatprep.subr.mxu0 %v2327
  %2723 = vmatpush1.msra.mxu0 %v2326
  %2724 = vmatprep.subr.mxu0 %v2331
  %2725 = vmatpush1.msra.mxu0 %v2330
  %2726 = vmatprep.subr.mxu0 %v2335
  %2727 = vmatpush1.msra.mxu0 %v2334
  %2728 = vmatprep.subr.mxu0 %v2339
  %2729 = vmatpush1.msra.mxu0 %v2338
  %2730 = vmatprep.subr.mxu0 %v2343
  %2731 = vmatpush1.msra.mxu0 %v2342
  %2732 = vmatprep.subr.mxu0 %v2347
  %2733 = vmatpush1.msra.mxu0 %v2346
  %2734 = vmatprep.subr.mxu0 %v2351
  %2735 = vmatpush1.msra.mxu0 %v2350
  %2736 = vmatprep.subr.mxu0 %v2355
  %2737 = vmatpush1.msra.mxu0 %v2354
  %2738 = vmatprep.subr.mxu0 %v2359
  %2739 = vmatpush1.msra.mxu0 %v2358
  %2740 = vmatprep.subr.mxu0 %v2363
  %2741 = vmatpush1.msra.mxu0 %v2362
  %2742 = vmatprep.subr.mxu0 %v2367
  %2743 = vmatpush1.msra.mxu0 %v2366
  %2744 = vmatprep.subr.mxu0 %v2371
  %2745 = vmatpush1.msra.mxu0 %v2370
  %2746 = vmatprep.subr.mxu0 %v2375
  %2747 = vmatpush1.msra.mxu0 %v2374
  %2748 = vmatprep.subr.mxu0 %v2379
  %2749 = vmatpush1.msra.mxu0 %v2378
  %2750 = vmatprep.mubr.f32.mxu0 %v2237
  %2751 = vmatmul.mubr.f32.gmra.mrb[0].mxu0 %v2236
  %v2752 = vpop.f32.mrb[0].mxu0
  %v2753 = vadd.f32 0.0, %v2752
  %v2754 = vpop.f32.mrb[0].mxu0
  %v2755 = vadd.f32 0.0, %v2754
  %2756 = vmatprep.mubr.f32.mxu0 %v2241
  %2757 = vmatmul.mubr.f32.gmra.mrb[0].mxu0 %v2240
  %v2758 = vpop.f32.mrb[0].mxu0
  %v2759 = vadd.f32 0.0, %v2758
  %v2760 = vpop.f32.mrb[0].mxu0
  %v2761 = vadd.f32 0.0, %v2760
  %2762 = vmatprep.mubr.f32.mxu0 %v2245
  %2763 = vmatmul.mubr.f32.gmra.mrb[0].mxu0 %v2244
  %v2764 = vpop.f32.mrb[0].mxu0
  %v2765 = vadd.f32 0.0, %v2764
  %v2766 = vpop.f32.mrb[0].mxu0
  %v2767 = vadd.f32 0.0, %v2766
  %2768 = vmatprep.mubr.f32.mxu0 %v2249
  %2769 = vmatmul.mubr.f32.gmra.mrb[0].mxu0 %v2248
  %v2770 = vpop.f32.mrb[0].mxu0
  %v2771 = vadd.f32 0.0, %v2770
  %v2772 = vpop.f32.mrb[0].mxu0
  %v2773 = vadd.f32 0.0, %v2772
  %2774 = vdwg.mxu0
  %2775 = vmatprep.subr.mxu0 %v2383
  %2776 = vmatpush1.msra.mxu0 %v2382
  %2777 = vmatprep.subr.mxu0 %v2387
  %2778 = vmatpush1.msra.mxu0 %v2386
  %2779 = vmatprep.subr.mxu0 %v2391
  %2780 = vmatpush1.msra.mxu0 %v2390
  %2781 = vmatprep.subr.mxu0 %v2395
  %2782 = vmatpush1.msra.mxu0 %v2394
  %2783 = vmatprep.subr.mxu0 %v2399
  %2784 = vmatpush1.msra.mxu0 %v2398
  %2785 = vmatprep.subr.mxu0 %v2403
  %2786 = vmatpush1.msra.mxu0 %v2402
  %2787 = vmatprep.subr.mxu0 %v2407
  %2788 = vmatpush1.msra.mxu0 %v2406
  %2789 = vmatprep.subr.mxu0 %v2411
  %2790 = vmatpush1.msra.mxu0 %v2410
  %2791 = vmatprep.subr.mxu0 %v2415
  %2792 = vmatpush1.msra.mxu0 %v2414
  %2793 = vmatprep.subr.mxu0 %v2419
  %2794 = vmatpush1.msra.mxu0 %v2418
  %2795 = vmatprep.subr.mxu0 %v2423
  %2796 = vmatpush1.msra.mxu0 %v2422
  %2797 = vmatprep.subr.mxu0 %v2427
  %2798 = vmatpush1.msra.mxu0 %v2426
  %2799 = vmatprep.subr.mxu0 %v2431
  %2800 = vmatpush1.msra.mxu0 %v2430
  %2801 = vmatprep.subr.mxu0 %v2435
  %2802 = vmatpush1.msra.mxu0 %v2434
  %2803 = vmatprep.subr.mxu0 %v2439
  %2804 = vmatpush1.msra.mxu0 %v2438
  %2805 = vmatprep.subr.mxu0 %v2443
  %2806 = vmatpush1.msra.mxu0 %v2442
  %2807 = vmatprep.subr.mxu0 %v2447
  %2808 = vmatpush1.msra.mxu0 %v2446
  %2809 = vmatprep.subr.mxu0 %v2451
  %2810 = vmatpush1.msra.mxu0 %v2450
  %2811 = vmatprep.subr.mxu0 %v2455
  %2812 = vmatpush1.msra.mxu0 %v2454
  %2813 = vmatprep.subr.mxu0 %v2459
  %2814 = vmatpush1.msra.mxu0 %v2458
  %2815 = vmatprep.subr.mxu0 %v2463
  %2816 = vmatpush1.msra.mxu0 %v2462
  %2817 = vmatprep.subr.mxu0 %v2467
  %2818 = vmatpush1.msra.mxu0 %v2466
  %2819 = vmatprep.subr.mxu0 %v2471
  %2820 = vmatpush1.msra.mxu0 %v2470
  %2821 = vmatprep.subr.mxu0 %v2475
  %2822 = vmatpush1.msra.mxu0 %v2474
  %2823 = vmatprep.subr.mxu0 %v2479
  %2824 = vmatpush1.msra.mxu0 %v2478
  %2825 = vmatprep.subr.mxu0 %v2483
  %2826 = vmatpush1.msra.mxu0 %v2482
  %2827 = vmatprep.subr.mxu0 %v2487
  %2828 = vmatpush1.msra.mxu0 %v2486
  %2829 = vmatprep.subr.mxu0 %v2491
  %2830 = vmatpush1.msra.mxu0 %v2490
  %2831 = vmatprep.subr.mxu0 %v2495
  %2832 = vmatpush1.msra.mxu0 %v2494
  %2833 = vmatprep.subr.mxu0 %v2499
  %2834 = vmatpush1.msra.mxu0 %v2498
  %2835 = vmatprep.subr.mxu0 %v2503
  %2836 = vmatpush1.msra.mxu0 %v2502
  %2837 = vmatprep.subr.mxu0 %v2507
  %2838 = vmatpush1.msra.mxu0 %v2506
  %2839 = vmatprep.mubr.f32.mxu0 %v2239
  %2840 = vmatmul.mubr.f32.gmra.mrb[0].mxu0 %v2238
  %v2841 = vpop.f32.mrb[0].mxu0
  %v2842 = vadd.f32 %v2753, %v2841
  %v2843 = vpop.f32.mrb[0].mxu0
  %v2844 = vadd.f32 %v2755, %v2843
  %2845 = vmatprep.mubr.f32.mxu0 %v2243
  %2846 = vmatmul.mubr.f32.gmra.mrb[0].mxu0 %v2242
  %v2847 = vpop.f32.mrb[0].mxu0
  %v2848 = vadd.f32 %v2759, %v2847
  %v2849 = vpop.f32.mrb[0].mxu0
  %v2850 = vadd.f32 %v2761, %v2849
  %2851 = vmatprep.mubr.f32.mxu0 %v2247
  %2852 = vmatmul.mubr.f32.gmra.mrb[0].mxu0 %v2246
  %v2853 = vpop.f32.mrb[0].mxu0
  %v2854 = vadd.f32 %v2765, %v2853
  %v2855 = vpop.f32.mrb[0].mxu0
  %v2856 = vadd.f32 %v2767, %v2855
  %2857 = vmatprep.mubr.f32.mxu0 %v2251
  %2858 = vmatmul.mubr.f32.gmra.mrb[0].mxu0 %v2250
  %v2859 = vpop.f32.mrb[0].mxu0
  %v2860 = vadd.f32 %v2771, %v2859
  %v2861 = vpop.f32.mrb[0].mxu0
  %v2862 = vadd.f32 %v2773, %v2861
  %2863 = vdwg.mxu0
  %v2864 = vld [vmem:[%s11] sm:$0xf]
  %v2865 = vld [vmem:[%s12] sm:$0xf]
  %2866 = vmatprep.subr.mxu0 %v1047
  %2867 = vmatpush1.msra.mxu0 %v1046
  %2868 = vmatprep.subr.mxu0 %v1051
  %2869 = vmatpush1.msra.mxu0 %v1050
  %2870 = vmatprep.subr.mxu0 %v1055
  %2871 = vmatpush1.msra.mxu0 %v1054
  %2872 = vmatprep.subr.mxu0 %v1059
  %2873 = vmatpush1.msra.mxu0 %v1058
  %2874 = vmatprep.subr.mxu0 %v1063
  %2875 = vmatpush1.msra.mxu0 %v1062
  %2876 = vmatprep.subr.mxu0 %v1067
  %2877 = vmatpush1.msra.mxu0 %v1066
  %2878 = vmatprep.subr.mxu0 %v1071
  %2879 = vmatpush1.msra.mxu0 %v1070
  %2880 = vmatprep.subr.mxu0 %v1075
  %2881 = vmatpush1.msra.mxu0 %v1074
  %2882 = vmatprep.subr.mxu0 %v1079
  %2883 = vmatpush1.msra.mxu0 %v1078
  %2884 = vmatprep.subr.mxu0 %v1083
  %2885 = vmatpush1.msra.mxu0 %v1082
  %2886 = vmatprep.subr.mxu0 %v1087
  %2887 = vmatpush1.msra.mxu0 %v1086
  %2888 = vmatprep.subr.mxu0 %v1091
  %2889 = vmatpush1.msra.mxu0 %v1090
  %2890 = vmatprep.subr.mxu0 %v1095
  %2891 = vmatpush1.msra.mxu0 %v1094
  %2892 = vmatprep.subr.mxu0 %v1099
  %2893 = vmatpush1.msra.mxu0 %v1098
  %2894 = vmatprep.subr.mxu0 %v1103
  %2895 = vmatpush1.msra.mxu0 %v1102
  %2896 = vmatprep.subr.mxu0 %v1107
  %2897 = vmatpush1.msra.mxu0 %v1106
  %2898 = vmatprep.subr.mxu0 %v1111
  %2899 = vmatpush1.msra.mxu0 %v1110
  %2900 = vmatprep.subr.mxu0 %v1115
  %2901 = vmatpush1.msra.mxu0 %v1114
  %2902 = vmatprep.subr.mxu0 %v1119
  %2903 = vmatpush1.msra.mxu0 %v1118
  %2904 = vmatprep.subr.mxu0 %v1123
  %2905 = vmatpush1.msra.mxu0 %v1122
  %2906 = vmatprep.subr.mxu0 %v1127
  %2907 = vmatpush1.msra.mxu0 %v1126
  %2908 = vmatprep.subr.mxu0 %v1131
  %2909 = vmatpush1.msra.mxu0 %v1130
  %2910 = vmatprep.subr.mxu0 %v1135
  %2911 = vmatpush1.msra.mxu0 %v1134
  %2912 = vmatprep.subr.mxu0 %v1139
  %2913 = vmatpush1.msra.mxu0 %v1138
  %2914 = vmatprep.subr.mxu0 %v1143
  %2915 = vmatpush1.msra.mxu0 %v1142
  %2916 = vmatprep.subr.mxu0 %v1147
  %2917 = vmatpush1.msra.mxu0 %v1146
  %2918 = vmatprep.subr.mxu0 %v1151
  %2919 = vmatpush1.msra.mxu0 %v1150
  %2920 = vmatprep.subr.mxu0 %v1155
  %2921 = vmatpush1.msra.mxu0 %v1154
  %2922 = vmatprep.subr.mxu0 %v1159
  %2923 = vmatpush1.msra.mxu0 %v1158
  %2924 = vmatprep.subr.mxu0 %v1163
  %2925 = vmatpush1.msra.mxu0 %v1162
  %2926 = vmatprep.subr.mxu0 %v1167
  %2927 = vmatpush1.msra.mxu0 %v1166
  %2928 = vmatprep.subr.mxu0 %v1171
  %2929 = vmatpush1.msra.mxu0 %v1170
  %2930 = vmatprep.mubr.f32.mxu0 %v2666
  %2931 = vmatmul.mubr.f32.gmra.mrb[0].mxu0 %v2664
  %v2932 = vpop.f32.mrb[0].mxu0
  %v2933 = vadd.f32 0.0, %v2932
  %v2934 = vpop.f32.mrb[0].mxu0
  %v2935 = vadd.f32 0.0, %v2934
  %2936 = vmatprep.mubr.f32.mxu0 %v2672
  %2937 = vmatmul.mubr.f32.gmra.mrb[0].mxu0 %v2670
  %v2938 = vpop.f32.mrb[0].mxu0
  %v2939 = vadd.f32 0.0, %v2938
  %v2940 = vpop.f32.mrb[0].mxu0
  %v2941 = vadd.f32 0.0, %v2940
  %2942 = vmatprep.mubr.f32.mxu0 %v2678
  %2943 = vmatmul.mubr.f32.gmra.mrb[0].mxu0 %v2676
  %v2944 = vpop.f32.mrb[0].mxu0
  %v2945 = vadd.f32 0.0, %v2944
  %v2946 = vpop.f32.mrb[0].mxu0
  %v2947 = vadd.f32 0.0, %v2946
  %2948 = vmatprep.mubr.f32.mxu0 %v2684
  %2949 = vmatmul.mubr.f32.gmra.mrb[0].mxu0 %v2682
  %v2950 = vpop.f32.mrb[0].mxu0
  %v2951 = vadd.f32 0.0, %v2950
  %v2952 = vpop.f32.mrb[0].mxu0
  %v2953 = vadd.f32 0.0, %v2952
  %2954 = vdwg.mxu0
  %2955 = vmatprep.subr.mxu0 %v1175
  %2956 = vmatpush1.msra.mxu0 %v1174
  %2957 = vmatprep.subr.mxu0 %v1179
  %2958 = vmatpush1.msra.mxu0 %v1178
  %2959 = vmatprep.subr.mxu0 %v1183
  %2960 = vmatpush1.msra.mxu0 %v1182
  %2961 = vmatprep.subr.mxu0 %v1187
  %2962 = vmatpush1.msra.mxu0 %v1186
  %2963 = vmatprep.subr.mxu0 %v1191
  %2964 = vmatpush1.msra.mxu0 %v1190
  %2965 = vmatprep.subr.mxu0 %v1195
  %2966 = vmatpush1.msra.mxu0 %v1194
  %2967 = vmatprep.subr.mxu0 %v1199
  %2968 = vmatpush1.msra.mxu0 %v1198
  %2969 = vmatprep.subr.mxu0 %v1203
  %2970 = vmatpush1.msra.mxu0 %v1202
  %2971 = vmatprep.subr.mxu0 %v1207
  %2972 = vmatpush1.msra.mxu0 %v1206
  %2973 = vmatprep.subr.mxu0 %v1211
  %2974 = vmatpush1.msra.mxu0 %v1210
  %2975 = vmatprep.subr.mxu0 %v1215
  %2976 = vmatpush1.msra.mxu0 %v1214
  %2977 = vmatprep.subr.mxu0 %v1219
  %2978 = vmatpush1.msra.mxu0 %v1218
  %2979 = vmatprep.subr.mxu0 %v1223
  %2980 = vmatpush1.msra.mxu0 %v1222
  %2981 = vmatprep.subr.mxu0 %v1227
  %2982 = vmatpush1.msra.mxu0 %v1226
  %2983 = vmatprep.subr.mxu0 %v1231
  %2984 = vmatpush1.msra.mxu0 %v1230
  %2985 = vmatprep.subr.mxu0 %v1235
  %2986 = vmatpush1.msra.mxu0 %v1234
  %2987 = vmatprep.subr.mxu0 %v1239
  %2988 = vmatpush1.msra.mxu0 %v1238
  %2989 = vmatprep.subr.mxu0 %v1243
  %2990 = vmatpush1.msra.mxu0 %v1242
  %2991 = vmatprep.subr.mxu0 %v1247
  %2992 = vmatpush1.msra.mxu0 %v1246
  %2993 = vmatprep.subr.mxu0 %v1251
  %2994 = vmatpush1.msra.mxu0 %v1250
  %2995 = vmatprep.subr.mxu0 %v1255
  %2996 = vmatpush1.msra.mxu0 %v1254
  %2997 = vmatprep.subr.mxu0 %v1259
  %2998 = vmatpush1.msra.mxu0 %v1258
  %2999 = vmatprep.subr.mxu0 %v1263
  %3000 = vmatpush1.msra.mxu0 %v1262
  %3001 = vmatprep.subr.mxu0 %v1267
  %3002 = vmatpush1.msra.mxu0 %v1266
  %3003 = vmatprep.subr.mxu0 %v1271
  %3004 = vmatpush1.msra.mxu0 %v1270
  %3005 = vmatprep.subr.mxu0 %v1275
  %3006 = vmatpush1.msra.mxu0 %v1274
  %3007 = vmatprep.subr.mxu0 %v1279
  %3008 = vmatpush1.msra.mxu0 %v1278
  %3009 = vmatprep.subr.mxu0 %v1283
  %3010 = vmatpush1.msra.mxu0 %v1282
  %3011 = vmatprep.subr.mxu0 %v1287
  %3012 = vmatpush1.msra.mxu0 %v1286
  %3013 = vmatprep.subr.mxu0 %v1291
  %3014 = vmatpush1.msra.mxu0 %v1290
  %3015 = vmatprep.subr.mxu0 %v1295
  %3016 = vmatpush1.msra.mxu0 %v1294
  %3017 = vmatprep.subr.mxu0 %v1299
  %3018 = vmatpush1.msra.mxu0 %v1298
  %3019 = vmatprep.mubr.f32.mxu0 %v2844
  %3020 = vmatmul.mubr.f32.gmra.mrb[0].mxu0 %v2842
  %v3021 = vpop.f32.mrb[0].mxu0
  %v3022 = vadd.f32 %v2933, %v3021
  %v3023 = vpop.f32.mrb[0].mxu0
  %v3024 = vadd.f32 %v2935, %v3023
  %3025 = vmatprep.mubr.f32.mxu0 %v2850
  %3026 = vmatmul.mubr.f32.gmra.mrb[0].mxu0 %v2848
  %v3027 = vpop.f32.mrb[0].mxu0
  %v3028 = vadd.f32 %v2939, %v3027
  %v3029 = vpop.f32.mrb[0].mxu0
  %v3030 = vadd.f32 %v2941, %v3029
  %3031 = vmatprep.mubr.f32.mxu0 %v2856
  %3032 = vmatmul.mubr.f32.gmra.mrb[0].mxu0 %v2854
  %v3033 = vpop.f32.mrb[0].mxu0
  %v3034 = vadd.f32 %v2945, %v3033
  %v3035 = vpop.f32.mrb[0].mxu0
  %v3036 = vadd.f32 %v2947, %v3035
  %3037 = vmatprep.mubr.f32.mxu0 %v2862
  %3038 = vmatmul.mubr.f32.gmra.mrb[0].mxu0 %v2860
  %v3039 = vpop.f32.mrb[0].mxu0
  %v3040 = vadd.f32 %v2951, %v3039
  %v3041 = vpop.f32.mrb[0].mxu0
  %v3042 = vadd.f32 %v2953, %v3041
  %3043 = vdwg.mxu0
  %3044 = vmatprep.subr.mxu0 %v1049
  %3045 = vmatpush1.msra.mxu0 %v1048
  %3046 = vmatprep.subr.mxu0 %v1053
  %3047 = vmatpush1.msra.mxu0 %v1052
  %3048 = vmatprep.subr.mxu0 %v1057
  %3049 = vmatpush1.msra.mxu0 %v1056
  %3050 = vmatprep.subr.mxu0 %v1061
  %3051 = vmatpush1.msra.mxu0 %v1060
  %3052 = vmatprep.subr.mxu0 %v1065
  %3053 = vmatpush1.msra.mxu0 %v1064
  %3054 = vmatprep.subr.mxu0 %v1069
  %3055 = vmatpush1.msra.mxu0 %v1068
  %3056 = vmatprep.subr.mxu0 %v1073
  %3057 = vmatpush1.msra.mxu0 %v1072
  %3058 = vmatprep.subr.mxu0 %v1077
  %3059 = vmatpush1.msra.mxu0 %v1076
  %3060 = vmatprep.subr.mxu0 %v1081
  %3061 = vmatpush1.msra.mxu0 %v1080
  %3062 = vmatprep.subr.mxu0 %v1085
  %3063 = vmatpush1.msra.mxu0 %v1084
  %3064 = vmatprep.subr.mxu0 %v1089
  %3065 = vmatpush1.msra.mxu0 %v1088
  %3066 = vmatprep.subr.mxu0 %v1093
  %3067 = vmatpush1.msra.mxu0 %v1092
  %3068 = vmatprep.subr.mxu0 %v1097
  %3069 = vmatpush1.msra.mxu0 %v1096
  %3070 = vmatprep.subr.mxu0 %v1101
  %3071 = vmatpush1.msra.mxu0 %v1100
  %3072 = vmatprep.subr.mxu0 %v1105
  %3073 = vmatpush1.msra.mxu0 %v1104
  %3074 = vmatprep.subr.mxu0 %v1109
  %3075 = vmatpush1.msra.mxu0 %v1108
  %3076 = vmatprep.subr.mxu0 %v1113
  %3077 = vmatpush1.msra.mxu0 %v1112
  %3078 = vmatprep.subr.mxu0 %v1117
  %3079 = vmatpush1.msra.mxu0 %v1116
  %3080 = vmatprep.subr.mxu0 %v1121
  %3081 = vmatpush1.msra.mxu0 %v1120
  %3082 = vmatprep.subr.mxu0 %v1125
  %3083 = vmatpush1.msra.mxu0 %v1124
  %3084 = vmatprep.subr.mxu0 %v1129
  %3085 = vmatpush1.msra.mxu0 %v1128
  %3086 = vmatprep.subr.mxu0 %v1133
  %3087 = vmatpush1.msra.mxu0 %v1132
  %3088 = vmatprep.subr.mxu0 %v1137
  %3089 = vmatpush1.msra.mxu0 %v1136
  %3090 = vmatprep.subr.mxu0 %v1141
  %3091 = vmatpush1.msra.mxu0 %v1140
  %3092 = vmatprep.subr.mxu0 %v1145
  %3093 = vmatpush1.msra.mxu0 %v1144
  %3094 = vmatprep.subr.mxu0 %v1149
  %3095 = vmatpush1.msra.mxu0 %v1148
  %3096 = vmatprep.subr.mxu0 %v1153
  %3097 = vmatpush1.msra.mxu0 %v1152
  %3098 = vmatprep.subr.mxu0 %v1157
  %3099 = vmatpush1.msra.mxu0 %v1156
  %3100 = vmatprep.subr.mxu0 %v1161
  %3101 = vmatpush1.msra.mxu0 %v1160
  %3102 = vmatprep.subr.mxu0 %v1165
  %3103 = vmatpush1.msra.mxu0 %v1164
  %3104 = vmatprep.subr.mxu0 %v1169
  %3105 = vmatpush1.msra.mxu0 %v1168
  %3106 = vmatprep.subr.mxu0 %v1173
  %3107 = vmatpush1.msra.mxu0 %v1172
  %3108 = vmatprep.mubr.f32.mxu0 %v2666
  %3109 = vmatmul.mubr.f32.gmra.mrb[0].mxu0 %v2664
  %v3110 = vpop.f32.mrb[0].mxu0
  %v3111 = vadd.f32 0.0, %v3110
  %v3112 = vpop.f32.mrb[0].mxu0
  %v3113 = vadd.f32 0.0, %v3112
  %3114 = vmatprep.mubr.f32.mxu0 %v2672
  %3115 = vmatmul.mubr.f32.gmra.mrb[0].mxu0 %v2670
  %v3116 = vpop.f32.mrb[0].mxu0
  %v3117 = vadd.f32 0.0, %v3116
  %v3118 = vpop.f32.mrb[0].mxu0
  %v3119 = vadd.f32 0.0, %v3118
  %3120 = vmatprep.mubr.f32.mxu0 %v2678
  %3121 = vmatmul.mubr.f32.gmra.mrb[0].mxu0 %v2676
  %v3122 = vpop.f32.mrb[0].mxu0
  %v3123 = vadd.f32 0.0, %v3122
  %v3124 = vpop.f32.mrb[0].mxu0
  %v3125 = vadd.f32 0.0, %v3124
  %3126 = vmatprep.mubr.f32.mxu0 %v2684
  %3127 = vmatmul.mubr.f32.gmra.mrb[0].mxu0 %v2682
  %v3128 = vpop.f32.mrb[0].mxu0
  %v3129 = vadd.f32 0.0, %v3128
  %v3130 = vpop.f32.mrb[0].mxu0
  %v3131 = vadd.f32 0.0, %v3130
  %3132 = vdwg.mxu0
  %3133 = vmatprep.subr.mxu0 %v1177
  %3134 = vmatpush1.msra.mxu0 %v1176
  %3135 = vmatprep.subr.mxu0 %v1181
  %3136 = vmatpush1.msra.mxu0 %v1180
  %3137 = vmatprep.subr.mxu0 %v1185
  %3138 = vmatpush1.msra.mxu0 %v1184
  %3139 = vmatprep.subr.mxu0 %v1189
  %3140 = vmatpush1.msra.mxu0 %v1188
  %3141 = vmatprep.subr.mxu0 %v1193
  %3142 = vmatpush1.msra.mxu0 %v1192
  %3143 = vmatprep.subr.mxu0 %v1197
  %3144 = vmatpush1.msra.mxu0 %v1196
  %3145 = vmatprep.subr.mxu0 %v1201
  %3146 = vmatpush1.msra.mxu0 %v1200
  %3147 = vmatprep.subr.mxu0 %v1205
  %3148 = vmatpush1.msra.mxu0 %v1204
  %3149 = vmatprep.subr.mxu0 %v1209
  %3150 = vmatpush1.msra.mxu0 %v1208
  %3151 = vmatprep.subr.mxu0 %v1213
  %3152 = vmatpush1.msra.mxu0 %v1212
  %3153 = vmatprep.subr.mxu0 %v1217
  %3154 = vmatpush1.msra.mxu0 %v1216
  %3155 = vmatprep.subr.mxu0 %v1221
  %3156 = vmatpush1.msra.mxu0 %v1220
  %3157 = vmatprep.subr.mxu0 %v1225
  %3158 = vmatpush1.msra.mxu0 %v1224
  %3159 = vmatprep.subr.mxu0 %v1229
  %3160 = vmatpush1.msra.mxu0 %v1228
  %3161 = vmatprep.subr.mxu0 %v1233
  %3162 = vmatpush1.msra.mxu0 %v1232
  %3163 = vmatprep.subr.mxu0 %v1237
  %3164 = vmatpush1.msra.mxu0 %v1236
  %3165 = vmatprep.subr.mxu0 %v1241
  %3166 = vmatpush1.msra.mxu0 %v1240
  %3167 = vmatprep.subr.mxu0 %v1245
  %3168 = vmatpush1.msra.mxu0 %v1244
  %3169 = vmatprep.subr.mxu0 %v1249
  %3170 = vmatpush1.msra.mxu0 %v1248
  %3171 = vmatprep.subr.mxu0 %v1253
  %3172 = vmatpush1.msra.mxu0 %v1252
  %3173 = vmatprep.subr.mxu0 %v1257
  %3174 = vmatpush1.msra.mxu0 %v1256
  %3175 = vmatprep.subr.mxu0 %v1261
  %3176 = vmatpush1.msra.mxu0 %v1260
  %3177 = vmatprep.subr.mxu0 %v1265
  %3178 = vmatpush1.msra.mxu0 %v1264
  %3179 = vmatprep.subr.mxu0 %v1269
  %3180 = vmatpush1.msra.mxu0 %v1268
  %3181 = vmatprep.subr.mxu0 %v1273
  %3182 = vmatpush1.msra.mxu0 %v1272
  %3183 = vmatprep.subr.mxu0 %v1277
  %3184 = vmatpush1.msra.mxu0 %v1276
  %3185 = vmatprep.subr.mxu0 %v1281
  %3186 = vmatpush1.msra.mxu0 %v1280
  %3187 = vmatprep.subr.mxu0 %v1285
  %3188 = vmatpush1.msra.mxu0 %v1284
  %3189 = vmatprep.subr.mxu0 %v1289
  %3190 = vmatpush1.msra.mxu0 %v1288
  %3191 = vmatprep.subr.mxu0 %v1293
  %3192 = vmatpush1.msra.mxu0 %v1292
  %3193 = vmatprep.subr.mxu0 %v1297
  %3194 = vmatpush1.msra.mxu0 %v1296
  %3195 = vmatprep.subr.mxu0 %v1301
  %3196 = vmatpush1.msra.mxu0 %v1300
  %3197 = vmatprep.mubr.f32.mxu0 %v2844
  %3198 = vmatmul.mubr.f32.gmra.mrb[0].mxu0 %v2842
  %v3199 = vpop.f32.mrb[0].mxu0
  %v3200 = vadd.f32 %v3111, %v3199
  %v3201 = vpop.f32.mrb[0].mxu0
  %v3202 = vadd.f32 %v3113, %v3201
  %3203 = vmatprep.mubr.f32.mxu0 %v2850
  %3204 = vmatmul.mubr.f32.gmra.mrb[0].mxu0 %v2848
  %v3205 = vpop.f32.mrb[0].mxu0
  %v3206 = vadd.f32 %v3117, %v3205
  %v3207 = vpop.f32.mrb[0].mxu0
  %v3208 = vadd.f32 %v3119, %v3207
  %3209 = vmatprep.mubr.f32.mxu0 %v2856
  %3210 = vmatmul.mubr.f32.gmra.mrb[0].mxu0 %v2854
  %v3211 = vpop.f32.mrb[0].mxu0
  %v3212 = vadd.f32 %v3123, %v3211
  %v3213 = vpop.f32.mrb[0].mxu0
  %v3214 = vadd.f32 %v3125, %v3213
  %3215 = vmatprep.mubr.f32.mxu0 %v2862
  %3216 = vmatmul.mubr.f32.gmra.mrb[0].mxu0 %v2860
  %v3217 = vpop.f32.mrb[0].mxu0
  %v3218 = vadd.f32 %v3129, %v3217
  %v3219 = vpop.f32.mrb[0].mxu0
  %v3220 = vadd.f32 %v3131, %v3219
  %3221 = vdwg.mxu0
  %v3222 = vmul.f32 %v2664, %v2664
  %v3223 = vmul.f32 %v2666, %v2666
  %v3224 = vmul.f32 %v2842, %v2842
  %v3225 = vmul.f32 %v2844, %v2844
  %v3226 = vmul.f32 %v2670, %v2670
  %v3227 = vmul.f32 %v2672, %v2672
  %v3228 = vmul.f32 %v2848, %v2848
  %v3229 = vmul.f32 %v2850, %v2850
  %v3230 = vmul.f32 %v2676, %v2676
  %v3231 = vmul.f32 %v2678, %v2678
  %v3232 = vmul.f32 %v2854, %v2854
  %v3233 = vmul.f32 %v2856, %v2856
  %v3234 = vmul.f32 %v2682, %v2682
  %v3235 = vmul.f32 %v2684, %v2684
  %v3236 = vmul.f32 %v2860, %v2860
  %v3237 = vmul.f32 %v2862, %v2862
  %3238 = vmatprep.subr.mxu0 %v1047
  %3239 = vmatpush1.msra.mxu0 %v1046
  %3240 = vmatprep.subr.mxu0 %v1051
  %3241 = vmatpush1.msra.mxu0 %v1050
  %3242 = vmatprep.subr.mxu0 %v1055
  %3243 = vmatpush1.msra.mxu0 %v1054
  %3244 = vmatprep.subr.mxu0 %v1059
  %3245 = vmatpush1.msra.mxu0 %v1058
  %3246 = vmatprep.subr.mxu0 %v1063
  %3247 = vmatpush1.msra.mxu0 %v1062
  %3248 = vmatprep.subr.mxu0 %v1067
  %3249 = vmatpush1.msra.mxu0 %v1066
  %3250 = vmatprep.subr.mxu0 %v1071
  %3251 = vmatpush1.msra.mxu0 %v1070
  %3252 = vmatprep.subr.mxu0 %v1075
  %3253 = vmatpush1.msra.mxu0 %v1074
  %3254 = vmatprep.subr.mxu0 %v1079
  %3255 = vmatpush1.msra.mxu0 %v1078
  %3256 = vmatprep.subr.mxu0 %v1083
  %3257 = vmatpush1.msra.mxu0 %v1082
  %3258 = vmatprep.subr.mxu0 %v1087
  %3259 = vmatpush1.msra.mxu0 %v1086
  %3260 = vmatprep.subr.mxu0 %v1091
  %3261 = vmatpush1.msra.mxu0 %v1090
  %3262 = vmatprep.subr.mxu0 %v1095
  %3263 = vmatpush1.msra.mxu0 %v1094
  %3264 = vmatprep.subr.mxu0 %v1099
  %3265 = vmatpush1.msra.mxu0 %v1098
  %3266 = vmatprep.subr.mxu0 %v1103
  %3267 = vmatpush1.msra.mxu0 %v1102
  %3268 = vmatprep.subr.mxu0 %v1107
  %3269 = vmatpush1.msra.mxu0 %v1106
  %3270 = vmatprep.subr.mxu0 %v1111
  %3271 = vmatpush1.msra.mxu0 %v1110
  %3272 = vmatprep.subr.mxu0 %v1115
  %3273 = vmatpush1.msra.mxu0 %v1114
  %3274 = vmatprep.subr.mxu0 %v1119
  %3275 = vmatpush1.msra.mxu0 %v1118
  %3276 = vmatprep.subr.mxu0 %v1123
  %3277 = vmatpush1.msra.mxu0 %v1122
  %3278 = vmatprep.subr.mxu0 %v1127
  %3279 = vmatpush1.msra.mxu0 %v1126
  %3280 = vmatprep.subr.mxu0 %v1131
  %3281 = vmatpush1.msra.mxu0 %v1130
  %3282 = vmatprep.subr.mxu0 %v1135
  %3283 = vmatpush1.msra.mxu0 %v1134
  %3284 = vmatprep.subr.mxu0 %v1139
  %3285 = vmatpush1.msra.mxu0 %v1138
  %3286 = vmatprep.subr.mxu0 %v1143
  %3287 = vmatpush1.msra.mxu0 %v1142
  %3288 = vmatprep.subr.mxu0 %v1147
  %3289 = vmatpush1.msra.mxu0 %v1146
  %3290 = vmatprep.subr.mxu0 %v1151
  %3291 = vmatpush1.msra.mxu0 %v1150
  %3292 = vmatprep.subr.mxu0 %v1155
  %3293 = vmatpush1.msra.mxu0 %v1154
  %3294 = vmatprep.subr.mxu0 %v1159
  %3295 = vmatpush1.msra.mxu0 %v1158
  %3296 = vmatprep.subr.mxu0 %v1163
  %3297 = vmatpush1.msra.mxu0 %v1162
  %3298 = vmatprep.subr.mxu0 %v1167
  %3299 = vmatpush1.msra.mxu0 %v1166
  %3300 = vmatprep.subr.mxu0 %v1171
  %3301 = vmatpush1.msra.mxu0 %v1170
  %3302 = vmatprep.mubr.f32.mxu0 %v3223
  %3303 = vmatmul.mubr.f32.gmra.mrb[0].mxu0 %v3222
  %v3304 = vpop.f32.mrb[0].mxu0
  %v3305 = vadd.f32 0.0, %v3304
  %v3306 = vpop.f32.mrb[0].mxu0
  %v3307 = vadd.f32 0.0, %v3306
  %3308 = vmatprep.mubr.f32.mxu0 %v3227
  %3309 = vmatmul.mubr.f32.gmra.mrb[0].mxu0 %v3226
  %v3310 = vpop.f32.mrb[0].mxu0
  %v3311 = vadd.f32 0.0, %v3310
  %v3312 = vpop.f32.mrb[0].mxu0
  %v3313 = vadd.f32 0.0, %v3312
  %3314 = vmatprep.mubr.f32.mxu0 %v3231
  %3315 = vmatmul.mubr.f32.gmra.mrb[0].mxu0 %v3230
  %v3316 = vpop.f32.mrb[0].mxu0
  %v3317 = vadd.f32 0.0, %v3316
  %v3318 = vpop.f32.mrb[0].mxu0
  %v3319 = vadd.f32 0.0, %v3318
  %3320 = vmatprep.mubr.f32.mxu0 %v3235
  %3321 = vmatmul.mubr.f32.gmra.mrb[0].mxu0 %v3234
  %v3322 = vpop.f32.mrb[0].mxu0
  %v3323 = vadd.f32 0.0, %v3322
  %v3324 = vpop.f32.mrb[0].mxu0
  %v3325 = vadd.f32 0.0, %v3324
  %3326 = vdwg.mxu0
  %3327 = vmatprep.subr.mxu0 %v1175
  %3328 = vmatpush1.msra.mxu0 %v1174
  %3329 = vmatprep.subr.mxu0 %v1179
  %3330 = vmatpush1.msra.mxu0 %v1178
  %3331 = vmatprep.subr.mxu0 %v1183
  %3332 = vmatpush1.msra.mxu0 %v1182
  %3333 = vmatprep.subr.mxu0 %v1187
  %3334 = vmatpush1.msra.mxu0 %v1186
  %3335 = vmatprep.subr.mxu0 %v1191
  %3336 = vmatpush1.msra.mxu0 %v1190
  %3337 = vmatprep.subr.mxu0 %v1195
  %3338 = vmatpush1.msra.mxu0 %v1194
  %3339 = vmatprep.subr.mxu0 %v1199
  %3340 = vmatpush1.msra.mxu0 %v1198
  %3341 = vmatprep.subr.mxu0 %v1203
  %3342 = vmatpush1.msra.mxu0 %v1202
  %3343 = vmatprep.subr.mxu0 %v1207
  %3344 = vmatpush1.msra.mxu0 %v1206
  %3345 = vmatprep.subr.mxu0 %v1211
  %3346 = vmatpush1.msra.mxu0 %v1210
  %3347 = vmatprep.subr.mxu0 %v1215
  %3348 = vmatpush1.msra.mxu0 %v1214
  %3349 = vmatprep.subr.mxu0 %v1219
  %3350 = vmatpush1.msra.mxu0 %v1218
  %3351 = vmatprep.subr.mxu0 %v1223
  %3352 = vmatpush1.msra.mxu0 %v1222
  %3353 = vmatprep.subr.mxu0 %v1227
  %3354 = vmatpush1.msra.mxu0 %v1226
  %3355 = vmatprep.subr.mxu0 %v1231
  %3356 = vmatpush1.msra.mxu0 %v1230
  %3357 = vmatprep.subr.mxu0 %v1235
  %3358 = vmatpush1.msra.mxu0 %v1234
  %3359 = vmatprep.subr.mxu0 %v1239
  %3360 = vmatpush1.msra.mxu0 %v1238
  %3361 = vmatprep.subr.mxu0 %v1243
  %3362 = vmatpush1.msra.mxu0 %v1242
  %3363 = vmatprep.subr.mxu0 %v1247
  %3364 = vmatpush1.msra.mxu0 %v1246
  %3365 = vmatprep.subr.mxu0 %v1251
  %3366 = vmatpush1.msra.mxu0 %v1250
  %3367 = vmatprep.subr.mxu0 %v1255
  %3368 = vmatpush1.msra.mxu0 %v1254
  %3369 = vmatprep.subr.mxu0 %v1259
  %3370 = vmatpush1.msra.mxu0 %v1258
  %3371 = vmatprep.subr.mxu0 %v1263
  %3372 = vmatpush1.msra.mxu0 %v1262
  %3373 = vmatprep.subr.mxu0 %v1267
  %3374 = vmatpush1.msra.mxu0 %v1266
  %3375 = vmatprep.subr.mxu0 %v1271
  %3376 = vmatpush1.msra.mxu0 %v1270
  %3377 = vmatprep.subr.mxu0 %v1275
  %3378 = vmatpush1.msra.mxu0 %v1274
  %3379 = vmatprep.subr.mxu0 %v1279
  %3380 = vmatpush1.msra.mxu0 %v1278
  %3381 = vmatprep.subr.mxu0 %v1283
  %3382 = vmatpush1.msra.mxu0 %v1282
  %3383 = vmatprep.subr.mxu0 %v1287
  %3384 = vmatpush1.msra.mxu0 %v1286
  %3385 = vmatprep.subr.mxu0 %v1291
  %3386 = vmatpush1.msra.mxu0 %v1290
  %3387 = vmatprep.subr.mxu0 %v1295
  %3388 = vmatpush1.msra.mxu0 %v1294
  %3389 = vmatprep.subr.mxu0 %v1299
  %3390 = vmatpush1.msra.mxu0 %v1298
  %3391 = vmatprep.mubr.f32.mxu0 %v3225
  %3392 = vmatmul.mubr.f32.gmra.mrb[0].mxu0 %v3224
  %v3393 = vpop.f32.mrb[0].mxu0
  %v3394 = vadd.f32 %v3305, %v3393
  %v3395 = vpop.f32.mrb[0].mxu0
  %v3396 = vadd.f32 %v3307, %v3395
  %3397 = vmatprep.mubr.f32.mxu0 %v3229
  %3398 = vmatmul.mubr.f32.gmra.mrb[0].mxu0 %v3228
  %v3399 = vpop.f32.mrb[0].mxu0
  %v3400 = vadd.f32 %v3311, %v3399
  %v3401 = vpop.f32.mrb[0].mxu0
  %v3402 = vadd.f32 %v3313, %v3401
  %3403 = vmatprep.mubr.f32.mxu0 %v3233
  %3404 = vmatmul.mubr.f32.gmra.mrb[0].mxu0 %v3232
  %v3405 = vpop.f32.mrb[0].mxu0
  %v3406 = vadd.f32 %v3317, %v3405
  %v3407 = vpop.f32.mrb[0].mxu0
  %v3408 = vadd.f32 %v3319, %v3407
  %3409 = vmatprep.mubr.f32.mxu0 %v3237
  %3410 = vmatmul.mubr.f32.gmra.mrb[0].mxu0 %v3236
  %v3411 = vpop.f32.mrb[0].mxu0
  %v3412 = vadd.f32 %v3323, %v3411
  %v3413 = vpop.f32.mrb[0].mxu0
  %v3414 = vadd.f32 %v3325, %v3413
  %3415 = vdwg.mxu0
  %3416 = vmatprep.subr.mxu0 %v1049
  %3417 = vmatpush1.msra.mxu0 %v1048
  %3418 = vmatprep.subr.mxu0 %v1053
  %3419 = vmatpush1.msra.mxu0 %v1052
  %3420 = vmatprep.subr.mxu0 %v1057
  %3421 = vmatpush1.msra.mxu0 %v1056
  %3422 = vmatprep.subr.mxu0 %v1061
  %3423 = vmatpush1.msra.mxu0 %v1060
  %3424 = vmatprep.subr.mxu0 %v1065
  %3425 = vmatpush1.msra.mxu0 %v1064
  %3426 = vmatprep.subr.mxu0 %v1069
  %3427 = vmatpush1.msra.mxu0 %v1068
  %3428 = vmatprep.subr.mxu0 %v1073
  %3429 = vmatpush1.msra.mxu0 %v1072
  %3430 = vmatprep.subr.mxu0 %v1077
  %3431 = vmatpush1.msra.mxu0 %v1076
  %3432 = vmatprep.subr.mxu0 %v1081
  %3433 = vmatpush1.msra.mxu0 %v1080
  %3434 = vmatprep.subr.mxu0 %v1085
  %3435 = vmatpush1.msra.mxu0 %v1084
  %3436 = vmatprep.subr.mxu0 %v1089
  %3437 = vmatpush1.msra.mxu0 %v1088
  %3438 = vmatprep.subr.mxu0 %v1093
  %3439 = vmatpush1.msra.mxu0 %v1092
  %3440 = vmatprep.subr.mxu0 %v1097
  %3441 = vmatpush1.msra.mxu0 %v1096
  %3442 = vmatprep.subr.mxu0 %v1101
  %3443 = vmatpush1.msra.mxu0 %v1100
  %3444 = vmatprep.subr.mxu0 %v1105
  %3445 = vmatpush1.msra.mxu0 %v1104
  %3446 = vmatprep.subr.mxu0 %v1109
  %3447 = vmatpush1.msra.mxu0 %v1108
  %3448 = vmatprep.subr.mxu0 %v1113
  %3449 = vmatpush1.msra.mxu0 %v1112
  %3450 = vmatprep.subr.mxu0 %v1117
  %3451 = vmatpush1.msra.mxu0 %v1116
  %3452 = vmatprep.subr.mxu0 %v1121
  %3453 = vmatpush1.msra.mxu0 %v1120
  %3454 = vmatprep.subr.mxu0 %v1125
  %3455 = vmatpush1.msra.mxu0 %v1124
  %3456 = vmatprep.subr.mxu0 %v1129
  %3457 = vmatpush1.msra.mxu0 %v1128
  %3458 = vmatprep.subr.mxu0 %v1133
  %3459 = vmatpush1.msra.mxu0 %v1132
  %3460 = vmatprep.subr.mxu0 %v1137
  %3461 = vmatpush1.msra.mxu0 %v1136
  %3462 = vmatprep.subr.mxu0 %v1141
  %3463 = vmatpush1.msra.mxu0 %v1140
  %3464 = vmatprep.subr.mxu0 %v1145
  %3465 = vmatpush1.msra.mxu0 %v1144
  %3466 = vmatprep.subr.mxu0 %v1149
  %3467 = vmatpush1.msra.mxu0 %v1148
  %3468 = vmatprep.subr.mxu0 %v1153
  %3469 = vmatpush1.msra.mxu0 %v1152
  %3470 = vmatprep.subr.mxu0 %v1157
  %3471 = vmatpush1.msra.mxu0 %v1156
  %3472 = vmatprep.subr.mxu0 %v1161
  %3473 = vmatpush1.msra.mxu0 %v1160
  %3474 = vmatprep.subr.mxu0 %v1165
  %3475 = vmatpush1.msra.mxu0 %v1164
  %3476 = vmatprep.subr.mxu0 %v1169
  %3477 = vmatpush1.msra.mxu0 %v1168
  %3478 = vmatprep.subr.mxu0 %v1173
  %3479 = vmatpush1.msra.mxu0 %v1172
  %3480 = vmatprep.mubr.f32.mxu0 %v3223
  %3481 = vmatmul.mubr.f32.gmra.mrb[0].mxu0 %v3222
  %v3482 = vpop.f32.mrb[0].mxu0
  %v3483 = vadd.f32 0.0, %v3482
  %v3484 = vpop.f32.mrb[0].mxu0
  %v3485 = vadd.f32 0.0, %v3484
  %3486 = vmatprep.mubr.f32.mxu0 %v3227
  %3487 = vmatmul.mubr.f32.gmra.mrb[0].mxu0 %v3226
  %v3488 = vpop.f32.mrb[0].mxu0
  %v3489 = vadd.f32 0.0, %v3488
  %v3490 = vpop.f32.mrb[0].mxu0
  %v3491 = vadd.f32 0.0, %v3490
  %3492 = vmatprep.mubr.f32.mxu0 %v3231
  %3493 = vmatmul.mubr.f32.gmra.mrb[0].mxu0 %v3230
  %v3494 = vpop.f32.mrb[0].mxu0
  %v3495 = vadd.f32 0.0, %v3494
  %v3496 = vpop.f32.mrb[0].mxu0
  %v3497 = vadd.f32 0.0, %v3496
  %3498 = vmatprep.mubr.f32.mxu0 %v3235
  %3499 = vmatmul.mubr.f32.gmra.mrb[0].mxu0 %v3234
  %v3500 = vpop.f32.mrb[0].mxu0
  %v3501 = vadd.f32 0.0, %v3500
  %v3502 = vpop.f32.mrb[0].mxu0
  %v3503 = vadd.f32 0.0, %v3502
  %3504 = vdwg.mxu0
  %3505 = vmatprep.subr.mxu0 %v1177
  %3506 = vmatpush1.msra.mxu0 %v1176
  %3507 = vmatprep.subr.mxu0 %v1181
  %3508 = vmatpush1.msra.mxu0 %v1180
  %3509 = vmatprep.subr.mxu0 %v1185
  %3510 = vmatpush1.msra.mxu0 %v1184
  %3511 = vmatprep.subr.mxu0 %v1189
  %3512 = vmatpush1.msra.mxu0 %v1188
  %3513 = vmatprep.subr.mxu0 %v1193
  %3514 = vmatpush1.msra.mxu0 %v1192
  %3515 = vmatprep.subr.mxu0 %v1197
  %3516 = vmatpush1.msra.mxu0 %v1196
  %3517 = vmatprep.subr.mxu0 %v1201
  %3518 = vmatpush1.msra.mxu0 %v1200
  %3519 = vmatprep.subr.mxu0 %v1205
  %3520 = vmatpush1.msra.mxu0 %v1204
  %3521 = vmatprep.subr.mxu0 %v1209
  %3522 = vmatpush1.msra.mxu0 %v1208
  %3523 = vmatprep.subr.mxu0 %v1213
  %3524 = vmatpush1.msra.mxu0 %v1212
  %3525 = vmatprep.subr.mxu0 %v1217
  %3526 = vmatpush1.msra.mxu0 %v1216
  %3527 = vmatprep.subr.mxu0 %v1221
  %3528 = vmatpush1.msra.mxu0 %v1220
  %3529 = vmatprep.subr.mxu0 %v1225
  %3530 = vmatpush1.msra.mxu0 %v1224
  %3531 = vmatprep.subr.mxu0 %v1229
  %3532 = vmatpush1.msra.mxu0 %v1228
  %3533 = vmatprep.subr.mxu0 %v1233
  %3534 = vmatpush1.msra.mxu0 %v1232
  %3535 = vmatprep.subr.mxu0 %v1237
  %3536 = vmatpush1.msra.mxu0 %v1236
  %3537 = vmatprep.subr.mxu0 %v1241
  %3538 = vmatpush1.msra.mxu0 %v1240
  %3539 = vmatprep.subr.mxu0 %v1245
  %3540 = vmatpush1.msra.mxu0 %v1244
  %3541 = vmatprep.subr.mxu0 %v1249
  %3542 = vmatpush1.msra.mxu0 %v1248
  %3543 = vmatprep.subr.mxu0 %v1253
  %3544 = vmatpush1.msra.mxu0 %v1252
  %3545 = vmatprep.subr.mxu0 %v1257
  %3546 = vmatpush1.msra.mxu0 %v1256
  %3547 = vmatprep.subr.mxu0 %v1261
  %3548 = vmatpush1.msra.mxu0 %v1260
  %3549 = vmatprep.subr.mxu0 %v1265
  %3550 = vmatpush1.msra.mxu0 %v1264
  %3551 = vmatprep.subr.mxu0 %v1269
  %3552 = vmatpush1.msra.mxu0 %v1268
  %3553 = vmatprep.subr.mxu0 %v1273
  %3554 = vmatpush1.msra.mxu0 %v1272
  %3555 = vmatprep.subr.mxu0 %v1277
  %3556 = vmatpush1.msra.mxu0 %v1276
  %3557 = vmatprep.subr.mxu0 %v1281
  %3558 = vmatpush1.msra.mxu0 %v1280
  %3559 = vmatprep.subr.mxu0 %v1285
  %3560 = vmatpush1.msra.mxu0 %v1284
  %3561 = vmatprep.subr.mxu0 %v1289
  %3562 = vmatpush1.msra.mxu0 %v1288
  %3563 = vmatprep.subr.mxu0 %v1293
  %3564 = vmatpush1.msra.mxu0 %v1292
  %3565 = vmatprep.subr.mxu0 %v1297
  %3566 = vmatpush1.msra.mxu0 %v1296
  %3567 = vmatprep.subr.mxu0 %v1301
  %3568 = vmatpush1.msra.mxu0 %v1300
  %3569 = vmatprep.mubr.f32.mxu0 %v3225
  %3570 = vmatmul.mubr.f32.gmra.mrb[0].mxu0 %v3224
  %v3571 = vpop.f32.mrb[0].mxu0
  %v3572 = vadd.f32 %v3483, %v3571
  %v3573 = vpop.f32.mrb[0].mxu0
  %v3574 = vadd.f32 %v3485, %v3573
  %3575 = vmatprep.mubr.f32.mxu0 %v3229
  %3576 = vmatmul.mubr.f32.gmra.mrb[0].mxu0 %v3228
  %v3577 = vpop.f32.mrb[0].mxu0
  %v3578 = vadd.f32 %v3489, %v3577
  %v3579 = vpop.f32.mrb[0].mxu0
  %v3580 = vadd.f32 %v3491, %v3579
  %3581 = vmatprep.mubr.f32.mxu0 %v3233
  %3582 = vmatmul.mubr.f32.gmra.mrb[0].mxu0 %v3232
  %v3583 = vpop.f32.mrb[0].mxu0
  %v3584 = vadd.f32 %v3495, %v3583
  %v3585 = vpop.f32.mrb[0].mxu0
  %v3586 = vadd.f32 %v3497, %v3585
  %3587 = vmatprep.mubr.f32.mxu0 %v3237
  %3588 = vmatmul.mubr.f32.gmra.mrb[0].mxu0 %v3236
  %v3589 = vpop.f32.mrb[0].mxu0
  %v3590 = vadd.f32 %v3501, %v3589
  %v3591 = vpop.f32.mrb[0].mxu0
  %v3592 = vadd.f32 %v3503, %v3591
  %3593 = vdwg.mxu0
  %v3594 = vadd.f32 %v3022, %v3028
  %v3595 = vadd.f32 %v3594, %v3034
  %v3596 = vadd.f32 %v3595, %v3040
  %v3597 = vrot.slane %v3596, 4
  %v3598 = vadd.f32 %v3596, %v3597
  %v3599 = vrot.slane %v3598, 2
  %v3600 = vadd.f32 %v3598, %v3599
  %v3601 = vrot.slane %v3600, 1
  %v3602 = vadd.f32 %v3600, %v3601
  %v3603 = vadd.f32 %v3024, %v3030
  %v3604 = vadd.f32 %v3603, %v3036
  %v3605 = vadd.f32 %v3604, %v3042
  %v3606 = vrot.slane %v3605, 4
  %v3607 = vadd.f32 %v3605, %v3606
  %v3608 = vrot.slane %v3607, 2
  %v3609 = vadd.f32 %v3607, %v3608
  %v3610 = vrot.slane %v3609, 1
  %v3611 = vadd.f32 %v3609, %v3610
  %v3612 = vadd.f32 %v3200, %v3206
  %v3613 = vadd.f32 %v3612, %v3212
  %v3614 = vadd.f32 %v3613, %v3218
  %v3615 = vrot.slane %v3614, 4
  %v3616 = vadd.f32 %v3614, %v3615
  %v3617 = vrot.slane %v3616, 2
  %v3618 = vadd.f32 %v3616, %v3617
  %v3619 = vrot.slane %v3618, 1
  %v3620 = vadd.f32 %v3618, %v3619
  %v3621 = vadd.f32 %v3202, %v3208
  %v3622 = vadd.f32 %v3621, %v3214
  %v3623 = vadd.f32 %v3622, %v3220
  %v3624 = vrot.slane %v3623, 4
  %v3625 = vadd.f32 %v3623, %v3624
  %v3626 = vrot.slane %v3625, 2
  %v3627 = vadd.f32 %v3625, %v3626
  %v3628 = vrot.slane %v3627, 1
  %v3629 = vadd.f32 %v3627, %v3628
  %v3630 = vmul.f32 %v3602, 0.001953125
  %v3631 = vmul.f32 %v3611, 0.001953125
  %v3632 = vmul.f32 %v3620, 0.001953125
  %v3633 = vmul.f32 %v3629, 0.001953125
  %v3634 = vadd.f32 %v3394, %v3400
  %v3635 = vadd.f32 %v3634, %v3406
  %v3636 = vadd.f32 %v3635, %v3412
  %v3637 = vrot.slane %v3636, 4
  %v3638 = vadd.f32 %v3636, %v3637
  %v3639 = vrot.slane %v3638, 2
  %v3640 = vadd.f32 %v3638, %v3639
  %v3641 = vrot.slane %v3640, 1
  %v3642 = vadd.f32 %v3640, %v3641
  %v3643 = vadd.f32 %v3396, %v3402
  %v3644 = vadd.f32 %v3643, %v3408
  %v3645 = vadd.f32 %v3644, %v3414
  %v3646 = vrot.slane %v3645, 4
  %v3647 = vadd.f32 %v3645, %v3646
  %v3648 = vrot.slane %v3647, 2
  %v3649 = vadd.f32 %v3647, %v3648
  %v3650 = vrot.slane %v3649, 1
  %v3651 = vadd.f32 %v3649, %v3650
  %v3652 = vadd.f32 %v3572, %v3578
  %v3653 = vadd.f32 %v3652, %v3584
  %v3654 = vadd.f32 %v3653, %v3590
  %v3655 = vrot.slane %v3654, 4
  %v3656 = vadd.f32 %v3654, %v3655
  %v3657 = vrot.slane %v3656, 2
  %v3658 = vadd.f32 %v3656, %v3657
  %v3659 = vrot.slane %v3658, 1
  %v3660 = vadd.f32 %v3658, %v3659
  %v3661 = vadd.f32 %v3574, %v3580
  %v3662 = vadd.f32 %v3661, %v3586
  %v3663 = vadd.f32 %v3662, %v3592
  %v3664 = vrot.slane %v3663, 4
  %v3665 = vadd.f32 %v3663, %v3664
  %v3666 = vrot.slane %v3665, 2
  %v3667 = vadd.f32 %v3665, %v3666
  %v3668 = vrot.slane %v3667, 1
  %v3669 = vadd.f32 %v3667, %v3668
  %v3670 = vmul.f32 %v3642, 0.001953125
  %v3671 = vmul.f32 %v3651, 0.001953125
  %v3672 = vmul.f32 %v3660, 0.001953125
  %v3673 = vmul.f32 %v3669, 0.001953125
  %v3674 = vmul.f32 %v3630, %v3630
  %v3675 = vmul.f32 %v3631, %v3631
  %v3676 = vmul.f32 %v3632, %v3632
  %v3677 = vmul.f32 %v3633, %v3633
  %v3678 = vsub.f32 %v3670, %v3674
  %v3679 = vsub.f32 %v3671, %v3675
  %v3680 = vsub.f32 %v3672, %v3676
  %v3681 = vsub.f32 %v3673, %v3677
  %v3682 = vmax.f32 %v3678, 0.0
  %v3683 = vmax.f32 %v3679, 0.0
  %v3684 = vmax.f32 %v3680, 0.0
  %v3685 = vmax.f32 %v3681, 0.0
  %v3686 = vsub.f32 %v2664, %v3630
  %v3687 = vsub.f32 %v2666, %v3631
  %v3688 = vsub.f32 %v2842, %v3632
  %v3689 = vsub.f32 %v2844, %v3633
  %v3690 = vsub.f32 %v2670, %v3630
  %v3691 = vsub.f32 %v2672, %v3631
  %v3692 = vsub.f32 %v2848, %v3632
  %v3693 = vsub.f32 %v2850, %v3633
  %v3694 = vsub.f32 %v2676, %v3630
  %v3695 = vsub.f32 %v2678, %v3631
  %v3696 = vsub.f32 %v2854, %v3632
  %v3697 = vsub.f32 %v2856, %v3633
  %v3698 = vsub.f32 %v2682, %v3630
  %v3699 = vsub.f32 %v2684, %v3631
  %v3700 = vsub.f32 %v2860, %v3632
  %v3701 = vsub.f32 %v2862, %v3633
  %v3702 = vadd.f32 %v3682, 1e-05
  %v3703 = vadd.f32 %v3683, 1e-05
  %v3704 = vadd.f32 %v3684, 1e-05
  %v3705 = vadd.f32 %v3685, 1e-05
  %v3706 = vrsqrt.pop %v3702
  %v3707 = vrsqrt.pop %v3703
  %v3708 = vrsqrt.pop %v3704
  %v3709 = vrsqrt.pop %v3705
  %v3710 = vmul.f32 %v3686, %v3706
  %v3711 = vmul.f32 %v3687, %v3707
  %v3712 = vmul.f32 %v3688, %v3708
  %v3713 = vmul.f32 %v3689, %v3709
  %v3714 = vmul.f32 %v3690, %v3706
  %v3715 = vmul.f32 %v3691, %v3707
  %v3716 = vmul.f32 %v3692, %v3708
  %v3717 = vmul.f32 %v3693, %v3709
  %v3718 = vmul.f32 %v3694, %v3706
  %v3719 = vmul.f32 %v3695, %v3707
  %v3720 = vmul.f32 %v3696, %v3708
  %v3721 = vmul.f32 %v3697, %v3709
  %v3722 = vmul.f32 %v3698, %v3706
  %v3723 = vmul.f32 %v3699, %v3707
  %v3724 = vmul.f32 %v3700, %v3708
  %v3725 = vmul.f32 %v3701, %v3709
  %v3727 = vlaneseq
  %v3728 = vshrl.u32 %v3727, 7
  %v3729 = vsub.s32 0, %v3728
  %v3730 = vrot.slane %v2864, %v3729
  %v3731 = vlaneseq
  %v3732 = vshrl.u32 %v3731, 7
  %v3733 = vsub.s32 1, %v3732
  %v3734 = vrot.slane %v2864, %v3733
  %v3735 = vlaneseq
  %v3736 = vshrl.u32 %v3735, 7
  %v3737 = vsub.s32 2, %v3736
  %v3738 = vrot.slane %v2864, %v3737
  %v3739 = vlaneseq
  %v3740 = vshrl.u32 %v3739, 7
  %v3741 = vsub.s32 3, %v3740
  %v3742 = vrot.slane %v2864, %v3741
  %v3747 = vmul.f32 %v3710, %v3730
  %v3748 = vmul.f32 %v3711, %v3734
  %v3749 = vmul.f32 %v3712, %v3738
  %v3750 = vmul.f32 %v3713, %v3742
  %v3751 = vmul.f32 %v3714, %v3730
  %v3752 = vmul.f32 %v3715, %v3734
  %v3753 = vmul.f32 %v3716, %v3738
  %v3754 = vmul.f32 %v3717, %v3742
  %v3755 = vmul.f32 %v3718, %v3730
  %v3756 = vmul.f32 %v3719, %v3734
  %v3757 = vmul.f32 %v3720, %v3738
  %v3758 = vmul.f32 %v3721, %v3742
  %v3759 = vmul.f32 %v3722, %v3730
  %v3760 = vmul.f32 %v3723, %v3734
  %v3761 = vmul.f32 %v3724, %v3738
  %v3762 = vmul.f32 %v3725, %v3742
  %v3764 = vlaneseq
  %v3765 = vshrl.u32 %v3764, 7
  %v3766 = vsub.s32 0, %v3765
  %v3767 = vrot.slane %v2865, %v3766
  %v3768 = vlaneseq
  %v3769 = vshrl.u32 %v3768, 7
  %v3770 = vsub.s32 1, %v3769
  %v3771 = vrot.slane %v2865, %v3770
  %v3772 = vlaneseq
  %v3773 = vshrl.u32 %v3772, 7
  %v3774 = vsub.s32 2, %v3773
  %v3775 = vrot.slane %v2865, %v3774
  %v3776 = vlaneseq
  %v3777 = vshrl.u32 %v3776, 7
  %v3778 = vsub.s32 3, %v3777
  %v3779 = vrot.slane %v2865, %v3778
  %v3784 = vadd.f32 %v3747, %v3767
  %v3785 = vadd.f32 %v3748, %v3771
  %v3786 = vadd.f32 %v3749, %v3775
  %v3787 = vadd.f32 %v3750, %v3779
  %v3788 = vadd.f32 %v3751, %v3767
  %v3789 = vadd.f32 %v3752, %v3771
  %v3790 = vadd.f32 %v3753, %v3775
  %v3791 = vadd.f32 %v3754, %v3779
  %v3792 = vadd.f32 %v3755, %v3767
  %v3793 = vadd.f32 %v3756, %v3771
  %v3794 = vadd.f32 %v3757, %v3775
  %v3795 = vadd.f32 %v3758, %v3779
  %v3796 = vadd.f32 %v3759, %v3767
  %v3797 = vadd.f32 %v3760, %v3771
  %v3798 = vadd.f32 %v3761, %v3775
  %v3799 = vadd.f32 %v3762, %v3779
  %v3800 = vmax.f32 %v3784, 0.0
  %v3801 = vmax.f32 %v3785, 0.0
  %v3802 = vmax.f32 %v3786, 0.0
  %v3803 = vmax.f32 %v3787, 0.0
  %v3804 = vmax.f32 %v3788, 0.0
  %v3805 = vmax.f32 %v3789, 0.0
  %v3806 = vmax.f32 %v3790, 0.0
  %v3807 = vmax.f32 %v3791, 0.0
  %v3808 = vmax.f32 %v3792, 0.0
  %v3809 = vmax.f32 %v3793, 0.0
  %v3810 = vmax.f32 %v3794, 0.0
  %v3811 = vmax.f32 %v3795, 0.0
  %v3812 = vmax.f32 %v3796, 0.0
  %v3813 = vmax.f32 %v3797, 0.0
  %v3814 = vmax.f32 %v3798, 0.0
  %v3815 = vmax.f32 %v3799, 0.0
  %v3816 = vlaneseq
  %vm3817 = vcmp.ge.s32.totalorder %v3816, 0
  %vm3818 = vcmp.lt.s32.totalorder %v3816, 512
  %vm3819 = vmand %vm3817, %vm3818
  %s3820 = scalar_lea.vmem [#allocation3], 7
  %3821 = vst.msk [vmem:[%s3820] ss:$8 sm:$0xf] %vm3819, 0.0
  %3822 = vst.msk [vmem:[%s3820] ss:$8 sm:$0x0] %vm3819, 0.0
  %s3823 = scalar_lea.vmem [#allocation3], 135
  %3824 = vst.msk [vmem:[%s3823] ss:$8 sm:$0xf] %vm3819, 0.0
  %3825 = vst.msk [vmem:[%s3823] ss:$8 sm:$0x0] %vm3819, 0.0
  %s3826 = scalar_lea.vmem [#allocation3], 96
  %3827 = vst.msk [vmem:[%s3826] ss:$8 sm:$0xf] %vm3819, 0.0
  %3828 = vst.msk [vmem:[%s3826] ss:$8 sm:$0x0] %vm3819, 0.0
  %s3829 = scalar_lea.vmem [#allocation3], 224
  %3830 = vst.msk [vmem:[%s3829] ss:$8 sm:$0xf] %vm3819, 0.0
  %3831 = vst.msk [vmem:[%s3829] ss:$8 sm:$0x0] %vm3819, 0.0
  %3832 = vst [vmem:[#allocation3 + $0x20] sm:$0xff] %v3800
  %3833 = vst [vmem:[#allocation3 + $0x28] sm:$0xff] %v3801
  %3834 = vst [vmem:[#allocation3 + $0x30] sm:$0xff] %v3802
  %3835 = vst [vmem:[#allocation3 + $0x38] sm:$0xff] %v3803
  %3836 = vst [vmem:[#allocation3 + $0x40] sm:$0xff] %v3804
  %3837 = vst [vmem:[#allocation3 + $0x48] sm:$0xff] %v3805
  %3838 = vst [vmem:[#allocation3 + $0x50] sm:$0xff] %v3806
  %3839 = vst [vmem:[#allocation3 + $0x58] sm:$0xff] %v3807
  %3840 = vst [vmem:[#allocation3 + $0xa0] sm:$0xff] %v3808
  %3841 = vst [vmem:[#allocation3 + $0xa8] sm:$0xff] %v3809
  %3842 = vst [vmem:[#allocation3 + $0xb0] sm:$0xff] %v3810
  %3843 = vst [vmem:[#allocation3 + $0xb8] sm:$0xff] %v3811
  %3844 = vst [vmem:[#allocation3 + $0xc0] sm:$0xff] %v3812
  %3845 = vst [vmem:[#allocation3 + $0xc8] sm:$0xff] %v3813
  %3846 = vst [vmem:[#allocation3 + $0xd0] sm:$0xff] %v3814
  %3847 = vst [vmem:[#allocation3 + $0xd8] sm:$0xff] %v3815
  %v3848 = vld [vmem:[%s15] sm:$0x1]
  %v3849 = vld [vmem:[#allocation3] sm:$0x80]
  %v3850 = vld [vmem:[#allocation3 + $0x8] sm:$0x80]
  %v3851 = vld [vmem:[#allocation3 + $0x10] sm:$0x80]
  %v3852 = vld [vmem:[#allocation3 + $0x18] sm:$0x80]
  %v3853 = vld [vmem:[#allocation3 + $0x20] sm:$0xff]
  %v3854 = vld [vmem:[#allocation3 + $0x28] sm:$0xff]
  %v3855 = vld [vmem:[#allocation3 + $0x30] sm:$0xff]
  %v3856 = vld [vmem:[#allocation3 + $0x38] sm:$0xff]
  %v3857 = vld [vmem:[#allocation3 + $0x40] sm:$0x7f]
  %v3858 = vld [vmem:[#allocation3 + $0x48] sm:$0x7f]
  %v3859 = vld [vmem:[#allocation3 + $0x50] sm:$0x7f]
  %v3860 = vld [vmem:[#allocation3 + $0x58] sm:$0x7f]
  %v3861 = vld [vmem:[#allocation3 + $0x80] sm:$0x80]
  %v3862 = vld [vmem:[#allocation3 + $0x88] sm:$0x80]
  %v3863 = vld [vmem:[#allocation3 + $0x90] sm:$0x80]
  %v3864 = vld [vmem:[#allocation3 + $0x98] sm:$0x80]
  %v3865 = vld [vmem:[#allocation3 + $0xa0] sm:$0xff]
  %v3866 = vld [vmem:[#allocation3 + $0xa8] sm:$0xff]
  %v3867 = vld [vmem:[#allocation3 + $0xb0] sm:$0xff]
  %v3868 = vld [vmem:[#allocation3 + $0xb8] sm:$0xff]
  %v3869 = vld [vmem:[#allocation3 + $0xc0] sm:$0x7f]
  %v3870 = vld [vmem:[#allocation3 + $0xc8] sm:$0x7f]
  %v3871 = vld [vmem:[#allocation3 + $0xd0] sm:$0x7f]
  %v3872 = vld [vmem:[#allocation3 + $0xd8] sm:$0x7f]
  %vm3897 = vcmask 1040384
  %v3898 = vrot.slane %v3849, 7
  %v3899 = vrot.slane %v3853, 7
  %v3900 = vsel %vm3897, %v3898, %v3899
  %v3901 = vrot.slane %v3850, 7
  %v3902 = vrot.slane %v3854, 7
  %v3903 = vsel %vm3897, %v3901, %v3902
  %v3904 = vrot.slane %v3851, 7
  %v3905 = vrot.slane %v3855, 7
  %v3906 = vsel %vm3897, %v3904, %v3905
  %v3907 = vrot.slane %v3852, 7
  %v3908 = vrot.slane %v3856, 7
  %v3909 = vsel %vm3897, %v3907, %v3908
  %v3910 = vrot.slane %v3857, 7
  %v3911 = vsel %vm3897, %v3899, %v3910
  %v3912 = vrot.slane %v3858, 7
  %v3913 = vsel %vm3897, %v3902, %v3912
  %v3914 = vrot.slane %v3859, 7
  %v3915 = vsel %vm3897, %v3905, %v3914
  %v3916 = vrot.slane %v3860, 7
  %v3917 = vsel %vm3897, %v3908, %v3916
  %v3918 = vrot.slane %v3861, 7
  %v3919 = vrot.slane %v3865, 7
  %v3920 = vsel %vm3897, %v3918, %v3919
  %v3921 = vrot.slane %v3862, 7
  %v3922 = vrot.slane %v3866, 7
  %v3923 = vsel %vm3897, %v3921, %v3922
  %v3924 = vrot.slane %v3863, 7
  %v3925 = vrot.slane %v3867, 7
  %v3926 = vsel %vm3897, %v3924, %v3925
  %v3927 = vrot.slane %v3864, 7
  %v3928 = vrot.slane %v3868, 7
  %v3929 = vsel %vm3897, %v3927, %v3928
  %v3930 = vrot.slane %v3869, 7
  %v3931 = vsel %vm3897, %v3919, %v3930
  %v3932 = vrot.slane %v3870, 7
  %v3933 = vsel %vm3897, %v3922, %v3932
  %v3934 = vrot.slane %v3871, 7
  %v3935 = vsel %vm3897, %v3925, %v3934
  %v3936 = vrot.slane %v3872, 7
  %v3937 = vsel %vm3897, %v3928, %v3936
  %v3954 = vld [vmem:[%s13] sm:$0xff]
  %v3955 = vld [vmem:[%s13 + $0x8] sm:$0xff]
  %v3956 = vld [vmem:[%s13 + $0x10] sm:$0xff]
  %v3957 = vld [vmem:[%s13 + $0x18] sm:$0xff]
  %v3958 = vld [vmem:[%s13 + $0x20] sm:$0xff]
  %v3959 = vld [vmem:[%s13 + $0x28] sm:$0xff]
  %v3960 = vld [vmem:[%s13 + $0x30] sm:$0xff]
  %v3961 = vld [vmem:[%s13 + $0x38] sm:$0xff]
  %v3962 = vld [vmem:[%s13 + $0x40] sm:$0xff]
  %v3963 = vld [vmem:[%s13 + $0x48] sm:$0xff]
  %v3964 = vld [vmem:[%s13 + $0x50] sm:$0xff]
  %v3965 = vld [vmem:[%s13 + $0x58] sm:$0xff]
  %v3966 = vld [vmem:[%s13 + $0x60] sm:$0xff]
  %v3967 = vld [vmem:[%s13 + $0x68] sm:$0xff]
  %v3968 = vld [vmem:[%s13 + $0x70] sm:$0xff]
  %v3969 = vld [vmem:[%s13 + $0x78] sm:$0xff]
  %v3970 = vld [vmem:[%s13 + $0x80] sm:$0xff]
  %v3971 = vld [vmem:[%s13 + $0x88] sm:$0xff]
  %v3972 = vld [vmem:[%s13 + $0x90] sm:$0xff]
  %v3973 = vld [vmem:[%s13 + $0x98] sm:$0xff]
  %v3974 = vld [vmem:[%s13 + $0xa0] sm:$0xff]
  %v3975 = vld [vmem:[%s13 + $0xa8] sm:$0xff]
  %v3976 = vld [vmem:[%s13 + $0xb0] sm:$0xff]
  %v3977 = vld [vmem:[%s13 + $0xb8] sm:$0xff]
  %v3978 = vld [vmem:[%s13 + $0xc0] sm:$0xff]
  %v3979 = vld [vmem:[%s13 + $0xc8] sm:$0xff]
  %v3980 = vld [vmem:[%s13 + $0xd0] sm:$0xff]
  %v3981 = vld [vmem:[%s13 + $0xd8] sm:$0xff]
  %v3982 = vld [vmem:[%s13 + $0xe0] sm:$0xff]
  %v3983 = vld [vmem:[%s13 + $0xe8] sm:$0xff]
  %v3984 = vld [vmem:[%s13 + $0xf0] sm:$0xff]
  %v3985 = vld [vmem:[%s13 + $0xf8] sm:$0xff]
  %v3986 = vld [vmem:[%s13 + $0x100] sm:$0xff]
  %v3987 = vld [vmem:[%s13 + $0x108] sm:$0xff]
  %v3988 = vld [vmem:[%s13 + $0x110] sm:$0xff]
  %v3989 = vld [vmem:[%s13 + $0x118] sm:$0xff]
  %v3990 = vld [vmem:[%s13 + $0x120] sm:$0xff]
  %v3991 = vld [vmem:[%s13 + $0x128] sm:$0xff]
  %v3992 = vld [vmem:[%s13 + $0x130] sm:$0xff]
  %v3993 = vld [vmem:[%s13 + $0x138] sm:$0xff]
  %v3994 = vld [vmem:[%s13 + $0x140] sm:$0xff]
  %v3995 = vld [vmem:[%s13 + $0x148] sm:$0xff]
  %v3996 = vld [vmem:[%s13 + $0x150] sm:$0xff]
  %v3997 = vld [vmem:[%s13 + $0x158] sm:$0xff]
  %v3998 = vld [vmem:[%s13 + $0x160] sm:$0xff]
  %v3999 = vld [vmem:[%s13 + $0x168] sm:$0xff]
  %v4000 = vld [vmem:[%s13 + $0x170] sm:$0xff]
  %v4001 = vld [vmem:[%s13 + $0x178] sm:$0xff]
  %v4002 = vld [vmem:[%s13 + $0x180] sm:$0xff]
  %v4003 = vld [vmem:[%s13 + $0x188] sm:$0xff]
  %v4004 = vld [vmem:[%s13 + $0x190] sm:$0xff]
  %v4005 = vld [vmem:[%s13 + $0x198] sm:$0xff]
  %v4006 = vld [vmem:[%s13 + $0x1a0] sm:$0xff]
  %v4007 = vld [vmem:[%s13 + $0x1a8] sm:$0xff]
  %v4008 = vld [vmem:[%s13 + $0x1b0] sm:$0xff]
  %v4009 = vld [vmem:[%s13 + $0x1b8] sm:$0xff]
  %v4010 = vld [vmem:[%s13 + $0x1c0] sm:$0xff]
  %v4011 = vld [vmem:[%s13 + $0x1c8] sm:$0xff]
  %v4012 = vld [vmem:[%s13 + $0x1d0] sm:$0xff]
  %v4013 = vld [vmem:[%s13 + $0x1d8] sm:$0xff]
  %v4014 = vld [vmem:[%s13 + $0x1e0] sm:$0xff]
  %v4015 = vld [vmem:[%s13 + $0x1e8] sm:$0xff]
  %v4016 = vld [vmem:[%s13 + $0x1f0] sm:$0xff]
  %v4017 = vld [vmem:[%s13 + $0x1f8] sm:$0xff]
  %4018 = vmatprep.subr.mxu0 0.0
  %4019 = vmatpush1.msra.mxu0 %v3954
  %4020 = vmatprep.subr.mxu0 0.0
  %4021 = vmatpush1.msra.mxu0 %v3955
  %4022 = vmatprep.subr.mxu0 0.0
  %4023 = vmatpush1.msra.mxu0 %v3956
  %4024 = vmatprep.subr.mxu0 0.0
  %4025 = vmatpush1.msra.mxu0 %v3957
  %4026 = vmatprep.subr.mxu0 0.0
  %4027 = vmatpush1.msra.mxu0 %v3958
  %4028 = vmatprep.subr.mxu0 0.0
  %4029 = vmatpush1.msra.mxu0 %v3959
  %4030 = vmatprep.subr.mxu0 0.0
  %4031 = vmatpush1.msra.mxu0 %v3960
  %4032 = vmatprep.subr.mxu0 0.0
  %4033 = vmatpush1.msra.mxu0 %v3961
  %4034 = vmatprep.subr.mxu0 0.0
  %4035 = vmatpush1.msra.mxu0 %v3962
  %4036 = vmatprep.subr.mxu0 0.0
  %4037 = vmatpush1.msra.mxu0 %v3963
  %4038 = vmatprep.subr.mxu0 0.0
  %4039 = vmatpush1.msra.mxu0 %v3964
  %4040 = vmatprep.subr.mxu0 0.0
  %4041 = vmatpush1.msra.mxu0 %v3965
  %4042 = vmatprep.subr.mxu0 0.0
  %4043 = vmatpush1.msra.mxu0 %v3966
  %4044 = vmatprep.subr.mxu0 0.0
  %4045 = vmatpush1.msra.mxu0 %v3967
  %4046 = vmatprep.subr.mxu0 0.0
  %4047 = vmatpush1.msra.mxu0 %v3968
  %4048 = vmatprep.subr.mxu0 0.0
  %4049 = vmatpush1.msra.mxu0 %v3969
  %4050 = vmatprep.subr.mxu0 0.0
  %4051 = vmatpush1.msra.mxu0 %v3970
  %4052 = vmatprep.subr.mxu0 0.0
  %4053 = vmatpush1.msra.mxu0 %v3971
  %4054 = vmatprep.subr.mxu0 0.0
  %4055 = vmatpush1.msra.mxu0 %v3972
  %4056 = vmatprep.subr.mxu0 0.0
  %4057 = vmatpush1.msra.mxu0 %v3973
  %4058 = vmatprep.subr.mxu0 0.0
  %4059 = vmatpush1.msra.mxu0 %v3974
  %4060 = vmatprep.subr.mxu0 0.0
  %4061 = vmatpush1.msra.mxu0 %v3975
  %4062 = vmatprep.subr.mxu0 0.0
  %4063 = vmatpush1.msra.mxu0 %v3976
  %4064 = vmatprep.subr.mxu0 0.0
  %4065 = vmatpush1.msra.mxu0 %v3977
  %4066 = vmatprep.subr.mxu0 0.0
  %4067 = vmatpush1.msra.mxu0 %v3978
  %4068 = vmatprep.subr.mxu0 0.0
  %4069 = vmatpush1.msra.mxu0 %v3979
  %4070 = vmatprep.subr.mxu0 0.0
  %4071 = vmatpush1.msra.mxu0 %v3980
  %4072 = vmatprep.subr.mxu0 0.0
  %4073 = vmatpush1.msra.mxu0 %v3981
  %4074 = vmatprep.subr.mxu0 0.0
  %4075 = vmatpush1.msra.mxu0 %v3982
  %4076 = vmatprep.subr.mxu0 0.0
  %4077 = vmatpush1.msra.mxu0 %v3983
  %4078 = vmatprep.subr.mxu0 0.0
  %4079 = vmatpush1.msra.mxu0 %v3984
  %4080 = vmatprep.subr.mxu0 0.0
  %4081 = vmatpush1.msra.mxu0 %v3985
  %4082 = vmatprep.mubr.f32.mxu0 %v3903
  %4083 = vmatmul.mubr.f32.gmra.mrb[0].mxu0 %v3900
  %v4084 = vpop.f32.mrb[0].mxu0
  %v4085 = vadd.f32 0.0, %v4084
  %v4086 = vpop.f32.mrb[0].mxu0
  %4087 = vmatprep.mubr.f32.mxu0 %v3913
  %4088 = vmatmul.mubr.f32.gmra.mrb[0].mxu0 %v3911
  %v4089 = vpop.f32.mrb[0].mxu0
  %v4090 = vadd.f32 0.0, %v4089
  %v4091 = vpop.f32.mrb[0].mxu0
  %4092 = vmatprep.mubr.f32.mxu0 %v3923
  %4093 = vmatmul.mubr.f32.gmra.mrb[0].mxu0 %v3920
  %v4094 = vpop.f32.mrb[0].mxu0
  %v4095 = vadd.f32 0.0, %v4094
  %v4096 = vpop.f32.mrb[0].mxu0
  %4097 = vmatprep.mubr.f32.mxu0 %v3933
  %4098 = vmatmul.mubr.f32.gmra.mrb[0].mxu0 %v3931
  %v4099 = vpop.f32.mrb[0].mxu0
  %v4100 = vadd.f32 0.0, %v4099
  %v4101 = vpop.f32.mrb[0].mxu0
  %4102 = vdwg.mxu0
  %4103 = vmatprep.subr.mxu0 0.0
  %4104 = vmatpush1.msra.mxu0 %v3986
  %4105 = vmatprep.subr.mxu0 0.0
  %4106 = vmatpush1.msra.mxu0 %v3987
  %4107 = vmatprep.subr.mxu0 0.0
  %4108 = vmatpush1.msra.mxu0 %v3988
  %4109 = vmatprep.subr.mxu0 0.0
  %4110 = vmatpush1.msra.mxu0 %v3989
  %4111 = vmatprep.subr.mxu0 0.0
  %4112 = vmatpush1.msra.mxu0 %v3990
  %4113 = vmatprep.subr.mxu0 0.0
  %4114 = vmatpush1.msra.mxu0 %v3991
  %4115 = vmatprep.subr.mxu0 0.0
  %4116 = vmatpush1.msra.mxu0 %v3992
  %4117 = vmatprep.subr.mxu0 0.0
  %4118 = vmatpush1.msra.mxu0 %v3993
  %4119 = vmatprep.subr.mxu0 0.0
  %4120 = vmatpush1.msra.mxu0 %v3994
  %4121 = vmatprep.subr.mxu0 0.0
  %4122 = vmatpush1.msra.mxu0 %v3995
  %4123 = vmatprep.subr.mxu0 0.0
  %4124 = vmatpush1.msra.mxu0 %v3996
  %4125 = vmatprep.subr.mxu0 0.0
  %4126 = vmatpush1.msra.mxu0 %v3997
  %4127 = vmatprep.subr.mxu0 0.0
  %4128 = vmatpush1.msra.mxu0 %v3998
  %4129 = vmatprep.subr.mxu0 0.0
  %4130 = vmatpush1.msra.mxu0 %v3999
  %4131 = vmatprep.subr.mxu0 0.0
  %4132 = vmatpush1.msra.mxu0 %v4000
  %4133 = vmatprep.subr.mxu0 0.0
  %4134 = vmatpush1.msra.mxu0 %v4001
  %4135 = vmatprep.subr.mxu0 0.0
  %4136 = vmatpush1.msra.mxu0 %v4002
  %4137 = vmatprep.subr.mxu0 0.0
  %4138 = vmatpush1.msra.mxu0 %v4003
  %4139 = vmatprep.subr.mxu0 0.0
  %4140 = vmatpush1.msra.mxu0 %v4004
  %4141 = vmatprep.subr.mxu0 0.0
  %4142 = vmatpush1.msra.mxu0 %v4005
  %4143 = vmatprep.subr.mxu0 0.0
  %4144 = vmatpush1.msra.mxu0 %v4006
  %4145 = vmatprep.subr.mxu0 0.0
  %4146 = vmatpush1.msra.mxu0 %v4007
  %4147 = vmatprep.subr.mxu0 0.0
  %4148 = vmatpush1.msra.mxu0 %v4008
  %4149 = vmatprep.subr.mxu0 0.0
  %4150 = vmatpush1.msra.mxu0 %v4009
  %4151 = vmatprep.subr.mxu0 0.0
  %4152 = vmatpush1.msra.mxu0 %v4010
  %4153 = vmatprep.subr.mxu0 0.0
  %4154 = vmatpush1.msra.mxu0 %v4011
  %4155 = vmatprep.subr.mxu0 0.0
  %4156 = vmatpush1.msra.mxu0 %v4012
  %4157 = vmatprep.subr.mxu0 0.0
  %4158 = vmatpush1.msra.mxu0 %v4013
  %4159 = vmatprep.subr.mxu0 0.0
  %4160 = vmatpush1.msra.mxu0 %v4014
  %4161 = vmatprep.subr.mxu0 0.0
  %4162 = vmatpush1.msra.mxu0 %v4015
  %4163 = vmatprep.subr.mxu0 0.0
  %4164 = vmatpush1.msra.mxu0 %v4016
  %4165 = vmatprep.subr.mxu0 0.0
  %4166 = vmatpush1.msra.mxu0 %v4017
  %4167 = vmatprep.mubr.f32.mxu0 %v3909
  %4168 = vmatmul.mubr.f32.gmra.mrb[0].mxu0 %v3906
  %v4169 = vpop.f32.mrb[0].mxu0
  %v4170 = vadd.f32 %v4085, %v4169
  %v4171 = vpop.f32.mrb[0].mxu0
  %4172 = vmatprep.mubr.f32.mxu0 %v3917
  %4173 = vmatmul.mubr.f32.gmra.mrb[0].mxu0 %v3915
  %v4174 = vpop.f32.mrb[0].mxu0
  %v4175 = vadd.f32 %v4090, %v4174
  %v4176 = vpop.f32.mrb[0].mxu0
  %4177 = vmatprep.mubr.f32.mxu0 %v3929
  %4178 = vmatmul.mubr.f32.gmra.mrb[0].mxu0 %v3926
  %v4179 = vpop.f32.mrb[0].mxu0
  %v4180 = vadd.f32 %v4095, %v4179
  %v4181 = vpop.f32.mrb[0].mxu0
  %4182 = vmatprep.mubr.f32.mxu0 %v3937
  %4183 = vmatmul.mubr.f32.gmra.mrb[0].mxu0 %v3935
  %v4184 = vpop.f32.mrb[0].mxu0
  %v4185 = vadd.f32 %v4100, %v4184
  %v4186 = vpop.f32.mrb[0].mxu0
  %4187 = vdwg.mxu0
  %v4189 = vlaneseq
  %v4190 = vshrl.u32 %v4189, 7
  %v4191 = vsub.s32 0, %v4190
  %v4192 = vrot.slane %v3848, %v4191
  %v4194 = vadd.f32 %v4192, %v4170
  %v4195 = vadd.f32 %v4192, %v4175
  %v4196 = vadd.f32 %v4192, %v4180
  %v4197 = vadd.f32 %v4192, %v4185
  %v4198 = vld [vmem:[#allocation3 + $0x40] sm:$0xff]
  %v4199 = vld [vmem:[#allocation3 + $0x48] sm:$0xff]
  %v4200 = vld [vmem:[#allocation3 + $0x50] sm:$0xff]
  %v4201 = vld [vmem:[#allocation3 + $0x58] sm:$0xff]
  %v4202 = vld [vmem:[#allocation3 + $0xc0] sm:$0xff]
  %v4203 = vld [vmem:[#allocation3 + $0xc8] sm:$0xff]
  %v4204 = vld [vmem:[#allocation3 + $0xd0] sm:$0xff]
  %v4205 = vld [vmem:[#allocation3 + $0xd8] sm:$0xff]
  %s4206 = scalar_lea.vmem %s13, 512
  %v4207 = vld [vmem:[%s4206] sm:$0xff]
  %v4208 = vld [vmem:[%s4206 + $0x8] sm:$0xff]
  %v4209 = vld [vmem:[%s4206 + $0x10] sm:$0xff]
  %v4210 = vld [vmem:[%s4206 + $0x18] sm:$0xff]
  %v4211 = vld [vmem:[%s4206 + $0x20] sm:$0xff]
  %v4212 = vld [vmem:[%s4206 + $0x28] sm:$0xff]
  %v4213 = vld [vmem:[%s4206 + $0x30] sm:$0xff]
  %v4214 = vld [vmem:[%s4206 + $0x38] sm:$0xff]
  %v4215 = vld [vmem:[%s4206 + $0x40] sm:$0xff]
  %v4216 = vld [vmem:[%s4206 + $0x48] sm:$0xff]
  %v4217 = vld [vmem:[%s4206 + $0x50] sm:$0xff]
  %v4218 = vld [vmem:[%s4206 + $0x58] sm:$0xff]
  %v4219 = vld [vmem:[%s4206 + $0x60] sm:$0xff]
  %v4220 = vld [vmem:[%s4206 + $0x68] sm:$0xff]
  %v4221 = vld [vmem:[%s4206 + $0x70] sm:$0xff]
  %v4222 = vld [vmem:[%s4206 + $0x78] sm:$0xff]
  %v4223 = vld [vmem:[%s4206 + $0x80] sm:$0xff]
  %v4224 = vld [vmem:[%s4206 + $0x88] sm:$0xff]
  %v4225 = vld [vmem:[%s4206 + $0x90] sm:$0xff]
  %v4226 = vld [vmem:[%s4206 + $0x98] sm:$0xff]
  %v4227 = vld [vmem:[%s4206 + $0xa0] sm:$0xff]
  %v4228 = vld [vmem:[%s4206 + $0xa8] sm:$0xff]
  %v4229 = vld [vmem:[%s4206 + $0xb0] sm:$0xff]
  %v4230 = vld [vmem:[%s4206 + $0xb8] sm:$0xff]
  %v4231 = vld [vmem:[%s4206 + $0xc0] sm:$0xff]
  %v4232 = vld [vmem:[%s4206 + $0xc8] sm:$0xff]
  %v4233 = vld [vmem:[%s4206 + $0xd0] sm:$0xff]
  %v4234 = vld [vmem:[%s4206 + $0xd8] sm:$0xff]
  %v4235 = vld [vmem:[%s4206 + $0xe0] sm:$0xff]
  %v4236 = vld [vmem:[%s4206 + $0xe8] sm:$0xff]
  %v4237 = vld [vmem:[%s4206 + $0xf0] sm:$0xff]
  %v4238 = vld [vmem:[%s4206 + $0xf8] sm:$0xff]
  %v4239 = vld [vmem:[%s4206 + $0x100] sm:$0xff]
  %v4240 = vld [vmem:[%s4206 + $0x108] sm:$0xff]
  %v4241 = vld [vmem:[%s4206 + $0x110] sm:$0xff]
  %v4242 = vld [vmem:[%s4206 + $0x118] sm:$0xff]
  %v4243 = vld [vmem:[%s4206 + $0x120] sm:$0xff]
  %v4244 = vld [vmem:[%s4206 + $0x128] sm:$0xff]
  %v4245 = vld [vmem:[%s4206 + $0x130] sm:$0xff]
  %v4246 = vld [vmem:[%s4206 + $0x138] sm:$0xff]
  %v4247 = vld [vmem:[%s4206 + $0x140] sm:$0xff]
  %v4248 = vld [vmem:[%s4206 + $0x148] sm:$0xff]
  %v4249 = vld [vmem:[%s4206 + $0x150] sm:$0xff]
  %v4250 = vld [vmem:[%s4206 + $0x158] sm:$0xff]
  %v4251 = vld [vmem:[%s4206 + $0x160] sm:$0xff]
  %v4252 = vld [vmem:[%s4206 + $0x168] sm:$0xff]
  %v4253 = vld [vmem:[%s4206 + $0x170] sm:$0xff]
  %v4254 = vld [vmem:[%s4206 + $0x178] sm:$0xff]
  %v4255 = vld [vmem:[%s4206 + $0x180] sm:$0xff]
  %v4256 = vld [vmem:[%s4206 + $0x188] sm:$0xff]
  %v4257 = vld [vmem:[%s4206 + $0x190] sm:$0xff]
  %v4258 = vld [vmem:[%s4206 + $0x198] sm:$0xff]
  %v4259 = vld [vmem:[%s4206 + $0x1a0] sm:$0xff]
  %v4260 = vld [vmem:[%s4206 + $0x1a8] sm:$0xff]
  %v4261 = vld [vmem:[%s4206 + $0x1b0] sm:$0xff]
  %v4262 = vld [vmem:[%s4206 + $0x1b8] sm:$0xff]
  %v4263 = vld [vmem:[%s4206 + $0x1c0] sm:$0xff]
  %v4264 = vld [vmem:[%s4206 + $0x1c8] sm:$0xff]
  %v4265 = vld [vmem:[%s4206 + $0x1d0] sm:$0xff]
  %v4266 = vld [vmem:[%s4206 + $0x1d8] sm:$0xff]
  %v4267 = vld [vmem:[%s4206 + $0x1e0] sm:$0xff]
  %v4268 = vld [vmem:[%s4206 + $0x1e8] sm:$0xff]
  %v4269 = vld [vmem:[%s4206 + $0x1f0] sm:$0xff]
  %v4270 = vld [vmem:[%s4206 + $0x1f8] sm:$0xff]
  %4271 = vmatprep.subr.mxu0 0.0
  %4272 = vmatpush1.msra.mxu0 %v4207
  %4273 = vmatprep.subr.mxu0 0.0
  %4274 = vmatpush1.msra.mxu0 %v4208
  %4275 = vmatprep.subr.mxu0 0.0
  %4276 = vmatpush1.msra.mxu0 %v4209
  %4277 = vmatprep.subr.mxu0 0.0
  %4278 = vmatpush1.msra.mxu0 %v4210
  %4279 = vmatprep.subr.mxu0 0.0
  %4280 = vmatpush1.msra.mxu0 %v4211
  %4281 = vmatprep.subr.mxu0 0.0
  %4282 = vmatpush1.msra.mxu0 %v4212
  %4283 = vmatprep.subr.mxu0 0.0
  %4284 = vmatpush1.msra.mxu0 %v4213
  %4285 = vmatprep.subr.mxu0 0.0
  %4286 = vmatpush1.msra.mxu0 %v4214
  %4287 = vmatprep.subr.mxu0 0.0
  %4288 = vmatpush1.msra.mxu0 %v4215
  %4289 = vmatprep.subr.mxu0 0.0
  %4290 = vmatpush1.msra.mxu0 %v4216
  %4291 = vmatprep.subr.mxu0 0.0
  %4292 = vmatpush1.msra.mxu0 %v4217
  %4293 = vmatprep.subr.mxu0 0.0
  %4294 = vmatpush1.msra.mxu0 %v4218
  %4295 = vmatprep.subr.mxu0 0.0
  %4296 = vmatpush1.msra.mxu0 %v4219
  %4297 = vmatprep.subr.mxu0 0.0
  %4298 = vmatpush1.msra.mxu0 %v4220
  %4299 = vmatprep.subr.mxu0 0.0
  %4300 = vmatpush1.msra.mxu0 %v4221
  %4301 = vmatprep.subr.mxu0 0.0
  %4302 = vmatpush1.msra.mxu0 %v4222
  %4303 = vmatprep.subr.mxu0 0.0
  %4304 = vmatpush1.msra.mxu0 %v4223
  %4305 = vmatprep.subr.mxu0 0.0
  %4306 = vmatpush1.msra.mxu0 %v4224
  %4307 = vmatprep.subr.mxu0 0.0
  %4308 = vmatpush1.msra.mxu0 %v4225
  %4309 = vmatprep.subr.mxu0 0.0
  %4310 = vmatpush1.msra.mxu0 %v4226
  %4311 = vmatprep.subr.mxu0 0.0
  %4312 = vmatpush1.msra.mxu0 %v4227
  %4313 = vmatprep.subr.mxu0 0.0
  %4314 = vmatpush1.msra.mxu0 %v4228
  %4315 = vmatprep.subr.mxu0 0.0
  %4316 = vmatpush1.msra.mxu0 %v4229
  %4317 = vmatprep.subr.mxu0 0.0
  %4318 = vmatpush1.msra.mxu0 %v4230
  %4319 = vmatprep.subr.mxu0 0.0
  %4320 = vmatpush1.msra.mxu0 %v4231
  %4321 = vmatprep.subr.mxu0 0.0
  %4322 = vmatpush1.msra.mxu0 %v4232
  %4323 = vmatprep.subr.mxu0 0.0
  %4324 = vmatpush1.msra.mxu0 %v4233
  %4325 = vmatprep.subr.mxu0 0.0
  %4326 = vmatpush1.msra.mxu0 %v4234
  %4327 = vmatprep.subr.mxu0 0.0
  %4328 = vmatpush1.msra.mxu0 %v4235
  %4329 = vmatprep.subr.mxu0 0.0
  %4330 = vmatpush1.msra.mxu0 %v4236
  %4331 = vmatprep.subr.mxu0 0.0
  %4332 = vmatpush1.msra.mxu0 %v4237
  %4333 = vmatprep.subr.mxu0 0.0
  %4334 = vmatpush1.msra.mxu0 %v4238
  %4335 = vmatprep.mubr.f32.mxu0 %v3854
  %4336 = vmatmul.mubr.f32.gmra.mrb[0].mxu0 %v3853
  %v4337 = vpop.f32.mrb[0].mxu0
  %v4338 = vadd.f32 0.0, %v4337
  %v4339 = vpop.f32.mrb[0].mxu0
  %4340 = vmatprep.mubr.f32.mxu0 %v4199
  %4341 = vmatmul.mubr.f32.gmra.mrb[0].mxu0 %v4198
  %v4342 = vpop.f32.mrb[0].mxu0
  %v4343 = vadd.f32 0.0, %v4342
  %v4344 = vpop.f32.mrb[0].mxu0
  %4345 = vmatprep.mubr.f32.mxu0 %v3866
  %4346 = vmatmul.mubr.f32.gmra.mrb[0].mxu0 %v3865
  %v4347 = vpop.f32.mrb[0].mxu0
  %v4348 = vadd.f32 0.0, %v4347
  %v4349 = vpop.f32.mrb[0].mxu0
  %4350 = vmatprep.mubr.f32.mxu0 %v4203
  %4351 = vmatmul.mubr.f32.gmra.mrb[0].mxu0 %v4202
  %v4352 = vpop.f32.mrb[0].mxu0
  %v4353 = vadd.f32 0.0, %v4352
  %v4354 = vpop.f32.mrb[0].mxu0
  %4355 = vdwg.mxu0
  %4356 = vmatprep.subr.mxu0 0.0
  %4357 = vmatpush1.msra.mxu0 %v4239
  %4358 = vmatprep.subr.mxu0 0.0
  %4359 = vmatpush1.msra.mxu0 %v4240
  %4360 = vmatprep.subr.mxu0 0.0
  %4361 = vmatpush1.msra.mxu0 %v4241
  %4362 = vmatprep.subr.mxu0 0.0
  %4363 = vmatpush1.msra.mxu0 %v4242
  %4364 = vmatprep.subr.mxu0 0.0
  %4365 = vmatpush1.msra.mxu0 %v4243
  %4366 = vmatprep.subr.mxu0 0.0
  %4367 = vmatpush1.msra.mxu0 %v4244
  %4368 = vmatprep.subr.mxu0 0.0
  %4369 = vmatpush1.msra.mxu0 %v4245
  %4370 = vmatprep.subr.mxu0 0.0
  %4371 = vmatpush1.msra.mxu0 %v4246
  %4372 = vmatprep.subr.mxu0 0.0
  %4373 = vmatpush1.msra.mxu0 %v4247
  %4374 = vmatprep.subr.mxu0 0.0
  %4375 = vmatpush1.msra.mxu0 %v4248
  %4376 = vmatprep.subr.mxu0 0.0
  %4377 = vmatpush1.msra.mxu0 %v4249
  %4378 = vmatprep.subr.mxu0 0.0
  %4379 = vmatpush1.msra.mxu0 %v4250
  %4380 = vmatprep.subr.mxu0 0.0
  %4381 = vmatpush1.msra.mxu0 %v4251
  %4382 = vmatprep.subr.mxu0 0.0
  %4383 = vmatpush1.msra.mxu0 %v4252
  %4384 = vmatprep.subr.mxu0 0.0
  %4385 = vmatpush1.msra.mxu0 %v4253
  %4386 = vmatprep.subr.mxu0 0.0
  %4387 = vmatpush1.msra.mxu0 %v4254
  %4388 = vmatprep.subr.mxu0 0.0
  %4389 = vmatpush1.msra.mxu0 %v4255
  %4390 = vmatprep.subr.mxu0 0.0
  %4391 = vmatpush1.msra.mxu0 %v4256
  %4392 = vmatprep.subr.mxu0 0.0
  %4393 = vmatpush1.msra.mxu0 %v4257
  %4394 = vmatprep.subr.mxu0 0.0
  %4395 = vmatpush1.msra.mxu0 %v4258
  %4396 = vmatprep.subr.mxu0 0.0
  %4397 = vmatpush1.msra.mxu0 %v4259
  %4398 = vmatprep.subr.mxu0 0.0
  %4399 = vmatpush1.msra.mxu0 %v4260
  %4400 = vmatprep.subr.mxu0 0.0
  %4401 = vmatpush1.msra.mxu0 %v4261
  %4402 = vmatprep.subr.mxu0 0.0
  %4403 = vmatpush1.msra.mxu0 %v4262
  %4404 = vmatprep.subr.mxu0 0.0
  %4405 = vmatpush1.msra.mxu0 %v4263
  %4406 = vmatprep.subr.mxu0 0.0
  %4407 = vmatpush1.msra.mxu0 %v4264
  %4408 = vmatprep.subr.mxu0 0.0
  %4409 = vmatpush1.msra.mxu0 %v4265
  %4410 = vmatprep.subr.mxu0 0.0
  %4411 = vmatpush1.msra.mxu0 %v4266
  %4412 = vmatprep.subr.mxu0 0.0
  %4413 = vmatpush1.msra.mxu0 %v4267
  %4414 = vmatprep.subr.mxu0 0.0
  %4415 = vmatpush1.msra.mxu0 %v4268
  %4416 = vmatprep.subr.mxu0 0.0
  %4417 = vmatpush1.msra.mxu0 %v4269
  %4418 = vmatprep.subr.mxu0 0.0
  %4419 = vmatpush1.msra.mxu0 %v4270
  %4420 = vmatprep.mubr.f32.mxu0 %v3856
  %4421 = vmatmul.mubr.f32.gmra.mrb[0].mxu0 %v3855
  %v4422 = vpop.f32.mrb[0].mxu0
  %v4423 = vadd.f32 %v4338, %v4422
  %v4424 = vpop.f32.mrb[0].mxu0
  %4425 = vmatprep.mubr.f32.mxu0 %v4201
  %4426 = vmatmul.mubr.f32.gmra.mrb[0].mxu0 %v4200
  %v4427 = vpop.f32.mrb[0].mxu0
  %v4428 = vadd.f32 %v4343, %v4427
  %v4429 = vpop.f32.mrb[0].mxu0
  %4430 = vmatprep.mubr.f32.mxu0 %v3868
  %4431 = vmatmul.mubr.f32.gmra.mrb[0].mxu0 %v3867
  %v4432 = vpop.f32.mrb[0].mxu0
  %v4433 = vadd.f32 %v4348, %v4432
  %v4434 = vpop.f32.mrb[0].mxu0
  %4435 = vmatprep.mubr.f32.mxu0 %v4205
  %4436 = vmatmul.mubr.f32.gmra.mrb[0].mxu0 %v4204
  %v4437 = vpop.f32.mrb[0].mxu0
  %v4438 = vadd.f32 %v4353, %v4437
  %v4439 = vpop.f32.mrb[0].mxu0
  %4440 = vdwg.mxu0
  %v4441 = vadd.f32 %v4194, %v4423
  %v4442 = vadd.f32 %v4195, %v4428
  %v4443 = vadd.f32 %v4196, %v4433
  %v4444 = vadd.f32 %v4197, %v4438
  %v4445 = vld [vmem:[#allocation3 + $0x20] sm:$0xfe]
  %v4446 = vld [vmem:[#allocation3 + $0x28] sm:$0xfe]
  %v4447 = vld [vmem:[#allocation3 + $0x30] sm:$0xfe]
  %v4448 = vld [vmem:[#allocation3 + $0x38] sm:$0xfe]
  %v4449 = vld [vmem:[#allocation3 + $0x40] sm:$0xff]
  %v4450 = vld [vmem:[#allocation3 + $0x48] sm:$0xff]
  %v4451 = vld [vmem:[#allocation3 + $0x50] sm:$0xff]
  %v4452 = vld [vmem:[#allocation3 + $0x58] sm:$0xff]
  %v4453 = vld [vmem:[#allocation3 + $0x60] sm:$0x1]
  %v4454 = vld [vmem:[#allocation3 + $0x68] sm:$0x1]
  %v4455 = vld [vmem:[#allocation3 + $0x70] sm:$0x1]
  %v4456 = vld [vmem:[#allocation3 + $0x78] sm:$0x1]
  %v4457 = vld [vmem:[#allocation3 + $0xa0] sm:$0xfe]
  %v4458 = vld [vmem:[#allocation3 + $0xa8] sm:$0xfe]
  %v4459 = vld [vmem:[#allocation3 + $0xb0] sm:$0xfe]
  %v4460 = vld [vmem:[#allocation3 + $0xb8] sm:$0xfe]
  %v4461 = vld [vmem:[#allocation3 + $0xc0] sm:$0xff]
  %v4462 = vld [vmem:[#allocation3 + $0xc8] sm:$0xff]
  %v4463 = vld [vmem:[#allocation3 + $0xd0] sm:$0xff]
  %v4464 = vld [vmem:[#allocation3 + $0xd8] sm:$0xff]
  %v4465 = vld [vmem:[#allocation3 + $0xe0] sm:$0x1]
  %v4466 = vld [vmem:[#allocation3 + $0xe8] sm:$0x1]
  %v4467 = vld [vmem:[#allocation3 + $0xf0] sm:$0x1]
  %v4468 = vld [vmem:[#allocation3 + $0xf8] sm:$0x1]
  %vm4493 = vcmask 1046528
  %v4494 = vrot.slane %v4445, 1
  %v4495 = vrot.slane %v4449, 1
  %v4496 = vsel %vm4493, %v4494, %v4495
  %v4497 = vrot.slane %v4446, 1
  %v4498 = vrot.slane %v4450, 1
  %v4499 = vsel %vm4493, %v4497, %v4498
  %v4500 = vrot.slane %v4447, 1
  %v4501 = vrot.slane %v4451, 1
  %v4502 = vsel %vm4493, %v4500, %v4501
  %v4503 = vrot.slane %v4448, 1
  %v4504 = vrot.slane %v4452, 1
  %v4505 = vsel %vm4493, %v4503, %v4504
  %v4506 = vrot.slane %v4453, 1
  %v4507 = vsel %vm4493, %v4495, %v4506
  %v4508 = vrot.slane %v4454, 1
  %v4509 = vsel %vm4493, %v4498, %v4508
  %v4510 = vrot.slane %v4455, 1
  %v4511 = vsel %vm4493, %v4501, %v4510
  %v4512 = vrot.slane %v4456, 1
  %v4513 = vsel %vm4493, %v4504, %v4512
  %v4514 = vrot.slane %v4457, 1
  %v4515 = vrot.slane %v4461, 1
  %v4516 = vsel %vm4493, %v4514, %v4515
  %v4517 = vrot.slane %v4458, 1
  %v4518 = vrot.slane %v4462, 1
  %v4519 = vsel %vm4493, %v4517, %v4518
  %v4520 = vrot.slane %v4459, 1
  %v4521 = vrot.slane %v4463, 1
  %v4522 = vsel %vm4493, %v4520, %v4521
  %v4523 = vrot.slane %v4460, 1
  %v4524 = vrot.slane %v4464, 1
  %v4525 = vsel %vm4493, %v4523, %v4524
  %v4526 = vrot.slane %v4465, 1
  %v4527 = vsel %vm4493, %v4515, %v4526
  %v4528 = vrot.slane %v4466, 1
  %v4529 = vsel %vm4493, %v4518, %v4528
  %v4530 = vrot.slane %v4467, 1
  %v4531 = vsel %vm4493, %v4521, %v4530
  %v4532 = vrot.slane %v4468, 1
  %v4533 = vsel %vm4493, %v4524, %v4532
  %s4550 = scalar_lea.vmem %s13, 1024
  %v4551 = vld [vmem:[%s4550] sm:$0xff]
  %v4552 = vld [vmem:[%s4550 + $0x8] sm:$0xff]
  %v4553 = vld [vmem:[%s4550 + $0x10] sm:$0xff]
  %v4554 = vld [vmem:[%s4550 + $0x18] sm:$0xff]
  %v4555 = vld [vmem:[%s4550 + $0x20] sm:$0xff]
  %v4556 = vld [vmem:[%s4550 + $0x28] sm:$0xff]
  %v4557 = vld [vmem:[%s4550 + $0x30] sm:$0xff]
  %v4558 = vld [vmem:[%s4550 + $0x38] sm:$0xff]
  %v4559 = vld [vmem:[%s4550 + $0x40] sm:$0xff]
  %v4560 = vld [vmem:[%s4550 + $0x48] sm:$0xff]
  %v4561 = vld [vmem:[%s4550 + $0x50] sm:$0xff]
  %v4562 = vld [vmem:[%s4550 + $0x58] sm:$0xff]
  %v4563 = vld [vmem:[%s4550 + $0x60] sm:$0xff]
  %v4564 = vld [vmem:[%s4550 + $0x68] sm:$0xff]
  %v4565 = vld [vmem:[%s4550 + $0x70] sm:$0xff]
  %v4566 = vld [vmem:[%s4550 + $0x78] sm:$0xff]
  %v4567 = vld [vmem:[%s4550 + $0x80] sm:$0xff]
  %v4568 = vld [vmem:[%s4550 + $0x88] sm:$0xff]
  %v4569 = vld [vmem:[%s4550 + $0x90] sm:$0xff]
  %v4570 = vld [vmem:[%s4550 + $0x98] sm:$0xff]
  %v4571 = vld [vmem:[%s4550 + $0xa0] sm:$0xff]
  %v4572 = vld [vmem:[%s4550 + $0xa8] sm:$0xff]
  %v4573 = vld [vmem:[%s4550 + $0xb0] sm:$0xff]
  %v4574 = vld [vmem:[%s4550 + $0xb8] sm:$0xff]
  %v4575 = vld [vmem:[%s4550 + $0xc0] sm:$0xff]
  %v4576 = vld [vmem:[%s4550 + $0xc8] sm:$0xff]
  %v4577 = vld [vmem:[%s4550 + $0xd0] sm:$0xff]
  %v4578 = vld [vmem:[%s4550 + $0xd8] sm:$0xff]
  %v4579 = vld [vmem:[%s4550 + $0xe0] sm:$0xff]
  %v4580 = vld [vmem:[%s4550 + $0xe8] sm:$0xff]
  %v4581 = vld [vmem:[%s4550 + $0xf0] sm:$0xff]
  %v4582 = vld [vmem:[%s4550 + $0xf8] sm:$0xff]
  %v4583 = vld [vmem:[%s4550 + $0x100] sm:$0xff]
  %v4584 = vld [vmem:[%s4550 + $0x108] sm:$0xff]
  %v4585 = vld [vmem:[%s4550 + $0x110] sm:$0xff]
  %v4586 = vld [vmem:[%s4550 + $0x118] sm:$0xff]
  %v4587 = vld [vmem:[%s4550 + $0x120] sm:$0xff]
  %v4588 = vld [vmem:[%s4550 + $0x128] sm:$0xff]
  %v4589 = vld [vmem:[%s4550 + $0x130] sm:$0xff]
  %v4590 = vld [vmem:[%s4550 + $0x138] sm:$0xff]
  %v4591 = vld [vmem:[%s4550 + $0x140] sm:$0xff]
  %v4592 = vld [vmem:[%s4550 + $0x148] sm:$0xff]
  %v4593 = vld [vmem:[%s4550 + $0x150] sm:$0xff]
  %v4594 = vld [vmem:[%s4550 + $0x158] sm:$0xff]
  %v4595 = vld [vmem:[%s4550 + $0x160] sm:$0xff]
  %v4596 = vld [vmem:[%s4550 + $0x168] sm:$0xff]
  %v4597 = vld [vmem:[%s4550 + $0x170] sm:$0xff]
  %v4598 = vld [vmem:[%s4550 + $0x178] sm:$0xff]
  %v4599 = vld [vmem:[%s4550 + $0x180] sm:$0xff]
  %v4600 = vld [vmem:[%s4550 + $0x188] sm:$0xff]
  %v4601 = vld [vmem:[%s4550 + $0x190] sm:$0xff]
  %v4602 = vld [vmem:[%s4550 + $0x198] sm:$0xff]
  %v4603 = vld [vmem:[%s4550 + $0x1a0] sm:$0xff]
  %v4604 = vld [vmem:[%s4550 + $0x1a8] sm:$0xff]
  %v4605 = vld [vmem:[%s4550 + $0x1b0] sm:$0xff]
  %v4606 = vld [vmem:[%s4550 + $0x1b8] sm:$0xff]
  %v4607 = vld [vmem:[%s4550 + $0x1c0] sm:$0xff]
  %v4608 = vld [vmem:[%s4550 + $0x1c8] sm:$0xff]
  %v4609 = vld [vmem:[%s4550 + $0x1d0] sm:$0xff]
  %v4610 = vld [vmem:[%s4550 + $0x1d8] sm:$0xff]
  %v4611 = vld [vmem:[%s4550 + $0x1e0] sm:$0xff]
  %v4612 = vld [vmem:[%s4550 + $0x1e8] sm:$0xff]
  %v4613 = vld [vmem:[%s4550 + $0x1f0] sm:$0xff]
  %v4614 = vld [vmem:[%s4550 + $0x1f8] sm:$0xff]
  %4615 = vmatprep.subr.mxu0 0.0
  %4616 = vmatpush1.msra.mxu0 %v4551
  %4617 = vmatprep.subr.mxu0 0.0
  %4618 = vmatpush1.msra.mxu0 %v4552
  %4619 = vmatprep.subr.mxu0 0.0
  %4620 = vmatpush1.msra.mxu0 %v4553
  %4621 = vmatprep.subr.mxu0 0.0
  %4622 = vmatpush1.msra.mxu0 %v4554
  %4623 = vmatprep.subr.mxu0 0.0
  %4624 = vmatpush1.msra.mxu0 %v4555
  %4625 = vmatprep.subr.mxu0 0.0
  %4626 = vmatpush1.msra.mxu0 %v4556
  %4627 = vmatprep.subr.mxu0 0.0
  %4628 = vmatpush1.msra.mxu0 %v4557
  %4629 = vmatprep.subr.mxu0 0.0
  %4630 = vmatpush1.msra.mxu0 %v4558
  %4631 = vmatprep.subr.mxu0 0.0
  %4632 = vmatpush1.msra.mxu0 %v4559
  %4633 = vmatprep.subr.mxu0 0.0
  %4634 = vmatpush1.msra.mxu0 %v4560
  %4635 = vmatprep.subr.mxu0 0.0
  %4636 = vmatpush1.msra.mxu0 %v4561
  %4637 = vmatprep.subr.mxu0 0.0
  %4638 = vmatpush1.msra.mxu0 %v4562
  %4639 = vmatprep.subr.mxu0 0.0
  %4640 = vmatpush1.msra.mxu0 %v4563
  %4641 = vmatprep.subr.mxu0 0.0
  %4642 = vmatpush1.msra.mxu0 %v4564
  %4643 = vmatprep.subr.mxu0 0.0
  %4644 = vmatpush1.msra.mxu0 %v4565
  %4645 = vmatprep.subr.mxu0 0.0
  %4646 = vmatpush1.msra.mxu0 %v4566
  %4647 = vmatprep.subr.mxu0 0.0
  %4648 = vmatpush1.msra.mxu0 %v4567
  %4649 = vmatprep.subr.mxu0 0.0
  %4650 = vmatpush1.msra.mxu0 %v4568
  %4651 = vmatprep.subr.mxu0 0.0
  %4652 = vmatpush1.msra.mxu0 %v4569
  %4653 = vmatprep.subr.mxu0 0.0
  %4654 = vmatpush1.msra.mxu0 %v4570
  %4655 = vmatprep.subr.mxu0 0.0
  %4656 = vmatpush1.msra.mxu0 %v4571
  %4657 = vmatprep.subr.mxu0 0.0
  %4658 = vmatpush1.msra.mxu0 %v4572
  %4659 = vmatprep.subr.mxu0 0.0
  %4660 = vmatpush1.msra.mxu0 %v4573
  %4661 = vmatprep.subr.mxu0 0.0
  %4662 = vmatpush1.msra.mxu0 %v4574
  %4663 = vmatprep.subr.mxu0 0.0
  %4664 = vmatpush1.msra.mxu0 %v4575
  %4665 = vmatprep.subr.mxu0 0.0
  %4666 = vmatpush1.msra.mxu0 %v4576
  %4667 = vmatprep.subr.mxu0 0.0
  %4668 = vmatpush1.msra.mxu0 %v4577
  %4669 = vmatprep.subr.mxu0 0.0
  %4670 = vmatpush1.msra.mxu0 %v4578
  %4671 = vmatprep.subr.mxu0 0.0
  %4672 = vmatpush1.msra.mxu0 %v4579
  %4673 = vmatprep.subr.mxu0 0.0
  %4674 = vmatpush1.msra.mxu0 %v4580
  %4675 = vmatprep.subr.mxu0 0.0
  %4676 = vmatpush1.msra.mxu0 %v4581
  %4677 = vmatprep.subr.mxu0 0.0
  %4678 = vmatpush1.msra.mxu0 %v4582
  %4679 = vmatprep.mubr.f32.mxu0 %v4499
  %4680 = vmatmul.mubr.f32.gmra.mrb[0].mxu0 %v4496
  %v4681 = vpop.f32.mrb[0].mxu0
  %v4682 = vadd.f32 0.0, %v4681
  %v4683 = vpop.f32.mrb[0].mxu0
  %4684 = vmatprep.mubr.f32.mxu0 %v4509
  %4685 = vmatmul.mubr.f32.gmra.mrb[0].mxu0 %v4507
  %v4686 = vpop.f32.mrb[0].mxu0
  %v4687 = vadd.f32 0.0, %v4686
  %v4688 = vpop.f32.mrb[0].mxu0
  %4689 = vmatprep.mubr.f32.mxu0 %v4519
  %4690 = vmatmul.mubr.f32.gmra.mrb[0].mxu0 %v4516
  %v4691 = vpop.f32.mrb[0].mxu0
  %v4692 = vadd.f32 0.0, %v4691
  %v4693 = vpop.f32.mrb[0].mxu0
  %4694 = vmatprep.mubr.f32.mxu0 %v4529
  %4695 = vmatmul.mubr.f32.gmra.mrb[0].mxu0 %v4527
  %v4696 = vpop.f32.mrb[0].mxu0
  %v4697 = vadd.f32 0.0, %v4696
  %v4698 = vpop.f32.mrb[0].mxu0
  %4699 = vdwg.mxu0
  %4700 = vmatprep.subr.mxu0 0.0
  %4701 = vmatpush1.msra.mxu0 %v4583
  %4702 = vmatprep.subr.mxu0 0.0
  %4703 = vmatpush1.msra.mxu0 %v4584
  %4704 = vmatprep.subr.mxu0 0.0
  %4705 = vmatpush1.msra.mxu0 %v4585
  %4706 = vmatprep.subr.mxu0 0.0
  %4707 = vmatpush1.msra.mxu0 %v4586
  %4708 = vmatprep.subr.mxu0 0.0
  %4709 = vmatpush1.msra.mxu0 %v4587
  %4710 = vmatprep.subr.mxu0 0.0
  %4711 = vmatpush1.msra.mxu0 %v4588
  %4712 = vmatprep.subr.mxu0 0.0
  %4713 = vmatpush1.msra.mxu0 %v4589
  %4714 = vmatprep.subr.mxu0 0.0
  %4715 = vmatpush1.msra.mxu0 %v4590
  %4716 = vmatprep.subr.mxu0 0.0
  %4717 = vmatpush1.msra.mxu0 %v4591
  %4718 = vmatprep.subr.mxu0 0.0
  %4719 = vmatpush1.msra.mxu0 %v4592
  %4720 = vmatprep.subr.mxu0 0.0
  %4721 = vmatpush1.msra.mxu0 %v4593
  %4722 = vmatprep.subr.mxu0 0.0
  %4723 = vmatpush1.msra.mxu0 %v4594
  %4724 = vmatprep.subr.mxu0 0.0
  %4725 = vmatpush1.msra.mxu0 %v4595
  %4726 = vmatprep.subr.mxu0 0.0
  %4727 = vmatpush1.msra.mxu0 %v4596
  %4728 = vmatprep.subr.mxu0 0.0
  %4729 = vmatpush1.msra.mxu0 %v4597
  %4730 = vmatprep.subr.mxu0 0.0
  %4731 = vmatpush1.msra.mxu0 %v4598
  %4732 = vmatprep.subr.mxu0 0.0
  %4733 = vmatpush1.msra.mxu0 %v4599
  %4734 = vmatprep.subr.mxu0 0.0
  %4735 = vmatpush1.msra.mxu0 %v4600
  %4736 = vmatprep.subr.mxu0 0.0
  %4737 = vmatpush1.msra.mxu0 %v4601
  %4738 = vmatprep.subr.mxu0 0.0
  %4739 = vmatpush1.msra.mxu0 %v4602
  %4740 = vmatprep.subr.mxu0 0.0
  %4741 = vmatpush1.msra.mxu0 %v4603
  %4742 = vmatprep.subr.mxu0 0.0
  %4743 = vmatpush1.msra.mxu0 %v4604
  %4744 = vmatprep.subr.mxu0 0.0
  %4745 = vmatpush1.msra.mxu0 %v4605
  %4746 = vmatprep.subr.mxu0 0.0
  %4747 = vmatpush1.msra.mxu0 %v4606
  %4748 = vmatprep.subr.mxu0 0.0
  %4749 = vmatpush1.msra.mxu0 %v4607
  %4750 = vmatprep.subr.mxu0 0.0
  %4751 = vmatpush1.msra.mxu0 %v4608
  %4752 = vmatprep.subr.mxu0 0.0
  %4753 = vmatpush1.msra.mxu0 %v4609
  %4754 = vmatprep.subr.mxu0 0.0
  %4755 = vmatpush1.msra.mxu0 %v4610
  %4756 = vmatprep.subr.mxu0 0.0
  %4757 = vmatpush1.msra.mxu0 %v4611
  %4758 = vmatprep.subr.mxu0 0.0
  %4759 = vmatpush1.msra.mxu0 %v4612
  %4760 = vmatprep.subr.mxu0 0.0
  %4761 = vmatpush1.msra.mxu0 %v4613
  %4762 = vmatprep.subr.mxu0 0.0
  %4763 = vmatpush1.msra.mxu0 %v4614
  %4764 = vmatprep.mubr.f32.mxu0 %v4505
  %4765 = vmatmul.mubr.f32.gmra.mrb[0].mxu0 %v4502
  %v4766 = vpop.f32.mrb[0].mxu0
  %v4767 = vadd.f32 %v4682, %v4766
  %v4768 = vpop.f32.mrb[0].mxu0
  %4769 = vmatprep.mubr.f32.mxu0 %v4513
  %4770 = vmatmul.mubr.f32.gmra.mrb[0].mxu0 %v4511
  %v4771 = vpop.f32.mrb[0].mxu0
  %v4772 = vadd.f32 %v4687, %v4771
  %v4773 = vpop.f32.mrb[0].mxu0
  %4774 = vmatprep.mubr.f32.mxu0 %v4525
  %4775 = vmatmul.mubr.f32.gmra.mrb[0].mxu0 %v4522
  %v4776 = vpop.f32.mrb[0].mxu0
  %v4777 = vadd.f32 %v4692, %v4776
  %v4778 = vpop.f32.mrb[0].mxu0
  %4779 = vmatprep.mubr.f32.mxu0 %v4533
  %4780 = vmatmul.mubr.f32.gmra.mrb[0].mxu0 %v4531
  %v4781 = vpop.f32.mrb[0].mxu0
  %v4782 = vadd.f32 %v4697, %v4781
  %v4783 = vpop.f32.mrb[0].mxu0
  %4784 = vdwg.mxu0
  %v4785 = vadd.f32 %v4441, %v4767
  %v4786 = vadd.f32 %v4442, %v4772
  %v4787 = vadd.f32 %v4443, %v4777
  %v4788 = vadd.f32 %v4444, %v4782
  %v4789 = vld [vmem:[%s16] sm:$0x1]
  %v4790 = vld [vmem:[%s14] sm:$0xff]
  %v4791 = vld [vmem:[%s14 + $0x8] sm:$0xff]
  %v4792 = vld [vmem:[%s14 + $0x10] sm:$0xff]
  %v4793 = vld [vmem:[%s14 + $0x18] sm:$0xff]
  %v4794 = vld [vmem:[%s14 + $0x20] sm:$0xff]
  %v4795 = vld [vmem:[%s14 + $0x28] sm:$0xff]
  %v4796 = vld [vmem:[%s14 + $0x30] sm:$0xff]
  %v4797 = vld [vmem:[%s14 + $0x38] sm:$0xff]
  %v4798 = vld [vmem:[%s14 + $0x40] sm:$0xff]
  %v4799 = vld [vmem:[%s14 + $0x48] sm:$0xff]
  %v4800 = vld [vmem:[%s14 + $0x50] sm:$0xff]
  %v4801 = vld [vmem:[%s14 + $0x58] sm:$0xff]
  %v4802 = vld [vmem:[%s14 + $0x60] sm:$0xff]
  %v4803 = vld [vmem:[%s14 + $0x68] sm:$0xff]
  %v4804 = vld [vmem:[%s14 + $0x70] sm:$0xff]
  %v4805 = vld [vmem:[%s14 + $0x78] sm:$0xff]
  %v4806 = vld [vmem:[%s14 + $0x80] sm:$0xff]
  %v4807 = vld [vmem:[%s14 + $0x88] sm:$0xff]
  %v4808 = vld [vmem:[%s14 + $0x90] sm:$0xff]
  %v4809 = vld [vmem:[%s14 + $0x98] sm:$0xff]
  %v4810 = vld [vmem:[%s14 + $0xa0] sm:$0xff]
  %v4811 = vld [vmem:[%s14 + $0xa8] sm:$0xff]
  %v4812 = vld [vmem:[%s14 + $0xb0] sm:$0xff]
  %v4813 = vld [vmem:[%s14 + $0xb8] sm:$0xff]
  %v4814 = vld [vmem:[%s14 + $0xc0] sm:$0xff]
  %v4815 = vld [vmem:[%s14 + $0xc8] sm:$0xff]
  %v4816 = vld [vmem:[%s14 + $0xd0] sm:$0xff]
  %v4817 = vld [vmem:[%s14 + $0xd8] sm:$0xff]
  %v4818 = vld [vmem:[%s14 + $0xe0] sm:$0xff]
  %v4819 = vld [vmem:[%s14 + $0xe8] sm:$0xff]
  %v4820 = vld [vmem:[%s14 + $0xf0] sm:$0xff]
  %v4821 = vld [vmem:[%s14 + $0xf8] sm:$0xff]
  %v4822 = vld [vmem:[%s14 + $0x100] sm:$0xff]
  %v4823 = vld [vmem:[%s14 + $0x108] sm:$0xff]
  %v4824 = vld [vmem:[%s14 + $0x110] sm:$0xff]
  %v4825 = vld [vmem:[%s14 + $0x118] sm:$0xff]
  %v4826 = vld [vmem:[%s14 + $0x120] sm:$0xff]
  %v4827 = vld [vmem:[%s14 + $0x128] sm:$0xff]
  %v4828 = vld [vmem:[%s14 + $0x130] sm:$0xff]
  %v4829 = vld [vmem:[%s14 + $0x138] sm:$0xff]
  %v4830 = vld [vmem:[%s14 + $0x140] sm:$0xff]
  %v4831 = vld [vmem:[%s14 + $0x148] sm:$0xff]
  %v4832 = vld [vmem:[%s14 + $0x150] sm:$0xff]
  %v4833 = vld [vmem:[%s14 + $0x158] sm:$0xff]
  %v4834 = vld [vmem:[%s14 + $0x160] sm:$0xff]
  %v4835 = vld [vmem:[%s14 + $0x168] sm:$0xff]
  %v4836 = vld [vmem:[%s14 + $0x170] sm:$0xff]
  %v4837 = vld [vmem:[%s14 + $0x178] sm:$0xff]
  %v4838 = vld [vmem:[%s14 + $0x180] sm:$0xff]
  %v4839 = vld [vmem:[%s14 + $0x188] sm:$0xff]
  %v4840 = vld [vmem:[%s14 + $0x190] sm:$0xff]
  %v4841 = vld [vmem:[%s14 + $0x198] sm:$0xff]
  %v4842 = vld [vmem:[%s14 + $0x1a0] sm:$0xff]
  %v4843 = vld [vmem:[%s14 + $0x1a8] sm:$0xff]
  %v4844 = vld [vmem:[%s14 + $0x1b0] sm:$0xff]
  %v4845 = vld [vmem:[%s14 + $0x1b8] sm:$0xff]
  %v4846 = vld [vmem:[%s14 + $0x1c0] sm:$0xff]
  %v4847 = vld [vmem:[%s14 + $0x1c8] sm:$0xff]
  %v4848 = vld [vmem:[%s14 + $0x1d0] sm:$0xff]
  %v4849 = vld [vmem:[%s14 + $0x1d8] sm:$0xff]
  %v4850 = vld [vmem:[%s14 + $0x1e0] sm:$0xff]
  %v4851 = vld [vmem:[%s14 + $0x1e8] sm:$0xff]
  %v4852 = vld [vmem:[%s14 + $0x1f0] sm:$0xff]
  %v4853 = vld [vmem:[%s14 + $0x1f8] sm:$0xff]
  %4854 = vmatprep.subr.mxu0 0.0
  %4855 = vmatpush1.msra.mxu0 %v4790
  %4856 = vmatprep.subr.mxu0 0.0
  %4857 = vmatpush1.msra.mxu0 %v4791
  %4858 = vmatprep.subr.mxu0 0.0
  %4859 = vmatpush1.msra.mxu0 %v4792
  %4860 = vmatprep.subr.mxu0 0.0
  %4861 = vmatpush1.msra.mxu0 %v4793
  %4862 = vmatprep.subr.mxu0 0.0
  %4863 = vmatpush1.msra.mxu0 %v4794
  %4864 = vmatprep.subr.mxu0 0.0
  %4865 = vmatpush1.msra.mxu0 %v4795
  %4866 = vmatprep.subr.mxu0 0.0
  %4867 = vmatpush1.msra.mxu0 %v4796
  %4868 = vmatprep.subr.mxu0 0.0
  %4869 = vmatpush1.msra.mxu0 %v4797
  %4870 = vmatprep.subr.mxu0 0.0
  %4871 = vmatpush1.msra.mxu0 %v4798
  %4872 = vmatprep.subr.mxu0 0.0
  %4873 = vmatpush1.msra.mxu0 %v4799
  %4874 = vmatprep.subr.mxu0 0.0
  %4875 = vmatpush1.msra.mxu0 %v4800
  %4876 = vmatprep.subr.mxu0 0.0
  %4877 = vmatpush1.msra.mxu0 %v4801
  %4878 = vmatprep.subr.mxu0 0.0
  %4879 = vmatpush1.msra.mxu0 %v4802
  %4880 = vmatprep.subr.mxu0 0.0
  %4881 = vmatpush1.msra.mxu0 %v4803
  %4882 = vmatprep.subr.mxu0 0.0
  %4883 = vmatpush1.msra.mxu0 %v4804
  %4884 = vmatprep.subr.mxu0 0.0
  %4885 = vmatpush1.msra.mxu0 %v4805
  %4886 = vmatprep.subr.mxu0 0.0
  %4887 = vmatpush1.msra.mxu0 %v4806
  %4888 = vmatprep.subr.mxu0 0.0
  %4889 = vmatpush1.msra.mxu0 %v4807
  %4890 = vmatprep.subr.mxu0 0.0
  %4891 = vmatpush1.msra.mxu0 %v4808
  %4892 = vmatprep.subr.mxu0 0.0
  %4893 = vmatpush1.msra.mxu0 %v4809
  %4894 = vmatprep.subr.mxu0 0.0
  %4895 = vmatpush1.msra.mxu0 %v4810
  %4896 = vmatprep.subr.mxu0 0.0
  %4897 = vmatpush1.msra.mxu0 %v4811
  %4898 = vmatprep.subr.mxu0 0.0
  %4899 = vmatpush1.msra.mxu0 %v4812
  %4900 = vmatprep.subr.mxu0 0.0
  %4901 = vmatpush1.msra.mxu0 %v4813
  %4902 = vmatprep.subr.mxu0 0.0
  %4903 = vmatpush1.msra.mxu0 %v4814
  %4904 = vmatprep.subr.mxu0 0.0
  %4905 = vmatpush1.msra.mxu0 %v4815
  %4906 = vmatprep.subr.mxu0 0.0
  %4907 = vmatpush1.msra.mxu0 %v4816
  %4908 = vmatprep.subr.mxu0 0.0
  %4909 = vmatpush1.msra.mxu0 %v4817
  %4910 = vmatprep.subr.mxu0 0.0
  %4911 = vmatpush1.msra.mxu0 %v4818
  %4912 = vmatprep.subr.mxu0 0.0
  %4913 = vmatpush1.msra.mxu0 %v4819
  %4914 = vmatprep.subr.mxu0 0.0
  %4915 = vmatpush1.msra.mxu0 %v4820
  %4916 = vmatprep.subr.mxu0 0.0
  %4917 = vmatpush1.msra.mxu0 %v4821
  %4918 = vmatprep.mubr.f32.mxu0 %v3903
  %4919 = vmatmul.mubr.f32.gmra.mrb[0].mxu0 %v3900
  %v4920 = vpop.f32.mrb[0].mxu0
  %v4921 = vadd.f32 0.0, %v4920
  %v4922 = vpop.f32.mrb[0].mxu0
  %4923 = vmatprep.mubr.f32.mxu0 %v3913
  %4924 = vmatmul.mubr.f32.gmra.mrb[0].mxu0 %v3911
  %v4925 = vpop.f32.mrb[0].mxu0
  %v4926 = vadd.f32 0.0, %v4925
  %v4927 = vpop.f32.mrb[0].mxu0
  %4928 = vmatprep.mubr.f32.mxu0 %v3923
  %4929 = vmatmul.mubr.f32.gmra.mrb[0].mxu0 %v3920
  %v4930 = vpop.f32.mrb[0].mxu0
  %v4931 = vadd.f32 0.0, %v4930
  %v4932 = vpop.f32.mrb[0].mxu0
  %4933 = vmatprep.mubr.f32.mxu0 %v3933
  %4934 = vmatmul.mubr.f32.gmra.mrb[0].mxu0 %v3931
  %v4935 = vpop.f32.mrb[0].mxu0
  %v4936 = vadd.f32 0.0, %v4935
  %v4937 = vpop.f32.mrb[0].mxu0
  %4938 = vdwg.mxu0
  %4939 = vmatprep.subr.mxu0 0.0
  %4940 = vmatpush1.msra.mxu0 %v4822
  %4941 = vmatprep.subr.mxu0 0.0
  %4942 = vmatpush1.msra.mxu0 %v4823
  %4943 = vmatprep.subr.mxu0 0.0
  %4944 = vmatpush1.msra.mxu0 %v4824
  %4945 = vmatprep.subr.mxu0 0.0
  %4946 = vmatpush1.msra.mxu0 %v4825
  %4947 = vmatprep.subr.mxu0 0.0
  %4948 = vmatpush1.msra.mxu0 %v4826
  %4949 = vmatprep.subr.mxu0 0.0
  %4950 = vmatpush1.msra.mxu0 %v4827
  %4951 = vmatprep.subr.mxu0 0.0
  %4952 = vmatpush1.msra.mxu0 %v4828
  %4953 = vmatprep.subr.mxu0 0.0
  %4954 = vmatpush1.msra.mxu0 %v4829
  %4955 = vmatprep.subr.mxu0 0.0
  %4956 = vmatpush1.msra.mxu0 %v4830
  %4957 = vmatprep.subr.mxu0 0.0
  %4958 = vmatpush1.msra.mxu0 %v4831
  %4959 = vmatprep.subr.mxu0 0.0
  %4960 = vmatpush1.msra.mxu0 %v4832
  %4961 = vmatprep.subr.mxu0 0.0
  %4962 = vmatpush1.msra.mxu0 %v4833
  %4963 = vmatprep.subr.mxu0 0.0
  %4964 = vmatpush1.msra.mxu0 %v4834
  %4965 = vmatprep.subr.mxu0 0.0
  %4966 = vmatpush1.msra.mxu0 %v4835
  %4967 = vmatprep.subr.mxu0 0.0
  %4968 = vmatpush1.msra.mxu0 %v4836
  %4969 = vmatprep.subr.mxu0 0.0
  %4970 = vmatpush1.msra.mxu0 %v4837
  %4971 = vmatprep.subr.mxu0 0.0
  %4972 = vmatpush1.msra.mxu0 %v4838
  %4973 = vmatprep.subr.mxu0 0.0
  %4974 = vmatpush1.msra.mxu0 %v4839
  %4975 = vmatprep.subr.mxu0 0.0
  %4976 = vmatpush1.msra.mxu0 %v4840
  %4977 = vmatprep.subr.mxu0 0.0
  %4978 = vmatpush1.msra.mxu0 %v4841
  %4979 = vmatprep.subr.mxu0 0.0
  %4980 = vmatpush1.msra.mxu0 %v4842
  %4981 = vmatprep.subr.mxu0 0.0
  %4982 = vmatpush1.msra.mxu0 %v4843
  %4983 = vmatprep.subr.mxu0 0.0
  %4984 = vmatpush1.msra.mxu0 %v4844
  %4985 = vmatprep.subr.mxu0 0.0
  %4986 = vmatpush1.msra.mxu0 %v4845
  %4987 = vmatprep.subr.mxu0 0.0
  %4988 = vmatpush1.msra.mxu0 %v4846
  %4989 = vmatprep.subr.mxu0 0.0
  %4990 = vmatpush1.msra.mxu0 %v4847
  %4991 = vmatprep.subr.mxu0 0.0
  %4992 = vmatpush1.msra.mxu0 %v4848
  %4993 = vmatprep.subr.mxu0 0.0
  %4994 = vmatpush1.msra.mxu0 %v4849
  %4995 = vmatprep.subr.mxu0 0.0
  %4996 = vmatpush1.msra.mxu0 %v4850
  %4997 = vmatprep.subr.mxu0 0.0
  %4998 = vmatpush1.msra.mxu0 %v4851
  %4999 = vmatprep.subr.mxu0 0.0
  %5000 = vmatpush1.msra.mxu0 %v4852
  %5001 = vmatprep.subr.mxu0 0.0
  %5002 = vmatpush1.msra.mxu0 %v4853
  %5003 = vmatprep.mubr.f32.mxu0 %v3909
  %5004 = vmatmul.mubr.f32.gmra.mrb[0].mxu0 %v3906
  %v5005 = vpop.f32.mrb[0].mxu0
  %v5006 = vadd.f32 %v4921, %v5005
  %v5007 = vpop.f32.mrb[0].mxu0
  %5008 = vmatprep.mubr.f32.mxu0 %v3917
  %5009 = vmatmul.mubr.f32.gmra.mrb[0].mxu0 %v3915
  %v5010 = vpop.f32.mrb[0].mxu0
  %v5011 = vadd.f32 %v4926, %v5010
  %v5012 = vpop.f32.mrb[0].mxu0
  %5013 = vmatprep.mubr.f32.mxu0 %v3929
  %5014 = vmatmul.mubr.f32.gmra.mrb[0].mxu0 %v3926
  %v5015 = vpop.f32.mrb[0].mxu0
  %v5016 = vadd.f32 %v4931, %v5015
  %v5017 = vpop.f32.mrb[0].mxu0
  %5018 = vmatprep.mubr.f32.mxu0 %v3937
  %5019 = vmatmul.mubr.f32.gmra.mrb[0].mxu0 %v3935
  %v5020 = vpop.f32.mrb[0].mxu0
  %v5021 = vadd.f32 %v4936, %v5020
  %v5022 = vpop.f32.mrb[0].mxu0
  %5023 = vdwg.mxu0
  %v5025 = vlaneseq
  %v5026 = vshrl.u32 %v5025, 7
  %v5027 = vsub.s32 0, %v5026
  %v5028 = vrot.slane %v4789, %v5027
  %v5030 = vadd.f32 %v5028, %v5006
  %v5031 = vadd.f32 %v5028, %v5011
  %v5032 = vadd.f32 %v5028, %v5016
  %v5033 = vadd.f32 %v5028, %v5021
  %s5034 = scalar_lea.vmem %s14, 512
  %v5035 = vld [vmem:[%s5034] sm:$0xff]
  %v5036 = vld [vmem:[%s5034 + $0x8] sm:$0xff]
  %v5037 = vld [vmem:[%s5034 + $0x10] sm:$0xff]
  %v5038 = vld [vmem:[%s5034 + $0x18] sm:$0xff]
  %v5039 = vld [vmem:[%s5034 + $0x20] sm:$0xff]
  %v5040 = vld [vmem:[%s5034 + $0x28] sm:$0xff]
  %v5041 = vld [vmem:[%s5034 + $0x30] sm:$0xff]
  %v5042 = vld [vmem:[%s5034 + $0x38] sm:$0xff]
  %v5043 = vld [vmem:[%s5034 + $0x40] sm:$0xff]
  %v5044 = vld [vmem:[%s5034 + $0x48] sm:$0xff]
  %v5045 = vld [vmem:[%s5034 + $0x50] sm:$0xff]
  %v5046 = vld [vmem:[%s5034 + $0x58] sm:$0xff]
  %v5047 = vld [vmem:[%s5034 + $0x60] sm:$0xff]
  %v5048 = vld [vmem:[%s5034 + $0x68] sm:$0xff]
  %v5049 = vld [vmem:[%s5034 + $0x70] sm:$0xff]
  %v5050 = vld [vmem:[%s5034 + $0x78] sm:$0xff]
  %v5051 = vld [vmem:[%s5034 + $0x80] sm:$0xff]
  %v5052 = vld [vmem:[%s5034 + $0x88] sm:$0xff]
  %v5053 = vld [vmem:[%s5034 + $0x90] sm:$0xff]
  %v5054 = vld [vmem:[%s5034 + $0x98] sm:$0xff]
  %v5055 = vld [vmem:[%s5034 + $0xa0] sm:$0xff]
  %v5056 = vld [vmem:[%s5034 + $0xa8] sm:$0xff]
  %v5057 = vld [vmem:[%s5034 + $0xb0] sm:$0xff]
  %v5058 = vld [vmem:[%s5034 + $0xb8] sm:$0xff]
  %v5059 = vld [vmem:[%s5034 + $0xc0] sm:$0xff]
  %v5060 = vld [vmem:[%s5034 + $0xc8] sm:$0xff]
  %v5061 = vld [vmem:[%s5034 + $0xd0] sm:$0xff]
  %v5062 = vld [vmem:[%s5034 + $0xd8] sm:$0xff]
  %v5063 = vld [vmem:[%s5034 + $0xe0] sm:$0xff]
  %v5064 = vld [vmem:[%s5034 + $0xe8] sm:$0xff]
  %v5065 = vld [vmem:[%s5034 + $0xf0] sm:$0xff]
  %v5066 = vld [vmem:[%s5034 + $0xf8] sm:$0xff]
  %v5067 = vld [vmem:[%s5034 + $0x100] sm:$0xff]
  %v5068 = vld [vmem:[%s5034 + $0x108] sm:$0xff]
  %v5069 = vld [vmem:[%s5034 + $0x110] sm:$0xff]
  %v5070 = vld [vmem:[%s5034 + $0x118] sm:$0xff]
  %v5071 = vld [vmem:[%s5034 + $0x120] sm:$0xff]
  %v5072 = vld [vmem:[%s5034 + $0x128] sm:$0xff]
  %v5073 = vld [vmem:[%s5034 + $0x130] sm:$0xff]
  %v5074 = vld [vmem:[%s5034 + $0x138] sm:$0xff]
  %v5075 = vld [vmem:[%s5034 + $0x140] sm:$0xff]
  %v5076 = vld [vmem:[%s5034 + $0x148] sm:$0xff]
  %v5077 = vld [vmem:[%s5034 + $0x150] sm:$0xff]
  %v5078 = vld [vmem:[%s5034 + $0x158] sm:$0xff]
  %v5079 = vld [vmem:[%s5034 + $0x160] sm:$0xff]
  %v5080 = vld [vmem:[%s5034 + $0x168] sm:$0xff]
  %v5081 = vld [vmem:[%s5034 + $0x170] sm:$0xff]
  %v5082 = vld [vmem:[%s5034 + $0x178] sm:$0xff]
  %v5083 = vld [vmem:[%s5034 + $0x180] sm:$0xff]
  %v5084 = vld [vmem:[%s5034 + $0x188] sm:$0xff]
  %v5085 = vld [vmem:[%s5034 + $0x190] sm:$0xff]
  %v5086 = vld [vmem:[%s5034 + $0x198] sm:$0xff]
  %v5087 = vld [vmem:[%s5034 + $0x1a0] sm:$0xff]
  %v5088 = vld [vmem:[%s5034 + $0x1a8] sm:$0xff]
  %v5089 = vld [vmem:[%s5034 + $0x1b0] sm:$0xff]
  %v5090 = vld [vmem:[%s5034 + $0x1b8] sm:$0xff]
  %v5091 = vld [vmem:[%s5034 + $0x1c0] sm:$0xff]
  %v5092 = vld [vmem:[%s5034 + $0x1c8] sm:$0xff]
  %v5093 = vld [vmem:[%s5034 + $0x1d0] sm:$0xff]
  %v5094 = vld [vmem:[%s5034 + $0x1d8] sm:$0xff]
  %v5095 = vld [vmem:[%s5034 + $0x1e0] sm:$0xff]
  %v5096 = vld [vmem:[%s5034 + $0x1e8] sm:$0xff]
  %v5097 = vld [vmem:[%s5034 + $0x1f0] sm:$0xff]
  %v5098 = vld [vmem:[%s5034 + $0x1f8] sm:$0xff]
  %5099 = vmatprep.subr.mxu0 0.0
  %5100 = vmatpush1.msra.mxu0 %v5035
  %5101 = vmatprep.subr.mxu0 0.0
  %5102 = vmatpush1.msra.mxu0 %v5036
  %5103 = vmatprep.subr.mxu0 0.0
  %5104 = vmatpush1.msra.mxu0 %v5037
  %5105 = vmatprep.subr.mxu0 0.0
  %5106 = vmatpush1.msra.mxu0 %v5038
  %5107 = vmatprep.subr.mxu0 0.0
  %5108 = vmatpush1.msra.mxu0 %v5039
  %5109 = vmatprep.subr.mxu0 0.0
  %5110 = vmatpush1.msra.mxu0 %v5040
  %5111 = vmatprep.subr.mxu0 0.0
  %5112 = vmatpush1.msra.mxu0 %v5041
  %5113 = vmatprep.subr.mxu0 0.0
  %5114 = vmatpush1.msra.mxu0 %v5042
  %5115 = vmatprep.subr.mxu0 0.0
  %5116 = vmatpush1.msra.mxu0 %v5043
  %5117 = vmatprep.subr.mxu0 0.0
  %5118 = vmatpush1.msra.mxu0 %v5044
  %5119 = vmatprep.subr.mxu0 0.0
  %5120 = vmatpush1.msra.mxu0 %v5045
  %5121 = vmatprep.subr.mxu0 0.0
  %5122 = vmatpush1.msra.mxu0 %v5046
  %5123 = vmatprep.subr.mxu0 0.0
  %5124 = vmatpush1.msra.mxu0 %v5047
  %5125 = vmatprep.subr.mxu0 0.0
  %5126 = vmatpush1.msra.mxu0 %v5048
  %5127 = vmatprep.subr.mxu0 0.0
  %5128 = vmatpush1.msra.mxu0 %v5049
  %5129 = vmatprep.subr.mxu0 0.0
  %5130 = vmatpush1.msra.mxu0 %v5050
  %5131 = vmatprep.subr.mxu0 0.0
  %5132 = vmatpush1.msra.mxu0 %v5051
  %5133 = vmatprep.subr.mxu0 0.0
  %5134 = vmatpush1.msra.mxu0 %v5052
  %5135 = vmatprep.subr.mxu0 0.0
  %5136 = vmatpush1.msra.mxu0 %v5053
  %5137 = vmatprep.subr.mxu0 0.0
  %5138 = vmatpush1.msra.mxu0 %v5054
  %5139 = vmatprep.subr.mxu0 0.0
  %5140 = vmatpush1.msra.mxu0 %v5055
  %5141 = vmatprep.subr.mxu0 0.0
  %5142 = vmatpush1.msra.mxu0 %v5056
  %5143 = vmatprep.subr.mxu0 0.0
  %5144 = vmatpush1.msra.mxu0 %v5057
  %5145 = vmatprep.subr.mxu0 0.0
  %5146 = vmatpush1.msra.mxu0 %v5058
  %5147 = vmatprep.subr.mxu0 0.0
  %5148 = vmatpush1.msra.mxu0 %v5059
  %5149 = vmatprep.subr.mxu0 0.0
  %5150 = vmatpush1.msra.mxu0 %v5060
  %5151 = vmatprep.subr.mxu0 0.0
  %5152 = vmatpush1.msra.mxu0 %v5061
  %5153 = vmatprep.subr.mxu0 0.0
  %5154 = vmatpush1.msra.mxu0 %v5062
  %5155 = vmatprep.subr.mxu0 0.0
  %5156 = vmatpush1.msra.mxu0 %v5063
  %5157 = vmatprep.subr.mxu0 0.0
  %5158 = vmatpush1.msra.mxu0 %v5064
  %5159 = vmatprep.subr.mxu0 0.0
  %5160 = vmatpush1.msra.mxu0 %v5065
  %5161 = vmatprep.subr.mxu0 0.0
  %5162 = vmatpush1.msra.mxu0 %v5066
  %5163 = vmatprep.mubr.f32.mxu0 %v3854
  %5164 = vmatmul.mubr.f32.gmra.mrb[0].mxu0 %v3853
  %v5165 = vpop.f32.mrb[0].mxu0
  %v5166 = vadd.f32 0.0, %v5165
  %v5167 = vpop.f32.mrb[0].mxu0
  %5168 = vmatprep.mubr.f32.mxu0 %v4199
  %5169 = vmatmul.mubr.f32.gmra.mrb[0].mxu0 %v4198
  %v5170 = vpop.f32.mrb[0].mxu0
  %v5171 = vadd.f32 0.0, %v5170
  %v5172 = vpop.f32.mrb[0].mxu0
  %5173 = vmatprep.mubr.f32.mxu0 %v3866
  %5174 = vmatmul.mubr.f32.gmra.mrb[0].mxu0 %v3865
  %v5175 = vpop.f32.mrb[0].mxu0
  %v5176 = vadd.f32 0.0, %v5175
  %v5177 = vpop.f32.mrb[0].mxu0
  %5178 = vmatprep.mubr.f32.mxu0 %v4203
  %5179 = vmatmul.mubr.f32.gmra.mrb[0].mxu0 %v4202
  %v5180 = vpop.f32.mrb[0].mxu0
  %v5181 = vadd.f32 0.0, %v5180
  %v5182 = vpop.f32.mrb[0].mxu0
  %5183 = vdwg.mxu0
  %5184 = vmatprep.subr.mxu0 0.0
  %5185 = vmatpush1.msra.mxu0 %v5067
  %5186 = vmatprep.subr.mxu0 0.0
  %5187 = vmatpush1.msra.mxu0 %v5068
  %5188 = vmatprep.subr.mxu0 0.0
  %5189 = vmatpush1.msra.mxu0 %v5069
  %5190 = vmatprep.subr.mxu0 0.0
  %5191 = vmatpush1.msra.mxu0 %v5070
  %5192 = vmatprep.subr.mxu0 0.0
  %5193 = vmatpush1.msra.mxu0 %v5071
  %5194 = vmatprep.subr.mxu0 0.0
  %5195 = vmatpush1.msra.mxu0 %v5072
  %5196 = vmatprep.subr.mxu0 0.0
  %5197 = vmatpush1.msra.mxu0 %v5073
  %5198 = vmatprep.subr.mxu0 0.0
  %5199 = vmatpush1.msra.mxu0 %v5074
  %5200 = vmatprep.subr.mxu0 0.0
  %5201 = vmatpush1.msra.mxu0 %v5075
  %5202 = vmatprep.subr.mxu0 0.0
  %5203 = vmatpush1.msra.mxu0 %v5076
  %5204 = vmatprep.subr.mxu0 0.0
  %5205 = vmatpush1.msra.mxu0 %v5077
  %5206 = vmatprep.subr.mxu0 0.0
  %5207 = vmatpush1.msra.mxu0 %v5078
  %5208 = vmatprep.subr.mxu0 0.0
  %5209 = vmatpush1.msra.mxu0 %v5079
  %5210 = vmatprep.subr.mxu0 0.0
  %5211 = vmatpush1.msra.mxu0 %v5080
  %5212 = vmatprep.subr.mxu0 0.0
  %5213 = vmatpush1.msra.mxu0 %v5081
  %5214 = vmatprep.subr.mxu0 0.0
  %5215 = vmatpush1.msra.mxu0 %v5082
  %5216 = vmatprep.subr.mxu0 0.0
  %5217 = vmatpush1.msra.mxu0 %v5083
  %5218 = vmatprep.subr.mxu0 0.0
  %5219 = vmatpush1.msra.mxu0 %v5084
  %5220 = vmatprep.subr.mxu0 0.0
  %5221 = vmatpush1.msra.mxu0 %v5085
  %5222 = vmatprep.subr.mxu0 0.0
  %5223 = vmatpush1.msra.mxu0 %v5086
  %5224 = vmatprep.subr.mxu0 0.0
  %5225 = vmatpush1.msra.mxu0 %v5087
  %5226 = vmatprep.subr.mxu0 0.0
  %5227 = vmatpush1.msra.mxu0 %v5088
  %5228 = vmatprep.subr.mxu0 0.0
  %5229 = vmatpush1.msra.mxu0 %v5089
  %5230 = vmatprep.subr.mxu0 0.0
  %5231 = vmatpush1.msra.mxu0 %v5090
  %5232 = vmatprep.subr.mxu0 0.0
  %5233 = vmatpush1.msra.mxu0 %v5091
  %5234 = vmatprep.subr.mxu0 0.0
  %5235 = vmatpush1.msra.mxu0 %v5092
  %5236 = vmatprep.subr.mxu0 0.0
  %5237 = vmatpush1.msra.mxu0 %v5093
  %5238 = vmatprep.subr.mxu0 0.0
  %5239 = vmatpush1.msra.mxu0 %v5094
  %5240 = vmatprep.subr.mxu0 0.0
  %5241 = vmatpush1.msra.mxu0 %v5095
  %5242 = vmatprep.subr.mxu0 0.0
  %5243 = vmatpush1.msra.mxu0 %v5096
  %5244 = vmatprep.subr.mxu0 0.0
  %5245 = vmatpush1.msra.mxu0 %v5097
  %5246 = vmatprep.subr.mxu0 0.0
  %5247 = vmatpush1.msra.mxu0 %v5098
  %5248 = vmatprep.mubr.f32.mxu0 %v3856
  %5249 = vmatmul.mubr.f32.gmra.mrb[0].mxu0 %v3855
  %v5250 = vpop.f32.mrb[0].mxu0
  %v5251 = vadd.f32 %v5166, %v5250
  %v5252 = vpop.f32.mrb[0].mxu0
  %5253 = vmatprep.mubr.f32.mxu0 %v4201
  %5254 = vmatmul.mubr.f32.gmra.mrb[0].mxu0 %v4200
  %v5255 = vpop.f32.mrb[0].mxu0
  %v5256 = vadd.f32 %v5171, %v5255
  %v5257 = vpop.f32.mrb[0].mxu0
  %5258 = vmatprep.mubr.f32.mxu0 %v3868
  %5259 = vmatmul.mubr.f32.gmra.mrb[0].mxu0 %v3867
  %v5260 = vpop.f32.mrb[0].mxu0
  %v5261 = vadd.f32 %v5176, %v5260
  %v5262 = vpop.f32.mrb[0].mxu0
  %5263 = vmatprep.mubr.f32.mxu0 %v4205
  %5264 = vmatmul.mubr.f32.gmra.mrb[0].mxu0 %v4204
  %v5265 = vpop.f32.mrb[0].mxu0
  %v5266 = vadd.f32 %v5181, %v5265
  %v5267 = vpop.f32.mrb[0].mxu0
  %5268 = vdwg.mxu0
  %v5269 = vadd.f32 %v5030, %v5251
  %v5270 = vadd.f32 %v5031, %v5256
  %v5271 = vadd.f32 %v5032, %v5261
  %v5272 = vadd.f32 %v5033, %v5266
  %s5273 = scalar_lea.vmem %s14, 1024
  %v5274 = vld [vmem:[%s5273] sm:$0xff]
  %v5275 = vld [vmem:[%s5273 + $0x8] sm:$0xff]
  %v5276 = vld [vmem:[%s5273 + $0x10] sm:$0xff]
  %v5277 = vld [vmem:[%s5273 + $0x18] sm:$0xff]
  %v5278 = vld [vmem:[%s5273 + $0x20] sm:$0xff]
  %v5279 = vld [vmem:[%s5273 + $0x28] sm:$0xff]
  %v5280 = vld [vmem:[%s5273 + $0x30] sm:$0xff]
  %v5281 = vld [vmem:[%s5273 + $0x38] sm:$0xff]
  %v5282 = vld [vmem:[%s5273 + $0x40] sm:$0xff]
  %v5283 = vld [vmem:[%s5273 + $0x48] sm:$0xff]
  %v5284 = vld [vmem:[%s5273 + $0x50] sm:$0xff]
  %v5285 = vld [vmem:[%s5273 + $0x58] sm:$0xff]
  %v5286 = vld [vmem:[%s5273 + $0x60] sm:$0xff]
  %v5287 = vld [vmem:[%s5273 + $0x68] sm:$0xff]
  %v5288 = vld [vmem:[%s5273 + $0x70] sm:$0xff]
  %v5289 = vld [vmem:[%s5273 + $0x78] sm:$0xff]
  %v5290 = vld [vmem:[%s5273 + $0x80] sm:$0xff]
  %v5291 = vld [vmem:[%s5273 + $0x88] sm:$0xff]
  %v5292 = vld [vmem:[%s5273 + $0x90] sm:$0xff]
  %v5293 = vld [vmem:[%s5273 + $0x98] sm:$0xff]
  %v5294 = vld [vmem:[%s5273 + $0xa0] sm:$0xff]
  %v5295 = vld [vmem:[%s5273 + $0xa8] sm:$0xff]
  %v5296 = vld [vmem:[%s5273 + $0xb0] sm:$0xff]
  %v5297 = vld [vmem:[%s5273 + $0xb8] sm:$0xff]
  %v5298 = vld [vmem:[%s5273 + $0xc0] sm:$0xff]
  %v5299 = vld [vmem:[%s5273 + $0xc8] sm:$0xff]
  %v5300 = vld [vmem:[%s5273 + $0xd0] sm:$0xff]
  %v5301 = vld [vmem:[%s5273 + $0xd8] sm:$0xff]
  %v5302 = vld [vmem:[%s5273 + $0xe0] sm:$0xff]
  %v5303 = vld [vmem:[%s5273 + $0xe8] sm:$0xff]
  %v5304 = vld [vmem:[%s5273 + $0xf0] sm:$0xff]
  %v5305 = vld [vmem:[%s5273 + $0xf8] sm:$0xff]
  %v5306 = vld [vmem:[%s5273 + $0x100] sm:$0xff]
  %v5307 = vld [vmem:[%s5273 + $0x108] sm:$0xff]
  %v5308 = vld [vmem:[%s5273 + $0x110] sm:$0xff]
  %v5309 = vld [vmem:[%s5273 + $0x118] sm:$0xff]
  %v5310 = vld [vmem:[%s5273 + $0x120] sm:$0xff]
  %v5311 = vld [vmem:[%s5273 + $0x128] sm:$0xff]
  %v5312 = vld [vmem:[%s5273 + $0x130] sm:$0xff]
  %v5313 = vld [vmem:[%s5273 + $0x138] sm:$0xff]
  %v5314 = vld [vmem:[%s5273 + $0x140] sm:$0xff]
  %v5315 = vld [vmem:[%s5273 + $0x148] sm:$0xff]
  %v5316 = vld [vmem:[%s5273 + $0x150] sm:$0xff]
  %v5317 = vld [vmem:[%s5273 + $0x158] sm:$0xff]
  %v5318 = vld [vmem:[%s5273 + $0x160] sm:$0xff]
  %v5319 = vld [vmem:[%s5273 + $0x168] sm:$0xff]
  %v5320 = vld [vmem:[%s5273 + $0x170] sm:$0xff]
  %v5321 = vld [vmem:[%s5273 + $0x178] sm:$0xff]
  %v5322 = vld [vmem:[%s5273 + $0x180] sm:$0xff]
  %v5323 = vld [vmem:[%s5273 + $0x188] sm:$0xff]
  %v5324 = vld [vmem:[%s5273 + $0x190] sm:$0xff]
  %v5325 = vld [vmem:[%s5273 + $0x198] sm:$0xff]
  %v5326 = vld [vmem:[%s5273 + $0x1a0] sm:$0xff]
  %v5327 = vld [vmem:[%s5273 + $0x1a8] sm:$0xff]
  %v5328 = vld [vmem:[%s5273 + $0x1b0] sm:$0xff]
  %v5329 = vld [vmem:[%s5273 + $0x1b8] sm:$0xff]
  %v5330 = vld [vmem:[%s5273 + $0x1c0] sm:$0xff]
  %v5331 = vld [vmem:[%s5273 + $0x1c8] sm:$0xff]
  %v5332 = vld [vmem:[%s5273 + $0x1d0] sm:$0xff]
  %v5333 = vld [vmem:[%s5273 + $0x1d8] sm:$0xff]
  %v5334 = vld [vmem:[%s5273 + $0x1e0] sm:$0xff]
  %v5335 = vld [vmem:[%s5273 + $0x1e8] sm:$0xff]
  %v5336 = vld [vmem:[%s5273 + $0x1f0] sm:$0xff]
  %v5337 = vld [vmem:[%s5273 + $0x1f8] sm:$0xff]
  %5338 = vmatprep.subr.mxu0 0.0
  %5339 = vmatpush1.msra.mxu0 %v5274
  %5340 = vmatprep.subr.mxu0 0.0
  %5341 = vmatpush1.msra.mxu0 %v5275
  %5342 = vmatprep.subr.mxu0 0.0
  %5343 = vmatpush1.msra.mxu0 %v5276
  %5344 = vmatprep.subr.mxu0 0.0
  %5345 = vmatpush1.msra.mxu0 %v5277
  %5346 = vmatprep.subr.mxu0 0.0
  %5347 = vmatpush1.msra.mxu0 %v5278
  %5348 = vmatprep.subr.mxu0 0.0
  %5349 = vmatpush1.msra.mxu0 %v5279
  %5350 = vmatprep.subr.mxu0 0.0
  %5351 = vmatpush1.msra.mxu0 %v5280
  %5352 = vmatprep.subr.mxu0 0.0
  %5353 = vmatpush1.msra.mxu0 %v5281
  %5354 = vmatprep.subr.mxu0 0.0
  %5355 = vmatpush1.msra.mxu0 %v5282
  %5356 = vmatprep.subr.mxu0 0.0
  %5357 = vmatpush1.msra.mxu0 %v5283
  %5358 = vmatprep.subr.mxu0 0.0
  %5359 = vmatpush1.msra.mxu0 %v5284
  %5360 = vmatprep.subr.mxu0 0.0
  %5361 = vmatpush1.msra.mxu0 %v5285
  %5362 = vmatprep.subr.mxu0 0.0
  %5363 = vmatpush1.msra.mxu0 %v5286
  %5364 = vmatprep.subr.mxu0 0.0
  %5365 = vmatpush1.msra.mxu0 %v5287
  %5366 = vmatprep.subr.mxu0 0.0
  %5367 = vmatpush1.msra.mxu0 %v5288
  %5368 = vmatprep.subr.mxu0 0.0
  %5369 = vmatpush1.msra.mxu0 %v5289
  %5370 = vmatprep.subr.mxu0 0.0
  %5371 = vmatpush1.msra.mxu0 %v5290
  %5372 = vmatprep.subr.mxu0 0.0
  %5373 = vmatpush1.msra.mxu0 %v5291
  %5374 = vmatprep.subr.mxu0 0.0
  %5375 = vmatpush1.msra.mxu0 %v5292
  %5376 = vmatprep.subr.mxu0 0.0
  %5377 = vmatpush1.msra.mxu0 %v5293
  %5378 = vmatprep.subr.mxu0 0.0
  %5379 = vmatpush1.msra.mxu0 %v5294
  %5380 = vmatprep.subr.mxu0 0.0
  %5381 = vmatpush1.msra.mxu0 %v5295
  %5382 = vmatprep.subr.mxu0 0.0
  %5383 = vmatpush1.msra.mxu0 %v5296
  %5384 = vmatprep.subr.mxu0 0.0
  %5385 = vmatpush1.msra.mxu0 %v5297
  %5386 = vmatprep.subr.mxu0 0.0
  %5387 = vmatpush1.msra.mxu0 %v5298
  %5388 = vmatprep.subr.mxu0 0.0
  %5389 = vmatpush1.msra.mxu0 %v5299
  %5390 = vmatprep.subr.mxu0 0.0
  %5391 = vmatpush1.msra.mxu0 %v5300
  %5392 = vmatprep.subr.mxu0 0.0
  %5393 = vmatpush1.msra.mxu0 %v5301
  %5394 = vmatprep.subr.mxu0 0.0
  %5395 = vmatpush1.msra.mxu0 %v5302
  %5396 = vmatprep.subr.mxu0 0.0
  %5397 = vmatpush1.msra.mxu0 %v5303
  %5398 = vmatprep.subr.mxu0 0.0
  %5399 = vmatpush1.msra.mxu0 %v5304
  %5400 = vmatprep.subr.mxu0 0.0
  %5401 = vmatpush1.msra.mxu0 %v5305
  %5402 = vmatprep.mubr.f32.mxu0 %v4499
  %5403 = vmatmul.mubr.f32.gmra.mrb[0].mxu0 %v4496
  %v5404 = vpop.f32.mrb[0].mxu0
  %v5405 = vadd.f32 0.0, %v5404
  %v5406 = vpop.f32.mrb[0].mxu0
  %5407 = vmatprep.mubr.f32.mxu0 %v4509
  %5408 = vmatmul.mubr.f32.gmra.mrb[0].mxu0 %v4507
  %v5409 = vpop.f32.mrb[0].mxu0
  %v5410 = vadd.f32 0.0, %v5409
  %v5411 = vpop.f32.mrb[0].mxu0
  %5412 = vmatprep.mubr.f32.mxu0 %v4519
  %5413 = vmatmul.mubr.f32.gmra.mrb[0].mxu0 %v4516
  %v5414 = vpop.f32.mrb[0].mxu0
  %v5415 = vadd.f32 0.0, %v5414
  %v5416 = vpop.f32.mrb[0].mxu0
  %5417 = vmatprep.mubr.f32.mxu0 %v4529
  %5418 = vmatmul.mubr.f32.gmra.mrb[0].mxu0 %v4527
  %v5419 = vpop.f32.mrb[0].mxu0
  %v5420 = vadd.f32 0.0, %v5419
  %v5421 = vpop.f32.mrb[0].mxu0
  %5422 = vdwg.mxu0
  %5423 = vmatprep.subr.mxu0 0.0
  %5424 = vmatpush1.msra.mxu0 %v5306
  %5425 = vmatprep.subr.mxu0 0.0
  %5426 = vmatpush1.msra.mxu0 %v5307
  %5427 = vmatprep.subr.mxu0 0.0
  %5428 = vmatpush1.msra.mxu0 %v5308
  %5429 = vmatprep.subr.mxu0 0.0
  %5430 = vmatpush1.msra.mxu0 %v5309
  %5431 = vmatprep.subr.mxu0 0.0
  %5432 = vmatpush1.msra.mxu0 %v5310
  %5433 = vmatprep.subr.mxu0 0.0
  %5434 = vmatpush1.msra.mxu0 %v5311
  %5435 = vmatprep.subr.mxu0 0.0
  %5436 = vmatpush1.msra.mxu0 %v5312
  %5437 = vmatprep.subr.mxu0 0.0
  %5438 = vmatpush1.msra.mxu0 %v5313
  %5439 = vmatprep.subr.mxu0 0.0
  %5440 = vmatpush1.msra.mxu0 %v5314
  %5441 = vmatprep.subr.mxu0 0.0
  %5442 = vmatpush1.msra.mxu0 %v5315
  %5443 = vmatprep.subr.mxu0 0.0
  %5444 = vmatpush1.msra.mxu0 %v5316
  %5445 = vmatprep.subr.mxu0 0.0
  %5446 = vmatpush1.msra.mxu0 %v5317
  %5447 = vmatprep.subr.mxu0 0.0
  %5448 = vmatpush1.msra.mxu0 %v5318
  %5449 = vmatprep.subr.mxu0 0.0
  %5450 = vmatpush1.msra.mxu0 %v5319
  %5451 = vmatprep.subr.mxu0 0.0
  %5452 = vmatpush1.msra.mxu0 %v5320
  %5453 = vmatprep.subr.mxu0 0.0
  %5454 = vmatpush1.msra.mxu0 %v5321
  %5455 = vmatprep.subr.mxu0 0.0
  %5456 = vmatpush1.msra.mxu0 %v5322
  %5457 = vmatprep.subr.mxu0 0.0
  %5458 = vmatpush1.msra.mxu0 %v5323
  %5459 = vmatprep.subr.mxu0 0.0
  %5460 = vmatpush1.msra.mxu0 %v5324
  %5461 = vmatprep.subr.mxu0 0.0
  %5462 = vmatpush1.msra.mxu0 %v5325
  %5463 = vmatprep.subr.mxu0 0.0
  %5464 = vmatpush1.msra.mxu0 %v5326
  %5465 = vmatprep.subr.mxu0 0.0
  %5466 = vmatpush1.msra.mxu0 %v5327
  %5467 = vmatprep.subr.mxu0 0.0
  %5468 = vmatpush1.msra.mxu0 %v5328
  %5469 = vmatprep.subr.mxu0 0.0
  %5470 = vmatpush1.msra.mxu0 %v5329
  %5471 = vmatprep.subr.mxu0 0.0
  %5472 = vmatpush1.msra.mxu0 %v5330
  %5473 = vmatprep.subr.mxu0 0.0
  %5474 = vmatpush1.msra.mxu0 %v5331
  %5475 = vmatprep.subr.mxu0 0.0
  %5476 = vmatpush1.msra.mxu0 %v5332
  %5477 = vmatprep.subr.mxu0 0.0
  %5478 = vmatpush1.msra.mxu0 %v5333
  %5479 = vmatprep.subr.mxu0 0.0
  %5480 = vmatpush1.msra.mxu0 %v5334
  %5481 = vmatprep.subr.mxu0 0.0
  %5482 = vmatpush1.msra.mxu0 %v5335
  %5483 = vmatprep.subr.mxu0 0.0
  %5484 = vmatpush1.msra.mxu0 %v5336
  %5485 = vmatprep.subr.mxu0 0.0
  %5486 = vmatpush1.msra.mxu0 %v5337
  %5487 = vmatprep.mubr.f32.mxu0 %v4505
  %5488 = vmatmul.mubr.f32.gmra.mrb[0].mxu0 %v4502
  %v5489 = vpop.f32.mrb[0].mxu0
  %v5490 = vadd.f32 %v5405, %v5489
  %v5491 = vpop.f32.mrb[0].mxu0
  %5492 = vmatprep.mubr.f32.mxu0 %v4513
  %5493 = vmatmul.mubr.f32.gmra.mrb[0].mxu0 %v4511
  %v5494 = vpop.f32.mrb[0].mxu0
  %v5495 = vadd.f32 %v5410, %v5494
  %v5496 = vpop.f32.mrb[0].mxu0
  %5497 = vmatprep.mubr.f32.mxu0 %v4525
  %5498 = vmatmul.mubr.f32.gmra.mrb[0].mxu0 %v4522
  %v5499 = vpop.f32.mrb[0].mxu0
  %v5500 = vadd.f32 %v5415, %v5499
  %v5501 = vpop.f32.mrb[0].mxu0
  %5502 = vmatprep.mubr.f32.mxu0 %v4533
  %5503 = vmatmul.mubr.f32.gmra.mrb[0].mxu0 %v4531
  %v5504 = vpop.f32.mrb[0].mxu0
  %v5505 = vadd.f32 %v5420, %v5504
  %v5506 = vpop.f32.mrb[0].mxu0
  %5507 = vdwg.mxu0
  %v5508 = vadd.f32 %v5269, %v5490
  %v5509 = vadd.f32 %v5270, %v5495
  %v5510 = vadd.f32 %v5271, %v5500
  %v5511 = vadd.f32 %v5272, %v5505
  %v5512 = vld [vmem:[%s17] sm:$0x1]
  %v5513 = vtanh.pop %v4785
  %v5514 = vtanh.pop %v4786
  %v5515 = vtanh.pop %v4787
  %v5516 = vtanh.pop %v4788
  %v5518 = vlaneseq
  %v5519 = vshrl.u32 %v5518, 7
  %v5520 = vsub.s32 0, %v5519
  %v5521 = vrot.slane %v5512, %v5520
  %v5523 = vmul.f32 %v5521, %v5513
  %v5524 = vmul.f32 %v5521, %v5514
  %v5525 = vmul.f32 %v5521, %v5515
  %v5526 = vmul.f32 %v5521, %v5516
  %v5527 = vld [vmem:[%s0] sm:$0xff]
  %v5528 = vld [vmem:[%s0 + $0x8] sm:$0xff]
  %v5529 = vld [vmem:[%s0 + $0x10] sm:$0xff]
  %v5530 = vld [vmem:[%s0 + $0x18] sm:$0xff]
  %v5531 = vadd.f32 %v5527, %v5508
  %v5532 = vadd.f32 %v5528, %v5509
  %v5533 = vadd.f32 %v5529, %v5510
  %v5534 = vadd.f32 %v5530, %v5511
  %v5535 = vmul.f32 %v5523, 1.442695
  %v5536 = vpow.pop %v5535
  %v5537 = vmul.f32 %v5524, 1.442695
  %v5538 = vpow.pop %v5537
  %v5539 = vmul.f32 %v5525, 1.442695
  %v5540 = vpow.pop %v5539
  %v5541 = vmul.f32 %v5526, 1.442695
  %v5542 = vpow.pop %v5541
  %v5543 = vmul.f32 %v5531, %v5536
  %v5544 = vmul.f32 %v5532, %v5538
  %v5545 = vmul.f32 %v5533, %v5540
  %v5546 = vmul.f32 %v5534, %v5542
  %5547 = vst.msk [vmem:[%s18] sm:$0xff] %vm75, %v5543
  %5548 = vst.msk [vmem:[%s18 + $0x8] sm:$0xff] %vm75, %v5544
  %5549 = vst.msk [vmem:[%s18 + $0x10] sm:$0xff] %vm75, %v5545
  %5550 = vst.msk [vmem:[%s18 + $0x18] sm:$0xff] %vm75, %v5546
  %v5551 = vsel %vm75, %v5523, 0.0
  %5552 = vadd.xlane.f32.xlu0 %v5551
  %v5553 = vpop.xlane.xlu0 %5552
  %v5554 = vsel %vm75, %v5524, 0.0
  %5555 = vadd.xlane.f32.xlu0 %v5554
  %v5556 = vpop.xlane.xlu0 %5555
  %v5557 = vsel %vm75, %v5525, 0.0
  %5558 = vadd.xlane.f32.xlu0 %v5557
  %v5559 = vpop.xlane.xlu0 %5558
  %v5560 = vsel %vm75, %v5526, 0.0
  %5561 = vadd.xlane.f32.xlu0 %v5560
  %v5562 = vpop.xlane.xlu0 %5561
  %v5567 = vlaneseq
  %v5568 = vand.u32 %v5567, 127
  %v5569 = vlaneseq
  %v5570 = vshrl.u32 %v5569, 7
  %v5571 = vsub.s32 %v5568, %v5570
  %v5572 = vrot.slane %v5553, %v5571
  %v5573 = vadd.s32 %v5568, 4294967288
  %v5574 = vlaneseq
  %v5575 = vshrl.u32 %v5574, 7
  %v5576 = vsub.s32 %v5573, %v5575
  %v5577 = vrot.slane %v5556, %v5576
  %vm5578 = vcmask 130112
  %v5579 = vsel %vm5578, %v5577, %v5572
  %v5580 = vlaneseq
  %v5581 = vshrl.u32 %v5580, 7
  %v5582 = vsub.s32 %v5568, %v5581
  %v5583 = vrot.slane %v5559, %v5582
  %v5584 = vlaneseq
  %v5585 = vshrl.u32 %v5584, 7
  %v5586 = vsub.s32 %v5573, %v5585
  %v5587 = vrot.slane %v5562, %v5586
  %v5588 = vsel %vm5578, %v5587, %v5583
  %vm5589 = vcmask 1041409
  %v5590 = vsel %vm5589, %v5588, %v5579
  %vm5592 = vcmask 123904
  %v5593 = vsel %vm5592, %v5590, 0.0
  %5594 = vadd.xlane.f32.xlu0 %v5593
  %v5595 = vpop.xlane.xlu0 %5594
  %v5596 = vld [vmem:[%s2] sm:$0x3]
  %v5597 = vadd.f32 %v5596, %v5595
  %vm5598 = vcmask 1024
  %5599 = vst.msk [vmem:[%s19] sm:$0x3] %vm5598, %v5597
  // Predicated region
  $region74: #{coupling_forward.1} parent=0 // pred_check
    _
  $region75: #{coupling_forward.1} parent=0 // pred_check_branch
    %5601 = sbr.rel (0) target = $region77
  $region76: #{coupling_forward.1} parent=0 // pred_region
    _
  $region77: #{coupling_forward.1} parent=0 // pred_fallthru
    _
  // Predicated region
  $region78: #{coupling_forward.1} parent=0 // pred_check
    _
  $region79: #{coupling_forward.1} parent=0 // pred_check_branch
    %5603 = sbr.rel (0) target = $region81
  $region80: #{coupling_forward.1} parent=0 // pred_region
    _
  $region81: #{coupling_forward.1} parent=0 // pred_fallthru
    _
  // Predicated region
  $region82: #{coupling_forward.1} parent=0 // pred_check
    _
  $region83: #{coupling_forward.1} parent=0 // pred_check_branch
    %5605 = sbr.rel (0) target = $region85
  $region84: #{coupling_forward.1} parent=0 // pred_region
    _
  $region85: #{coupling_forward.1} parent=0 // pred_fallthru
    _
  // Predicated region
  $region86: #{coupling_forward.1} parent=0 // pred_check
    _
  $region87: #{coupling_forward.1} parent=0 // pred_check_branch
    %5607 = sbr.rel (0) target = $region89
  $region88: #{coupling_forward.1} parent=0 // pred_region
    _
  $region89: #{coupling_forward.1} parent=0 // pred_fallthru
    _

</llo_original>
